<compile_context>
chip_gen: v6e
topology: v6e:2x2x1
jax: 0.10.0
libtpu: 0.0.40
codegen_flags: <defaults>
</compile_context>

<pallas_src>
import jax
import jax.numpy as jnp
from jax.experimental import pallas as pl
from jax.experimental.pallas import tpu as pltpu

EMBED = 128
HIDDEN = 128
N_LAYERS = 4
N_VOCAB = 256          # synthetic vocabulary size (len(dataset.uniq_words))
FC_HIDDEN = 256

# act_scr reuse (layer-0 input written into a (Tc,Bp,H) buffer) relies on this.
assert EMBED == HIDDEN


# ----------------------------------------------------------------------------
# Fused kernel body (one time chunk per grid step):
#   4 LSTM layers + FC head over a (Tc, Bp, ·) chunk.
#   Persistent scratch: per-layer recurrent state (L,Bp,H) x2, the chunk's
#   activation sequence (Tc,Bp,H), and the hoisted input-projection gates
#   (Tc,Bp,4H).  Gate column order inside the kernel is [i, f, o, g].
# ----------------------------------------------------------------------------
def _fused_lstm_fc_kernel(emb_ref, wih_ref, whh_ref, b_ref, h0_ref, c0_ref,
                          fcw1_ref, fcb1_ref, fcw2_ref, fcb2_ref,
                          logits_ref, hT_ref, cT_ref,
                          state_h_scr, state_c_scr, act_scr, gx_scr):
    tchunk = pl.program_id(0)
    n_chunks = pl.num_programs(0)
    Tc, Bp, _ = emb_ref.shape
    H = HIDDEN
    Vp = fcw2_ref.shape[1]

    # Seed persistent recurrent state from (h0, c0) on the first chunk.
    @pl.when(tchunk == 0)
    def _():
        state_h_scr[...] = h0_ref[...]
        state_c_scr[...] = c0_ref[...]

    # layer-0 input = this chunk's embeddings (already DMA'd to VMEM)
    act_scr[...] = emb_ref[...]

    for layer in range(N_LAYERS):                 # static unroll over layers
        wih_l = wih_ref[layer]                    # (128, 4H)
        whh_l = whh_ref[layer]                    # (H, 4H)
        b_l = b_ref[layer]                        # (1, 4H)

        # Hoisted input projection over the whole chunk (MXU-friendly rows).
        x_flat = act_scr[...].reshape(Tc * Bp, H)
        gx = jnp.dot(x_flat, wih_l, preferred_element_type=jnp.float32) + b_l
        gx_scr[...] = gx.reshape(Tc, Bp, 4 * H)

        # NOTE: a weight-stationary W_hh (pltpu.matmul_push_rhs once/layer,
        # matmul_acc_lhs per step) would shave the per-step weight push; kept
        # on jnp.dot here for portability/robustness across chip generations.
        def step(t, carry):
            h, c = carry                                   # vreg-resident state
            gates = (jnp.dot(h, whh_l, preferred_element_type=jnp.float32)
                     + gx_scr[t])                          # (Bp, 4H)
            # sigmoid(x) = 0.5*tanh(0.5x)+0.5 : one EUP push for the i|f|o slab
            sig = 0.5 * jnp.tanh(0.5 * gates[:, :3 * H]) + 0.5
            i_g = sig[:, 0 * H:1 * H]
            f_g = sig[:, 1 * H:2 * H]
            o_g = sig[:, 2 * H:3 * H]
            g_g = jnp.tanh(gates[:, 3 * H:4 * H])
            c_new = f_g * c + i_g * g_g
            h_new = o_g * jnp.tanh(c_new)
            act_scr[t] = h_new                             # next layer's input
            return (h_new, c_new)

        h_fin, c_fin = jax.lax.fori_loop(
            0, Tc, step, (state_h_scr[layer], state_c_scr[layer]),
            unroll=True if Tc <= 8 else 8)

        # per-layer state writeback once per chunk (not per timestep)
        state_h_scr[layer] = h_fin
        state_c_scr[layer] = c_fin

    # FC head for this chunk: (Tc*Bp,H)@(H,256) -> (Tc*Bp,256)@(256,Vp)
    y_flat = act_scr[...].reshape(Tc * Bp, H)
    hid = jnp.dot(y_flat, fcw1_ref[...],
                  preferred_element_type=jnp.float32) + fcb1_ref[...]
    logits = jnp.dot(hid, fcw2_ref[...],
                     preferred_element_type=jnp.float32) + fcb2_ref[...]
    logits_ref[...] = logits.reshape(Tc, Bp, Vp)

    # Final recurrent state, written once at the last chunk.
    @pl.when(tchunk == n_chunks - 1)
    def _():
        hT_ref[...] = state_h_scr[...]
        cT_ref[...] = state_c_scr[...]


def _vmem_limit_bytes(Tc, Bp, Vp):
    f = 4
    H, E, L = HIDDEN, EMBED, N_LAYERS
    needed = (
        2 * Tc * Bp * E * f                 # emb in, double-buffered
        + 2 * Tc * Bp * Vp * f              # logits out, double-buffered
        + 4 * L * Bp * H * f                # h0/c0 in + hT/cT out
        + L * E * 4 * H * f + L * H * 4 * H * f + L * 4 * H * f     # lstm W,b
        + H * FC_HIDDEN * f + FC_HIDDEN * f + FC_HIDDEN * Vp * f + Vp * f
        + 2 * L * Bp * H * f                # persistent state scratch
        + Tc * Bp * H * f                   # act scratch
        + Tc * Bp * 4 * H * f               # gx scratch
    )
    try:
        cap = pltpu.get_tpu_info().vmem_capacity_bytes
    except Exception:
        cap = 64 * 1024 * 1024              # conservative (v7x per-TC)
    hard_cap = min(int(cap * 7 // 8), 100 * 1024 * 1024)
    return max(min(2 * needed + (4 << 20), hard_cap),
               min(needed + (2 << 20), hard_cap))


def fused_forward(embed_p, wih, whh, b, h0_p, c0_p, fc_w1, fc_b1, fc_w2, fc_b2,
                  time_chunk=8):
    T, Bp, E = embed_p.shape
    L = wih.shape[0]
    H = HIDDEN
    Vp = fc_w2.shape[1]
    Tc = time_chunk if (T % time_chunk == 0) else T
    n_chunks = T // Tc

    return pl.pallas_call(
        _fused_lstm_fc_kernel,
        out_shape=(jax.ShapeDtypeStruct((T, Bp, Vp), jnp.float32),
                   jax.ShapeDtypeStruct((L, Bp, H), jnp.float32),
                   jax.ShapeDtypeStruct((L, Bp, H), jnp.float32)),
        grid_spec=pltpu.PrefetchScalarGridSpec(
            num_scalar_prefetch=0,
            grid=(n_chunks,),
            in_specs=[
                pl.BlockSpec((Tc, Bp, E), lambda t: (t, 0, 0)),        # emb
                pl.BlockSpec((L, E, 4 * H), lambda t: (0, 0, 0)),      # W_ih
                pl.BlockSpec((L, H, 4 * H), lambda t: (0, 0, 0)),      # W_hh
                pl.BlockSpec((L, 1, 4 * H), lambda t: (0, 0, 0)),      # bias
                pl.BlockSpec((L, Bp, H), lambda t: (0, 0, 0)),         # h0
                pl.BlockSpec((L, Bp, H), lambda t: (0, 0, 0)),         # c0
                pl.BlockSpec((H, FC_HIDDEN), lambda t: (0, 0)),        # fc_w1
                pl.BlockSpec((1, FC_HIDDEN), lambda t: (0, 0)),        # fc_b1
                pl.BlockSpec((FC_HIDDEN, Vp), lambda t: (0, 0)),       # fc_w2
                pl.BlockSpec((1, Vp), lambda t: (0, 0)),               # fc_b2
            ],
            out_specs=(
                pl.BlockSpec((Tc, Bp, Vp), lambda t: (t, 0, 0)),       # logits
                pl.BlockSpec((L, Bp, H), lambda t: (0, 0, 0)),         # hT
                pl.BlockSpec((L, Bp, H), lambda t: (0, 0, 0)),         # cT
            ),
            scratch_shapes=[
                pltpu.VMEM((L, Bp, H), jnp.float32),       # persistent h state
                pltpu.VMEM((L, Bp, H), jnp.float32),       # persistent c state
                pltpu.VMEM((Tc, Bp, H), jnp.float32),      # chunk activations
                pltpu.VMEM((Tc, Bp, 4 * H), jnp.float32),  # hoisted gates_x
            ]),
        compiler_params=pltpu.CompilerParams(
            dimension_semantics=("arbitrary",),
            vmem_limit_bytes=_vmem_limit_bytes(Tc, Bp, Vp)),
    )(embed_p, wih, whh, b, h0_p, c0_p, fc_w1, fc_b1, fc_w2, fc_b2)


# ----------------------------------------------------------------------------
# Parameter packing: stack layers and reorder gate columns [i,f,g,o] -> [i,f,o,g]
# ----------------------------------------------------------------------------
def _reorder_gate_cols(w):
    H = HIDDEN
    return jnp.concatenate([w[..., :2 * H],          # i, f
                            w[..., 3 * H:4 * H],     # o
                            w[..., 2 * H:3 * H]],    # g
                           axis=-1)


def pack_params(params):
    return {
        "wih": jnp.stack([_reorder_gate_cols(w) for w in params["w_ih_t"]]),
        "whh": jnp.stack([_reorder_gate_cols(w) for w in params["w_hh_t"]]),
        "b": jnp.stack([_reorder_gate_cols(bb) for bb in params["b"]]),
        "fc_w1": params["fc_w1_t"], "fc_b1": params["fc_b1"],
        "fc_w2": params["fc_w2_t"], "fc_b2": params["fc_b2"],
    }


# ----------------------------------------------------------------------------
# Full model forward (wrapper: embedding gather + padding + fused kernel)
# ----------------------------------------------------------------------------
def model_forward(params, x_ids, prev_state):
    h0_all, c0_all = prev_state                           # (L, B, H) each
    T, B = x_ids.shape
    embed = jnp.take(params["embedding"], x_ids, axis=0)  # (T, B, EMBED), glue

    # pad batch to a multiple of 8 so (B, H) tiles fill sublanes / MXU rows;
    # for real workloads, pack more sequences upstream (toward 128/256 rows).
    Bp = max(8, ((B + 7) // 8) * 8)
    pad_b = Bp - B
    if pad_b:
        embed = jnp.pad(embed, ((0, 0), (0, pad_b), (0, 0)))
        h0_all = jnp.pad(h0_all, ((0, 0), (0, pad_b), (0, 0)))
        c0_all = jnp.pad(c0_all, ((0, 0), (0, pad_b), (0, 0)))

    p = pack_params(params)

    # pad vocab to a multiple of 128 so the logits store is lane-dense
    V = p["fc_w2"].shape[1]
    Vp = ((V + 127) // 128) * 128
    pad_v = Vp - V
    fc_w2 = jnp.pad(p["fc_w2"], ((0, 0), (0, pad_v))) if pad_v else p["fc_w2"]
    fc_b2 = jnp.pad(p["fc_b2"], ((0, 0), (0, pad_v))) if pad_v else p["fc_b2"]

    logits_p, hT_p, cT_p = fused_forward(
        embed, p["wih"], p["whh"], p["b"], h0_all, c0_all,
        p["fc_w1"], p["fc_b1"], fc_w2, fc_b2)

    return logits_p[:, :B, :V], (hT_p[:, :B], cT_p[:, :B])


# ----------------------------------------------------------------------------
# Pure-JAX reference (for correctness check) — PyTorch gate order [i, f, g, o]
# ----------------------------------------------------------------------------
def reference_forward(params, x_ids, prev_state):
    h0_all, c0_all = prev_state
    embed = jnp.take(params["embedding"], x_ids, axis=0)

    layer_in = embed
    h_fin, c_fin = [], []
    for layer in range(N_LAYERS):
        w_ih_t = params["w_ih_t"][layer]
        w_hh_t = params["w_hh_t"][layer]
        b = params["b"][layer]

        def step(carry, x_t):
            h, c = carry
            g = x_t @ w_ih_t + h @ w_hh_t + b
            H = HIDDEN
            i = jax.nn.sigmoid(g[:, :H])
            f = jax.nn.sigmoid(g[:, H:2 * H])
            gg = jnp.tanh(g[:, 2 * H:3 * H])
            o = jax.nn.sigmoid(g[:, 3 * H:])
            c_new = f * c + i * gg
            h_new = o * jnp.tanh(c_new)
            return (h_new, c_new), h_new

        (hT, cT), ys = jax.lax.scan(step, (h0_all[layer], c0_all[layer]), layer_in)
        layer_in = ys
        h_fin.append(hT)
        c_fin.append(cT)

    h1 = layer_in @ params["fc_w1_t"] + params["fc_b1"]
    logits = h1 @ params["fc_w2_t"] + params["fc_b2"]
    return logits, (jnp.stack(h_fin), jnp.stack(c_fin))


def init_params(key):
    ks = jax.random.split(key, 16)
    s = 0.05
    params = {
        "embedding": jax.random.normal(ks[0], (N_VOCAB, EMBED), jnp.float32) * s,
        "w_ih_t": [], "w_hh_t": [], "b": [],
        "fc_w1_t": jax.random.normal(ks[1], (HIDDEN, FC_HIDDEN), jnp.float32) * s,
        "fc_b1": jax.random.normal(ks[2], (1, FC_HIDDEN), jnp.float32) * s,
        "fc_w2_t": jax.random.normal(ks[3], (FC_HIDDEN, N_VOCAB), jnp.float32) * s,
        "fc_b2": jax.random.normal(ks[4], (1, N_VOCAB), jnp.float32) * s,
    }
    for layer in range(N_LAYERS):
        in_dim = EMBED if layer == 0 else HIDDEN
        kk = jax.random.split(ks[5 + layer], 4)
        # stored transposed: (in_dim, 4H) / (H, 4H); bias = b_ih + b_hh folded.
        params["w_ih_t"].append(
            jax.random.normal(kk[0], (in_dim, 4 * HIDDEN), jnp.float32) * s)
        params["w_hh_t"].append(
            jax.random.normal(kk[1], (HIDDEN, 4 * HIDDEN), jnp.float32) * s)
        params["b"].append(
            jax.random.normal(kk[2], (1, 4 * HIDDEN), jnp.float32) * s)
    return params


if __name__ == "__main__":
    key = jax.random.PRNGKey(0)
    params = init_params(key)

    # T=16 exercises the time-chunk grid (Tc=8 -> 2 chunks, state carried
    # across chunks in persistent VMEM scratch).
    T, B = 16, 4
    x_ids = jax.random.randint(jax.random.PRNGKey(1), (T, B), 0, N_VOCAB,
                               dtype=jnp.int32)
    prev_state = (jnp.zeros((N_LAYERS, B, HIDDEN), jnp.float32),
                  jnp.zeros((N_LAYERS, B, HIDDEN), jnp.float32))

    logits, (h_n, c_n) = model_forward(params, x_ids, prev_state)
    jax.block_until_ready((logits, h_n, c_n))

    ref_logits, (ref_h, ref_c) = reference_forward(params, x_ids, prev_state)
    assert logits.shape == (T, B, N_VOCAB)
    assert h_n.shape == (N_LAYERS, B, HIDDEN) and c_n.shape == (N_LAYERS, B, HIDDEN)
    assert jnp.allclose(logits, ref_logits, atol=1e-4)
    assert jnp.allclose(h_n, ref_h, atol=1e-4)
    assert jnp.allclose(c_n, ref_c, atol=1e-4)

    print("KERNEL_OK")
</pallas_src>

<mosaic_0001>
module attributes {stable_mosaic.version = 11 : i64} {
  func.func @_fused_lstm_fc_kernel(%arg0: i32, %arg1: memref<8x8x128xf32, #tpu.memory_space<vmem>>, %arg2: memref<4x128x512xf32, #tpu.memory_space<vmem>>, %arg3: memref<4x128x512xf32, #tpu.memory_space<vmem>>, %arg4: memref<4x1x512xf32, #tpu.memory_space<vmem>>, %arg5: memref<4x8x128xf32, #tpu.memory_space<vmem>>, %arg6: memref<4x8x128xf32, #tpu.memory_space<vmem>>, %arg7: memref<128x256xf32, #tpu.memory_space<vmem>>, %arg8: memref<1x256xf32, #tpu.memory_space<vmem>>, %arg9: memref<256x256xf32, #tpu.memory_space<vmem>>, %arg10: memref<1x256xf32, #tpu.memory_space<vmem>>, %arg11: memref<8x8x256xf32, #tpu.memory_space<vmem>>, %arg12: memref<4x8x128xf32, #tpu.memory_space<vmem>>, %arg13: memref<4x8x128xf32, #tpu.memory_space<vmem>>, %arg14: memref<4x8x128xf32, #tpu.memory_space<vmem>>, %arg15: memref<4x8x128xf32, #tpu.memory_space<vmem>>, %arg16: memref<8x8x128xf32, #tpu.memory_space<vmem>>, %arg17: memref<8x8x512xf32, #tpu.memory_space<vmem>>) attributes {dimension_semantics = [#tpu.dimension_semantics<arbitrary>], iteration_bounds = array<i64: 2>, scalar_prefetch = 0 : i64, scratch_operands = 4 : i64, tpu.core_type = #tpu.core_type<tc>, window_params = [{transform_indices = @transform_0, window_bounds = array<i64: 8, 8, 128>}, {pipeline_mode = #tpu.pipeline_mode<synchronous>, transform_indices = @transform_1, window_bounds = array<i64: 4, 128, 512>}, {pipeline_mode = #tpu.pipeline_mode<synchronous>, transform_indices = @transform_2, window_bounds = array<i64: 4, 128, 512>}, {pipeline_mode = #tpu.pipeline_mode<synchronous>, transform_indices = @transform_3, window_bounds = array<i64: 4, 1, 512>}, {pipeline_mode = #tpu.pipeline_mode<synchronous>, transform_indices = @transform_4, window_bounds = array<i64: 4, 8, 128>}, {pipeline_mode = #tpu.pipeline_mode<synchronous>, transform_indices = @transform_5, window_bounds = array<i64: 4, 8, 128>}, {pipeline_mode = #tpu.pipeline_mode<synchronous>, transform_indices = @transform_6, window_bounds = array<i64: 128, 256>}, {pipeline_mode = #tpu.pipeline_mode<synchronous>, transform_indices = @transform_7, window_bounds = array<i64: 1, 256>}, {pipeline_mode = #tpu.pipeline_mode<synchronous>, transform_indices = @transform_8, window_bounds = array<i64: 256, 256>}, {pipeline_mode = #tpu.pipeline_mode<synchronous>, transform_indices = @transform_9, window_bounds = array<i64: 1, 256>}, {transform_indices = @transform_10, window_bounds = array<i64: 8, 8, 256>}, {pipeline_mode = #tpu.pipeline_mode<synchronous>, transform_indices = @transform_11, window_bounds = array<i64: 4, 8, 128>}, {pipeline_mode = #tpu.pipeline_mode<synchronous>, transform_indices = @transform_12, window_bounds = array<i64: 4, 8, 128>}]} {
    %c0_i32 = arith.constant 0 : i32
    %0 = arith.cmpi eq, %arg0, %c0_i32 : i32
    %1 = arith.extui %0 : i1 to i32
    %c0_i32_0 = arith.constant 0 : i32
    %2 = arith.cmpi ne, %1, %c0_i32_0 : i32
    scf.if %2 {
      %c0_416 = arith.constant 0 : index
      %c0_417 = arith.constant 0 : index
      %c0_418 = arith.constant 0 : index
      %978 = vector.load %arg5[%c0_416, %c0_417, %c0_418] : memref<4x8x128xf32, #tpu.memory_space<vmem>>, vector<4x8x128xf32>
      %c0_419 = arith.constant 0 : index
      %c0_420 = arith.constant 0 : index
      %c0_421 = arith.constant 0 : index
      %979 = vector.load %arg14[%c0_419, %c0_420, %c0_421] : memref<4x8x128xf32, #tpu.memory_space<vmem>>, vector<4x8x128xf32>
      tpu.vector_store %arg14[%c0_419, %c0_420, %c0_421], %978 {strides = array<i32>} : memref<4x8x128xf32, #tpu.memory_space<vmem>>, vector<4x8x128xf32>,
      %c0_422 = arith.constant 0 : index
      %c0_423 = arith.constant 0 : index
      %c0_424 = arith.constant 0 : index
      %980 = vector.load %arg6[%c0_422, %c0_423, %c0_424] : memref<4x8x128xf32, #tpu.memory_space<vmem>>, vector<4x8x128xf32>
      %c0_425 = arith.constant 0 : index
      %c0_426 = arith.constant 0 : index
      %c0_427 = arith.constant 0 : index
      %981 = vector.load %arg15[%c0_425, %c0_426, %c0_427] : memref<4x8x128xf32, #tpu.memory_space<vmem>>, vector<4x8x128xf32>
      tpu.vector_store %arg15[%c0_425, %c0_426, %c0_427], %980 {strides = array<i32>} : memref<4x8x128xf32, #tpu.memory_space<vmem>>, vector<4x8x128xf32>,
    } else {
    }
    %c0 = arith.constant 0 : index
    %c0_1 = arith.constant 0 : index
    %c0_2 = arith.constant 0 : index
    %3 = vector.load %arg1[%c0, %c0_1, %c0_2] : memref<8x8x128xf32, #tpu.memory_space<vmem>>, vector<8x8x128xf32>
    %c0_3 = arith.constant 0 : index
    %c0_4 = arith.constant 0 : index
    %c0_5 = arith.constant 0 : index
    %4 = vector.load %arg16[%c0_3, %c0_4, %c0_5] : memref<8x8x128xf32, #tpu.memory_space<vmem>>, vector<8x8x128xf32>
    tpu.vector_store %arg16[%c0_3, %c0_4, %c0_5], %3 {strides = array<i32>} : memref<8x8x128xf32, #tpu.memory_space<vmem>>, vector<8x8x128xf32>,
    %c0_6 = arith.constant 0 : index
    %c0_7 = arith.constant 0 : index
    %c0_8 = arith.constant 0 : index
    %5 = vector.load %arg2[%c0_6, %c0_7, %c0_8] : memref<4x128x512xf32, #tpu.memory_space<vmem>>, vector<1x128x512xf32>
    %6 = vector.shape_cast %5 : vector<1x128x512xf32> to vector<128x512xf32>
    %c0_9 = arith.constant 0 : index
    %c0_10 = arith.constant 0 : index
    %c0_11 = arith.constant 0 : index
    %7 = vector.load %arg3[%c0_9, %c0_10, %c0_11] : memref<4x128x512xf32, #tpu.memory_space<vmem>>, vector<1x128x512xf32>
    %8 = vector.shape_cast %7 : vector<1x128x512xf32> to vector<128x512xf32>
    %c0_12 = arith.constant 0 : index
    %c0_13 = arith.constant 0 : index
    %c0_14 = arith.constant 0 : index
    %9 = vector.load %arg4[%c0_12, %c0_13, %c0_14] : memref<4x1x512xf32, #tpu.memory_space<vmem>>, vector<1x1x512xf32>
    %10 = vector.shape_cast %9 : vector<1x1x512xf32> to vector<1x512xf32>
    %c0_15 = arith.constant 0 : index
    %c0_16 = arith.constant 0 : index
    %c0_17 = arith.constant 0 : index
    %11 = vector.load %arg16[%c0_15, %c0_16, %c0_17] : memref<8x8x128xf32, #tpu.memory_space<vmem>>, vector<8x8x128xf32>
    %12 = vector.shape_cast %11 : vector<8x8x128xf32> to vector<64x128xf32>
    %cst = arith.constant dense<0.000000e+00> : vector<64x512xf32>
    %13 = tpu.matmul %12, %6, %cst {dimension_numbers = #tpu.dot_dimension_numbers<[1], [0], [0], [1], [0, 0, 1, 1], [], []>} : vector<64x128xf32>, vector<128x512xf32>, vector<64x512xf32> -> vector<64x512xf32>
    %14 = vector.broadcast %10 : vector<1x512xf32> to vector<64x512xf32>
    %15 = arith.addf %13, %14 : vector<64x512xf32>
    %16 = vector.shape_cast %15 : vector<64x512xf32> to vector<8x8x512xf32>
    %c0_18 = arith.constant 0 : index
    %c0_19 = arith.constant 0 : index
    %c0_20 = arith.constant 0 : index
    %17 = vector.load %arg17[%c0_18, %c0_19, %c0_20] : memref<8x8x512xf32, #tpu.memory_space<vmem>>, vector<8x8x512xf32>
    tpu.vector_store %arg17[%c0_18, %c0_19, %c0_20], %16 {strides = array<i32>} : memref<8x8x512xf32, #tpu.memory_space<vmem>>, vector<8x8x512xf32>,
    %c0_21 = arith.constant 0 : index
    %c0_22 = arith.constant 0 : index
    %c0_23 = arith.constant 0 : index
    %18 = vector.load %arg14[%c0_21, %c0_22, %c0_23] : memref<4x8x128xf32, #tpu.memory_space<vmem>>, vector<1x8x128xf32>
    %19 = vector.shape_cast %18 : vector<1x8x128xf32> to vector<8x128xf32>
    %c0_24 = arith.constant 0 : index
    %c0_25 = arith.constant 0 : index
    %c0_26 = arith.constant 0 : index
    %20 = vector.load %arg15[%c0_24, %c0_25, %c0_26] : memref<4x8x128xf32, #tpu.memory_space<vmem>>, vector<1x8x128xf32>
    %21 = vector.shape_cast %20 : vector<1x8x128xf32> to vector<8x128xf32>
    %c0_i32_27 = arith.constant 0 : i32
    %cst_28 = arith.constant dense<0.000000e+00> : vector<8x512xf32>
    %22 = tpu.matmul %19, %8, %cst_28 {dimension_numbers = #tpu.dot_dimension_numbers<[1], [0], [0], [1], [0, 0, 1, 1], [], []>} : vector<8x128xf32>, vector<128x512xf32>, vector<8x512xf32> -> vector<8x512xf32>
    %23 = arith.index_cast %c0_i32_27 : i32 to index
    %c0_29 = arith.constant 0 : index
    %c0_30 = arith.constant 0 : index
    %24 = vector.load %arg17[%23, %c0_29, %c0_30] : memref<8x8x512xf32, #tpu.memory_space<vmem>>, vector<1x8x512xf32>
    %25 = vector.shape_cast %24 : vector<1x8x512xf32> to vector<8x512xf32>
    %26 = arith.addf %22, %25 : vector<8x512xf32>
    %27 = vector.extract_strided_slice %26 {offsets = [0, 0], sizes = [8, 384], strides = [1, 1]} : vector<8x512xf32> to vector<8x384xf32>
    %cst_31 = arith.constant 5.000000e-01 : f32
    %28 = vector.broadcast %cst_31 : f32 to vector<8x384xf32>
    %29 = arith.mulf %28, %27 : vector<8x384xf32>
    %30 = math.tanh %29 : vector<8x384xf32>
    %cst_32 = arith.constant 5.000000e-01 : f32
    %31 = vector.broadcast %cst_32 : f32 to vector<8x384xf32>
    %32 = arith.mulf %31, %30 : vector<8x384xf32>
    %cst_33 = arith.constant 5.000000e-01 : f32
    %33 = vector.broadcast %cst_33 : f32 to vector<8x384xf32>
    %34 = arith.addf %32, %33 : vector<8x384xf32>
    %35 = vector.extract_strided_slice %34 {offsets = [0, 0], sizes = [8, 128], strides = [1, 1]} : vector<8x384xf32> to vector<8x128xf32>
    %36 = vector.extract_strided_slice %34 {offsets = [0, 128], sizes = [8, 128], strides = [1, 1]} : vector<8x384xf32> to vector<8x128xf32>
    %37 = vector.extract_strided_slice %34 {offsets = [0, 256], sizes = [8, 128], strides = [1, 1]} : vector<8x384xf32> to vector<8x128xf32>
    %38 = vector.extract_strided_slice %26 {offsets = [0, 384], sizes = [8, 128], strides = [1, 1]} : vector<8x512xf32> to vector<8x128xf32>
    %39 = math.tanh %38 : vector<8x128xf32>
    %40 = arith.mulf %36, %21 : vector<8x128xf32>
    %41 = arith.mulf %35, %39 : vector<8x128xf32>
    %42 = arith.addf %40, %41 : vector<8x128xf32>
    %43 = math.tanh %42 : vector<8x128xf32>
    %44 = arith.mulf %37, %43 : vector<8x128xf32>
    %45 = arith.index_cast %c0_i32_27 : i32 to index
    %c0_34 = arith.constant 0 : index
    %c0_35 = arith.constant 0 : index
    %46 = vector.load %arg16[%45, %c0_34, %c0_35] : memref<8x8x128xf32, #tpu.memory_space<vmem>>, vector<1x8x128xf32>
    %47 = vector.shape_cast %46 : vector<1x8x128xf32> to vector<8x128xf32>
    %48 = vector.shape_cast %44 : vector<8x128xf32> to vector<1x8x128xf32>
    tpu.vector_store %arg16[%45, %c0_34, %c0_35], %48 {strides = array<i32>} : memref<8x8x128xf32, #tpu.memory_space<vmem>>, vector<1x8x128xf32>,
    %c1_i32 = arith.constant 1 : i32
    %cst_36 = arith.constant dense<0.000000e+00> : vector<8x512xf32>
    %49 = tpu.matmul %44, %8, %cst_36 {dimension_numbers = #tpu.dot_dimension_numbers<[1], [0], [0], [1], [0, 0, 1, 1], [], []>} : vector<8x128xf32>, vector<128x512xf32>, vector<8x512xf32> -> vector<8x512xf32>
    %50 = arith.index_cast %c1_i32 : i32 to index
    %c0_37 = arith.constant 0 : index
    %c0_38 = arith.constant 0 : index
    %51 = vector.load %arg17[%50, %c0_37, %c0_38] : memref<8x8x512xf32, #tpu.memory_space<vmem>>, vector<1x8x512xf32>
    %52 = vector.shape_cast %51 : vector<1x8x512xf32> to vector<8x512xf32>
    %53 = arith.addf %49, %52 : vector<8x512xf32>
    %54 = vector.extract_strided_slice %53 {offsets = [0, 0], sizes = [8, 384], strides = [1, 1]} : vector<8x512xf32> to vector<8x384xf32>
    %cst_39 = arith.constant 5.000000e-01 : f32
    %55 = vector.broadcast %cst_39 : f32 to vector<8x384xf32>
    %56 = arith.mulf %55, %54 : vector<8x384xf32>
    %57 = math.tanh %56 : vector<8x384xf32>
    %cst_40 = arith.constant 5.000000e-01 : f32
    %58 = vector.broadcast %cst_40 : f32 to vector<8x384xf32>
    %59 = arith.mulf %58, %57 : vector<8x384xf32>
    %cst_41 = arith.constant 5.000000e-01 : f32
    %60 = vector.broadcast %cst_41 : f32 to vector<8x384xf32>
    %61 = arith.addf %59, %60 : vector<8x384xf32>
    %62 = vector.extract_strided_slice %61 {offsets = [0, 0], sizes = [8, 128], strides = [1, 1]} : vector<8x384xf32> to vector<8x128xf32>
    %63 = vector.extract_strided_slice %61 {offsets = [0, 128], sizes = [8, 128], strides = [1, 1]} : vector<8x384xf32> to vector<8x128xf32>
    %64 = vector.extract_strided_slice %61 {offsets = [0, 256], sizes = [8, 128], strides = [1, 1]} : vector<8x384xf32> to vector<8x128xf32>
    %65 = vector.extract_strided_slice %53 {offsets = [0, 384], sizes = [8, 128], strides = [1, 1]} : vector<8x512xf32> to vector<8x128xf32>
    %66 = math.tanh %65 : vector<8x128xf32>
    %67 = arith.mulf %63, %42 : vector<8x128xf32>
    %68 = arith.mulf %62, %66 : vector<8x128xf32>
    %69 = arith.addf %67, %68 : vector<8x128xf32>
    %70 = math.tanh %69 : vector<8x128xf32>
    %71 = arith.mulf %64, %70 : vector<8x128xf32>
    %72 = arith.index_cast %c1_i32 : i32 to index
    %c0_42 = arith.constant 0 : index
    %c0_43 = arith.constant 0 : index
    %73 = vector.load %arg16[%72, %c0_42, %c0_43] : memref<8x8x128xf32, #tpu.memory_space<vmem>>, vector<1x8x128xf32>
    %74 = vector.shape_cast %73 : vector<1x8x128xf32> to vector<8x128xf32>
    %75 = vector.shape_cast %71 : vector<8x128xf32> to vector<1x8x128xf32>
    tpu.vector_store %arg16[%72, %c0_42, %c0_43], %75 {strides = array<i32>} : memref<8x8x128xf32, #tpu.memory_space<vmem>>, vector<1x8x128xf32>,
    %c2_i32 = arith.constant 2 : i32
    %cst_44 = arith.constant dense<0.000000e+00> : vector<8x512xf32>
    %76 = tpu.matmul %71, %8, %cst_44 {dimension_numbers = #tpu.dot_dimension_numbers<[1], [0], [0], [1], [0, 0, 1, 1], [], []>} : vector<8x128xf32>, vector<128x512xf32>, vector<8x512xf32> -> vector<8x512xf32>
    %77 = arith.index_cast %c2_i32 : i32 to index
    %c0_45 = arith.constant 0 : index
    %c0_46 = arith.constant 0 : index
    %78 = vector.load %arg17[%77, %c0_45, %c0_46] : memref<8x8x512xf32, #tpu.memory_space<vmem>>, vector<1x8x512xf32>
    %79 = vector.shape_cast %78 : vector<1x8x512xf32> to vector<8x512xf32>
    %80 = arith.addf %76, %79 : vector<8x512xf32>
    %81 = vector.extract_strided_slice %80 {offsets = [0, 0], sizes = [8, 384], strides = [1, 1]} : vector<8x512xf32> to vector<8x384xf32>
    %cst_47 = arith.constant 5.000000e-01 : f32
    %82 = vector.broadcast %cst_47 : f32 to vector<8x384xf32>
    %83 = arith.mulf %82, %81 : vector<8x384xf32>
    %84 = math.tanh %83 : vector<8x384xf32>
    %cst_48 = arith.constant 5.000000e-01 : f32
    %85 = vector.broadcast %cst_48 : f32 to vector<8x384xf32>
    %86 = arith.mulf %85, %84 : vector<8x384xf32>
    %cst_49 = arith.constant 5.000000e-01 : f32
    %87 = vector.broadcast %cst_49 : f32 to vector<8x384xf32>
    %88 = arith.addf %86, %87 : vector<8x384xf32>
    %89 = vector.extract_strided_slice %88 {offsets = [0, 0], sizes = [8, 128], strides = [1, 1]} : vector<8x384xf32> to vector<8x128xf32>
    %90 = vector.extract_strided_slice %88 {offsets = [0, 128], sizes = [8, 128], strides = [1, 1]} : vector<8x384xf32> to vector<8x128xf32>
    %91 = vector.extract_strided_slice %88 {offsets = [0, 256], sizes = [8, 128], strides = [1, 1]} : vector<8x384xf32> to vector<8x128xf32>
    %92 = vector.extract_strided_slice %80 {offsets = [0, 384], sizes = [8, 128], strides = [1, 1]} : vector<8x512xf32> to vector<8x128xf32>
    %93 = math.tanh %92 : vector<8x128xf32>
    %94 = arith.mulf %90, %69 : vector<8x128xf32>
    %95 = arith.mulf %89, %93 : vector<8x128xf32>
    %96 = arith.addf %94, %95 : vector<8x128xf32>
    %97 = math.tanh %96 : vector<8x128xf32>
    %98 = arith.mulf %91, %97 : vector<8x128xf32>
    %99 = arith.index_cast %c2_i32 : i32 to index
    %c0_50 = arith.constant 0 : index
    %c0_51 = arith.constant 0 : index
    %100 = vector.load %arg16[%99, %c0_50, %c0_51] : memref<8x8x128xf32, #tpu.memory_space<vmem>>, vector<1x8x128xf32>
    %101 = vector.shape_cast %100 : vector<1x8x128xf32> to vector<8x128xf32>
    %102 = vector.shape_cast %98 : vector<8x128xf32> to vector<1x8x128xf32>
    tpu.vector_store %arg16[%99, %c0_50, %c0_51], %102 {strides = array<i32>} : memref<8x8x128xf32, #tpu.memory_space<vmem>>, vector<1x8x128xf32>,
    %c3_i32 = arith.constant 3 : i32
    %cst_52 = arith.constant dense<0.000000e+00> : vector<8x512xf32>
    %103 = tpu.matmul %98, %8, %cst_52 {dimension_numbers = #tpu.dot_dimension_numbers<[1], [0], [0], [1], [0, 0, 1, 1], [], []>} : vector<8x128xf32>, vector<128x512xf32>, vector<8x512xf32> -> vector<8x512xf32>
    %104 = arith.index_cast %c3_i32 : i32 to index
    %c0_53 = arith.constant 0 : index
    %c0_54 = arith.constant 0 : index
    %105 = vector.load %arg17[%104, %c0_53, %c0_54] : memref<8x8x512xf32, #tpu.memory_space<vmem>>, vector<1x8x512xf32>
    %106 = vector.shape_cast %105 : vector<1x8x512xf32> to vector<8x512xf32>
    %107 = arith.addf %103, %106 : vector<8x512xf32>
    %108 = vector.extract_strided_slice %107 {offsets = [0, 0], sizes = [8, 384], strides = [1, 1]} : vector<8x512xf32> to vector<8x384xf32>
    %cst_55 = arith.constant 5.000000e-01 : f32
    %109 = vector.broadcast %cst_55 : f32 to vector<8x384xf32>
    %110 = arith.mulf %109, %108 : vector<8x384xf32>
    %111 = math.tanh %110 : vector<8x384xf32>
    %cst_56 = arith.constant 5.000000e-01 : f32
    %112 = vector.broadcast %cst_56 : f32 to vector<8x384xf32>
    %113 = arith.mulf %112, %111 : vector<8x384xf32>
    %cst_57 = arith.constant 5.000000e-01 : f32
    %114 = vector.broadcast %cst_57 : f32 to vector<8x384xf32>
    %115 = arith.addf %113, %114 : vector<8x384xf32>
    %116 = vector.extract_strided_slice %115 {offsets = [0, 0], sizes = [8, 128], strides = [1, 1]} : vector<8x384xf32> to vector<8x128xf32>
    %117 = vector.extract_strided_slice %115 {offsets = [0, 128], sizes = [8, 128], strides = [1, 1]} : vector<8x384xf32> to vector<8x128xf32>
    %118 = vector.extract_strided_slice %115 {offsets = [0, 256], sizes = [8, 128], strides = [1, 1]} : vector<8x384xf32> to vector<8x128xf32>
    %119 = vector.extract_strided_slice %107 {offsets = [0, 384], sizes = [8, 128], strides = [1, 1]} : vector<8x512xf32> to vector<8x128xf32>
    %120 = math.tanh %119 : vector<8x128xf32>
    %121 = arith.mulf %117, %96 : vector<8x128xf32>
    %122 = arith.mulf %116, %120 : vector<8x128xf32>
    %123 = arith.addf %121, %122 : vector<8x128xf32>
    %124 = math.tanh %123 : vector<8x128xf32>
    %125 = arith.mulf %118, %124 : vector<8x128xf32>
    %126 = arith.index_cast %c3_i32 : i32 to index
    %c0_58 = arith.constant 0 : index
    %c0_59 = arith.constant 0 : index
    %127 = vector.load %arg16[%126, %c0_58, %c0_59] : memref<8x8x128xf32, #tpu.memory_space<vmem>>, vector<1x8x128xf32>
    %128 = vector.shape_cast %127 : vector<1x8x128xf32> to vector<8x128xf32>
    %129 = vector.shape_cast %125 : vector<8x128xf32> to vector<1x8x128xf32>
    tpu.vector_store %arg16[%126, %c0_58, %c0_59], %129 {strides = array<i32>} : memref<8x8x128xf32, #tpu.memory_space<vmem>>, vector<1x8x128xf32>,
    %c4_i32 = arith.constant 4 : i32
    %cst_60 = arith.constant dense<0.000000e+00> : vector<8x512xf32>
    %130 = tpu.matmul %125, %8, %cst_60 {dimension_numbers = #tpu.dot_dimension_numbers<[1], [0], [0], [1], [0, 0, 1, 1], [], []>} : vector<8x128xf32>, vector<128x512xf32>, vector<8x512xf32> -> vector<8x512xf32>
    %131 = arith.index_cast %c4_i32 : i32 to index
    %c0_61 = arith.constant 0 : index
    %c0_62 = arith.constant 0 : index
    %132 = vector.load %arg17[%131, %c0_61, %c0_62] : memref<8x8x512xf32, #tpu.memory_space<vmem>>, vector<1x8x512xf32>
    %133 = vector.shape_cast %132 : vector<1x8x512xf32> to vector<8x512xf32>
    %134 = arith.addf %130, %133 : vector<8x512xf32>
    %135 = vector.extract_strided_slice %134 {offsets = [0, 0], sizes = [8, 384], strides = [1, 1]} : vector<8x512xf32> to vector<8x384xf32>
    %cst_63 = arith.constant 5.000000e-01 : f32
    %136 = vector.broadcast %cst_63 : f32 to vector<8x384xf32>
    %137 = arith.mulf %136, %135 : vector<8x384xf32>
    %138 = math.tanh %137 : vector<8x384xf32>
    %cst_64 = arith.constant 5.000000e-01 : f32
    %139 = vector.broadcast %cst_64 : f32 to vector<8x384xf32>
    %140 = arith.mulf %139, %138 : vector<8x384xf32>
    %cst_65 = arith.constant 5.000000e-01 : f32
    %141 = vector.broadcast %cst_65 : f32 to vector<8x384xf32>
    %142 = arith.addf %140, %141 : vector<8x384xf32>
    %143 = vector.extract_strided_slice %142 {offsets = [0, 0], sizes = [8, 128], strides = [1, 1]} : vector<8x384xf32> to vector<8x128xf32>
    %144 = vector.extract_strided_slice %142 {offsets = [0, 128], sizes = [8, 128], strides = [1, 1]} : vector<8x384xf32> to vector<8x128xf32>
    %145 = vector.extract_strided_slice %142 {offsets = [0, 256], sizes = [8, 128], strides = [1, 1]} : vector<8x384xf32> to vector<8x128xf32>
    %146 = vector.extract_strided_slice %134 {offsets = [0, 384], sizes = [8, 128], strides = [1, 1]} : vector<8x512xf32> to vector<8x128xf32>
    %147 = math.tanh %146 : vector<8x128xf32>
    %148 = arith.mulf %144, %123 : vector<8x128xf32>
    %149 = arith.mulf %143, %147 : vector<8x128xf32>
    %150 = arith.addf %148, %149 : vector<8x128xf32>
    %151 = math.tanh %150 : vector<8x128xf32>
    %152 = arith.mulf %145, %151 : vector<8x128xf32>
    %153 = arith.index_cast %c4_i32 : i32 to index
    %c0_66 = arith.constant 0 : index
    %c0_67 = arith.constant 0 : index
    %154 = vector.load %arg16[%153, %c0_66, %c0_67] : memref<8x8x128xf32, #tpu.memory_space<vmem>>, vector<1x8x128xf32>
    %155 = vector.shape_cast %154 : vector<1x8x128xf32> to vector<8x128xf32>
    %156 = vector.shape_cast %152 : vector<8x128xf32> to vector<1x8x128xf32>
    tpu.vector_store %arg16[%153, %c0_66, %c0_67], %156 {strides = array<i32>} : memref<8x8x128xf32, #tpu.memory_space<vmem>>, vector<1x8x128xf32>,
    %c5_i32 = arith.constant 5 : i32
    %cst_68 = arith.constant dense<0.000000e+00> : vector<8x512xf32>
    %157 = tpu.matmul %152, %8, %cst_68 {dimension_numbers = #tpu.dot_dimension_numbers<[1], [0], [0], [1], [0, 0, 1, 1], [], []>} : vector<8x128xf32>, vector<128x512xf32>, vector<8x512xf32> -> vector<8x512xf32>
    %158 = arith.index_cast %c5_i32 : i32 to index
    %c0_69 = arith.constant 0 : index
    %c0_70 = arith.constant 0 : index
    %159 = vector.load %arg17[%158, %c0_69, %c0_70] : memref<8x8x512xf32, #tpu.memory_space<vmem>>, vector<1x8x512xf32>
    %160 = vector.shape_cast %159 : vector<1x8x512xf32> to vector<8x512xf32>
    %161 = arith.addf %157, %160 : vector<8x512xf32>
    %162 = vector.extract_strided_slice %161 {offsets = [0, 0], sizes = [8, 384], strides = [1, 1]} : vector<8x512xf32> to vector<8x384xf32>
    %cst_71 = arith.constant 5.000000e-01 : f32
    %163 = vector.broadcast %cst_71 : f32 to vector<8x384xf32>
    %164 = arith.mulf %163, %162 : vector<8x384xf32>
    %165 = math.tanh %164 : vector<8x384xf32>
    %cst_72 = arith.constant 5.000000e-01 : f32
    %166 = vector.broadcast %cst_72 : f32 to vector<8x384xf32>
    %167 = arith.mulf %166, %165 : vector<8x384xf32>
    %cst_73 = arith.constant 5.000000e-01 : f32
    %168 = vector.broadcast %cst_73 : f32 to vector<8x384xf32>
    %169 = arith.addf %167, %168 : vector<8x384xf32>
    %170 = vector.extract_strided_slice %169 {offsets = [0, 0], sizes = [8, 128], strides = [1, 1]} : vector<8x384xf32> to vector<8x128xf32>
    %171 = vector.extract_strided_slice %169 {offsets = [0, 128], sizes = [8, 128], strides = [1, 1]} : vector<8x384xf32> to vector<8x128xf32>
    %172 = vector.extract_strided_slice %169 {offsets = [0, 256], sizes = [8, 128], strides = [1, 1]} : vector<8x384xf32> to vector<8x128xf32>
    %173 = vector.extract_strided_slice %161 {offsets = [0, 384], sizes = [8, 128], strides = [1, 1]} : vector<8x512xf32> to vector<8x128xf32>
    %174 = math.tanh %173 : vector<8x128xf32>
    %175 = arith.mulf %171, %150 : vector<8x128xf32>
    %176 = arith.mulf %170, %174 : vector<8x128xf32>
    %177 = arith.addf %175, %176 : vector<8x128xf32>
    %178 = math.tanh %177 : vector<8x128xf32>
    %179 = arith.mulf %172, %178 : vector<8x128xf32>
    %180 = arith.index_cast %c5_i32 : i32 to index
    %c0_74 = arith.constant 0 : index
    %c0_75 = arith.constant 0 : index
    %181 = vector.load %arg16[%180, %c0_74, %c0_75] : memref<8x8x128xf32, #tpu.memory_space<vmem>>, vector<1x8x128xf32>
    %182 = vector.shape_cast %181 : vector<1x8x128xf32> to vector<8x128xf32>
    %183 = vector.shape_cast %179 : vector<8x128xf32> to vector<1x8x128xf32>
    tpu.vector_store %arg16[%180, %c0_74, %c0_75], %183 {strides = array<i32>} : memref<8x8x128xf32, #tpu.memory_space<vmem>>, vector<1x8x128xf32>,
    %c6_i32 = arith.constant 6 : i32
    %cst_76 = arith.constant dense<0.000000e+00> : vector<8x512xf32>
    %184 = tpu.matmul %179, %8, %cst_76 {dimension_numbers = #tpu.dot_dimension_numbers<[1], [0], [0], [1], [0, 0, 1, 1], [], []>} : vector<8x128xf32>, vector<128x512xf32>, vector<8x512xf32> -> vector<8x512xf32>
    %185 = arith.index_cast %c6_i32 : i32 to index
    %c0_77 = arith.constant 0 : index
    %c0_78 = arith.constant 0 : index
    %186 = vector.load %arg17[%185, %c0_77, %c0_78] : memref<8x8x512xf32, #tpu.memory_space<vmem>>, vector<1x8x512xf32>
    %187 = vector.shape_cast %186 : vector<1x8x512xf32> to vector<8x512xf32>
    %188 = arith.addf %184, %187 : vector<8x512xf32>
    %189 = vector.extract_strided_slice %188 {offsets = [0, 0], sizes = [8, 384], strides = [1, 1]} : vector<8x512xf32> to vector<8x384xf32>
    %cst_79 = arith.constant 5.000000e-01 : f32
    %190 = vector.broadcast %cst_79 : f32 to vector<8x384xf32>
    %191 = arith.mulf %190, %189 : vector<8x384xf32>
    %192 = math.tanh %191 : vector<8x384xf32>
    %cst_80 = arith.constant 5.000000e-01 : f32
    %193 = vector.broadcast %cst_80 : f32 to vector<8x384xf32>
    %194 = arith.mulf %193, %192 : vector<8x384xf32>
    %cst_81 = arith.constant 5.000000e-01 : f32
    %195 = vector.broadcast %cst_81 : f32 to vector<8x384xf32>
    %196 = arith.addf %194, %195 : vector<8x384xf32>
    %197 = vector.extract_strided_slice %196 {offsets = [0, 0], sizes = [8, 128], strides = [1, 1]} : vector<8x384xf32> to vector<8x128xf32>
    %198 = vector.extract_strided_slice %196 {offsets = [0, 128], sizes = [8, 128], strides = [1, 1]} : vector<8x384xf32> to vector<8x128xf32>
    %199 = vector.extract_strided_slice %196 {offsets = [0, 256], sizes = [8, 128], strides = [1, 1]} : vector<8x384xf32> to vector<8x128xf32>
    %200 = vector.extract_strided_slice %188 {offsets = [0, 384], sizes = [8, 128], strides = [1, 1]} : vector<8x512xf32> to vector<8x128xf32>
    %201 = math.tanh %200 : vector<8x128xf32>
    %202 = arith.mulf %198, %177 : vector<8x128xf32>
    %203 = arith.mulf %197, %201 : vector<8x128xf32>
    %204 = arith.addf %202, %203 : vector<8x128xf32>
    %205 = math.tanh %204 : vector<8x128xf32>
    %206 = arith.mulf %199, %205 : vector<8x128xf32>
    %207 = arith.index_cast %c6_i32 : i32 to index
    %c0_82 = arith.constant 0 : index
    %c0_83 = arith.constant 0 : index
    %208 = vector.load %arg16[%207, %c0_82, %c0_83] : memref<8x8x128xf32, #tpu.memory_space<vmem>>, vector<1x8x128xf32>
    %209 = vector.shape_cast %208 : vector<1x8x128xf32> to vector<8x128xf32>
    %210 = vector.shape_cast %206 : vector<8x128xf32> to vector<1x8x128xf32>
    tpu.vector_store %arg16[%207, %c0_82, %c0_83], %210 {strides = array<i32>} : memref<8x8x128xf32, #tpu.memory_space<vmem>>, vector<1x8x128xf32>,
    %c7_i32 = arith.constant 7 : i32
    %cst_84 = arith.constant dense<0.000000e+00> : vector<8x512xf32>
    %211 = tpu.matmul %206, %8, %cst_84 {dimension_numbers = #tpu.dot_dimension_numbers<[1], [0], [0], [1], [0, 0, 1, 1], [], []>} : vector<8x128xf32>, vector<128x512xf32>, vector<8x512xf32> -> vector<8x512xf32>
    %212 = arith.index_cast %c7_i32 : i32 to index
    %c0_85 = arith.constant 0 : index
    %c0_86 = arith.constant 0 : index
    %213 = vector.load %arg17[%212, %c0_85, %c0_86] : memref<8x8x512xf32, #tpu.memory_space<vmem>>, vector<1x8x512xf32>
    %214 = vector.shape_cast %213 : vector<1x8x512xf32> to vector<8x512xf32>
    %215 = arith.addf %211, %214 : vector<8x512xf32>
    %216 = vector.extract_strided_slice %215 {offsets = [0, 0], sizes = [8, 384], strides = [1, 1]} : vector<8x512xf32> to vector<8x384xf32>
    %cst_87 = arith.constant 5.000000e-01 : f32
    %217 = vector.broadcast %cst_87 : f32 to vector<8x384xf32>
    %218 = arith.mulf %217, %216 : vector<8x384xf32>
    %219 = math.tanh %218 : vector<8x384xf32>
    %cst_88 = arith.constant 5.000000e-01 : f32
    %220 = vector.broadcast %cst_88 : f32 to vector<8x384xf32>
    %221 = arith.mulf %220, %219 : vector<8x384xf32>
    %cst_89 = arith.constant 5.000000e-01 : f32
    %222 = vector.broadcast %cst_89 : f32 to vector<8x384xf32>
    %223 = arith.addf %221, %222 : vector<8x384xf32>
    %224 = vector.extract_strided_slice %223 {offsets = [0, 0], sizes = [8, 128], strides = [1, 1]} : vector<8x384xf32> to vector<8x128xf32>
    %225 = vector.extract_strided_slice %223 {offsets = [0, 128], sizes = [8, 128], strides = [1, 1]} : vector<8x384xf32> to vector<8x128xf32>
    %226 = vector.extract_strided_slice %223 {offsets = [0, 256], sizes = [8, 128], strides = [1, 1]} : vector<8x384xf32> to vector<8x128xf32>
    %227 = vector.extract_strided_slice %215 {offsets = [0, 384], sizes = [8, 128], strides = [1, 1]} : vector<8x512xf32> to vector<8x128xf32>
    %228 = math.tanh %227 : vector<8x128xf32>
    %229 = arith.mulf %225, %204 : vector<8x128xf32>
    %230 = arith.mulf %224, %228 : vector<8x128xf32>
    %231 = arith.addf %229, %230 : vector<8x128xf32>
    %232 = math.tanh %231 : vector<8x128xf32>
    %233 = arith.mulf %226, %232 : vector<8x128xf32>
    %234 = arith.index_cast %c7_i32 : i32 to index
    %c0_90 = arith.constant 0 : index
    %c0_91 = arith.constant 0 : index
    %235 = vector.load %arg16[%234, %c0_90, %c0_91] : memref<8x8x128xf32, #tpu.memory_space<vmem>>, vector<1x8x128xf32>
    %236 = vector.shape_cast %235 : vector<1x8x128xf32> to vector<8x128xf32>
    %237 = vector.shape_cast %233 : vector<8x128xf32> to vector<1x8x128xf32>
    tpu.vector_store %arg16[%234, %c0_90, %c0_91], %237 {strides = array<i32>} : memref<8x8x128xf32, #tpu.memory_space<vmem>>, vector<1x8x128xf32>,
    %c8_i32 = arith.constant 8 : i32
    %c0_92 = arith.constant 0 : index
    %c0_93 = arith.constant 0 : index
    %c0_94 = arith.constant 0 : index
    %238 = vector.load %arg14[%c0_92, %c0_93, %c0_94] : memref<4x8x128xf32, #tpu.memory_space<vmem>>, vector<1x8x128xf32>
    %239 = vector.shape_cast %238 : vector<1x8x128xf32> to vector<8x128xf32>
    %240 = vector.shape_cast %233 : vector<8x128xf32> to vector<1x8x128xf32>
    tpu.vector_store %arg14[%c0_92, %c0_93, %c0_94], %240 {strides = array<i32>} : memref<4x8x128xf32, #tpu.memory_space<vmem>>, vector<1x8x128xf32>,
    %c0_95 = arith.constant 0 : index
    %c0_96 = arith.constant 0 : index
    %c0_97 = arith.constant 0 : index
    %241 = vector.load %arg15[%c0_95, %c0_96, %c0_97] : memref<4x8x128xf32, #tpu.memory_space<vmem>>, vector<1x8x128xf32>
    %242 = vector.shape_cast %241 : vector<1x8x128xf32> to vector<8x128xf32>
    %243 = vector.shape_cast %231 : vector<8x128xf32> to vector<1x8x128xf32>
    tpu.vector_store %arg15[%c0_95, %c0_96, %c0_97], %243 {strides = array<i32>} : memref<4x8x128xf32, #tpu.memory_space<vmem>>, vector<1x8x128xf32>,
    %c1 = arith.constant 1 : index
    %c0_98 = arith.constant 0 : index
    %c0_99 = arith.constant 0 : index
    %244 = vector.load %arg2[%c1, %c0_98, %c0_99] : memref<4x128x512xf32, #tpu.memory_space<vmem>>, vector<1x128x512xf32>
    %245 = vector.shape_cast %244 : vector<1x128x512xf32> to vector<128x512xf32>
    %c1_100 = arith.constant 1 : index
    %c0_101 = arith.constant 0 : index
    %c0_102 = arith.constant 0 : index
    %246 = vector.load %arg3[%c1_100, %c0_101, %c0_102] : memref<4x128x512xf32, #tpu.memory_space<vmem>>, vector<1x128x512xf32>
    %247 = vector.shape_cast %246 : vector<1x128x512xf32> to vector<128x512xf32>
    %c1_103 = arith.constant 1 : index
    %c0_104 = arith.constant 0 : index
    %c0_105 = arith.constant 0 : index
    %248 = vector.load %arg4[%c1_103, %c0_104, %c0_105] : memref<4x1x512xf32, #tpu.memory_space<vmem>>, vector<1x1x512xf32>
    %249 = vector.shape_cast %248 : vector<1x1x512xf32> to vector<1x512xf32>
    %c0_106 = arith.constant 0 : index
    %c0_107 = arith.constant 0 : index
    %c0_108 = arith.constant 0 : index
    %250 = vector.load %arg16[%c0_106, %c0_107, %c0_108] : memref<8x8x128xf32, #tpu.memory_space<vmem>>, vector<8x8x128xf32>
    %251 = vector.shape_cast %250 : vector<8x8x128xf32> to vector<64x128xf32>
    %cst_109 = arith.constant dense<0.000000e+00> : vector<64x512xf32>
    %252 = tpu.matmul %251, %245, %cst_109 {dimension_numbers = #tpu.dot_dimension_numbers<[1], [0], [0], [1], [0, 0, 1, 1], [], []>} : vector<64x128xf32>, vector<128x512xf32>, vector<64x512xf32> -> vector<64x512xf32>
    %253 = vector.broadcast %249 : vector<1x512xf32> to vector<64x512xf32>
    %254 = arith.addf %252, %253 : vector<64x512xf32>
    %255 = vector.shape_cast %254 : vector<64x512xf32> to vector<8x8x512xf32>
    %c0_110 = arith.constant 0 : index
    %c0_111 = arith.constant 0 : index
    %c0_112 = arith.constant 0 : index
    %256 = vector.load %arg17[%c0_110, %c0_111, %c0_112] : memref<8x8x512xf32, #tpu.memory_space<vmem>>, vector<8x8x512xf32>
    tpu.vector_store %arg17[%c0_110, %c0_111, %c0_112], %255 {strides = array<i32>} : memref<8x8x512xf32, #tpu.memory_space<vmem>>, vector<8x8x512xf32>,
    %c1_113 = arith.constant 1 : index
    %c0_114 = arith.constant 0 : index
    %c0_115 = arith.constant 0 : index
    %257 = vector.load %arg14[%c1_113, %c0_114, %c0_115] : memref<4x8x128xf32, #tpu.memory_space<vmem>>, vector<1x8x128xf32>
    %258 = vector.shape_cast %257 : vector<1x8x128xf32> to vector<8x128xf32>
    %c1_116 = arith.constant 1 : index
    %c0_117 = arith.constant 0 : index
    %c0_118 = arith.constant 0 : index
    %259 = vector.load %arg15[%c1_116, %c0_117, %c0_118] : memref<4x8x128xf32, #tpu.memory_space<vmem>>, vector<1x8x128xf32>
    %260 = vector.shape_cast %259 : vector<1x8x128xf32> to vector<8x128xf32>
    %c0_i32_119 = arith.constant 0 : i32
    %cst_120 = arith.constant dense<0.000000e+00> : vector<8x512xf32>
    %261 = tpu.matmul %258, %247, %cst_120 {dimension_numbers = #tpu.dot_dimension_numbers<[1], [0], [0], [1], [0, 0, 1, 1], [], []>} : vector<8x128xf32>, vector<128x512xf32>, vector<8x512xf32> -> vector<8x512xf32>
    %262 = arith.index_cast %c0_i32_119 : i32 to index
    %c0_121 = arith.constant 0 : index
    %c0_122 = arith.constant 0 : index
    %263 = vector.load %arg17[%262, %c0_121, %c0_122] : memref<8x8x512xf32, #tpu.memory_space<vmem>>, vector<1x8x512xf32>
    %264 = vector.shape_cast %263 : vector<1x8x512xf32> to vector<8x512xf32>
    %265 = arith.addf %261, %264 : vector<8x512xf32>
    %266 = vector.extract_strided_slice %265 {offsets = [0, 0], sizes = [8, 384], strides = [1, 1]} : vector<8x512xf32> to vector<8x384xf32>
    %cst_123 = arith.constant 5.000000e-01 : f32
    %267 = vector.broadcast %cst_123 : f32 to vector<8x384xf32>
    %268 = arith.mulf %267, %266 : vector<8x384xf32>
    %269 = math.tanh %268 : vector<8x384xf32>
    %cst_124 = arith.constant 5.000000e-01 : f32
    %270 = vector.broadcast %cst_124 : f32 to vector<8x384xf32>
    %271 = arith.mulf %270, %269 : vector<8x384xf32>
    %cst_125 = arith.constant 5.000000e-01 : f32
    %272 = vector.broadcast %cst_125 : f32 to vector<8x384xf32>
    %273 = arith.addf %271, %272 : vector<8x384xf32>
    %274 = vector.extract_strided_slice %273 {offsets = [0, 0], sizes = [8, 128], strides = [1, 1]} : vector<8x384xf32> to vector<8x128xf32>
    %275 = vector.extract_strided_slice %273 {offsets = [0, 128], sizes = [8, 128], strides = [1, 1]} : vector<8x384xf32> to vector<8x128xf32>
    %276 = vector.extract_strided_slice %273 {offsets = [0, 256], sizes = [8, 128], strides = [1, 1]} : vector<8x384xf32> to vector<8x128xf32>
    %277 = vector.extract_strided_slice %265 {offsets = [0, 384], sizes = [8, 128], strides = [1, 1]} : vector<8x512xf32> to vector<8x128xf32>
    %278 = math.tanh %277 : vector<8x128xf32>
    %279 = arith.mulf %275, %260 : vector<8x128xf32>
    %280 = arith.mulf %274, %278 : vector<8x128xf32>
    %281 = arith.addf %279, %280 : vector<8x128xf32>
    %282 = math.tanh %281 : vector<8x128xf32>
    %283 = arith.mulf %276, %282 : vector<8x128xf32>
    %284 = arith.index_cast %c0_i32_119 : i32 to index
    %c0_126 = arith.constant 0 : index
    %c0_127 = arith.constant 0 : index
    %285 = vector.load %arg16[%284, %c0_126, %c0_127] : memref<8x8x128xf32, #tpu.memory_space<vmem>>, vector<1x8x128xf32>
    %286 = vector.shape_cast %285 : vector<1x8x128xf32> to vector<8x128xf32>
    %287 = vector.shape_cast %283 : vector<8x128xf32> to vector<1x8x128xf32>
    tpu.vector_store %arg16[%284, %c0_126, %c0_127], %287 {strides = array<i32>} : memref<8x8x128xf32, #tpu.memory_space<vmem>>, vector<1x8x128xf32>,
    %c1_i32_128 = arith.constant 1 : i32
    %cst_129 = arith.constant dense<0.000000e+00> : vector<8x512xf32>
    %288 = tpu.matmul %283, %247, %cst_129 {dimension_numbers = #tpu.dot_dimension_numbers<[1], [0], [0], [1], [0, 0, 1, 1], [], []>} : vector<8x128xf32>, vector<128x512xf32>, vector<8x512xf32> -> vector<8x512xf32>
    %289 = arith.index_cast %c1_i32_128 : i32 to index
    %c0_130 = arith.constant 0 : index
    %c0_131 = arith.constant 0 : index
    %290 = vector.load %arg17[%289, %c0_130, %c0_131] : memref<8x8x512xf32, #tpu.memory_space<vmem>>, vector<1x8x512xf32>
    %291 = vector.shape_cast %290 : vector<1x8x512xf32> to vector<8x512xf32>
    %292 = arith.addf %288, %291 : vector<8x512xf32>
    %293 = vector.extract_strided_slice %292 {offsets = [0, 0], sizes = [8, 384], strides = [1, 1]} : vector<8x512xf32> to vector<8x384xf32>
    %cst_132 = arith.constant 5.000000e-01 : f32
    %294 = vector.broadcast %cst_132 : f32 to vector<8x384xf32>
    %295 = arith.mulf %294, %293 : vector<8x384xf32>
    %296 = math.tanh %295 : vector<8x384xf32>
    %cst_133 = arith.constant 5.000000e-01 : f32
    %297 = vector.broadcast %cst_133 : f32 to vector<8x384xf32>
    %298 = arith.mulf %297, %296 : vector<8x384xf32>
    %cst_134 = arith.constant 5.000000e-01 : f32
    %299 = vector.broadcast %cst_134 : f32 to vector<8x384xf32>
    %300 = arith.addf %298, %299 : vector<8x384xf32>
    %301 = vector.extract_strided_slice %300 {offsets = [0, 0], sizes = [8, 128], strides = [1, 1]} : vector<8x384xf32> to vector<8x128xf32>
    %302 = vector.extract_strided_slice %300 {offsets = [0, 128], sizes = [8, 128], strides = [1, 1]} : vector<8x384xf32> to vector<8x128xf32>
    %303 = vector.extract_strided_slice %300 {offsets = [0, 256], sizes = [8, 128], strides = [1, 1]} : vector<8x384xf32> to vector<8x128xf32>
    %304 = vector.extract_strided_slice %292 {offsets = [0, 384], sizes = [8, 128], strides = [1, 1]} : vector<8x512xf32> to vector<8x128xf32>
    %305 = math.tanh %304 : vector<8x128xf32>
    %306 = arith.mulf %302, %281 : vector<8x128xf32>
    %307 = arith.mulf %301, %305 : vector<8x128xf32>
    %308 = arith.addf %306, %307 : vector<8x128xf32>
    %309 = math.tanh %308 : vector<8x128xf32>
    %310 = arith.mulf %303, %309 : vector<8x128xf32>
    %311 = arith.index_cast %c1_i32_128 : i32 to index
    %c0_135 = arith.constant 0 : index
    %c0_136 = arith.constant 0 : index
    %312 = vector.load %arg16[%311, %c0_135, %c0_136] : memref<8x8x128xf32, #tpu.memory_space<vmem>>, vector<1x8x128xf32>
    %313 = vector.shape_cast %312 : vector<1x8x128xf32> to vector<8x128xf32>
    %314 = vector.shape_cast %310 : vector<8x128xf32> to vector<1x8x128xf32>
    tpu.vector_store %arg16[%311, %c0_135, %c0_136], %314 {strides = array<i32>} : memref<8x8x128xf32, #tpu.memory_space<vmem>>, vector<1x8x128xf32>,
    %c2_i32_137 = arith.constant 2 : i32
    %cst_138 = arith.constant dense<0.000000e+00> : vector<8x512xf32>
    %315 = tpu.matmul %310, %247, %cst_138 {dimension_numbers = #tpu.dot_dimension_numbers<[1], [0], [0], [1], [0, 0, 1, 1], [], []>} : vector<8x128xf32>, vector<128x512xf32>, vector<8x512xf32> -> vector<8x512xf32>
    %316 = arith.index_cast %c2_i32_137 : i32 to index
    %c0_139 = arith.constant 0 : index
    %c0_140 = arith.constant 0 : index
    %317 = vector.load %arg17[%316, %c0_139, %c0_140] : memref<8x8x512xf32, #tpu.memory_space<vmem>>, vector<1x8x512xf32>
    %318 = vector.shape_cast %317 : vector<1x8x512xf32> to vector<8x512xf32>
    %319 = arith.addf %315, %318 : vector<8x512xf32>
    %320 = vector.extract_strided_slice %319 {offsets = [0, 0], sizes = [8, 384], strides = [1, 1]} : vector<8x512xf32> to vector<8x384xf32>
    %cst_141 = arith.constant 5.000000e-01 : f32
    %321 = vector.broadcast %cst_141 : f32 to vector<8x384xf32>
    %322 = arith.mulf %321, %320 : vector<8x384xf32>
    %323 = math.tanh %322 : vector<8x384xf32>
    %cst_142 = arith.constant 5.000000e-01 : f32
    %324 = vector.broadcast %cst_142 : f32 to vector<8x384xf32>
    %325 = arith.mulf %324, %323 : vector<8x384xf32>
    %cst_143 = arith.constant 5.000000e-01 : f32
    %326 = vector.broadcast %cst_143 : f32 to vector<8x384xf32>
    %327 = arith.addf %325, %326 : vector<8x384xf32>
    %328 = vector.extract_strided_slice %327 {offsets = [0, 0], sizes = [8, 128], strides = [1, 1]} : vector<8x384xf32> to vector<8x128xf32>
    %329 = vector.extract_strided_slice %327 {offsets = [0, 128], sizes = [8, 128], strides = [1, 1]} : vector<8x384xf32> to vector<8x128xf32>
    %330 = vector.extract_strided_slice %327 {offsets = [0, 256], sizes = [8, 128], strides = [1, 1]} : vector<8x384xf32> to vector<8x128xf32>
    %331 = vector.extract_strided_slice %319 {offsets = [0, 384], sizes = [8, 128], strides = [1, 1]} : vector<8x512xf32> to vector<8x128xf32>
    %332 = math.tanh %331 : vector<8x128xf32>
    %333 = arith.mulf %329, %308 : vector<8x128xf32>
    %334 = arith.mulf %328, %332 : vector<8x128xf32>
    %335 = arith.addf %333, %334 : vector<8x128xf32>
    %336 = math.tanh %335 : vector<8x128xf32>
    %337 = arith.mulf %330, %336 : vector<8x128xf32>
    %338 = arith.index_cast %c2_i32_137 : i32 to index
    %c0_144 = arith.constant 0 : index
    %c0_145 = arith.constant 0 : index
    %339 = vector.load %arg16[%338, %c0_144, %c0_145] : memref<8x8x128xf32, #tpu.memory_space<vmem>>, vector<1x8x128xf32>
    %340 = vector.shape_cast %339 : vector<1x8x128xf32> to vector<8x128xf32>
    %341 = vector.shape_cast %337 : vector<8x128xf32> to vector<1x8x128xf32>
    tpu.vector_store %arg16[%338, %c0_144, %c0_145], %341 {strides = array<i32>} : memref<8x8x128xf32, #tpu.memory_space<vmem>>, vector<1x8x128xf32>,
    %c3_i32_146 = arith.constant 3 : i32
    %cst_147 = arith.constant dense<0.000000e+00> : vector<8x512xf32>
    %342 = tpu.matmul %337, %247, %cst_147 {dimension_numbers = #tpu.dot_dimension_numbers<[1], [0], [0], [1], [0, 0, 1, 1], [], []>} : vector<8x128xf32>, vector<128x512xf32>, vector<8x512xf32> -> vector<8x512xf32>
    %343 = arith.index_cast %c3_i32_146 : i32 to index
    %c0_148 = arith.constant 0 : index
    %c0_149 = arith.constant 0 : index
    %344 = vector.load %arg17[%343, %c0_148, %c0_149] : memref<8x8x512xf32, #tpu.memory_space<vmem>>, vector<1x8x512xf32>
    %345 = vector.shape_cast %344 : vector<1x8x512xf32> to vector<8x512xf32>
    %346 = arith.addf %342, %345 : vector<8x512xf32>
    %347 = vector.extract_strided_slice %346 {offsets = [0, 0], sizes = [8, 384], strides = [1, 1]} : vector<8x512xf32> to vector<8x384xf32>
    %cst_150 = arith.constant 5.000000e-01 : f32
    %348 = vector.broadcast %cst_150 : f32 to vector<8x384xf32>
    %349 = arith.mulf %348, %347 : vector<8x384xf32>
    %350 = math.tanh %349 : vector<8x384xf32>
    %cst_151 = arith.constant 5.000000e-01 : f32
    %351 = vector.broadcast %cst_151 : f32 to vector<8x384xf32>
    %352 = arith.mulf %351, %350 : vector<8x384xf32>
    %cst_152 = arith.constant 5.000000e-01 : f32
    %353 = vector.broadcast %cst_152 : f32 to vector<8x384xf32>
    %354 = arith.addf %352, %353 : vector<8x384xf32>
    %355 = vector.extract_strided_slice %354 {offsets = [0, 0], sizes = [8, 128], strides = [1, 1]} : vector<8x384xf32> to vector<8x128xf32>
    %356 = vector.extract_strided_slice %354 {offsets = [0, 128], sizes = [8, 128], strides = [1, 1]} : vector<8x384xf32> to vector<8x128xf32>
    %357 = vector.extract_strided_slice %354 {offsets = [0, 256], sizes = [8, 128], strides = [1, 1]} : vector<8x384xf32> to vector<8x128xf32>
    %358 = vector.extract_strided_slice %346 {offsets = [0, 384], sizes = [8, 128], strides = [1, 1]} : vector<8x512xf32> to vector<8x128xf32>
    %359 = math.tanh %358 : vector<8x128xf32>
    %360 = arith.mulf %356, %335 : vector<8x128xf32>
    %361 = arith.mulf %355, %359 : vector<8x128xf32>
    %362 = arith.addf %360, %361 : vector<8x128xf32>
    %363 = math.tanh %362 : vector<8x128xf32>
    %364 = arith.mulf %357, %363 : vector<8x128xf32>
    %365 = arith.index_cast %c3_i32_146 : i32 to index
    %c0_153 = arith.constant 0 : index
    %c0_154 = arith.constant 0 : index
    %366 = vector.load %arg16[%365, %c0_153, %c0_154] : memref<8x8x128xf32, #tpu.memory_space<vmem>>, vector<1x8x128xf32>
    %367 = vector.shape_cast %366 : vector<1x8x128xf32> to vector<8x128xf32>
    %368 = vector.shape_cast %364 : vector<8x128xf32> to vector<1x8x128xf32>
    tpu.vector_store %arg16[%365, %c0_153, %c0_154], %368 {strides = array<i32>} : memref<8x8x128xf32, #tpu.memory_space<vmem>>, vector<1x8x128xf32>,
    %c4_i32_155 = arith.constant 4 : i32
    %cst_156 = arith.constant dense<0.000000e+00> : vector<8x512xf32>
    %369 = tpu.matmul %364, %247, %cst_156 {dimension_numbers = #tpu.dot_dimension_numbers<[1], [0], [0], [1], [0, 0, 1, 1], [], []>} : vector<8x128xf32>, vector<128x512xf32>, vector<8x512xf32> -> vector<8x512xf32>
    %370 = arith.index_cast %c4_i32_155 : i32 to index
    %c0_157 = arith.constant 0 : index
    %c0_158 = arith.constant 0 : index
    %371 = vector.load %arg17[%370, %c0_157, %c0_158] : memref<8x8x512xf32, #tpu.memory_space<vmem>>, vector<1x8x512xf32>
    %372 = vector.shape_cast %371 : vector<1x8x512xf32> to vector<8x512xf32>
    %373 = arith.addf %369, %372 : vector<8x512xf32>
    %374 = vector.extract_strided_slice %373 {offsets = [0, 0], sizes = [8, 384], strides = [1, 1]} : vector<8x512xf32> to vector<8x384xf32>
    %cst_159 = arith.constant 5.000000e-01 : f32
    %375 = vector.broadcast %cst_159 : f32 to vector<8x384xf32>
    %376 = arith.mulf %375, %374 : vector<8x384xf32>
    %377 = math.tanh %376 : vector<8x384xf32>
    %cst_160 = arith.constant 5.000000e-01 : f32
    %378 = vector.broadcast %cst_160 : f32 to vector<8x384xf32>
    %379 = arith.mulf %378, %377 : vector<8x384xf32>
    %cst_161 = arith.constant 5.000000e-01 : f32
    %380 = vector.broadcast %cst_161 : f32 to vector<8x384xf32>
    %381 = arith.addf %379, %380 : vector<8x384xf32>
    %382 = vector.extract_strided_slice %381 {offsets = [0, 0], sizes = [8, 128], strides = [1, 1]} : vector<8x384xf32> to vector<8x128xf32>
    %383 = vector.extract_strided_slice %381 {offsets = [0, 128], sizes = [8, 128], strides = [1, 1]} : vector<8x384xf32> to vector<8x128xf32>
    %384 = vector.extract_strided_slice %381 {offsets = [0, 256], sizes = [8, 128], strides = [1, 1]} : vector<8x384xf32> to vector<8x128xf32>
    %385 = vector.extract_strided_slice %373 {offsets = [0, 384], sizes = [8, 128], strides = [1, 1]} : vector<8x512xf32> to vector<8x128xf32>
    %386 = math.tanh %385 : vector<8x128xf32>
    %387 = arith.mulf %383, %362 : vector<8x128xf32>
    %388 = arith.mulf %382, %386 : vector<8x128xf32>
    %389 = arith.addf %387, %388 : vector<8x128xf32>
    %390 = math.tanh %389 : vector<8x128xf32>
    %391 = arith.mulf %384, %390 : vector<8x128xf32>
    %392 = arith.index_cast %c4_i32_155 : i32 to index
    %c0_162 = arith.constant 0 : index
    %c0_163 = arith.constant 0 : index
    %393 = vector.load %arg16[%392, %c0_162, %c0_163] : memref<8x8x128xf32, #tpu.memory_space<vmem>>, vector<1x8x128xf32>
    %394 = vector.shape_cast %393 : vector<1x8x128xf32> to vector<8x128xf32>
    %395 = vector.shape_cast %391 : vector<8x128xf32> to vector<1x8x128xf32>
    tpu.vector_store %arg16[%392, %c0_162, %c0_163], %395 {strides = array<i32>} : memref<8x8x128xf32, #tpu.memory_space<vmem>>, vector<1x8x128xf32>,
    %c5_i32_164 = arith.constant 5 : i32
    %cst_165 = arith.constant dense<0.000000e+00> : vector<8x512xf32>
    %396 = tpu.matmul %391, %247, %cst_165 {dimension_numbers = #tpu.dot_dimension_numbers<[1], [0], [0], [1], [0, 0, 1, 1], [], []>} : vector<8x128xf32>, vector<128x512xf32>, vector<8x512xf32> -> vector<8x512xf32>
    %397 = arith.index_cast %c5_i32_164 : i32 to index
    %c0_166 = arith.constant 0 : index
    %c0_167 = arith.constant 0 : index
    %398 = vector.load %arg17[%397, %c0_166, %c0_167] : memref<8x8x512xf32, #tpu.memory_space<vmem>>, vector<1x8x512xf32>
    %399 = vector.shape_cast %398 : vector<1x8x512xf32> to vector<8x512xf32>
    %400 = arith.addf %396, %399 : vector<8x512xf32>
    %401 = vector.extract_strided_slice %400 {offsets = [0, 0], sizes = [8, 384], strides = [1, 1]} : vector<8x512xf32> to vector<8x384xf32>
    %cst_168 = arith.constant 5.000000e-01 : f32
    %402 = vector.broadcast %cst_168 : f32 to vector<8x384xf32>
    %403 = arith.mulf %402, %401 : vector<8x384xf32>
    %404 = math.tanh %403 : vector<8x384xf32>
    %cst_169 = arith.constant 5.000000e-01 : f32
    %405 = vector.broadcast %cst_169 : f32 to vector<8x384xf32>
    %406 = arith.mulf %405, %404 : vector<8x384xf32>
    %cst_170 = arith.constant 5.000000e-01 : f32
    %407 = vector.broadcast %cst_170 : f32 to vector<8x384xf32>
    %408 = arith.addf %406, %407 : vector<8x384xf32>
    %409 = vector.extract_strided_slice %408 {offsets = [0, 0], sizes = [8, 128], strides = [1, 1]} : vector<8x384xf32> to vector<8x128xf32>
    %410 = vector.extract_strided_slice %408 {offsets = [0, 128], sizes = [8, 128], strides = [1, 1]} : vector<8x384xf32> to vector<8x128xf32>
    %411 = vector.extract_strided_slice %408 {offsets = [0, 256], sizes = [8, 128], strides = [1, 1]} : vector<8x384xf32> to vector<8x128xf32>
    %412 = vector.extract_strided_slice %400 {offsets = [0, 384], sizes = [8, 128], strides = [1, 1]} : vector<8x512xf32> to vector<8x128xf32>
    %413 = math.tanh %412 : vector<8x128xf32>
    %414 = arith.mulf %410, %389 : vector<8x128xf32>
    %415 = arith.mulf %409, %413 : vector<8x128xf32>
    %416 = arith.addf %414, %415 : vector<8x128xf32>
    %417 = math.tanh %416 : vector<8x128xf32>
    %418 = arith.mulf %411, %417 : vector<8x128xf32>
    %419 = arith.index_cast %c5_i32_164 : i32 to index
    %c0_171 = arith.constant 0 : index
    %c0_172 = arith.constant 0 : index
    %420 = vector.load %arg16[%419, %c0_171, %c0_172] : memref<8x8x128xf32, #tpu.memory_space<vmem>>, vector<1x8x128xf32>
    %421 = vector.shape_cast %420 : vector<1x8x128xf32> to vector<8x128xf32>
    %422 = vector.shape_cast %418 : vector<8x128xf32> to vector<1x8x128xf32>
    tpu.vector_store %arg16[%419, %c0_171, %c0_172], %422 {strides = array<i32>} : memref<8x8x128xf32, #tpu.memory_space<vmem>>, vector<1x8x128xf32>,
    %c6_i32_173 = arith.constant 6 : i32
    %cst_174 = arith.constant dense<0.000000e+00> : vector<8x512xf32>
    %423 = tpu.matmul %418, %247, %cst_174 {dimension_numbers = #tpu.dot_dimension_numbers<[1], [0], [0], [1], [0, 0, 1, 1], [], []>} : vector<8x128xf32>, vector<128x512xf32>, vector<8x512xf32> -> vector<8x512xf32>
    %424 = arith.index_cast %c6_i32_173 : i32 to index
    %c0_175 = arith.constant 0 : index
    %c0_176 = arith.constant 0 : index
    %425 = vector.load %arg17[%424, %c0_175, %c0_176] : memref<8x8x512xf32, #tpu.memory_space<vmem>>, vector<1x8x512xf32>
    %426 = vector.shape_cast %425 : vector<1x8x512xf32> to vector<8x512xf32>
    %427 = arith.addf %423, %426 : vector<8x512xf32>
    %428 = vector.extract_strided_slice %427 {offsets = [0, 0], sizes = [8, 384], strides = [1, 1]} : vector<8x512xf32> to vector<8x384xf32>
    %cst_177 = arith.constant 5.000000e-01 : f32
    %429 = vector.broadcast %cst_177 : f32 to vector<8x384xf32>
    %430 = arith.mulf %429, %428 : vector<8x384xf32>
    %431 = math.tanh %430 : vector<8x384xf32>
    %cst_178 = arith.constant 5.000000e-01 : f32
    %432 = vector.broadcast %cst_178 : f32 to vector<8x384xf32>
    %433 = arith.mulf %432, %431 : vector<8x384xf32>
    %cst_179 = arith.constant 5.000000e-01 : f32
    %434 = vector.broadcast %cst_179 : f32 to vector<8x384xf32>
    %435 = arith.addf %433, %434 : vector<8x384xf32>
    %436 = vector.extract_strided_slice %435 {offsets = [0, 0], sizes = [8, 128], strides = [1, 1]} : vector<8x384xf32> to vector<8x128xf32>
    %437 = vector.extract_strided_slice %435 {offsets = [0, 128], sizes = [8, 128], strides = [1, 1]} : vector<8x384xf32> to vector<8x128xf32>
    %438 = vector.extract_strided_slice %435 {offsets = [0, 256], sizes = [8, 128], strides = [1, 1]} : vector<8x384xf32> to vector<8x128xf32>
    %439 = vector.extract_strided_slice %427 {offsets = [0, 384], sizes = [8, 128], strides = [1, 1]} : vector<8x512xf32> to vector<8x128xf32>
    %440 = math.tanh %439 : vector<8x128xf32>
    %441 = arith.mulf %437, %416 : vector<8x128xf32>
    %442 = arith.mulf %436, %440 : vector<8x128xf32>
    %443 = arith.addf %441, %442 : vector<8x128xf32>
    %444 = math.tanh %443 : vector<8x128xf32>
    %445 = arith.mulf %438, %444 : vector<8x128xf32>
    %446 = arith.index_cast %c6_i32_173 : i32 to index
    %c0_180 = arith.constant 0 : index
    %c0_181 = arith.constant 0 : index
    %447 = vector.load %arg16[%446, %c0_180, %c0_181] : memref<8x8x128xf32, #tpu.memory_space<vmem>>, vector<1x8x128xf32>
    %448 = vector.shape_cast %447 : vector<1x8x128xf32> to vector<8x128xf32>
    %449 = vector.shape_cast %445 : vector<8x128xf32> to vector<1x8x128xf32>
    tpu.vector_store %arg16[%446, %c0_180, %c0_181], %449 {strides = array<i32>} : memref<8x8x128xf32, #tpu.memory_space<vmem>>, vector<1x8x128xf32>,
    %c7_i32_182 = arith.constant 7 : i32
    %cst_183 = arith.constant dense<0.000000e+00> : vector<8x512xf32>
    %450 = tpu.matmul %445, %247, %cst_183 {dimension_numbers = #tpu.dot_dimension_numbers<[1], [0], [0], [1], [0, 0, 1, 1], [], []>} : vector<8x128xf32>, vector<128x512xf32>, vector<8x512xf32> -> vector<8x512xf32>
    %451 = arith.index_cast %c7_i32_182 : i32 to index
    %c0_184 = arith.constant 0 : index
    %c0_185 = arith.constant 0 : index
    %452 = vector.load %arg17[%451, %c0_184, %c0_185] : memref<8x8x512xf32, #tpu.memory_space<vmem>>, vector<1x8x512xf32>
    %453 = vector.shape_cast %452 : vector<1x8x512xf32> to vector<8x512xf32>
    %454 = arith.addf %450, %453 : vector<8x512xf32>
    %455 = vector.extract_strided_slice %454 {offsets = [0, 0], sizes = [8, 384], strides = [1, 1]} : vector<8x512xf32> to vector<8x384xf32>
    %cst_186 = arith.constant 5.000000e-01 : f32
    %456 = vector.broadcast %cst_186 : f32 to vector<8x384xf32>
    %457 = arith.mulf %456, %455 : vector<8x384xf32>
    %458 = math.tanh %457 : vector<8x384xf32>
    %cst_187 = arith.constant 5.000000e-01 : f32
    %459 = vector.broadcast %cst_187 : f32 to vector<8x384xf32>
    %460 = arith.mulf %459, %458 : vector<8x384xf32>
    %cst_188 = arith.constant 5.000000e-01 : f32
    %461 = vector.broadcast %cst_188 : f32 to vector<8x384xf32>
    %462 = arith.addf %460, %461 : vector<8x384xf32>
    %463 = vector.extract_strided_slice %462 {offsets = [0, 0], sizes = [8, 128], strides = [1, 1]} : vector<8x384xf32> to vector<8x128xf32>
    %464 = vector.extract_strided_slice %462 {offsets = [0, 128], sizes = [8, 128], strides = [1, 1]} : vector<8x384xf32> to vector<8x128xf32>
    %465 = vector.extract_strided_slice %462 {offsets = [0, 256], sizes = [8, 128], strides = [1, 1]} : vector<8x384xf32> to vector<8x128xf32>
    %466 = vector.extract_strided_slice %454 {offsets = [0, 384], sizes = [8, 128], strides = [1, 1]} : vector<8x512xf32> to vector<8x128xf32>
    %467 = math.tanh %466 : vector<8x128xf32>
    %468 = arith.mulf %464, %443 : vector<8x128xf32>
    %469 = arith.mulf %463, %467 : vector<8x128xf32>
    %470 = arith.addf %468, %469 : vector<8x128xf32>
    %471 = math.tanh %470 : vector<8x128xf32>
    %472 = arith.mulf %465, %471 : vector<8x128xf32>
    %473 = arith.index_cast %c7_i32_182 : i32 to index
    %c0_189 = arith.constant 0 : index
    %c0_190 = arith.constant 0 : index
    %474 = vector.load %arg16[%473, %c0_189, %c0_190] : memref<8x8x128xf32, #tpu.memory_space<vmem>>, vector<1x8x128xf32>
    %475 = vector.shape_cast %474 : vector<1x8x128xf32> to vector<8x128xf32>
    %476 = vector.shape_cast %472 : vector<8x128xf32> to vector<1x8x128xf32>
    tpu.vector_store %arg16[%473, %c0_189, %c0_190], %476 {strides = array<i32>} : memref<8x8x128xf32, #tpu.memory_space<vmem>>, vector<1x8x128xf32>,
    %c8_i32_191 = arith.constant 8 : i32
    %c1_192 = arith.constant 1 : index
    %c0_193 = arith.constant 0 : index
    %c0_194 = arith.constant 0 : index
    %477 = vector.load %arg14[%c1_192, %c0_193, %c0_194] : memref<4x8x128xf32, #tpu.memory_space<vmem>>, vector<1x8x128xf32>
    %478 = vector.shape_cast %477 : vector<1x8x128xf32> to vector<8x128xf32>
    %479 = vector.shape_cast %472 : vector<8x128xf32> to vector<1x8x128xf32>
    tpu.vector_store %arg14[%c1_192, %c0_193, %c0_194], %479 {strides = array<i32>} : memref<4x8x128xf32, #tpu.memory_space<vmem>>, vector<1x8x128xf32>,
    %c1_195 = arith.constant 1 : index
    %c0_196 = arith.constant 0 : index
    %c0_197 = arith.constant 0 : index
    %480 = vector.load %arg15[%c1_195, %c0_196, %c0_197] : memref<4x8x128xf32, #tpu.memory_space<vmem>>, vector<1x8x128xf32>
    %481 = vector.shape_cast %480 : vector<1x8x128xf32> to vector<8x128xf32>
    %482 = vector.shape_cast %470 : vector<8x128xf32> to vector<1x8x128xf32>
    tpu.vector_store %arg15[%c1_195, %c0_196, %c0_197], %482 {strides = array<i32>} : memref<4x8x128xf32, #tpu.memory_space<vmem>>, vector<1x8x128xf32>,
    %c2 = arith.constant 2 : index
    %c0_198 = arith.constant 0 : index
    %c0_199 = arith.constant 0 : index
    %483 = vector.load %arg2[%c2, %c0_198, %c0_199] : memref<4x128x512xf32, #tpu.memory_space<vmem>>, vector<1x128x512xf32>
    %484 = vector.shape_cast %483 : vector<1x128x512xf32> to vector<128x512xf32>
    %c2_200 = arith.constant 2 : index
    %c0_201 = arith.constant 0 : index
    %c0_202 = arith.constant 0 : index
    %485 = vector.load %arg3[%c2_200, %c0_201, %c0_202] : memref<4x128x512xf32, #tpu.memory_space<vmem>>, vector<1x128x512xf32>
    %486 = vector.shape_cast %485 : vector<1x128x512xf32> to vector<128x512xf32>
    %c2_203 = arith.constant 2 : index
    %c0_204 = arith.constant 0 : index
    %c0_205 = arith.constant 0 : index
    %487 = vector.load %arg4[%c2_203, %c0_204, %c0_205] : memref<4x1x512xf32, #tpu.memory_space<vmem>>, vector<1x1x512xf32>
    %488 = vector.shape_cast %487 : vector<1x1x512xf32> to vector<1x512xf32>
    %c0_206 = arith.constant 0 : index
    %c0_207 = arith.constant 0 : index
    %c0_208 = arith.constant 0 : index
    %489 = vector.load %arg16[%c0_206, %c0_207, %c0_208] : memref<8x8x128xf32, #tpu.memory_space<vmem>>, vector<8x8x128xf32>
    %490 = vector.shape_cast %489 : vector<8x8x128xf32> to vector<64x128xf32>
    %cst_209 = arith.constant dense<0.000000e+00> : vector<64x512xf32>
    %491 = tpu.matmul %490, %484, %cst_209 {dimension_numbers = #tpu.dot_dimension_numbers<[1], [0], [0], [1], [0, 0, 1, 1], [], []>} : vector<64x128xf32>, vector<128x512xf32>, vector<64x512xf32> -> vector<64x512xf32>
    %492 = vector.broadcast %488 : vector<1x512xf32> to vector<64x512xf32>
    %493 = arith.addf %491, %492 : vector<64x512xf32>
    %494 = vector.shape_cast %493 : vector<64x512xf32> to vector<8x8x512xf32>
    %c0_210 = arith.constant 0 : index
    %c0_211 = arith.constant 0 : index
    %c0_212 = arith.constant 0 : index
    %495 = vector.load %arg17[%c0_210, %c0_211, %c0_212] : memref<8x8x512xf32, #tpu.memory_space<vmem>>, vector<8x8x512xf32>
    tpu.vector_store %arg17[%c0_210, %c0_211, %c0_212], %494 {strides = array<i32>} : memref<8x8x512xf32, #tpu.memory_space<vmem>>, vector<8x8x512xf32>,
    %c2_213 = arith.constant 2 : index
    %c0_214 = arith.constant 0 : index
    %c0_215 = arith.constant 0 : index
    %496 = vector.load %arg14[%c2_213, %c0_214, %c0_215] : memref<4x8x128xf32, #tpu.memory_space<vmem>>, vector<1x8x128xf32>
    %497 = vector.shape_cast %496 : vector<1x8x128xf32> to vector<8x128xf32>
    %c2_216 = arith.constant 2 : index
    %c0_217 = arith.constant 0 : index
    %c0_218 = arith.constant 0 : index
    %498 = vector.load %arg15[%c2_216, %c0_217, %c0_218] : memref<4x8x128xf32, #tpu.memory_space<vmem>>, vector<1x8x128xf32>
    %499 = vector.shape_cast %498 : vector<1x8x128xf32> to vector<8x128xf32>
    %c0_i32_219 = arith.constant 0 : i32
    %cst_220 = arith.constant dense<0.000000e+00> : vector<8x512xf32>
    %500 = tpu.matmul %497, %486, %cst_220 {dimension_numbers = #tpu.dot_dimension_numbers<[1], [0], [0], [1], [0, 0, 1, 1], [], []>} : vector<8x128xf32>, vector<128x512xf32>, vector<8x512xf32> -> vector<8x512xf32>
    %501 = arith.index_cast %c0_i32_219 : i32 to index
    %c0_221 = arith.constant 0 : index
    %c0_222 = arith.constant 0 : index
    %502 = vector.load %arg17[%501, %c0_221, %c0_222] : memref<8x8x512xf32, #tpu.memory_space<vmem>>, vector<1x8x512xf32>
    %503 = vector.shape_cast %502 : vector<1x8x512xf32> to vector<8x512xf32>
    %504 = arith.addf %500, %503 : vector<8x512xf32>
    %505 = vector.extract_strided_slice %504 {offsets = [0, 0], sizes = [8, 384], strides = [1, 1]} : vector<8x512xf32> to vector<8x384xf32>
    %cst_223 = arith.constant 5.000000e-01 : f32
    %506 = vector.broadcast %cst_223 : f32 to vector<8x384xf32>
    %507 = arith.mulf %506, %505 : vector<8x384xf32>
    %508 = math.tanh %507 : vector<8x384xf32>
    %cst_224 = arith.constant 5.000000e-01 : f32
    %509 = vector.broadcast %cst_224 : f32 to vector<8x384xf32>
    %510 = arith.mulf %509, %508 : vector<8x384xf32>
    %cst_225 = arith.constant 5.000000e-01 : f32
    %511 = vector.broadcast %cst_225 : f32 to vector<8x384xf32>
    %512 = arith.addf %510, %511 : vector<8x384xf32>
    %513 = vector.extract_strided_slice %512 {offsets = [0, 0], sizes = [8, 128], strides = [1, 1]} : vector<8x384xf32> to vector<8x128xf32>
    %514 = vector.extract_strided_slice %512 {offsets = [0, 128], sizes = [8, 128], strides = [1, 1]} : vector<8x384xf32> to vector<8x128xf32>
    %515 = vector.extract_strided_slice %512 {offsets = [0, 256], sizes = [8, 128], strides = [1, 1]} : vector<8x384xf32> to vector<8x128xf32>
    %516 = vector.extract_strided_slice %504 {offsets = [0, 384], sizes = [8, 128], strides = [1, 1]} : vector<8x512xf32> to vector<8x128xf32>
    %517 = math.tanh %516 : vector<8x128xf32>
    %518 = arith.mulf %514, %499 : vector<8x128xf32>
    %519 = arith.mulf %513, %517 : vector<8x128xf32>
    %520 = arith.addf %518, %519 : vector<8x128xf32>
    %521 = math.tanh %520 : vector<8x128xf32>
    %522 = arith.mulf %515, %521 : vector<8x128xf32>
    %523 = arith.index_cast %c0_i32_219 : i32 to index
    %c0_226 = arith.constant 0 : index
    %c0_227 = arith.constant 0 : index
    %524 = vector.load %arg16[%523, %c0_226, %c0_227] : memref<8x8x128xf32, #tpu.memory_space<vmem>>, vector<1x8x128xf32>
    %525 = vector.shape_cast %524 : vector<1x8x128xf32> to vector<8x128xf32>
    %526 = vector.shape_cast %522 : vector<8x128xf32> to vector<1x8x128xf32>
    tpu.vector_store %arg16[%523, %c0_226, %c0_227], %526 {strides = array<i32>} : memref<8x8x128xf32, #tpu.memory_space<vmem>>, vector<1x8x128xf32>,
    %c1_i32_228 = arith.constant 1 : i32
    %cst_229 = arith.constant dense<0.000000e+00> : vector<8x512xf32>
    %527 = tpu.matmul %522, %486, %cst_229 {dimension_numbers = #tpu.dot_dimension_numbers<[1], [0], [0], [1], [0, 0, 1, 1], [], []>} : vector<8x128xf32>, vector<128x512xf32>, vector<8x512xf32> -> vector<8x512xf32>
    %528 = arith.index_cast %c1_i32_228 : i32 to index
    %c0_230 = arith.constant 0 : index
    %c0_231 = arith.constant 0 : index
    %529 = vector.load %arg17[%528, %c0_230, %c0_231] : memref<8x8x512xf32, #tpu.memory_space<vmem>>, vector<1x8x512xf32>
    %530 = vector.shape_cast %529 : vector<1x8x512xf32> to vector<8x512xf32>
    %531 = arith.addf %527, %530 : vector<8x512xf32>
    %532 = vector.extract_strided_slice %531 {offsets = [0, 0], sizes = [8, 384], strides = [1, 1]} : vector<8x512xf32> to vector<8x384xf32>
    %cst_232 = arith.constant 5.000000e-01 : f32
    %533 = vector.broadcast %cst_232 : f32 to vector<8x384xf32>
    %534 = arith.mulf %533, %532 : vector<8x384xf32>
    %535 = math.tanh %534 : vector<8x384xf32>
    %cst_233 = arith.constant 5.000000e-01 : f32
    %536 = vector.broadcast %cst_233 : f32 to vector<8x384xf32>
    %537 = arith.mulf %536, %535 : vector<8x384xf32>
    %cst_234 = arith.constant 5.000000e-01 : f32
    %538 = vector.broadcast %cst_234 : f32 to vector<8x384xf32>
    %539 = arith.addf %537, %538 : vector<8x384xf32>
    %540 = vector.extract_strided_slice %539 {offsets = [0, 0], sizes = [8, 128], strides = [1, 1]} : vector<8x384xf32> to vector<8x128xf32>
    %541 = vector.extract_strided_slice %539 {offsets = [0, 128], sizes = [8, 128], strides = [1, 1]} : vector<8x384xf32> to vector<8x128xf32>
    %542 = vector.extract_strided_slice %539 {offsets = [0, 256], sizes = [8, 128], strides = [1, 1]} : vector<8x384xf32> to vector<8x128xf32>
    %543 = vector.extract_strided_slice %531 {offsets = [0, 384], sizes = [8, 128], strides = [1, 1]} : vector<8x512xf32> to vector<8x128xf32>
    %544 = math.tanh %543 : vector<8x128xf32>
    %545 = arith.mulf %541, %520 : vector<8x128xf32>
    %546 = arith.mulf %540, %544 : vector<8x128xf32>
    %547 = arith.addf %545, %546 : vector<8x128xf32>
    %548 = math.tanh %547 : vector<8x128xf32>
    %549 = arith.mulf %542, %548 : vector<8x128xf32>
    %550 = arith.index_cast %c1_i32_228 : i32 to index
    %c0_235 = arith.constant 0 : index
    %c0_236 = arith.constant 0 : index
    %551 = vector.load %arg16[%550, %c0_235, %c0_236] : memref<8x8x128xf32, #tpu.memory_space<vmem>>, vector<1x8x128xf32>
    %552 = vector.shape_cast %551 : vector<1x8x128xf32> to vector<8x128xf32>
    %553 = vector.shape_cast %549 : vector<8x128xf32> to vector<1x8x128xf32>
    tpu.vector_store %arg16[%550, %c0_235, %c0_236], %553 {strides = array<i32>} : memref<8x8x128xf32, #tpu.memory_space<vmem>>, vector<1x8x128xf32>,
    %c2_i32_237 = arith.constant 2 : i32
    %cst_238 = arith.constant dense<0.000000e+00> : vector<8x512xf32>
    %554 = tpu.matmul %549, %486, %cst_238 {dimension_numbers = #tpu.dot_dimension_numbers<[1], [0], [0], [1], [0, 0, 1, 1], [], []>} : vector<8x128xf32>, vector<128x512xf32>, vector<8x512xf32> -> vector<8x512xf32>
    %555 = arith.index_cast %c2_i32_237 : i32 to index
    %c0_239 = arith.constant 0 : index
    %c0_240 = arith.constant 0 : index
    %556 = vector.load %arg17[%555, %c0_239, %c0_240] : memref<8x8x512xf32, #tpu.memory_space<vmem>>, vector<1x8x512xf32>
    %557 = vector.shape_cast %556 : vector<1x8x512xf32> to vector<8x512xf32>
    %558 = arith.addf %554, %557 : vector<8x512xf32>
    %559 = vector.extract_strided_slice %558 {offsets = [0, 0], sizes = [8, 384], strides = [1, 1]} : vector<8x512xf32> to vector<8x384xf32>
    %cst_241 = arith.constant 5.000000e-01 : f32
    %560 = vector.broadcast %cst_241 : f32 to vector<8x384xf32>
    %561 = arith.mulf %560, %559 : vector<8x384xf32>
    %562 = math.tanh %561 : vector<8x384xf32>
    %cst_242 = arith.constant 5.000000e-01 : f32
    %563 = vector.broadcast %cst_242 : f32 to vector<8x384xf32>
    %564 = arith.mulf %563, %562 : vector<8x384xf32>
    %cst_243 = arith.constant 5.000000e-01 : f32
    %565 = vector.broadcast %cst_243 : f32 to vector<8x384xf32>
    %566 = arith.addf %564, %565 : vector<8x384xf32>
    %567 = vector.extract_strided_slice %566 {offsets = [0, 0], sizes = [8, 128], strides = [1, 1]} : vector<8x384xf32> to vector<8x128xf32>
    %568 = vector.extract_strided_slice %566 {offsets = [0, 128], sizes = [8, 128], strides = [1, 1]} : vector<8x384xf32> to vector<8x128xf32>
    %569 = vector.extract_strided_slice %566 {offsets = [0, 256], sizes = [8, 128], strides = [1, 1]} : vector<8x384xf32> to vector<8x128xf32>
    %570 = vector.extract_strided_slice %558 {offsets = [0, 384], sizes = [8, 128], strides = [1, 1]} : vector<8x512xf32> to vector<8x128xf32>
    %571 = math.tanh %570 : vector<8x128xf32>
    %572 = arith.mulf %568, %547 : vector<8x128xf32>
    %573 = arith.mulf %567, %571 : vector<8x128xf32>
    %574 = arith.addf %572, %573 : vector<8x128xf32>
    %575 = math.tanh %574 : vector<8x128xf32>
    %576 = arith.mulf %569, %575 : vector<8x128xf32>
    %577 = arith.index_cast %c2_i32_237 : i32 to index
    %c0_244 = arith.constant 0 : index
    %c0_245 = arith.constant 0 : index
    %578 = vector.load %arg16[%577, %c0_244, %c0_245] : memref<8x8x128xf32, #tpu.memory_space<vmem>>, vector<1x8x128xf32>
    %579 = vector.shape_cast %578 : vector<1x8x128xf32> to vector<8x128xf32>
    %580 = vector.shape_cast %576 : vector<8x128xf32> to vector<1x8x128xf32>
    tpu.vector_store %arg16[%577, %c0_244, %c0_245], %580 {strides = array<i32>} : memref<8x8x128xf32, #tpu.memory_space<vmem>>, vector<1x8x128xf32>,
    %c3_i32_246 = arith.constant 3 : i32
    %cst_247 = arith.constant dense<0.000000e+00> : vector<8x512xf32>
    %581 = tpu.matmul %576, %486, %cst_247 {dimension_numbers = #tpu.dot_dimension_numbers<[1], [0], [0], [1], [0, 0, 1, 1], [], []>} : vector<8x128xf32>, vector<128x512xf32>, vector<8x512xf32> -> vector<8x512xf32>
    %582 = arith.index_cast %c3_i32_246 : i32 to index
    %c0_248 = arith.constant 0 : index
    %c0_249 = arith.constant 0 : index
    %583 = vector.load %arg17[%582, %c0_248, %c0_249] : memref<8x8x512xf32, #tpu.memory_space<vmem>>, vector<1x8x512xf32>
    %584 = vector.shape_cast %583 : vector<1x8x512xf32> to vector<8x512xf32>
    %585 = arith.addf %581, %584 : vector<8x512xf32>
    %586 = vector.extract_strided_slice %585 {offsets = [0, 0], sizes = [8, 384], strides = [1, 1]} : vector<8x512xf32> to vector<8x384xf32>
    %cst_250 = arith.constant 5.000000e-01 : f32
    %587 = vector.broadcast %cst_250 : f32 to vector<8x384xf32>
    %588 = arith.mulf %587, %586 : vector<8x384xf32>
    %589 = math.tanh %588 : vector<8x384xf32>
    %cst_251 = arith.constant 5.000000e-01 : f32
    %590 = vector.broadcast %cst_251 : f32 to vector<8x384xf32>
    %591 = arith.mulf %590, %589 : vector<8x384xf32>
    %cst_252 = arith.constant 5.000000e-01 : f32
    %592 = vector.broadcast %cst_252 : f32 to vector<8x384xf32>
    %593 = arith.addf %591, %592 : vector<8x384xf32>
    %594 = vector.extract_strided_slice %593 {offsets = [0, 0], sizes = [8, 128], strides = [1, 1]} : vector<8x384xf32> to vector<8x128xf32>
    %595 = vector.extract_strided_slice %593 {offsets = [0, 128], sizes = [8, 128], strides = [1, 1]} : vector<8x384xf32> to vector<8x128xf32>
    %596 = vector.extract_strided_slice %593 {offsets = [0, 256], sizes = [8, 128], strides = [1, 1]} : vector<8x384xf32> to vector<8x128xf32>
    %597 = vector.extract_strided_slice %585 {offsets = [0, 384], sizes = [8, 128], strides = [1, 1]} : vector<8x512xf32> to vector<8x128xf32>
    %598 = math.tanh %597 : vector<8x128xf32>
    %599 = arith.mulf %595, %574 : vector<8x128xf32>
    %600 = arith.mulf %594, %598 : vector<8x128xf32>
    %601 = arith.addf %599, %600 : vector<8x128xf32>
    %602 = math.tanh %601 : vector<8x128xf32>
    %603 = arith.mulf %596, %602 : vector<8x128xf32>
    %604 = arith.index_cast %c3_i32_246 : i32 to index
    %c0_253 = arith.constant 0 : index
    %c0_254 = arith.constant 0 : index
    %605 = vector.load %arg16[%604, %c0_253, %c0_254] : memref<8x8x128xf32, #tpu.memory_space<vmem>>, vector<1x8x128xf32>
    %606 = vector.shape_cast %605 : vector<1x8x128xf32> to vector<8x128xf32>
    %607 = vector.shape_cast %603 : vector<8x128xf32> to vector<1x8x128xf32>
    tpu.vector_store %arg16[%604, %c0_253, %c0_254], %607 {strides = array<i32>} : memref<8x8x128xf32, #tpu.memory_space<vmem>>, vector<1x8x128xf32>,
    %c4_i32_255 = arith.constant 4 : i32
    %cst_256 = arith.constant dense<0.000000e+00> : vector<8x512xf32>
    %608 = tpu.matmul %603, %486, %cst_256 {dimension_numbers = #tpu.dot_dimension_numbers<[1], [0], [0], [1], [0, 0, 1, 1], [], []>} : vector<8x128xf32>, vector<128x512xf32>, vector<8x512xf32> -> vector<8x512xf32>
    %609 = arith.index_cast %c4_i32_255 : i32 to index
    %c0_257 = arith.constant 0 : index
    %c0_258 = arith.constant 0 : index
    %610 = vector.load %arg17[%609, %c0_257, %c0_258] : memref<8x8x512xf32, #tpu.memory_space<vmem>>, vector<1x8x512xf32>
    %611 = vector.shape_cast %610 : vector<1x8x512xf32> to vector<8x512xf32>
    %612 = arith.addf %608, %611 : vector<8x512xf32>
    %613 = vector.extract_strided_slice %612 {offsets = [0, 0], sizes = [8, 384], strides = [1, 1]} : vector<8x512xf32> to vector<8x384xf32>
    %cst_259 = arith.constant 5.000000e-01 : f32
    %614 = vector.broadcast %cst_259 : f32 to vector<8x384xf32>
    %615 = arith.mulf %614, %613 : vector<8x384xf32>
    %616 = math.tanh %615 : vector<8x384xf32>
    %cst_260 = arith.constant 5.000000e-01 : f32
    %617 = vector.broadcast %cst_260 : f32 to vector<8x384xf32>
    %618 = arith.mulf %617, %616 : vector<8x384xf32>
    %cst_261 = arith.constant 5.000000e-01 : f32
    %619 = vector.broadcast %cst_261 : f32 to vector<8x384xf32>
    %620 = arith.addf %618, %619 : vector<8x384xf32>
    %621 = vector.extract_strided_slice %620 {offsets = [0, 0], sizes = [8, 128], strides = [1, 1]} : vector<8x384xf32> to vector<8x128xf32>
    %622 = vector.extract_strided_slice %620 {offsets = [0, 128], sizes = [8, 128], strides = [1, 1]} : vector<8x384xf32> to vector<8x128xf32>
    %623 = vector.extract_strided_slice %620 {offsets = [0, 256], sizes = [8, 128], strides = [1, 1]} : vector<8x384xf32> to vector<8x128xf32>
    %624 = vector.extract_strided_slice %612 {offsets = [0, 384], sizes = [8, 128], strides = [1, 1]} : vector<8x512xf32> to vector<8x128xf32>
    %625 = math.tanh %624 : vector<8x128xf32>
    %626 = arith.mulf %622, %601 : vector<8x128xf32>
    %627 = arith.mulf %621, %625 : vector<8x128xf32>
    %628 = arith.addf %626, %627 : vector<8x128xf32>
    %629 = math.tanh %628 : vector<8x128xf32>
    %630 = arith.mulf %623, %629 : vector<8x128xf32>
    %631 = arith.index_cast %c4_i32_255 : i32 to index
    %c0_262 = arith.constant 0 : index
    %c0_263 = arith.constant 0 : index
    %632 = vector.load %arg16[%631, %c0_262, %c0_263] : memref<8x8x128xf32, #tpu.memory_space<vmem>>, vector<1x8x128xf32>
    %633 = vector.shape_cast %632 : vector<1x8x128xf32> to vector<8x128xf32>
    %634 = vector.shape_cast %630 : vector<8x128xf32> to vector<1x8x128xf32>
    tpu.vector_store %arg16[%631, %c0_262, %c0_263], %634 {strides = array<i32>} : memref<8x8x128xf32, #tpu.memory_space<vmem>>, vector<1x8x128xf32>,
    %c5_i32_264 = arith.constant 5 : i32
    %cst_265 = arith.constant dense<0.000000e+00> : vector<8x512xf32>
    %635 = tpu.matmul %630, %486, %cst_265 {dimension_numbers = #tpu.dot_dimension_numbers<[1], [0], [0], [1], [0, 0, 1, 1], [], []>} : vector<8x128xf32>, vector<128x512xf32>, vector<8x512xf32> -> vector<8x512xf32>
    %636 = arith.index_cast %c5_i32_264 : i32 to index
    %c0_266 = arith.constant 0 : index
    %c0_267 = arith.constant 0 : index
    %637 = vector.load %arg17[%636, %c0_266, %c0_267] : memref<8x8x512xf32, #tpu.memory_space<vmem>>, vector<1x8x512xf32>
    %638 = vector.shape_cast %637 : vector<1x8x512xf32> to vector<8x512xf32>
    %639 = arith.addf %635, %638 : vector<8x512xf32>
    %640 = vector.extract_strided_slice %639 {offsets = [0, 0], sizes = [8, 384], strides = [1, 1]} : vector<8x512xf32> to vector<8x384xf32>
    %cst_268 = arith.constant 5.000000e-01 : f32
    %641 = vector.broadcast %cst_268 : f32 to vector<8x384xf32>
    %642 = arith.mulf %641, %640 : vector<8x384xf32>
    %643 = math.tanh %642 : vector<8x384xf32>
    %cst_269 = arith.constant 5.000000e-01 : f32
    %644 = vector.broadcast %cst_269 : f32 to vector<8x384xf32>
    %645 = arith.mulf %644, %643 : vector<8x384xf32>
    %cst_270 = arith.constant 5.000000e-01 : f32
    %646 = vector.broadcast %cst_270 : f32 to vector<8x384xf32>
    %647 = arith.addf %645, %646 : vector<8x384xf32>
    %648 = vector.extract_strided_slice %647 {offsets = [0, 0], sizes = [8, 128], strides = [1, 1]} : vector<8x384xf32> to vector<8x128xf32>
    %649 = vector.extract_strided_slice %647 {offsets = [0, 128], sizes = [8, 128], strides = [1, 1]} : vector<8x384xf32> to vector<8x128xf32>
    %650 = vector.extract_strided_slice %647 {offsets = [0, 256], sizes = [8, 128], strides = [1, 1]} : vector<8x384xf32> to vector<8x128xf32>
    %651 = vector.extract_strided_slice %639 {offsets = [0, 384], sizes = [8, 128], strides = [1, 1]} : vector<8x512xf32> to vector<8x128xf32>
    %652 = math.tanh %651 : vector<8x128xf32>
    %653 = arith.mulf %649, %628 : vector<8x128xf32>
    %654 = arith.mulf %648, %652 : vector<8x128xf32>
    %655 = arith.addf %653, %654 : vector<8x128xf32>
    %656 = math.tanh %655 : vector<8x128xf32>
    %657 = arith.mulf %650, %656 : vector<8x128xf32>
    %658 = arith.index_cast %c5_i32_264 : i32 to index
    %c0_271 = arith.constant 0 : index
    %c0_272 = arith.constant 0 : index
    %659 = vector.load %arg16[%658, %c0_271, %c0_272] : memref<8x8x128xf32, #tpu.memory_space<vmem>>, vector<1x8x128xf32>
    %660 = vector.shape_cast %659 : vector<1x8x128xf32> to vector<8x128xf32>
    %661 = vector.shape_cast %657 : vector<8x128xf32> to vector<1x8x128xf32>
    tpu.vector_store %arg16[%658, %c0_271, %c0_272], %661 {strides = array<i32>} : memref<8x8x128xf32, #tpu.memory_space<vmem>>, vector<1x8x128xf32>,
    %c6_i32_273 = arith.constant 6 : i32
    %cst_274 = arith.constant dense<0.000000e+00> : vector<8x512xf32>
    %662 = tpu.matmul %657, %486, %cst_274 {dimension_numbers = #tpu.dot_dimension_numbers<[1], [0], [0], [1], [0, 0, 1, 1], [], []>} : vector<8x128xf32>, vector<128x512xf32>, vector<8x512xf32> -> vector<8x512xf32>
    %663 = arith.index_cast %c6_i32_273 : i32 to index
    %c0_275 = arith.constant 0 : index
    %c0_276 = arith.constant 0 : index
    %664 = vector.load %arg17[%663, %c0_275, %c0_276] : memref<8x8x512xf32, #tpu.memory_space<vmem>>, vector<1x8x512xf32>
    %665 = vector.shape_cast %664 : vector<1x8x512xf32> to vector<8x512xf32>
    %666 = arith.addf %662, %665 : vector<8x512xf32>
    %667 = vector.extract_strided_slice %666 {offsets = [0, 0], sizes = [8, 384], strides = [1, 1]} : vector<8x512xf32> to vector<8x384xf32>
    %cst_277 = arith.constant 5.000000e-01 : f32
    %668 = vector.broadcast %cst_277 : f32 to vector<8x384xf32>
    %669 = arith.mulf %668, %667 : vector<8x384xf32>
    %670 = math.tanh %669 : vector<8x384xf32>
    %cst_278 = arith.constant 5.000000e-01 : f32
    %671 = vector.broadcast %cst_278 : f32 to vector<8x384xf32>
    %672 = arith.mulf %671, %670 : vector<8x384xf32>
    %cst_279 = arith.constant 5.000000e-01 : f32
    %673 = vector.broadcast %cst_279 : f32 to vector<8x384xf32>
    %674 = arith.addf %672, %673 : vector<8x384xf32>
    %675 = vector.extract_strided_slice %674 {offsets = [0, 0], sizes = [8, 128], strides = [1, 1]} : vector<8x384xf32> to vector<8x128xf32>
    %676 = vector.extract_strided_slice %674 {offsets = [0, 128], sizes = [8, 128], strides = [1, 1]} : vector<8x384xf32> to vector<8x128xf32>
    %677 = vector.extract_strided_slice %674 {offsets = [0, 256], sizes = [8, 128], strides = [1, 1]} : vector<8x384xf32> to vector<8x128xf32>
    %678 = vector.extract_strided_slice %666 {offsets = [0, 384], sizes = [8, 128], strides = [1, 1]} : vector<8x512xf32> to vector<8x128xf32>
    %679 = math.tanh %678 : vector<8x128xf32>
    %680 = arith.mulf %676, %655 : vector<8x128xf32>
    %681 = arith.mulf %675, %679 : vector<8x128xf32>
    %682 = arith.addf %680, %681 : vector<8x128xf32>
    %683 = math.tanh %682 : vector<8x128xf32>
    %684 = arith.mulf %677, %683 : vector<8x128xf32>
    %685 = arith.index_cast %c6_i32_273 : i32 to index
    %c0_280 = arith.constant 0 : index
    %c0_281 = arith.constant 0 : index
    %686 = vector.load %arg16[%685, %c0_280, %c0_281] : memref<8x8x128xf32, #tpu.memory_space<vmem>>, vector<1x8x128xf32>
    %687 = vector.shape_cast %686 : vector<1x8x128xf32> to vector<8x128xf32>
    %688 = vector.shape_cast %684 : vector<8x128xf32> to vector<1x8x128xf32>
    tpu.vector_store %arg16[%685, %c0_280, %c0_281], %688 {strides = array<i32>} : memref<8x8x128xf32, #tpu.memory_space<vmem>>, vector<1x8x128xf32>,
    %c7_i32_282 = arith.constant 7 : i32
    %cst_283 = arith.constant dense<0.000000e+00> : vector<8x512xf32>
    %689 = tpu.matmul %684, %486, %cst_283 {dimension_numbers = #tpu.dot_dimension_numbers<[1], [0], [0], [1], [0, 0, 1, 1], [], []>} : vector<8x128xf32>, vector<128x512xf32>, vector<8x512xf32> -> vector<8x512xf32>
    %690 = arith.index_cast %c7_i32_282 : i32 to index
    %c0_284 = arith.constant 0 : index
    %c0_285 = arith.constant 0 : index
    %691 = vector.load %arg17[%690, %c0_284, %c0_285] : memref<8x8x512xf32, #tpu.memory_space<vmem>>, vector<1x8x512xf32>
    %692 = vector.shape_cast %691 : vector<1x8x512xf32> to vector<8x512xf32>
    %693 = arith.addf %689, %692 : vector<8x512xf32>
    %694 = vector.extract_strided_slice %693 {offsets = [0, 0], sizes = [8, 384], strides = [1, 1]} : vector<8x512xf32> to vector<8x384xf32>
    %cst_286 = arith.constant 5.000000e-01 : f32
    %695 = vector.broadcast %cst_286 : f32 to vector<8x384xf32>
    %696 = arith.mulf %695, %694 : vector<8x384xf32>
    %697 = math.tanh %696 : vector<8x384xf32>
    %cst_287 = arith.constant 5.000000e-01 : f32
    %698 = vector.broadcast %cst_287 : f32 to vector<8x384xf32>
    %699 = arith.mulf %698, %697 : vector<8x384xf32>
    %cst_288 = arith.constant 5.000000e-01 : f32
    %700 = vector.broadcast %cst_288 : f32 to vector<8x384xf32>
    %701 = arith.addf %699, %700 : vector<8x384xf32>
    %702 = vector.extract_strided_slice %701 {offsets = [0, 0], sizes = [8, 128], strides = [1, 1]} : vector<8x384xf32> to vector<8x128xf32>
    %703 = vector.extract_strided_slice %701 {offsets = [0, 128], sizes = [8, 128], strides = [1, 1]} : vector<8x384xf32> to vector<8x128xf32>
    %704 = vector.extract_strided_slice %701 {offsets = [0, 256], sizes = [8, 128], strides = [1, 1]} : vector<8x384xf32> to vector<8x128xf32>
    %705 = vector.extract_strided_slice %693 {offsets = [0, 384], sizes = [8, 128], strides = [1, 1]} : vector<8x512xf32> to vector<8x128xf32>
    %706 = math.tanh %705 : vector<8x128xf32>
    %707 = arith.mulf %703, %682 : vector<8x128xf32>
    %708 = arith.mulf %702, %706 : vector<8x128xf32>
    %709 = arith.addf %707, %708 : vector<8x128xf32>
    %710 = math.tanh %709 : vector<8x128xf32>
    %711 = arith.mulf %704, %710 : vector<8x128xf32>
    %712 = arith.index_cast %c7_i32_282 : i32 to index
    %c0_289 = arith.constant 0 : index
    %c0_290 = arith.constant 0 : index
    %713 = vector.load %arg16[%712, %c0_289, %c0_290] : memref<8x8x128xf32, #tpu.memory_space<vmem>>, vector<1x8x128xf32>
    %714 = vector.shape_cast %713 : vector<1x8x128xf32> to vector<8x128xf32>
    %715 = vector.shape_cast %711 : vector<8x128xf32> to vector<1x8x128xf32>
    tpu.vector_store %arg16[%712, %c0_289, %c0_290], %715 {strides = array<i32>} : memref<8x8x128xf32, #tpu.memory_space<vmem>>, vector<1x8x128xf32>,
    %c8_i32_291 = arith.constant 8 : i32
    %c2_292 = arith.constant 2 : index
    %c0_293 = arith.constant 0 : index
    %c0_294 = arith.constant 0 : index
    %716 = vector.load %arg14[%c2_292, %c0_293, %c0_294] : memref<4x8x128xf32, #tpu.memory_space<vmem>>, vector<1x8x128xf32>
    %717 = vector.shape_cast %716 : vector<1x8x128xf32> to vector<8x128xf32>
    %718 = vector.shape_cast %711 : vector<8x128xf32> to vector<1x8x128xf32>
    tpu.vector_store %arg14[%c2_292, %c0_293, %c0_294], %718 {strides = array<i32>} : memref<4x8x128xf32, #tpu.memory_space<vmem>>, vector<1x8x128xf32>,
    %c2_295 = arith.constant 2 : index
    %c0_296 = arith.constant 0 : index
    %c0_297 = arith.constant 0 : index
    %719 = vector.load %arg15[%c2_295, %c0_296, %c0_297] : memref<4x8x128xf32, #tpu.memory_space<vmem>>, vector<1x8x128xf32>
    %720 = vector.shape_cast %719 : vector<1x8x128xf32> to vector<8x128xf32>
    %721 = vector.shape_cast %709 : vector<8x128xf32> to vector<1x8x128xf32>
    tpu.vector_store %arg15[%c2_295, %c0_296, %c0_297], %721 {strides = array<i32>} : memref<4x8x128xf32, #tpu.memory_space<vmem>>, vector<1x8x128xf32>,
    %c3 = arith.constant 3 : index
    %c0_298 = arith.constant 0 : index
    %c0_299 = arith.constant 0 : index
    %722 = vector.load %arg2[%c3, %c0_298, %c0_299] : memref<4x128x512xf32, #tpu.memory_space<vmem>>, vector<1x128x512xf32>
    %723 = vector.shape_cast %722 : vector<1x128x512xf32> to vector<128x512xf32>
    %c3_300 = arith.constant 3 : index
    %c0_301 = arith.constant 0 : index
    %c0_302 = arith.constant 0 : index
    %724 = vector.load %arg3[%c3_300, %c0_301, %c0_302] : memref<4x128x512xf32, #tpu.memory_space<vmem>>, vector<1x128x512xf32>
    %725 = vector.shape_cast %724 : vector<1x128x512xf32> to vector<128x512xf32>
    %c3_303 = arith.constant 3 : index
    %c0_304 = arith.constant 0 : index
    %c0_305 = arith.constant 0 : index
    %726 = vector.load %arg4[%c3_303, %c0_304, %c0_305] : memref<4x1x512xf32, #tpu.memory_space<vmem>>, vector<1x1x512xf32>
    %727 = vector.shape_cast %726 : vector<1x1x512xf32> to vector<1x512xf32>
    %c0_306 = arith.constant 0 : index
    %c0_307 = arith.constant 0 : index
    %c0_308 = arith.constant 0 : index
    %728 = vector.load %arg16[%c0_306, %c0_307, %c0_308] : memref<8x8x128xf32, #tpu.memory_space<vmem>>, vector<8x8x128xf32>
    %729 = vector.shape_cast %728 : vector<8x8x128xf32> to vector<64x128xf32>
    %cst_309 = arith.constant dense<0.000000e+00> : vector<64x512xf32>
    %730 = tpu.matmul %729, %723, %cst_309 {dimension_numbers = #tpu.dot_dimension_numbers<[1], [0], [0], [1], [0, 0, 1, 1], [], []>} : vector<64x128xf32>, vector<128x512xf32>, vector<64x512xf32> -> vector<64x512xf32>
    %731 = vector.broadcast %727 : vector<1x512xf32> to vector<64x512xf32>
    %732 = arith.addf %730, %731 : vector<64x512xf32>
    %733 = vector.shape_cast %732 : vector<64x512xf32> to vector<8x8x512xf32>
    %c0_310 = arith.constant 0 : index
    %c0_311 = arith.constant 0 : index
    %c0_312 = arith.constant 0 : index
    %734 = vector.load %arg17[%c0_310, %c0_311, %c0_312] : memref<8x8x512xf32, #tpu.memory_space<vmem>>, vector<8x8x512xf32>
    tpu.vector_store %arg17[%c0_310, %c0_311, %c0_312], %733 {strides = array<i32>} : memref<8x8x512xf32, #tpu.memory_space<vmem>>, vector<8x8x512xf32>,
    %c3_313 = arith.constant 3 : index
    %c0_314 = arith.constant 0 : index
    %c0_315 = arith.constant 0 : index
    %735 = vector.load %arg14[%c3_313, %c0_314, %c0_315] : memref<4x8x128xf32, #tpu.memory_space<vmem>>, vector<1x8x128xf32>
    %736 = vector.shape_cast %735 : vector<1x8x128xf32> to vector<8x128xf32>
    %c3_316 = arith.constant 3 : index
    %c0_317 = arith.constant 0 : index
    %c0_318 = arith.constant 0 : index
    %737 = vector.load %arg15[%c3_316, %c0_317, %c0_318] : memref<4x8x128xf32, #tpu.memory_space<vmem>>, vector<1x8x128xf32>
    %738 = vector.shape_cast %737 : vector<1x8x128xf32> to vector<8x128xf32>
    %c0_i32_319 = arith.constant 0 : i32
    %cst_320 = arith.constant dense<0.000000e+00> : vector<8x512xf32>
    %739 = tpu.matmul %736, %725, %cst_320 {dimension_numbers = #tpu.dot_dimension_numbers<[1], [0], [0], [1], [0, 0, 1, 1], [], []>} : vector<8x128xf32>, vector<128x512xf32>, vector<8x512xf32> -> vector<8x512xf32>
    %740 = arith.index_cast %c0_i32_319 : i32 to index
    %c0_321 = arith.constant 0 : index
    %c0_322 = arith.constant 0 : index
    %741 = vector.load %arg17[%740, %c0_321, %c0_322] : memref<8x8x512xf32, #tpu.memory_space<vmem>>, vector<1x8x512xf32>
    %742 = vector.shape_cast %741 : vector<1x8x512xf32> to vector<8x512xf32>
    %743 = arith.addf %739, %742 : vector<8x512xf32>
    %744 = vector.extract_strided_slice %743 {offsets = [0, 0], sizes = [8, 384], strides = [1, 1]} : vector<8x512xf32> to vector<8x384xf32>
    %cst_323 = arith.constant 5.000000e-01 : f32
    %745 = vector.broadcast %cst_323 : f32 to vector<8x384xf32>
    %746 = arith.mulf %745, %744 : vector<8x384xf32>
    %747 = math.tanh %746 : vector<8x384xf32>
    %cst_324 = arith.constant 5.000000e-01 : f32
    %748 = vector.broadcast %cst_324 : f32 to vector<8x384xf32>
    %749 = arith.mulf %748, %747 : vector<8x384xf32>
    %cst_325 = arith.constant 5.000000e-01 : f32
    %750 = vector.broadcast %cst_325 : f32 to vector<8x384xf32>
    %751 = arith.addf %749, %750 : vector<8x384xf32>
    %752 = vector.extract_strided_slice %751 {offsets = [0, 0], sizes = [8, 128], strides = [1, 1]} : vector<8x384xf32> to vector<8x128xf32>
    %753 = vector.extract_strided_slice %751 {offsets = [0, 128], sizes = [8, 128], strides = [1, 1]} : vector<8x384xf32> to vector<8x128xf32>
    %754 = vector.extract_strided_slice %751 {offsets = [0, 256], sizes = [8, 128], strides = [1, 1]} : vector<8x384xf32> to vector<8x128xf32>
    %755 = vector.extract_strided_slice %743 {offsets = [0, 384], sizes = [8, 128], strides = [1, 1]} : vector<8x512xf32> to vector<8x128xf32>
    %756 = math.tanh %755 : vector<8x128xf32>
    %757 = arith.mulf %753, %738 : vector<8x128xf32>
    %758 = arith.mulf %752, %756 : vector<8x128xf32>
    %759 = arith.addf %757, %758 : vector<8x128xf32>
    %760 = math.tanh %759 : vector<8x128xf32>
    %761 = arith.mulf %754, %760 : vector<8x128xf32>
    %762 = arith.index_cast %c0_i32_319 : i32 to index
    %c0_326 = arith.constant 0 : index
    %c0_327 = arith.constant 0 : index
    %763 = vector.load %arg16[%762, %c0_326, %c0_327] : memref<8x8x128xf32, #tpu.memory_space<vmem>>, vector<1x8x128xf32>
    %764 = vector.shape_cast %763 : vector<1x8x128xf32> to vector<8x128xf32>
    %765 = vector.shape_cast %761 : vector<8x128xf32> to vector<1x8x128xf32>
    tpu.vector_store %arg16[%762, %c0_326, %c0_327], %765 {strides = array<i32>} : memref<8x8x128xf32, #tpu.memory_space<vmem>>, vector<1x8x128xf32>,
    %c1_i32_328 = arith.constant 1 : i32
    %cst_329 = arith.constant dense<0.000000e+00> : vector<8x512xf32>
    %766 = tpu.matmul %761, %725, %cst_329 {dimension_numbers = #tpu.dot_dimension_numbers<[1], [0], [0], [1], [0, 0, 1, 1], [], []>} : vector<8x128xf32>, vector<128x512xf32>, vector<8x512xf32> -> vector<8x512xf32>
    %767 = arith.index_cast %c1_i32_328 : i32 to index
    %c0_330 = arith.constant 0 : index
    %c0_331 = arith.constant 0 : index
    %768 = vector.load %arg17[%767, %c0_330, %c0_331] : memref<8x8x512xf32, #tpu.memory_space<vmem>>, vector<1x8x512xf32>
    %769 = vector.shape_cast %768 : vector<1x8x512xf32> to vector<8x512xf32>
    %770 = arith.addf %766, %769 : vector<8x512xf32>
    %771 = vector.extract_strided_slice %770 {offsets = [0, 0], sizes = [8, 384], strides = [1, 1]} : vector<8x512xf32> to vector<8x384xf32>
    %cst_332 = arith.constant 5.000000e-01 : f32
    %772 = vector.broadcast %cst_332 : f32 to vector<8x384xf32>
    %773 = arith.mulf %772, %771 : vector<8x384xf32>
    %774 = math.tanh %773 : vector<8x384xf32>
    %cst_333 = arith.constant 5.000000e-01 : f32
    %775 = vector.broadcast %cst_333 : f32 to vector<8x384xf32>
    %776 = arith.mulf %775, %774 : vector<8x384xf32>
    %cst_334 = arith.constant 5.000000e-01 : f32
    %777 = vector.broadcast %cst_334 : f32 to vector<8x384xf32>
    %778 = arith.addf %776, %777 : vector<8x384xf32>
    %779 = vector.extract_strided_slice %778 {offsets = [0, 0], sizes = [8, 128], strides = [1, 1]} : vector<8x384xf32> to vector<8x128xf32>
    %780 = vector.extract_strided_slice %778 {offsets = [0, 128], sizes = [8, 128], strides = [1, 1]} : vector<8x384xf32> to vector<8x128xf32>
    %781 = vector.extract_strided_slice %778 {offsets = [0, 256], sizes = [8, 128], strides = [1, 1]} : vector<8x384xf32> to vector<8x128xf32>
    %782 = vector.extract_strided_slice %770 {offsets = [0, 384], sizes = [8, 128], strides = [1, 1]} : vector<8x512xf32> to vector<8x128xf32>
    %783 = math.tanh %782 : vector<8x128xf32>
    %784 = arith.mulf %780, %759 : vector<8x128xf32>
    %785 = arith.mulf %779, %783 : vector<8x128xf32>
    %786 = arith.addf %784, %785 : vector<8x128xf32>
    %787 = math.tanh %786 : vector<8x128xf32>
    %788 = arith.mulf %781, %787 : vector<8x128xf32>
    %789 = arith.index_cast %c1_i32_328 : i32 to index
    %c0_335 = arith.constant 0 : index
    %c0_336 = arith.constant 0 : index
    %790 = vector.load %arg16[%789, %c0_335, %c0_336] : memref<8x8x128xf32, #tpu.memory_space<vmem>>, vector<1x8x128xf32>
    %791 = vector.shape_cast %790 : vector<1x8x128xf32> to vector<8x128xf32>
    %792 = vector.shape_cast %788 : vector<8x128xf32> to vector<1x8x128xf32>
    tpu.vector_store %arg16[%789, %c0_335, %c0_336], %792 {strides = array<i32>} : memref<8x8x128xf32, #tpu.memory_space<vmem>>, vector<1x8x128xf32>,
    %c2_i32_337 = arith.constant 2 : i32
    %cst_338 = arith.constant dense<0.000000e+00> : vector<8x512xf32>
    %793 = tpu.matmul %788, %725, %cst_338 {dimension_numbers = #tpu.dot_dimension_numbers<[1], [0], [0], [1], [0, 0, 1, 1], [], []>} : vector<8x128xf32>, vector<128x512xf32>, vector<8x512xf32> -> vector<8x512xf32>
    %794 = arith.index_cast %c2_i32_337 : i32 to index
    %c0_339 = arith.constant 0 : index
    %c0_340 = arith.constant 0 : index
    %795 = vector.load %arg17[%794, %c0_339, %c0_340] : memref<8x8x512xf32, #tpu.memory_space<vmem>>, vector<1x8x512xf32>
    %796 = vector.shape_cast %795 : vector<1x8x512xf32> to vector<8x512xf32>
    %797 = arith.addf %793, %796 : vector<8x512xf32>
    %798 = vector.extract_strided_slice %797 {offsets = [0, 0], sizes = [8, 384], strides = [1, 1]} : vector<8x512xf32> to vector<8x384xf32>
    %cst_341 = arith.constant 5.000000e-01 : f32
    %799 = vector.broadcast %cst_341 : f32 to vector<8x384xf32>
    %800 = arith.mulf %799, %798 : vector<8x384xf32>
    %801 = math.tanh %800 : vector<8x384xf32>
    %cst_342 = arith.constant 5.000000e-01 : f32
    %802 = vector.broadcast %cst_342 : f32 to vector<8x384xf32>
    %803 = arith.mulf %802, %801 : vector<8x384xf32>
    %cst_343 = arith.constant 5.000000e-01 : f32
    %804 = vector.broadcast %cst_343 : f32 to vector<8x384xf32>
    %805 = arith.addf %803, %804 : vector<8x384xf32>
    %806 = vector.extract_strided_slice %805 {offsets = [0, 0], sizes = [8, 128], strides = [1, 1]} : vector<8x384xf32> to vector<8x128xf32>
    %807 = vector.extract_strided_slice %805 {offsets = [0, 128], sizes = [8, 128], strides = [1, 1]} : vector<8x384xf32> to vector<8x128xf32>
    %808 = vector.extract_strided_slice %805 {offsets = [0, 256], sizes = [8, 128], strides = [1, 1]} : vector<8x384xf32> to vector<8x128xf32>
    %809 = vector.extract_strided_slice %797 {offsets = [0, 384], sizes = [8, 128], strides = [1, 1]} : vector<8x512xf32> to vector<8x128xf32>
    %810 = math.tanh %809 : vector<8x128xf32>
    %811 = arith.mulf %807, %786 : vector<8x128xf32>
    %812 = arith.mulf %806, %810 : vector<8x128xf32>
    %813 = arith.addf %811, %812 : vector<8x128xf32>
    %814 = math.tanh %813 : vector<8x128xf32>
    %815 = arith.mulf %808, %814 : vector<8x128xf32>
    %816 = arith.index_cast %c2_i32_337 : i32 to index
    %c0_344 = arith.constant 0 : index
    %c0_345 = arith.constant 0 : index
    %817 = vector.load %arg16[%816, %c0_344, %c0_345] : memref<8x8x128xf32, #tpu.memory_space<vmem>>, vector<1x8x128xf32>
    %818 = vector.shape_cast %817 : vector<1x8x128xf32> to vector<8x128xf32>
    %819 = vector.shape_cast %815 : vector<8x128xf32> to vector<1x8x128xf32>
    tpu.vector_store %arg16[%816, %c0_344, %c0_345], %819 {strides = array<i32>} : memref<8x8x128xf32, #tpu.memory_space<vmem>>, vector<1x8x128xf32>,
    %c3_i32_346 = arith.constant 3 : i32
    %cst_347 = arith.constant dense<0.000000e+00> : vector<8x512xf32>
    %820 = tpu.matmul %815, %725, %cst_347 {dimension_numbers = #tpu.dot_dimension_numbers<[1], [0], [0], [1], [0, 0, 1, 1], [], []>} : vector<8x128xf32>, vector<128x512xf32>, vector<8x512xf32> -> vector<8x512xf32>
    %821 = arith.index_cast %c3_i32_346 : i32 to index
    %c0_348 = arith.constant 0 : index
    %c0_349 = arith.constant 0 : index
    %822 = vector.load %arg17[%821, %c0_348, %c0_349] : memref<8x8x512xf32, #tpu.memory_space<vmem>>, vector<1x8x512xf32>
    %823 = vector.shape_cast %822 : vector<1x8x512xf32> to vector<8x512xf32>
    %824 = arith.addf %820, %823 : vector<8x512xf32>
    %825 = vector.extract_strided_slice %824 {offsets = [0, 0], sizes = [8, 384], strides = [1, 1]} : vector<8x512xf32> to vector<8x384xf32>
    %cst_350 = arith.constant 5.000000e-01 : f32
    %826 = vector.broadcast %cst_350 : f32 to vector<8x384xf32>
    %827 = arith.mulf %826, %825 : vector<8x384xf32>
    %828 = math.tanh %827 : vector<8x384xf32>
    %cst_351 = arith.constant 5.000000e-01 : f32
    %829 = vector.broadcast %cst_351 : f32 to vector<8x384xf32>
    %830 = arith.mulf %829, %828 : vector<8x384xf32>
    %cst_352 = arith.constant 5.000000e-01 : f32
    %831 = vector.broadcast %cst_352 : f32 to vector<8x384xf32>
    %832 = arith.addf %830, %831 : vector<8x384xf32>
    %833 = vector.extract_strided_slice %832 {offsets = [0, 0], sizes = [8, 128], strides = [1, 1]} : vector<8x384xf32> to vector<8x128xf32>
    %834 = vector.extract_strided_slice %832 {offsets = [0, 128], sizes = [8, 128], strides = [1, 1]} : vector<8x384xf32> to vector<8x128xf32>
    %835 = vector.extract_strided_slice %832 {offsets = [0, 256], sizes = [8, 128], strides = [1, 1]} : vector<8x384xf32> to vector<8x128xf32>
    %836 = vector.extract_strided_slice %824 {offsets = [0, 384], sizes = [8, 128], strides = [1, 1]} : vector<8x512xf32> to vector<8x128xf32>
    %837 = math.tanh %836 : vector<8x128xf32>
    %838 = arith.mulf %834, %813 : vector<8x128xf32>
    %839 = arith.mulf %833, %837 : vector<8x128xf32>
    %840 = arith.addf %838, %839 : vector<8x128xf32>
    %841 = math.tanh %840 : vector<8x128xf32>
    %842 = arith.mulf %835, %841 : vector<8x128xf32>
    %843 = arith.index_cast %c3_i32_346 : i32 to index
    %c0_353 = arith.constant 0 : index
    %c0_354 = arith.constant 0 : index
    %844 = vector.load %arg16[%843, %c0_353, %c0_354] : memref<8x8x128xf32, #tpu.memory_space<vmem>>, vector<1x8x128xf32>
    %845 = vector.shape_cast %844 : vector<1x8x128xf32> to vector<8x128xf32>
    %846 = vector.shape_cast %842 : vector<8x128xf32> to vector<1x8x128xf32>
    tpu.vector_store %arg16[%843, %c0_353, %c0_354], %846 {strides = array<i32>} : memref<8x8x128xf32, #tpu.memory_space<vmem>>, vector<1x8x128xf32>,
    %c4_i32_355 = arith.constant 4 : i32
    %cst_356 = arith.constant dense<0.000000e+00> : vector<8x512xf32>
    %847 = tpu.matmul %842, %725, %cst_356 {dimension_numbers = #tpu.dot_dimension_numbers<[1], [0], [0], [1], [0, 0, 1, 1], [], []>} : vector<8x128xf32>, vector<128x512xf32>, vector<8x512xf32> -> vector<8x512xf32>
    %848 = arith.index_cast %c4_i32_355 : i32 to index
    %c0_357 = arith.constant 0 : index
    %c0_358 = arith.constant 0 : index
    %849 = vector.load %arg17[%848, %c0_357, %c0_358] : memref<8x8x512xf32, #tpu.memory_space<vmem>>, vector<1x8x512xf32>
    %850 = vector.shape_cast %849 : vector<1x8x512xf32> to vector<8x512xf32>
    %851 = arith.addf %847, %850 : vector<8x512xf32>
    %852 = vector.extract_strided_slice %851 {offsets = [0, 0], sizes = [8, 384], strides = [1, 1]} : vector<8x512xf32> to vector<8x384xf32>
    %cst_359 = arith.constant 5.000000e-01 : f32
    %853 = vector.broadcast %cst_359 : f32 to vector<8x384xf32>
    %854 = arith.mulf %853, %852 : vector<8x384xf32>
    %855 = math.tanh %854 : vector<8x384xf32>
    %cst_360 = arith.constant 5.000000e-01 : f32
    %856 = vector.broadcast %cst_360 : f32 to vector<8x384xf32>
    %857 = arith.mulf %856, %855 : vector<8x384xf32>
    %cst_361 = arith.constant 5.000000e-01 : f32
    %858 = vector.broadcast %cst_361 : f32 to vector<8x384xf32>
    %859 = arith.addf %857, %858 : vector<8x384xf32>
    %860 = vector.extract_strided_slice %859 {offsets = [0, 0], sizes = [8, 128], strides = [1, 1]} : vector<8x384xf32> to vector<8x128xf32>
    %861 = vector.extract_strided_slice %859 {offsets = [0, 128], sizes = [8, 128], strides = [1, 1]} : vector<8x384xf32> to vector<8x128xf32>
    %862 = vector.extract_strided_slice %859 {offsets = [0, 256], sizes = [8, 128], strides = [1, 1]} : vector<8x384xf32> to vector<8x128xf32>
    %863 = vector.extract_strided_slice %851 {offsets = [0, 384], sizes = [8, 128], strides = [1, 1]} : vector<8x512xf32> to vector<8x128xf32>
    %864 = math.tanh %863 : vector<8x128xf32>
    %865 = arith.mulf %861, %840 : vector<8x128xf32>
    %866 = arith.mulf %860, %864 : vector<8x128xf32>
    %867 = arith.addf %865, %866 : vector<8x128xf32>
    %868 = math.tanh %867 : vector<8x128xf32>
    %869 = arith.mulf %862, %868 : vector<8x128xf32>
    %870 = arith.index_cast %c4_i32_355 : i32 to index
    %c0_362 = arith.constant 0 : index
    %c0_363 = arith.constant 0 : index
    %871 = vector.load %arg16[%870, %c0_362, %c0_363] : memref<8x8x128xf32, #tpu.memory_space<vmem>>, vector<1x8x128xf32>
    %872 = vector.shape_cast %871 : vector<1x8x128xf32> to vector<8x128xf32>
    %873 = vector.shape_cast %869 : vector<8x128xf32> to vector<1x8x128xf32>
    tpu.vector_store %arg16[%870, %c0_362, %c0_363], %873 {strides = array<i32>} : memref<8x8x128xf32, #tpu.memory_space<vmem>>, vector<1x8x128xf32>,
    %c5_i32_364 = arith.constant 5 : i32
    %cst_365 = arith.constant dense<0.000000e+00> : vector<8x512xf32>
    %874 = tpu.matmul %869, %725, %cst_365 {dimension_numbers = #tpu.dot_dimension_numbers<[1], [0], [0], [1], [0, 0, 1, 1], [], []>} : vector<8x128xf32>, vector<128x512xf32>, vector<8x512xf32> -> vector<8x512xf32>
    %875 = arith.index_cast %c5_i32_364 : i32 to index
    %c0_366 = arith.constant 0 : index
    %c0_367 = arith.constant 0 : index
    %876 = vector.load %arg17[%875, %c0_366, %c0_367] : memref<8x8x512xf32, #tpu.memory_space<vmem>>, vector<1x8x512xf32>
    %877 = vector.shape_cast %876 : vector<1x8x512xf32> to vector<8x512xf32>
    %878 = arith.addf %874, %877 : vector<8x512xf32>
    %879 = vector.extract_strided_slice %878 {offsets = [0, 0], sizes = [8, 384], strides = [1, 1]} : vector<8x512xf32> to vector<8x384xf32>
    %cst_368 = arith.constant 5.000000e-01 : f32
    %880 = vector.broadcast %cst_368 : f32 to vector<8x384xf32>
    %881 = arith.mulf %880, %879 : vector<8x384xf32>
    %882 = math.tanh %881 : vector<8x384xf32>
    %cst_369 = arith.constant 5.000000e-01 : f32
    %883 = vector.broadcast %cst_369 : f32 to vector<8x384xf32>
    %884 = arith.mulf %883, %882 : vector<8x384xf32>
    %cst_370 = arith.constant 5.000000e-01 : f32
    %885 = vector.broadcast %cst_370 : f32 to vector<8x384xf32>
    %886 = arith.addf %884, %885 : vector<8x384xf32>
    %887 = vector.extract_strided_slice %886 {offsets = [0, 0], sizes = [8, 128], strides = [1, 1]} : vector<8x384xf32> to vector<8x128xf32>
    %888 = vector.extract_strided_slice %886 {offsets = [0, 128], sizes = [8, 128], strides = [1, 1]} : vector<8x384xf32> to vector<8x128xf32>
    %889 = vector.extract_strided_slice %886 {offsets = [0, 256], sizes = [8, 128], strides = [1, 1]} : vector<8x384xf32> to vector<8x128xf32>
    %890 = vector.extract_strided_slice %878 {offsets = [0, 384], sizes = [8, 128], strides = [1, 1]} : vector<8x512xf32> to vector<8x128xf32>
    %891 = math.tanh %890 : vector<8x128xf32>
    %892 = arith.mulf %888, %867 : vector<8x128xf32>
    %893 = arith.mulf %887, %891 : vector<8x128xf32>
    %894 = arith.addf %892, %893 : vector<8x128xf32>
    %895 = math.tanh %894 : vector<8x128xf32>
    %896 = arith.mulf %889, %895 : vector<8x128xf32>
    %897 = arith.index_cast %c5_i32_364 : i32 to index
    %c0_371 = arith.constant 0 : index
    %c0_372 = arith.constant 0 : index
    %898 = vector.load %arg16[%897, %c0_371, %c0_372] : memref<8x8x128xf32, #tpu.memory_space<vmem>>, vector<1x8x128xf32>
    %899 = vector.shape_cast %898 : vector<1x8x128xf32> to vector<8x128xf32>
    %900 = vector.shape_cast %896 : vector<8x128xf32> to vector<1x8x128xf32>
    tpu.vector_store %arg16[%897, %c0_371, %c0_372], %900 {strides = array<i32>} : memref<8x8x128xf32, #tpu.memory_space<vmem>>, vector<1x8x128xf32>,
    %c6_i32_373 = arith.constant 6 : i32
    %cst_374 = arith.constant dense<0.000000e+00> : vector<8x512xf32>
    %901 = tpu.matmul %896, %725, %cst_374 {dimension_numbers = #tpu.dot_dimension_numbers<[1], [0], [0], [1], [0, 0, 1, 1], [], []>} : vector<8x128xf32>, vector<128x512xf32>, vector<8x512xf32> -> vector<8x512xf32>
    %902 = arith.index_cast %c6_i32_373 : i32 to index
    %c0_375 = arith.constant 0 : index
    %c0_376 = arith.constant 0 : index
    %903 = vector.load %arg17[%902, %c0_375, %c0_376] : memref<8x8x512xf32, #tpu.memory_space<vmem>>, vector<1x8x512xf32>
    %904 = vector.shape_cast %903 : vector<1x8x512xf32> to vector<8x512xf32>
    %905 = arith.addf %901, %904 : vector<8x512xf32>
    %906 = vector.extract_strided_slice %905 {offsets = [0, 0], sizes = [8, 384], strides = [1, 1]} : vector<8x512xf32> to vector<8x384xf32>
    %cst_377 = arith.constant 5.000000e-01 : f32
    %907 = vector.broadcast %cst_377 : f32 to vector<8x384xf32>
    %908 = arith.mulf %907, %906 : vector<8x384xf32>
    %909 = math.tanh %908 : vector<8x384xf32>
    %cst_378 = arith.constant 5.000000e-01 : f32
    %910 = vector.broadcast %cst_378 : f32 to vector<8x384xf32>
    %911 = arith.mulf %910, %909 : vector<8x384xf32>
    %cst_379 = arith.constant 5.000000e-01 : f32
    %912 = vector.broadcast %cst_379 : f32 to vector<8x384xf32>
    %913 = arith.addf %911, %912 : vector<8x384xf32>
    %914 = vector.extract_strided_slice %913 {offsets = [0, 0], sizes = [8, 128], strides = [1, 1]} : vector<8x384xf32> to vector<8x128xf32>
    %915 = vector.extract_strided_slice %913 {offsets = [0, 128], sizes = [8, 128], strides = [1, 1]} : vector<8x384xf32> to vector<8x128xf32>
    %916 = vector.extract_strided_slice %913 {offsets = [0, 256], sizes = [8, 128], strides = [1, 1]} : vector<8x384xf32> to vector<8x128xf32>
    %917 = vector.extract_strided_slice %905 {offsets = [0, 384], sizes = [8, 128], strides = [1, 1]} : vector<8x512xf32> to vector<8x128xf32>
    %918 = math.tanh %917 : vector<8x128xf32>
    %919 = arith.mulf %915, %894 : vector<8x128xf32>
    %920 = arith.mulf %914, %918 : vector<8x128xf32>
    %921 = arith.addf %919, %920 : vector<8x128xf32>
    %922 = math.tanh %921 : vector<8x128xf32>
    %923 = arith.mulf %916, %922 : vector<8x128xf32>
    %924 = arith.index_cast %c6_i32_373 : i32 to index
    %c0_380 = arith.constant 0 : index
    %c0_381 = arith.constant 0 : index
    %925 = vector.load %arg16[%924, %c0_380, %c0_381] : memref<8x8x128xf32, #tpu.memory_space<vmem>>, vector<1x8x128xf32>
    %926 = vector.shape_cast %925 : vector<1x8x128xf32> to vector<8x128xf32>
    %927 = vector.shape_cast %923 : vector<8x128xf32> to vector<1x8x128xf32>
    tpu.vector_store %arg16[%924, %c0_380, %c0_381], %927 {strides = array<i32>} : memref<8x8x128xf32, #tpu.memory_space<vmem>>, vector<1x8x128xf32>,
    %c7_i32_382 = arith.constant 7 : i32
    %cst_383 = arith.constant dense<0.000000e+00> : vector<8x512xf32>
    %928 = tpu.matmul %923, %725, %cst_383 {dimension_numbers = #tpu.dot_dimension_numbers<[1], [0], [0], [1], [0, 0, 1, 1], [], []>} : vector<8x128xf32>, vector<128x512xf32>, vector<8x512xf32> -> vector<8x512xf32>
    %929 = arith.index_cast %c7_i32_382 : i32 to index
    %c0_384 = arith.constant 0 : index
    %c0_385 = arith.constant 0 : index
    %930 = vector.load %arg17[%929, %c0_384, %c0_385] : memref<8x8x512xf32, #tpu.memory_space<vmem>>, vector<1x8x512xf32>
    %931 = vector.shape_cast %930 : vector<1x8x512xf32> to vector<8x512xf32>
    %932 = arith.addf %928, %931 : vector<8x512xf32>
    %933 = vector.extract_strided_slice %932 {offsets = [0, 0], sizes = [8, 384], strides = [1, 1]} : vector<8x512xf32> to vector<8x384xf32>
    %cst_386 = arith.constant 5.000000e-01 : f32
    %934 = vector.broadcast %cst_386 : f32 to vector<8x384xf32>
    %935 = arith.mulf %934, %933 : vector<8x384xf32>
    %936 = math.tanh %935 : vector<8x384xf32>
    %cst_387 = arith.constant 5.000000e-01 : f32
    %937 = vector.broadcast %cst_387 : f32 to vector<8x384xf32>
    %938 = arith.mulf %937, %936 : vector<8x384xf32>
    %cst_388 = arith.constant 5.000000e-01 : f32
    %939 = vector.broadcast %cst_388 : f32 to vector<8x384xf32>
    %940 = arith.addf %938, %939 : vector<8x384xf32>
    %941 = vector.extract_strided_slice %940 {offsets = [0, 0], sizes = [8, 128], strides = [1, 1]} : vector<8x384xf32> to vector<8x128xf32>
    %942 = vector.extract_strided_slice %940 {offsets = [0, 128], sizes = [8, 128], strides = [1, 1]} : vector<8x384xf32> to vector<8x128xf32>
    %943 = vector.extract_strided_slice %940 {offsets = [0, 256], sizes = [8, 128], strides = [1, 1]} : vector<8x384xf32> to vector<8x128xf32>
    %944 = vector.extract_strided_slice %932 {offsets = [0, 384], sizes = [8, 128], strides = [1, 1]} : vector<8x512xf32> to vector<8x128xf32>
    %945 = math.tanh %944 : vector<8x128xf32>
    %946 = arith.mulf %942, %921 : vector<8x128xf32>
    %947 = arith.mulf %941, %945 : vector<8x128xf32>
    %948 = arith.addf %946, %947 : vector<8x128xf32>
    %949 = math.tanh %948 : vector<8x128xf32>
    %950 = arith.mulf %943, %949 : vector<8x128xf32>
    %951 = arith.index_cast %c7_i32_382 : i32 to index
    %c0_389 = arith.constant 0 : index
    %c0_390 = arith.constant 0 : index
    %952 = vector.load %arg16[%951, %c0_389, %c0_390] : memref<8x8x128xf32, #tpu.memory_space<vmem>>, vector<1x8x128xf32>
    %953 = vector.shape_cast %952 : vector<1x8x128xf32> to vector<8x128xf32>
    %954 = vector.shape_cast %950 : vector<8x128xf32> to vector<1x8x128xf32>
    tpu.vector_store %arg16[%951, %c0_389, %c0_390], %954 {strides = array<i32>} : memref<8x8x128xf32, #tpu.memory_space<vmem>>, vector<1x8x128xf32>,
    %c8_i32_391 = arith.constant 8 : i32
    %c3_392 = arith.constant 3 : index
    %c0_393 = arith.constant 0 : index
    %c0_394 = arith.constant 0 : index
    %955 = vector.load %arg14[%c3_392, %c0_393, %c0_394] : memref<4x8x128xf32, #tpu.memory_space<vmem>>, vector<1x8x128xf32>
    %956 = vector.shape_cast %955 : vector<1x8x128xf32> to vector<8x128xf32>
    %957 = vector.shape_cast %950 : vector<8x128xf32> to vector<1x8x128xf32>
    tpu.vector_store %arg14[%c3_392, %c0_393, %c0_394], %957 {strides = array<i32>} : memref<4x8x128xf32, #tpu.memory_space<vmem>>, vector<1x8x128xf32>,
    %c3_395 = arith.constant 3 : index
    %c0_396 = arith.constant 0 : index
    %c0_397 = arith.constant 0 : index
    %958 = vector.load %arg15[%c3_395, %c0_396, %c0_397] : memref<4x8x128xf32, #tpu.memory_space<vmem>>, vector<1x8x128xf32>
    %959 = vector.shape_cast %958 : vector<1x8x128xf32> to vector<8x128xf32>
    %960 = vector.shape_cast %948 : vector<8x128xf32> to vector<1x8x128xf32>
    tpu.vector_store %arg15[%c3_395, %c0_396, %c0_397], %960 {strides = array<i32>} : memref<4x8x128xf32, #tpu.memory_space<vmem>>, vector<1x8x128xf32>,
    %c0_398 = arith.constant 0 : index
    %c0_399 = arith.constant 0 : index
    %c0_400 = arith.constant 0 : index
    %961 = vector.load %arg16[%c0_398, %c0_399, %c0_400] : memref<8x8x128xf32, #tpu.memory_space<vmem>>, vector<8x8x128xf32>
    %962 = vector.shape_cast %961 : vector<8x8x128xf32> to vector<64x128xf32>
    %c0_401 = arith.constant 0 : index
    %c0_402 = arith.constant 0 : index
    %963 = vector.load %arg7[%c0_401, %c0_402] : memref<128x256xf32, #tpu.memory_space<vmem>>, vector<128x256xf32>
    %cst_403 = arith.constant dense<0.000000e+00> : vector<64x256xf32>
    %964 = tpu.matmul %962, %963, %cst_403 {dimension_numbers = #tpu.dot_dimension_numbers<[1], [0], [0], [1], [0, 0, 1, 1], [], []>} : vector<64x128xf32>, vector<128x256xf32>, vector<64x256xf32> -> vector<64x256xf32>
    %c0_404 = arith.constant 0 : index
    %c0_405 = arith.constant 0 : index
    %965 = vector.load %arg8[%c0_404, %c0_405] : memref<1x256xf32, #tpu.memory_space<vmem>>, vector<1x256xf32>
    %966 = vector.broadcast %965 : vector<1x256xf32> to vector<64x256xf32>
    %967 = arith.addf %964, %966 : vector<64x256xf32>
    %c0_406 = arith.constant 0 : index
    %c0_407 = arith.constant 0 : index
    %968 = vector.load %arg9[%c0_406, %c0_407] : memref<256x256xf32, #tpu.memory_space<vmem>>, vector<256x256xf32>
    %cst_408 = arith.constant dense<0.000000e+00> : vector<64x256xf32>
    %969 = tpu.matmul %967, %968, %cst_408 {dimension_numbers = #tpu.dot_dimension_numbers<[1], [0], [0], [1], [0, 0, 1, 1], [], []>} : vector<64x256xf32>, vector<256x256xf32>, vector<64x256xf32> -> vector<64x256xf32>
    %c0_409 = arith.constant 0 : index
    %c0_410 = arith.constant 0 : index
    %970 = vector.load %arg10[%c0_409, %c0_410] : memref<1x256xf32, #tpu.memory_space<vmem>>, vector<1x256xf32>
    %971 = vector.broadcast %970 : vector<1x256xf32> to vector<64x256xf32>
    %972 = arith.addf %969, %971 : vector<64x256xf32>
    %973 = vector.shape_cast %972 : vector<64x256xf32> to vector<8x8x256xf32>
    %c0_411 = arith.constant 0 : index
    %c0_412 = arith.constant 0 : index
    %c0_413 = arith.constant 0 : index
    %974 = vector.load %arg11[%c0_411, %c0_412, %c0_413] : memref<8x8x256xf32, #tpu.memory_space<vmem>>, vector<8x8x256xf32>
    tpu.vector_store %arg11[%c0_411, %c0_412, %c0_413], %973 {strides = array<i32>} : memref<8x8x256xf32, #tpu.memory_space<vmem>>, vector<8x8x256xf32>,
    %c1_i32_414 = arith.constant 1 : i32
    %975 = arith.cmpi eq, %arg0, %c1_i32_414 : i32
    %976 = arith.extui %975 : i1 to i32
    %c0_i32_415 = arith.constant 0 : i32
    %977 = arith.cmpi ne, %976, %c0_i32_415 : i32
    scf.if %977 {
      %c0_416 = arith.constant 0 : index
      %c0_417 = arith.constant 0 : index
      %c0_418 = arith.constant 0 : index
      %978 = vector.load %arg14[%c0_416, %c0_417, %c0_418] : memref<4x8x128xf32, #tpu.memory_space<vmem>>, vector<4x8x128xf32>
      %c0_419 = arith.constant 0 : index
      %c0_420 = arith.constant 0 : index
      %c0_421 = arith.constant 0 : index
      %979 = vector.load %arg12[%c0_419, %c0_420, %c0_421] : memref<4x8x128xf32, #tpu.memory_space<vmem>>, vector<4x8x128xf32>
      tpu.vector_store %arg12[%c0_419, %c0_420, %c0_421], %978 {strides = array<i32>} : memref<4x8x128xf32, #tpu.memory_space<vmem>>, vector<4x8x128xf32>,
      %c0_422 = arith.constant 0 : index
      %c0_423 = arith.constant 0 : index
      %c0_424 = arith.constant 0 : index
      %980 = vector.load %arg15[%c0_422, %c0_423, %c0_424] : memref<4x8x128xf32, #tpu.memory_space<vmem>>, vector<4x8x128xf32>
      %c0_425 = arith.constant 0 : index
      %c0_426 = arith.constant 0 : index
      %c0_427 = arith.constant 0 : index
      %981 = vector.load %arg13[%c0_425, %c0_426, %c0_427] : memref<4x8x128xf32, #tpu.memory_space<vmem>>, vector<4x8x128xf32>
      tpu.vector_store %arg13[%c0_425, %c0_426, %c0_427], %980 {strides = array<i32>} : memref<4x8x128xf32, #tpu.memory_space<vmem>>, vector<4x8x128xf32>,
    } else {
    }
    return
  }
  func.func @transform_0(%arg0: i32) -> (i32, i32, i32) {
    %c0_i32 = arith.constant 0 : i32
    %c0_i32_0 = arith.constant 0 : i32
    %c0_i32_1 = arith.constant 0 : i32
    return %arg0, %c0_i32, %c0_i32_0 : i32, i32, i32
  }
  func.func @transform_1(%arg0: i32) -> (i32, i32, i32) {
    %c0_i32 = arith.constant 0 : i32
    %c0_i32_0 = arith.constant 0 : i32
    %c0_i32_1 = arith.constant 0 : i32
    %c0_i32_2 = arith.constant 0 : i32
    return %c0_i32, %c0_i32_0, %c0_i32_1 : i32, i32, i32
  }
  func.func @transform_2(%arg0: i32) -> (i32, i32, i32) {
    %c0_i32 = arith.constant 0 : i32
    %c0_i32_0 = arith.constant 0 : i32
    %c0_i32_1 = arith.constant 0 : i32
    %c0_i32_2 = arith.constant 0 : i32
    return %c0_i32, %c0_i32_0, %c0_i32_1 : i32, i32, i32
  }
  func.func @transform_3(%arg0: i32) -> (i32, i32, i32) {
    %c0_i32 = arith.constant 0 : i32
    %c0_i32_0 = arith.constant 0 : i32
    %c0_i32_1 = arith.constant 0 : i32
    %c0_i32_2 = arith.constant 0 : i32
    return %c0_i32, %c0_i32_0, %c0_i32_1 : i32, i32, i32
  }
  func.func @transform_4(%arg0: i32) -> (i32, i32, i32) {
    %c0_i32 = arith.constant 0 : i32
    %c0_i32_0 = arith.constant 0 : i32
    %c0_i32_1 = arith.constant 0 : i32
    %c0_i32_2 = arith.constant 0 : i32
    return %c0_i32, %c0_i32_0, %c0_i32_1 : i32, i32, i32
  }
  func.func @transform_5(%arg0: i32) -> (i32, i32, i32) {
    %c0_i32 = arith.constant 0 : i32
    %c0_i32_0 = arith.constant 0 : i32
    %c0_i32_1 = arith.constant 0 : i32
    %c0_i32_2 = arith.constant 0 : i32
    return %c0_i32, %c0_i32_0, %c0_i32_1 : i32, i32, i32
  }
  func.func @transform_6(%arg0: i32) -> (i32, i32) {
    %c0_i32 = arith.constant 0 : i32
    %c0_i32_0 = arith.constant 0 : i32
    %c0_i32_1 = arith.constant 0 : i32
    return %c0_i32, %c0_i32_0 : i32, i32
  }
  func.func @transform_7(%arg0: i32) -> (i32, i32) {
    %c0_i32 = arith.constant 0 : i32
    %c0_i32_0 = arith.constant 0 : i32
    %c0_i32_1 = arith.constant 0 : i32
    return %c0_i32, %c0_i32_0 : i32, i32
  }
  func.func @transform_8(%arg0: i32) -> (i32, i32) {
    %c0_i32 = arith.constant 0 : i32
    %c0_i32_0 = arith.constant 0 : i32
    %c0_i32_1 = arith.constant 0 : i32
    return %c0_i32, %c0_i32_0 : i32, i32
  }
  func.func @transform_9(%arg0: i32) -> (i32, i32) {
    %c0_i32 = arith.constant 0 : i32
    %c0_i32_0 = arith.constant 0 : i32
    %c0_i32_1 = arith.constant 0 : i32
    return %c0_i32, %c0_i32_0 : i32, i32
  }
  func.func @transform_10(%arg0: i32) -> (i32, i32, i32) {
    %c0_i32 = arith.constant 0 : i32
    %c0_i32_0 = arith.constant 0 : i32
    %c0_i32_1 = arith.constant 0 : i32
    return %arg0, %c0_i32, %c0_i32_0 : i32, i32, i32
  }
  func.func @transform_11(%arg0: i32) -> (i32, i32, i32) {
    %c0_i32 = arith.constant 0 : i32
    %c0_i32_0 = arith.constant 0 : i32
    %c0_i32_1 = arith.constant 0 : i32
    %c0_i32_2 = arith.constant 0 : i32
    return %c0_i32, %c0_i32_0, %c0_i32_1 : i32, i32, i32
  }
  func.func @transform_12(%arg0: i32) -> (i32, i32, i32) {
    %c0_i32 = arith.constant 0 : i32
    %c0_i32_0 = arith.constant 0 : i32
    %c0_i32_1 = arith.constant 0 : i32
    %c0_i32_2 = arith.constant 0 : i32
    return %c0_i32, %c0_i32_0, %c0_i32_1 : i32, i32, i32
  }
}

</mosaic_0001>

<llo_original>
// kernel: tpu_custom_call.1
$region0: #{tpu_custom_call.1}
  #allocation0 [shape = 'u32[]', space=smem, size = 0x4, offset = 0x4, fixed_abs, tag = 'smem constant byte address 0x4 - core index']
  #allocation1 [shape = 'u32[144,128]{1,0:T(1,128)}', space=vmem, size = 0x12000, scoped, tag = 'internal scratch']
  #allocation2 [shape = 'f32[4,8,128]{2,1,0:T(8,128)}', space=vmem, size = 0x4000, scoped, tag = 'scratch operand']
  #allocation3 [shape = 'f32[4,8,128]{2,1,0:T(8,128)}', space=vmem, size = 0x4000, scoped, tag = 'scratch operand']
  #allocation4 [shape = 'f32[8,8,128]{2,1,0:T(8,128)}', space=vmem, size = 0x8000, scoped, tag = 'scratch operand']
  #allocation5 [shape = 'f32[8,8,512]{2,1,0:T(8,128)}', space=vmem, size = 0x20000, scoped, tag = 'scratch operand']
  %s0 = inlined_call_operand.hbm [shape: f32[16,8,128], index: 0, kind: input, shape index: {}]
  %s1 = inlined_call_operand.hbm [shape: f32[4,128,512], index: 1, kind: input, shape index: {}]
  %s2 = inlined_call_operand.hbm [shape: f32[4,128,512], index: 2, kind: input, shape index: {}]
  %s3 = inlined_call_operand.hbm [shape: f32[4,1,512], index: 3, kind: input, shape index: {}]
  %s4 = inlined_call_operand.hbm [shape: f32[4,8,128], index: 4, kind: input, shape index: {}]
  %s5 = inlined_call_operand.hbm [shape: f32[4,8,128], index: 5, kind: input, shape index: {}]
  %s6 = inlined_call_operand.hbm [shape: f32[128,256], index: 6, kind: input, shape index: {}]
  %s7 = inlined_call_operand.vmem [shape: f32[1,256], index: 7, kind: input, shape index: {}]
  %s8 = inlined_call_operand.hbm [shape: f32[256,256], index: 8, kind: input, shape index: {}]
  %s9 = inlined_call_operand.vmem [shape: f32[1,256], index: 9, kind: input, shape index: {}]
  %s10 = inlined_call_operand.hbm [shape: f32[16,8,256], index: 10, kind: output, shape index: {0}]
  %s11 = inlined_call_operand.hbm [shape: f32[4,8,128], index: 11, kind: output, shape index: {1}]
  %s12 = inlined_call_operand.hbm [shape: f32[4,8,128], index: 12, kind: output, shape index: {2}]
  %13 = xla_tuple %s10, %s11, %s12
  %s14 = sld [smem:[#allocation0]]
  $region129: #{tpu_custom_call.1} parent=0
    _
  %s16 = ssub.s32 1, %s14
  %s17 = scalar_select 0, %s16, %s14
  $region1: #{tpu_custom_call.1} parent=0
    #allocation6 [shape = 'u8[65536]{0}', space=vmem, size = 0x10000, scoped, tag = 'input window, operand 0']
    #allocation7 [shape = 's32[2]{0}', space=sflag, size = 0x8, scoped, tag = 'scoped memory for tpu_custom_call.1']
    #allocation8 [shape = 's32[2]{0}', space=sflag, size = 0x8, scoped, tag = 'scoped memory for tpu_custom_call.1']
    #allocation9 [shape = 'u8[1048576]{0}', space=vmem, size = 0x100000, scoped, tag = 'input window, operand 1, single buffered']
    #allocation10 [shape = 's32[1]{0}', space=sflag, size = 0x4, scoped, tag = 'scoped memory for tpu_custom_call.1']
    #allocation11 [shape = 'u8[1048576]{0}', space=vmem, size = 0x100000, scoped, tag = 'input window, operand 2, single buffered']
    #allocation12 [shape = 'u8[8192]{0}', space=vmem, size = 0x2000, scoped, tag = 'input window, operand 3, single buffered']
    #allocation13 [shape = 's32[1]{0}', space=sflag, size = 0x4, scoped, tag = 'scoped memory for tpu_custom_call.1']
    #allocation14 [shape = 'u8[16384]{0}', space=vmem, size = 0x4000, scoped, tag = 'input window, operand 4, single buffered']
    #allocation15 [shape = 'u8[16384]{0}', space=vmem, size = 0x4000, scoped, tag = 'input window, operand 5, single buffered']
    #allocation16 [shape = 's32[1]{0}', space=sflag, size = 0x4, scoped, tag = 'scoped memory for tpu_custom_call.1']
    #allocation17 [shape = 'u8[131072]{0}', space=vmem, size = 0x20000, scoped, tag = 'input window, operand 6, single buffered']
    #allocation18 [shape = 'u8[262144]{0}', space=vmem, size = 0x40000, scoped, tag = 'input window, operand 8, single buffered']
    #allocation19 [shape = 's32[1]{0}', space=sflag, size = 0x4, scoped, tag = 'scoped memory for tpu_custom_call.1']
    #allocation20 [shape = 'u8[131072]{0}', space=vmem, size = 0x20000, scoped, tag = 'output window, operand 0']
    #allocation21 [shape = 'u8[16384]{0}', space=vmem, size = 0x4000, scoped, tag = 'output window, operand 1, single buffered']
    #allocation22 [shape = 's32[1]{0}', space=sflag, size = 0x4, scoped, tag = 'scoped memory for tpu_custom_call.1']
    #allocation23 [shape = 'u8[16384]{0}', space=vmem, size = 0x4000, scoped, tag = 'output window, operand 2, single buffered']
    %18 = vsyncpa [#allocation7], 0
    %s19 = scalar_lea.sflag [#allocation7], 1
    %20 = vsyncpa %s19, 0
    %21 = vsyncpa [#allocation10], 0
    %22 = vsyncpa [#allocation13], 0
    %23 = vsyncpa [#allocation16], 0
    %24 = vsyncpa [#allocation19], 0
    %25 = vsyncpa [#allocation8], 0
    %s26 = scalar_lea.sflag [#allocation8], 1
    %27 = vsyncpa %s26, 0
    %28 = vsyncpa [#allocation22], 0
    loop: start=0, step=1, limit=4
    $region2: #{tpu_custom_call.1} parent=1 // loop_pre_header
      _
    $region3: #{tpu_custom_call.1} parent=1 // loop_header
      %s30 = sphi 0, %s34
      %p31 = scmp.ge.s32.totalorder %s30, 4
      %s40 = sphi 0, %s42
      %s43 = sphi 0, %s40
      %s44 = sphi 0, %s43
      %s60 = sphi 0, %s44
      %s64 = sphi 0, %s64
      %s66 = sphi 0, %s64
      %s67 = sphi 0, %s66
      %s81 = sphi 0, %s67
      %s85 = sphi 0, %s85
      %s87 = sphi 0, %s85
      %s88 = sphi 0, %s87
      %s102 = sphi 0, %s88
      %s106 = sphi 0, %s106
      %s108 = sphi 0, %s106
      %s109 = sphi 0, %s108
      %s123 = sphi 0, %s109
      %s127 = sphi 0, %s127
      %s129 = sphi 0, %s127
      %s130 = sphi 0, %s129
      %s144 = sphi 0, %s130
      %s148 = sphi 0, %s148
      %s150 = sphi 0, %s148
      %s151 = sphi 0, %s150
      %s165 = sphi 0, %s151
      %s169 = sphi 0, %s169
      %s171 = sphi 0, %s169
      %s172 = sphi 0, %s171
      %s186 = sphi 0, %s172
      %s190 = sphi 0, %s190
      %s192 = sphi 0, %s190
      %s193 = sphi 0, %s192
      %s207 = sphi 0, %s193
      %s211 = sphi 0, %s211
      %s213 = sphi 0, %s211
      %s214 = sphi 0, %s213
      %s228 = sphi 0, %s214
      %s232 = sphi 0, %s232
      %s234 = sphi 0, %s232
      %s235 = sphi 0, %s234
      %s249 = sphi 0, %s235
      %s255 = sphi 0, %s257
      %s258 = sphi 0, %s255
      %s259 = sphi 0, %s258
      %s275 = sphi 0, %s259
      %s279 = sphi 0, %s279
      %s281 = sphi 0, %s279
      %s282 = sphi 0, %s281
      %s296 = sphi 0, %s282
      %s300 = sphi 0, %s300
      %s302 = sphi 0, %s300
      %s303 = sphi 0, %s302
      %s317 = sphi 0, %s303
    $region4: #{tpu_custom_call.1} parent=1 // loop_header_branch
      %33 = sbr.rel (%p31) target = $region8
    $region5: #{tpu_custom_call.1} parent=1 // loop_body
      %s35 = ssub.s32 %s30, 1
      %s36 = ssub.s32 %s30, 2
      %s37 = sadd.s32 %s30, 1
      %s38 = ssub.s32 %s30, %s37
      %p39 = scmp.eq.s32.totalorder %s38, 0
      %s41 = sadd.s32 %s40, 1
      %s42 = scalar_select %p39, %s40, %s41
      %p45 = pneg %p39
      %p46 = scmp.eq.s32.totalorder %s30, 1
      %p47 = por %p45, %p46
      %p48 = scmp.ne.s32.totalorder %s40, %s43
      %p49 = scmp.eq.s32.totalorder %s30, 0
      %p50 = por %p48, %p49
      %p51 = scmp.ne.s32.totalorder %s40, %s43
      %p52 = scmp.eq.s32.totalorder %s35, 1
      %p53 = por %p51, %p52
      %p54 = scmp.ne.s32.totalorder %s43, %s44
      %p55 = scmp.eq.s32.totalorder %s35, 0
      %p56 = por %p54, %p55
      %p57 = scmp.ne.s32.totalorder %s43, %s44
      %p58 = scmp.eq.s32.totalorder %s36, 1
      %p59 = por %p57, %p58
      %p61 = scmp.ne.s32.totalorder %s44, %s60
      %p62 = scmp.eq.s32.totalorder %s36, 0
      %p63 = por %p61, %p62
      %s65 = sadd.s32 %s64, 1
      %p68 = scmp.eq.s32.totalorder %s30, 1
      %p69 = scmp.ne.s32.totalorder %s64, %s66
      %p70 = scmp.eq.s32.totalorder %s30, 0
      %p71 = por %p69, %p70
      %p72 = scmp.ne.s32.totalorder %s64, %s66
      %p73 = scmp.eq.s32.totalorder %s35, 1
      %p74 = por %p72, %p73
      %p75 = scmp.ne.s32.totalorder %s66, %s67
      %p76 = scmp.eq.s32.totalorder %s35, 0
      %p77 = por %p75, %p76
      %p78 = scmp.ne.s32.totalorder %s66, %s67
      %p79 = scmp.eq.s32.totalorder %s36, 1
      %p80 = por %p78, %p79
      %p82 = scmp.ne.s32.totalorder %s67, %s81
      %p83 = scmp.eq.s32.totalorder %s36, 0
      %p84 = por %p82, %p83
      %s86 = sadd.s32 %s85, 1
      %p89 = scmp.eq.s32.totalorder %s30, 1
      %p90 = scmp.ne.s32.totalorder %s85, %s87
      %p91 = scmp.eq.s32.totalorder %s30, 0
      %p92 = por %p90, %p91
      %p93 = scmp.ne.s32.totalorder %s85, %s87
      %p94 = scmp.eq.s32.totalorder %s35, 1
      %p95 = por %p93, %p94
      %p96 = scmp.ne.s32.totalorder %s87, %s88
      %p97 = scmp.eq.s32.totalorder %s35, 0
      %p98 = por %p96, %p97
      %p99 = scmp.ne.s32.totalorder %s87, %s88
      %p100 = scmp.eq.s32.totalorder %s36, 1
      %p101 = por %p99, %p100
      %p103 = scmp.ne.s32.totalorder %s88, %s102
      %p104 = scmp.eq.s32.totalorder %s36, 0
      %p105 = por %p103, %p104
      %s107 = sadd.s32 %s106, 1
      %p110 = scmp.eq.s32.totalorder %s30, 1
      %p111 = scmp.ne.s32.totalorder %s106, %s108
      %p112 = scmp.eq.s32.totalorder %s30, 0
      %p113 = por %p111, %p112
      %p114 = scmp.ne.s32.totalorder %s106, %s108
      %p115 = scmp.eq.s32.totalorder %s35, 1
      %p116 = por %p114, %p115
      %p117 = scmp.ne.s32.totalorder %s108, %s109
      %p118 = scmp.eq.s32.totalorder %s35, 0
      %p119 = por %p117, %p118
      %p120 = scmp.ne.s32.totalorder %s108, %s109
      %p121 = scmp.eq.s32.totalorder %s36, 1
      %p122 = por %p120, %p121
      %p124 = scmp.ne.s32.totalorder %s109, %s123
      %p125 = scmp.eq.s32.totalorder %s36, 0
      %p126 = por %p124, %p125
      %s128 = sadd.s32 %s127, 1
      %p131 = scmp.eq.s32.totalorder %s30, 1
      %p132 = scmp.ne.s32.totalorder %s127, %s129
      %p133 = scmp.eq.s32.totalorder %s30, 0
      %p134 = por %p132, %p133
      %p135 = scmp.ne.s32.totalorder %s127, %s129
      %p136 = scmp.eq.s32.totalorder %s35, 1
      %p137 = por %p135, %p136
      %p138 = scmp.ne.s32.totalorder %s129, %s130
      %p139 = scmp.eq.s32.totalorder %s35, 0
      %p140 = por %p138, %p139
      %p141 = scmp.ne.s32.totalorder %s129, %s130
      %p142 = scmp.eq.s32.totalorder %s36, 1
      %p143 = por %p141, %p142
      %p145 = scmp.ne.s32.totalorder %s130, %s144
      %p146 = scmp.eq.s32.totalorder %s36, 0
      %p147 = por %p145, %p146
      %s149 = sadd.s32 %s148, 1
      %p152 = scmp.eq.s32.totalorder %s30, 1
      %p153 = scmp.ne.s32.totalorder %s148, %s150
      %p154 = scmp.eq.s32.totalorder %s30, 0
      %p155 = por %p153, %p154
      %p156 = scmp.ne.s32.totalorder %s148, %s150
      %p157 = scmp.eq.s32.totalorder %s35, 1
      %p158 = por %p156, %p157
      %p159 = scmp.ne.s32.totalorder %s150, %s151
      %p160 = scmp.eq.s32.totalorder %s35, 0
      %p161 = por %p159, %p160
      %p162 = scmp.ne.s32.totalorder %s150, %s151
      %p163 = scmp.eq.s32.totalorder %s36, 1
      %p164 = por %p162, %p163
      %p166 = scmp.ne.s32.totalorder %s151, %s165
      %p167 = scmp.eq.s32.totalorder %s36, 0
      %p168 = por %p166, %p167
      %s170 = sadd.s32 %s169, 1
      %p173 = scmp.eq.s32.totalorder %s30, 1
      %p174 = scmp.ne.s32.totalorder %s169, %s171
      %p175 = scmp.eq.s32.totalorder %s30, 0
      %p176 = por %p174, %p175
      %p177 = scmp.ne.s32.totalorder %s169, %s171
      %p178 = scmp.eq.s32.totalorder %s35, 1
      %p179 = por %p177, %p178
      %p180 = scmp.ne.s32.totalorder %s171, %s172
      %p181 = scmp.eq.s32.totalorder %s35, 0
      %p182 = por %p180, %p181
      %p183 = scmp.ne.s32.totalorder %s171, %s172
      %p184 = scmp.eq.s32.totalorder %s36, 1
      %p185 = por %p183, %p184
      %p187 = scmp.ne.s32.totalorder %s172, %s186
      %p188 = scmp.eq.s32.totalorder %s36, 0
      %p189 = por %p187, %p188
      %s191 = sadd.s32 %s190, 1
      %p194 = scmp.eq.s32.totalorder %s30, 1
      %p195 = scmp.ne.s32.totalorder %s190, %s192
      %p196 = scmp.eq.s32.totalorder %s30, 0
      %p197 = por %p195, %p196
      %p198 = scmp.ne.s32.totalorder %s190, %s192
      %p199 = scmp.eq.s32.totalorder %s35, 1
      %p200 = por %p198, %p199
      %p201 = scmp.ne.s32.totalorder %s192, %s193
      %p202 = scmp.eq.s32.totalorder %s35, 0
      %p203 = por %p201, %p202
      %p204 = scmp.ne.s32.totalorder %s192, %s193
      %p205 = scmp.eq.s32.totalorder %s36, 1
      %p206 = por %p204, %p205
      %p208 = scmp.ne.s32.totalorder %s193, %s207
      %p209 = scmp.eq.s32.totalorder %s36, 0
      %p210 = por %p208, %p209
      %s212 = sadd.s32 %s211, 1
      %p215 = scmp.eq.s32.totalorder %s30, 1
      %p216 = scmp.ne.s32.totalorder %s211, %s213
      %p217 = scmp.eq.s32.totalorder %s30, 0
      %p218 = por %p216, %p217
      %p219 = scmp.ne.s32.totalorder %s211, %s213
      %p220 = scmp.eq.s32.totalorder %s35, 1
      %p221 = por %p219, %p220
      %p222 = scmp.ne.s32.totalorder %s213, %s214
      %p223 = scmp.eq.s32.totalorder %s35, 0
      %p224 = por %p222, %p223
      %p225 = scmp.ne.s32.totalorder %s213, %s214
      %p226 = scmp.eq.s32.totalorder %s36, 1
      %p227 = por %p225, %p226
      %p229 = scmp.ne.s32.totalorder %s214, %s228
      %p230 = scmp.eq.s32.totalorder %s36, 0
      %p231 = por %p229, %p230
      %s233 = sadd.s32 %s232, 1
      %p236 = scmp.eq.s32.totalorder %s30, 1
      %p237 = scmp.ne.s32.totalorder %s232, %s234
      %p238 = scmp.eq.s32.totalorder %s30, 0
      %p239 = por %p237, %p238
      %p240 = scmp.ne.s32.totalorder %s232, %s234
      %p241 = scmp.eq.s32.totalorder %s35, 1
      %p242 = por %p240, %p241
      %p243 = scmp.ne.s32.totalorder %s234, %s235
      %p244 = scmp.eq.s32.totalorder %s35, 0
      %p245 = por %p243, %p244
      %p246 = scmp.ne.s32.totalorder %s234, %s235
      %p247 = scmp.eq.s32.totalorder %s36, 1
      %p248 = por %p246, %p247
      %p250 = scmp.ne.s32.totalorder %s235, %s249
      %p251 = scmp.eq.s32.totalorder %s36, 0
      %p252 = por %p250, %p251
      %s253 = ssub.s32 %s30, %s37
      %p254 = scmp.eq.s32.totalorder %s253, 0
      %s256 = sadd.s32 %s255, 1
      %s257 = scalar_select %p254, %s255, %s256
      %p260 = pneg %p254
      %p261 = scmp.eq.s32.totalorder %s30, 1
      %p262 = por %p260, %p261
      %p263 = scmp.ne.s32.totalorder %s255, %s258
      %p264 = scmp.eq.s32.totalorder %s30, 0
      %p265 = por %p263, %p264
      %p266 = scmp.ne.s32.totalorder %s255, %s258
      %p267 = scmp.eq.s32.totalorder %s35, 1
      %p268 = por %p266, %p267
      %p269 = scmp.ne.s32.totalorder %s258, %s259
      %p270 = scmp.eq.s32.totalorder %s35, 0
      %p271 = por %p269, %p270
      %p272 = scmp.ne.s32.totalorder %s258, %s259
      %p273 = scmp.eq.s32.totalorder %s36, 1
      %p274 = por %p272, %p273
      %p276 = scmp.ne.s32.totalorder %s259, %s275
      %p277 = scmp.eq.s32.totalorder %s36, 0
      %p278 = por %p276, %p277
      %s280 = sadd.s32 %s279, 1
      %p283 = scmp.eq.s32.totalorder %s30, 1
      %p284 = scmp.ne.s32.totalorder %s279, %s281
      %p285 = scmp.eq.s32.totalorder %s30, 0
      %p286 = por %p284, %p285
      %p287 = scmp.ne.s32.totalorder %s279, %s281
      %p288 = scmp.eq.s32.totalorder %s35, 1
      %p289 = por %p287, %p288
      %p290 = scmp.ne.s32.totalorder %s281, %s282
      %p291 = scmp.eq.s32.totalorder %s35, 0
      %p292 = por %p290, %p291
      %p293 = scmp.ne.s32.totalorder %s281, %s282
      %p294 = scmp.eq.s32.totalorder %s36, 1
      %p295 = por %p293, %p294
      %p297 = scmp.ne.s32.totalorder %s282, %s296
      %p298 = scmp.eq.s32.totalorder %s36, 0
      %p299 = por %p297, %p298
      %s301 = sadd.s32 %s300, 1
      %p304 = scmp.eq.s32.totalorder %s30, 1
      %p305 = scmp.ne.s32.totalorder %s300, %s302
      %p306 = scmp.eq.s32.totalorder %s30, 0
      %p307 = por %p305, %p306
      %p308 = scmp.ne.s32.totalorder %s300, %s302
      %p309 = scmp.eq.s32.totalorder %s35, 1
      %p310 = por %p308, %p309
      %p311 = scmp.ne.s32.totalorder %s302, %s303
      %p312 = scmp.eq.s32.totalorder %s35, 0
      %p313 = por %p311, %p312
      %p314 = scmp.ne.s32.totalorder %s302, %s303
      %p315 = scmp.eq.s32.totalorder %s36, 1
      %p316 = por %p314, %p315
      %p318 = scmp.ne.s32.totalorder %s303, %s317
      %p319 = scmp.eq.s32.totalorder %s36, 0
      %p320 = por %p318, %p319
      %p321 = scmp.le.s32.totalorder 1, %s30
      %p322 = scmp.lt.s32.totalorder %s30, 3
      %p323 = pnand %p321, %p322
      %p324 = pneg %p323
      // Predicated region
      $region9: #{tpu_custom_call.1} parent=5 // pred_check
        _
      $region10: #{tpu_custom_call.1} parent=5 // pred_check_branch
        %326 = sbr.rel (%p323) target = $region12
      $region11: #{tpu_custom_call.1} parent=5 // pred_region
        %s327 = ssub.s32 %s30, 1
        // Predicated region
        $region13: #{tpu_custom_call.1} parent=11 // pred_check
          %p328 = pneg %p77
        $region14: #{tpu_custom_call.1} parent=11 // pred_check_branch
          %330 = sbr.rel (%p328) target = $region16
        $region15: #{tpu_custom_call.1} parent=11 // pred_region
          %s332 = ssub.s32 32768, 32768
          %333 = vsyncadd [#allocation10], %s332
          %s334 = sshll.u32 [#allocation9], 4
          %s335 = int_to_ptr.vmem [resolvable:$true] %s334
          %340 = dma.hbm_to_vmem [thread:$0]  %s1, 32768, %s335, [#allocation10], 512, 512, 32
        $region16: #{tpu_custom_call.1} parent=11 // pred_fallthru
          _
        // Predicated region
        $region17: #{tpu_custom_call.1} parent=11 // pred_check
          %p341 = pneg %p98
        $region18: #{tpu_custom_call.1} parent=11 // pred_check_branch
          %343 = sbr.rel (%p341) target = $region20
        $region19: #{tpu_custom_call.1} parent=11 // pred_region
          %s345 = ssub.s32 32768, 32768
          %346 = vsyncadd [#allocation10], %s345
          %s347 = sshll.u32 [#allocation11], 4
          %s348 = int_to_ptr.vmem [resolvable:$true] %s347
          %353 = dma.hbm_to_vmem [thread:$0]  %s2, 32768, %s348, [#allocation10], 512, 512, 32
        $region20: #{tpu_custom_call.1} parent=11 // pred_fallthru
          _
        // Predicated region
        $region21: #{tpu_custom_call.1} parent=11 // pred_check
          %p354 = pneg %p119
        $region22: #{tpu_custom_call.1} parent=11 // pred_check_branch
          %356 = sbr.rel (%p354) target = $region24
        $region23: #{tpu_custom_call.1} parent=11 // pred_region
          %s358 = ssub.s32 256, 256
          %359 = vsyncadd [#allocation13], %s358
          %s360 = sshll.u32 [#allocation12], 4
          %s361 = int_to_ptr.vmem [resolvable:$true] %s360
          %366 = dma.hbm_to_vmem [thread:$0]  %s3, 256, %s361, [#allocation13], 64, 64, 4
        $region24: #{tpu_custom_call.1} parent=11 // pred_fallthru
          _
        // Predicated region
        $region25: #{tpu_custom_call.1} parent=11 // pred_check
          %p367 = pneg %p140
        $region26: #{tpu_custom_call.1} parent=11 // pred_check_branch
          %369 = sbr.rel (%p367) target = $region28
        $region27: #{tpu_custom_call.1} parent=11 // pred_region
          %s371 = ssub.s32 512, 512
          %372 = vsyncadd [#allocation13], %s371
          %s373 = sshll.u32 [#allocation14], 4
          %s374 = int_to_ptr.vmem [resolvable:$true] %s373
          %379 = dma.hbm_to_vmem [thread:$0]  %s4, 512, %s374, [#allocation13], 128, 128, 8
        $region28: #{tpu_custom_call.1} parent=11 // pred_fallthru
          _
        // Predicated region
        $region29: #{tpu_custom_call.1} parent=11 // pred_check
          %p380 = pneg %p161
        $region30: #{tpu_custom_call.1} parent=11 // pred_check_branch
          %382 = sbr.rel (%p380) target = $region32
        $region31: #{tpu_custom_call.1} parent=11 // pred_region
          %s384 = ssub.s32 512, 512
          %385 = vsyncadd [#allocation16], %s384
          %s386 = sshll.u32 [#allocation15], 4
          %s387 = int_to_ptr.vmem [resolvable:$true] %s386
          %392 = dma.hbm_to_vmem [thread:$0]  %s5, 512, %s387, [#allocation16], 128, 128, 8
        $region32: #{tpu_custom_call.1} parent=11 // pred_fallthru
          _
        // Predicated region
        $region33: #{tpu_custom_call.1} parent=11 // pred_check
          %p393 = pneg %p182
        $region34: #{tpu_custom_call.1} parent=11 // pred_check_branch
          %395 = sbr.rel (%p393) target = $region36
        $region35: #{tpu_custom_call.1} parent=11 // pred_region
          %s397 = ssub.s32 4096, 4096
          %398 = vsyncadd [#allocation16], %s397
          %s399 = sshll.u32 [#allocation17], 4
          %s400 = int_to_ptr.vmem [resolvable:$true] %s399
          %405 = dma.hbm_to_vmem [thread:$0]  %s6, 4096, %s400, [#allocation16], 256, 256, 16
        $region36: #{tpu_custom_call.1} parent=11 // pred_fallthru
          _
        // Predicated region
        $region37: #{tpu_custom_call.1} parent=11 // pred_check
          %p406 = pneg %p203
        $region38: #{tpu_custom_call.1} parent=11 // pred_check_branch
          %408 = sbr.rel (%p406) target = $region40
        $region39: #{tpu_custom_call.1} parent=11 // pred_region
          _
        $region40: #{tpu_custom_call.1} parent=11 // pred_fallthru
          _
        // Predicated region
        $region41: #{tpu_custom_call.1} parent=11 // pred_check
          %p409 = pneg %p224
        $region42: #{tpu_custom_call.1} parent=11 // pred_check_branch
          %411 = sbr.rel (%p409) target = $region44
        $region43: #{tpu_custom_call.1} parent=11 // pred_region
          %s413 = ssub.s32 8192, 8192
          %414 = vsyncadd [#allocation19], %s413
          %s415 = sshll.u32 [#allocation18], 4
          %s416 = int_to_ptr.vmem [resolvable:$true] %s415
          %421 = dma.hbm_to_vmem [thread:$0]  %s8, 8192, %s416, [#allocation19], 256, 256, 16
        $region44: #{tpu_custom_call.1} parent=11 // pred_fallthru
          _
        // Predicated region
        $region45: #{tpu_custom_call.1} parent=11 // pred_check
          %p422 = pneg %p245
        $region46: #{tpu_custom_call.1} parent=11 // pred_check_branch
          %424 = sbr.rel (%p422) target = $region48
        $region47: #{tpu_custom_call.1} parent=11 // pred_region
          _
        $region48: #{tpu_custom_call.1} parent=11 // pred_fallthru
          _
      $region12: #{tpu_custom_call.1} parent=5 // pred_fallthru
        _
      %p425 = scmp.lt.s32.totalorder %s30, 2
      // Predicated region
      $region49: #{tpu_custom_call.1} parent=5 // pred_check
        %p426 = pneg %p425
      $region50: #{tpu_custom_call.1} parent=5 // pred_check_branch
        %428 = sbr.rel (%p426) target = $region52
      $region51: #{tpu_custom_call.1} parent=5 // pred_region
        // Predicated region
        $region53: #{tpu_custom_call.1} parent=51 // pred_check
          %p429 = pneg %p50
        $region54: #{tpu_custom_call.1} parent=51 // pred_check_branch
          %431 = sbr.rel (%p429) target = $region56
        $region55: #{tpu_custom_call.1} parent=51 // pred_region
          %s432 = sand.u32 %s40, 1
          %s433 = scalar_lea.sflag [#allocation7], %s432
          %s434 = sand.u32 %s40, 1
          %s435 = smul.addr %s434, 64
          %s436 = scalar_lea.vmem [#allocation6], %s435
          %s437 = smul.u32 8, %s30
          %s439 = ssub.s32 1024, 1024
          %440 = vsyncadd %s433, %s439
          %s441 = smul.addr %s437, 128
          %s442 = scalar_lea.hbm %s0, %s441
          %s443 = sshll.u32 %s436, 4
          %s444 = int_to_ptr.vmem [resolvable:$true] %s443
          %449 = dma.hbm_to_vmem [thread:$0]  %s442, 1024, %s444, %s433, 128, 128, 8
        $region56: #{tpu_custom_call.1} parent=51 // pred_fallthru
          _
      $region52: #{tpu_custom_call.1} parent=5 // pred_fallthru
        _
      %p450 = scmp.le.s32.totalorder 1, %s30
      %p451 = scmp.lt.s32.totalorder %s30, 3
      %p452 = pnand %p450, %p451
      %p453 = pneg %p452
      // Predicated region
      $region57: #{tpu_custom_call.1} parent=5 // pred_check
        _
      $region58: #{tpu_custom_call.1} parent=5 // pred_check_branch
        %455 = sbr.rel (%p452) target = $region60
      $region59: #{tpu_custom_call.1} parent=5 // pred_region
        %s456 = ssub.s32 %s30, 1
        %s457 = sand.u32 %s43, 1
        %s458 = scalar_lea.sflag [#allocation7], %s457
        %s459 = sand.u32 %s43, 1
        %s460 = smul.addr %s459, 64
        %s461 = scalar_lea.vmem [#allocation6], %s460
        // Predicated region
        $region61: #{tpu_custom_call.1} parent=59 // pred_check
          %p462 = pneg %p56
        $region62: #{tpu_custom_call.1} parent=59 // pred_check_branch
          %464 = sbr.rel (%p462) target = $region64
        $region63: #{tpu_custom_call.1} parent=59 // pred_region
          %465 = dma.done %s458, 1024
        $region64: #{tpu_custom_call.1} parent=59 // pred_fallthru
          _
        // Predicated region
        $region65: #{tpu_custom_call.1} parent=59 // pred_check
          %p466 = pneg %p77
        $region66: #{tpu_custom_call.1} parent=59 // pred_check_branch
          %468 = sbr.rel (%p466) target = $region68
        $region67: #{tpu_custom_call.1} parent=59 // pred_region
          %469 = dma.done [#allocation10], 32768
        $region68: #{tpu_custom_call.1} parent=59 // pred_fallthru
          _
        // Predicated region
        $region69: #{tpu_custom_call.1} parent=59 // pred_check
          %p470 = pneg %p98
        $region70: #{tpu_custom_call.1} parent=59 // pred_check_branch
          %472 = sbr.rel (%p470) target = $region72
        $region71: #{tpu_custom_call.1} parent=59 // pred_region
          %473 = dma.done [#allocation10], 32768
        $region72: #{tpu_custom_call.1} parent=59 // pred_fallthru
          _
        // Predicated region
        $region73: #{tpu_custom_call.1} parent=59 // pred_check
          %p474 = pneg %p119
        $region74: #{tpu_custom_call.1} parent=59 // pred_check_branch
          %476 = sbr.rel (%p474) target = $region76
        $region75: #{tpu_custom_call.1} parent=59 // pred_region
          %477 = dma.done [#allocation13], 256
        $region76: #{tpu_custom_call.1} parent=59 // pred_fallthru
          _
        // Predicated region
        $region77: #{tpu_custom_call.1} parent=59 // pred_check
          %p478 = pneg %p140
        $region78: #{tpu_custom_call.1} parent=59 // pred_check_branch
          %480 = sbr.rel (%p478) target = $region80
        $region79: #{tpu_custom_call.1} parent=59 // pred_region
          %481 = dma.done [#allocation13], 512
        $region80: #{tpu_custom_call.1} parent=59 // pred_fallthru
          _
        // Predicated region
        $region81: #{tpu_custom_call.1} parent=59 // pred_check
          %p482 = pneg %p161
        $region82: #{tpu_custom_call.1} parent=59 // pred_check_branch
          %484 = sbr.rel (%p482) target = $region84
        $region83: #{tpu_custom_call.1} parent=59 // pred_region
          %485 = dma.done [#allocation16], 512
        $region84: #{tpu_custom_call.1} parent=59 // pred_fallthru
          _
        // Predicated region
        $region85: #{tpu_custom_call.1} parent=59 // pred_check
          %p486 = pneg %p182
        $region86: #{tpu_custom_call.1} parent=59 // pred_check_branch
          %488 = sbr.rel (%p486) target = $region88
        $region87: #{tpu_custom_call.1} parent=59 // pred_region
          %489 = dma.done [#allocation16], 4096
        $region88: #{tpu_custom_call.1} parent=59 // pred_fallthru
          _
        // Predicated region
        $region89: #{tpu_custom_call.1} parent=59 // pred_check
          %p490 = pneg %p224
        $region90: #{tpu_custom_call.1} parent=59 // pred_check_branch
          %492 = sbr.rel (%p490) target = $region92
        $region91: #{tpu_custom_call.1} parent=59 // pred_region
          %493 = dma.done [#allocation19], 8192
        $region92: #{tpu_custom_call.1} parent=59 // pred_fallthru
          _
        %s494 = sand.u32 %s43, 1
        %s495 = scalar_lea.sflag [#allocation7], %s494
        %s496 = sand.u32 %s43, 1
        %s497 = smul.addr %s496, 64
        %s498 = scalar_lea.vmem [#allocation6], %s497
        %p499 = pneg %p56
        %p500 = pneg %p53
        %p501 = pneg %p77
        %p502 = pneg %p74
        %p503 = pneg %p98
        %p504 = pneg %p95
        %p505 = pneg %p119
        %p506 = pneg %p116
        %p507 = pneg %p140
        %p508 = pneg %p137
        %p509 = pneg %p161
        %p510 = pneg %p158
        %p511 = pneg %p182
        %p512 = pneg %p179
        %p513 = pneg %p203
        %p514 = pneg %p200
        %p515 = pneg %p224
        %p516 = pneg %p221
        %p517 = pneg %p245
        %p518 = pneg %p242
        %p519 = pneg %p271
        %p520 = pneg %p268
        %s521 = sand.u32 %s258, 1
        %s522 = scalar_lea.sflag [#allocation8], %s521
        %s523 = sand.u32 %s258, 1
        %s524 = smul.addr %s523, 128
        %s525 = scalar_lea.vmem [#allocation20], %s524
        %p526 = pneg %p292
        %p527 = pneg %p289
        %p528 = pneg %p313
        %p529 = pneg %p310
        %s530 = smul.u32 8, %s35
        %s531 = smul.u32 8, %s35
        %p532 = scmp.eq.s32.totalorder %s35, 0
        // Predicated region
        $region93: #{tpu_custom_call.1} parent=59 // pred_check
          %p533 = pneg %p532
        $region94: #{tpu_custom_call.1} parent=59 // pred_check_branch
          %535 = sbr.rel (%p533) target = $region96
        $region95: #{tpu_custom_call.1} parent=59 // pred_region
          %v536 = vld [vmem:[#allocation14] sm:$0xff]
          %v537 = vld [vmem:[#allocation14 + $0x8] sm:$0xff]
          %v538 = vld [vmem:[#allocation14 + $0x10] sm:$0xff]
          %v539 = vld [vmem:[#allocation14 + $0x18] sm:$0xff]
          %540 = vst [vmem:[#allocation2] sm:$0xff] %v536
          %541 = vst [vmem:[#allocation2 + $0x8] sm:$0xff] %v537
          %542 = vst [vmem:[#allocation2 + $0x10] sm:$0xff] %v538
          %543 = vst [vmem:[#allocation2 + $0x18] sm:$0xff] %v539
          %v544 = vld [vmem:[#allocation15] sm:$0xff]
          %v545 = vld [vmem:[#allocation15 + $0x8] sm:$0xff]
          %v546 = vld [vmem:[#allocation15 + $0x10] sm:$0xff]
          %v547 = vld [vmem:[#allocation15 + $0x18] sm:$0xff]
          %548 = vst [vmem:[#allocation3] sm:$0xff] %v544
          %549 = vst [vmem:[#allocation3 + $0x8] sm:$0xff] %v545
          %550 = vst [vmem:[#allocation3 + $0x10] sm:$0xff] %v546
          %551 = vst [vmem:[#allocation3 + $0x18] sm:$0xff] %v547
        $region96: #{tpu_custom_call.1} parent=59 // pred_fallthru
          _
        %v552 = vld [vmem:[%s461] sm:$0xff]
        %v553 = vld [vmem:[%s461 + $0x8] sm:$0xff]
        %v554 = vld [vmem:[%s461 + $0x10] sm:$0xff]
        %v555 = vld [vmem:[%s461 + $0x18] sm:$0xff]
        %v556 = vld [vmem:[%s461 + $0x20] sm:$0xff]
        %v557 = vld [vmem:[%s461 + $0x28] sm:$0xff]
        %v558 = vld [vmem:[%s461 + $0x30] sm:$0xff]
        %v559 = vld [vmem:[%s461 + $0x38] sm:$0xff]
        %560 = vst [vmem:[#allocation4] sm:$0xff] %v552
        %561 = vst [vmem:[#allocation4 + $0x8] sm:$0xff] %v553
        %562 = vst [vmem:[#allocation4 + $0x10] sm:$0xff] %v554
        %563 = vst [vmem:[#allocation4 + $0x18] sm:$0xff] %v555
        %564 = vst [vmem:[#allocation4 + $0x20] sm:$0xff] %v556
        %565 = vst [vmem:[#allocation4 + $0x28] sm:$0xff] %v557
        %566 = vst [vmem:[#allocation4 + $0x30] sm:$0xff] %v558
        %567 = vst [vmem:[#allocation4 + $0x38] sm:$0xff] %v559
        %v568 = vld [vmem:[#allocation9] sm:$0xff]
        %v569 = vld [vmem:[#allocation9 + $0x8] sm:$0xff]
        %v570 = vld [vmem:[#allocation9 + $0x10] sm:$0xff]
        %v571 = vld [vmem:[#allocation9 + $0x18] sm:$0xff]
        %v572 = vld [vmem:[#allocation9 + $0x20] sm:$0xff]
        %v573 = vld [vmem:[#allocation9 + $0x28] sm:$0xff]
        %v574 = vld [vmem:[#allocation9 + $0x30] sm:$0xff]
        %v575 = vld [vmem:[#allocation9 + $0x38] sm:$0xff]
        %v576 = vld [vmem:[#allocation9 + $0x40] sm:$0xff]
        %v577 = vld [vmem:[#allocation9 + $0x48] sm:$0xff]
        %v578 = vld [vmem:[#allocation9 + $0x50] sm:$0xff]
        %v579 = vld [vmem:[#allocation9 + $0x58] sm:$0xff]
        %v580 = vld [vmem:[#allocation9 + $0x60] sm:$0xff]
        %v581 = vld [vmem:[#allocation9 + $0x68] sm:$0xff]
        %v582 = vld [vmem:[#allocation9 + $0x70] sm:$0xff]
        %v583 = vld [vmem:[#allocation9 + $0x78] sm:$0xff]
        %v584 = vld [vmem:[#allocation9 + $0x80] sm:$0xff]
        %v585 = vld [vmem:[#allocation9 + $0x88] sm:$0xff]
        %v586 = vld [vmem:[#allocation9 + $0x90] sm:$0xff]
        %v587 = vld [vmem:[#allocation9 + $0x98] sm:$0xff]
        %v588 = vld [vmem:[#allocation9 + $0xa0] sm:$0xff]
        %v589 = vld [vmem:[#allocation9 + $0xa8] sm:$0xff]
        %v590 = vld [vmem:[#allocation9 + $0xb0] sm:$0xff]
        %v591 = vld [vmem:[#allocation9 + $0xb8] sm:$0xff]
        %v592 = vld [vmem:[#allocation9 + $0xc0] sm:$0xff]
        %v593 = vld [vmem:[#allocation9 + $0xc8] sm:$0xff]
        %v594 = vld [vmem:[#allocation9 + $0xd0] sm:$0xff]
        %v595 = vld [vmem:[#allocation9 + $0xd8] sm:$0xff]
        %v596 = vld [vmem:[#allocation9 + $0xe0] sm:$0xff]
        %v597 = vld [vmem:[#allocation9 + $0xe8] sm:$0xff]
        %v598 = vld [vmem:[#allocation9 + $0xf0] sm:$0xff]
        %v599 = vld [vmem:[#allocation9 + $0xf8] sm:$0xff]
        %v600 = vld [vmem:[#allocation9 + $0x100] sm:$0xff]
        %v601 = vld [vmem:[#allocation9 + $0x108] sm:$0xff]
        %v602 = vld [vmem:[#allocation9 + $0x110] sm:$0xff]
        %v603 = vld [vmem:[#allocation9 + $0x118] sm:$0xff]
        %v604 = vld [vmem:[#allocation9 + $0x120] sm:$0xff]
        %v605 = vld [vmem:[#allocation9 + $0x128] sm:$0xff]
        %v606 = vld [vmem:[#allocation9 + $0x130] sm:$0xff]
        %v607 = vld [vmem:[#allocation9 + $0x138] sm:$0xff]
        %v608 = vld [vmem:[#allocation9 + $0x140] sm:$0xff]
        %v609 = vld [vmem:[#allocation9 + $0x148] sm:$0xff]
        %v610 = vld [vmem:[#allocation9 + $0x150] sm:$0xff]
        %v611 = vld [vmem:[#allocation9 + $0x158] sm:$0xff]
        %v612 = vld [vmem:[#allocation9 + $0x160] sm:$0xff]
        %v613 = vld [vmem:[#allocation9 + $0x168] sm:$0xff]
        %v614 = vld [vmem:[#allocation9 + $0x170] sm:$0xff]
        %v615 = vld [vmem:[#allocation9 + $0x178] sm:$0xff]
        %v616 = vld [vmem:[#allocation9 + $0x180] sm:$0xff]
        %v617 = vld [vmem:[#allocation9 + $0x188] sm:$0xff]
        %v618 = vld [vmem:[#allocation9 + $0x190] sm:$0xff]
        %v619 = vld [vmem:[#allocation9 + $0x198] sm:$0xff]
        %v620 = vld [vmem:[#allocation9 + $0x1a0] sm:$0xff]
        %v621 = vld [vmem:[#allocation9 + $0x1a8] sm:$0xff]
        %v622 = vld [vmem:[#allocation9 + $0x1b0] sm:$0xff]
        %v623 = vld [vmem:[#allocation9 + $0x1b8] sm:$0xff]
        %v624 = vld [vmem:[#allocation9 + $0x1c0] sm:$0xff]
        %v625 = vld [vmem:[#allocation9 + $0x1c8] sm:$0xff]
        %v626 = vld [vmem:[#allocation9 + $0x1d0] sm:$0xff]
        %v627 = vld [vmem:[#allocation9 + $0x1d8] sm:$0xff]
        %v628 = vld [vmem:[#allocation9 + $0x1e0] sm:$0xff]
        %v629 = vld [vmem:[#allocation9 + $0x1e8] sm:$0xff]
        %v630 = vld [vmem:[#allocation9 + $0x1f0] sm:$0xff]
        %v631 = vld [vmem:[#allocation9 + $0x1f8] sm:$0xff]
        %v632 = vld [vmem:[#allocation11] sm:$0xff]
        %v633 = vld [vmem:[#allocation11 + $0x8] sm:$0xff]
        %v634 = vld [vmem:[#allocation11 + $0x10] sm:$0xff]
        %v635 = vld [vmem:[#allocation11 + $0x18] sm:$0xff]
        %v636 = vld [vmem:[#allocation11 + $0x20] sm:$0xff]
        %v637 = vld [vmem:[#allocation11 + $0x28] sm:$0xff]
        %v638 = vld [vmem:[#allocation11 + $0x30] sm:$0xff]
        %v639 = vld [vmem:[#allocation11 + $0x38] sm:$0xff]
        %v640 = vld [vmem:[#allocation11 + $0x40] sm:$0xff]
        %v641 = vld [vmem:[#allocation11 + $0x48] sm:$0xff]
        %v642 = vld [vmem:[#allocation11 + $0x50] sm:$0xff]
        %v643 = vld [vmem:[#allocation11 + $0x58] sm:$0xff]
        %v644 = vld [vmem:[#allocation11 + $0x60] sm:$0xff]
        %v645 = vld [vmem:[#allocation11 + $0x68] sm:$0xff]
        %v646 = vld [vmem:[#allocation11 + $0x70] sm:$0xff]
        %v647 = vld [vmem:[#allocation11 + $0x78] sm:$0xff]
        %v648 = vld [vmem:[#allocation11 + $0x80] sm:$0xff]
        %v649 = vld [vmem:[#allocation11 + $0x88] sm:$0xff]
        %v650 = vld [vmem:[#allocation11 + $0x90] sm:$0xff]
        %v651 = vld [vmem:[#allocation11 + $0x98] sm:$0xff]
        %v652 = vld [vmem:[#allocation11 + $0xa0] sm:$0xff]
        %v653 = vld [vmem:[#allocation11 + $0xa8] sm:$0xff]
        %v654 = vld [vmem:[#allocation11 + $0xb0] sm:$0xff]
        %v655 = vld [vmem:[#allocation11 + $0xb8] sm:$0xff]
        %v656 = vld [vmem:[#allocation11 + $0xc0] sm:$0xff]
        %v657 = vld [vmem:[#allocation11 + $0xc8] sm:$0xff]
        %v658 = vld [vmem:[#allocation11 + $0xd0] sm:$0xff]
        %v659 = vld [vmem:[#allocation11 + $0xd8] sm:$0xff]
        %v660 = vld [vmem:[#allocation11 + $0xe0] sm:$0xff]
        %v661 = vld [vmem:[#allocation11 + $0xe8] sm:$0xff]
        %v662 = vld [vmem:[#allocation11 + $0xf0] sm:$0xff]
        %v663 = vld [vmem:[#allocation11 + $0xf8] sm:$0xff]
        %v664 = vld [vmem:[#allocation11 + $0x100] sm:$0xff]
        %v665 = vld [vmem:[#allocation11 + $0x108] sm:$0xff]
        %v666 = vld [vmem:[#allocation11 + $0x110] sm:$0xff]
        %v667 = vld [vmem:[#allocation11 + $0x118] sm:$0xff]
        %v668 = vld [vmem:[#allocation11 + $0x120] sm:$0xff]
        %v669 = vld [vmem:[#allocation11 + $0x128] sm:$0xff]
        %v670 = vld [vmem:[#allocation11 + $0x130] sm:$0xff]
        %v671 = vld [vmem:[#allocation11 + $0x138] sm:$0xff]
        %v672 = vld [vmem:[#allocation11 + $0x140] sm:$0xff]
        %v673 = vld [vmem:[#allocation11 + $0x148] sm:$0xff]
        %v674 = vld [vmem:[#allocation11 + $0x150] sm:$0xff]
        %v675 = vld [vmem:[#allocation11 + $0x158] sm:$0xff]
        %v676 = vld [vmem:[#allocation11 + $0x160] sm:$0xff]
        %v677 = vld [vmem:[#allocation11 + $0x168] sm:$0xff]
        %v678 = vld [vmem:[#allocation11 + $0x170] sm:$0xff]
        %v679 = vld [vmem:[#allocation11 + $0x178] sm:$0xff]
        %v680 = vld [vmem:[#allocation11 + $0x180] sm:$0xff]
        %v681 = vld [vmem:[#allocation11 + $0x188] sm:$0xff]
        %v682 = vld [vmem:[#allocation11 + $0x190] sm:$0xff]
        %v683 = vld [vmem:[#allocation11 + $0x198] sm:$0xff]
        %v684 = vld [vmem:[#allocation11 + $0x1a0] sm:$0xff]
        %v685 = vld [vmem:[#allocation11 + $0x1a8] sm:$0xff]
        %v686 = vld [vmem:[#allocation11 + $0x1b0] sm:$0xff]
        %v687 = vld [vmem:[#allocation11 + $0x1b8] sm:$0xff]
        %v688 = vld [vmem:[#allocation11 + $0x1c0] sm:$0xff]
        %v689 = vld [vmem:[#allocation11 + $0x1c8] sm:$0xff]
        %v690 = vld [vmem:[#allocation11 + $0x1d0] sm:$0xff]
        %v691 = vld [vmem:[#allocation11 + $0x1d8] sm:$0xff]
        %v692 = vld [vmem:[#allocation11 + $0x1e0] sm:$0xff]
        %v693 = vld [vmem:[#allocation11 + $0x1e8] sm:$0xff]
        %v694 = vld [vmem:[#allocation11 + $0x1f0] sm:$0xff]
        %v695 = vld [vmem:[#allocation11 + $0x1f8] sm:$0xff]
        %v696 = vld [vmem:[#allocation12] sm:$0xf]
        %v697 = vld [vmem:[#allocation4] sm:$0xff]
        %v698 = vld [vmem:[#allocation4 + $0x8] sm:$0xff]
        %v699 = vld [vmem:[#allocation4 + $0x10] sm:$0xff]
        %v700 = vld [vmem:[#allocation4 + $0x18] sm:$0xff]
        %v701 = vld [vmem:[#allocation4 + $0x20] sm:$0xff]
        %v702 = vld [vmem:[#allocation4 + $0x28] sm:$0xff]
        %v703 = vld [vmem:[#allocation4 + $0x30] sm:$0xff]
        %v704 = vld [vmem:[#allocation4 + $0x38] sm:$0xff]
        %v706 = vlaneseq
        %v707 = vshrl.u32 %v706, 7
        %v708 = vsub.s32 0, %v707
        %v709 = vrot.slane %v696, %v708
        %v710 = vlaneseq
        %v711 = vshrl.u32 %v710, 7
        %v712 = vsub.s32 1, %v711
        %v713 = vrot.slane %v696, %v712
        %v714 = vlaneseq
        %v715 = vshrl.u32 %v714, 7
        %v716 = vsub.s32 2, %v715
        %v717 = vrot.slane %v696, %v716
        %v718 = vlaneseq
        %v719 = vshrl.u32 %v718, 7
        %v720 = vsub.s32 3, %v719
        %v721 = vrot.slane %v696, %v720
        %726 = vmatprep.subr.mxu0 %v629
        %727 = vmatpush1.msra.mxu0 %v628
        %728 = vmatprep.subr.mxu0 %v625
        %729 = vmatpush1.msra.mxu0 %v624
        %730 = vmatprep.subr.mxu0 %v621
        %731 = vmatpush1.msra.mxu0 %v620
        %732 = vmatprep.subr.mxu0 %v617
        %733 = vmatpush1.msra.mxu0 %v616
        %734 = vmatprep.subr.mxu0 %v613
        %735 = vmatpush1.msra.mxu0 %v612
        %736 = vmatprep.subr.mxu0 %v609
        %737 = vmatpush1.msra.mxu0 %v608
        %738 = vmatprep.subr.mxu0 %v605
        %739 = vmatpush1.msra.mxu0 %v604
        %740 = vmatprep.subr.mxu0 %v601
        %741 = vmatpush1.msra.mxu0 %v600
        %742 = vmatprep.subr.mxu0 %v597
        %743 = vmatpush1.msra.mxu0 %v596
        %744 = vmatprep.subr.mxu0 %v593
        %745 = vmatpush1.msra.mxu0 %v592
        %746 = vmatprep.subr.mxu0 %v589
        %747 = vmatpush1.msra.mxu0 %v588
        %748 = vmatprep.subr.mxu0 %v585
        %749 = vmatpush1.msra.mxu0 %v584
        %750 = vmatprep.subr.mxu0 %v581
        %751 = vmatpush1.msra.mxu0 %v580
        %752 = vmatprep.subr.mxu0 %v577
        %753 = vmatpush1.msra.mxu0 %v576
        %754 = vmatprep.subr.mxu0 %v573
        %755 = vmatpush1.msra.mxu0 %v572
        %756 = vmatprep.subr.mxu0 %v569
        %757 = vmatpush1.msra.mxu0 %v568
        %758 = vmatprep.subr.mxu0 0.0
        %759 = vmatpush2.msra.mxu0 0.0
        %760 = vmatprep.subr.mxu0 0.0
        %761 = vmatpush2.msra.mxu0 0.0
        %762 = vmatprep.subr.mxu0 0.0
        %763 = vmatpush2.msra.mxu0 0.0
        %764 = vmatprep.subr.mxu0 0.0
        %765 = vmatpush2.msra.mxu0 0.0
        %766 = vmatprep.subr.mxu0 0.0
        %767 = vmatpush2.msra.mxu0 0.0
        %768 = vmatprep.subr.mxu0 0.0
        %769 = vmatpush2.msra.mxu0 0.0
        %770 = vmatprep.subr.mxu0 0.0
        %771 = vmatpush2.msra.mxu0 0.0
        %772 = vmatprep.subr.mxu0 0.0
        %773 = vmatpush2.msra.mxu0 0.0
        %774 = vmatprep.subr.mxu0 0.0
        %775 = vmatpush2.msra.mxu0 0.0
        %776 = vmatprep.subr.mxu0 0.0
        %777 = vmatpush2.msra.mxu0 0.0
        %778 = vmatprep.subr.mxu0 0.0
        %779 = vmatpush2.msra.mxu0 0.0
        %780 = vmatprep.subr.mxu0 0.0
        %781 = vmatpush2.msra.mxu0 0.0
        %782 = vmatprep.subr.mxu0 0.0
        %783 = vmatpush2.msra.mxu0 0.0
        %784 = vmatprep.subr.mxu0 0.0
        %785 = vmatpush2.msra.mxu0 0.0
        %786 = vmatprep.subr.mxu0 0.0
        %787 = vmatpush2.msra.mxu0 0.0
        %788 = vmatprep.subr.mxu0 0.0
        %789 = vmatpush2.msra.mxu0 0.0
        %790 = vmatprep.mubr.f32.mxu0 0.0
        %791 = vmatmul.mubr.f32.gmra.mxu0 %v697
        %v792 = vpop.f32.mrf.mxu0
        %v793 = vadd.f32 %v709, %v792
        %v794 = vpop.f32.mrf.mxu0
        %v795 = vadd.f32 %v713, %v794
        %796 = vmatprep.mubr.f32.mxu0 0.0
        %797 = vmatmul.mubr.f32.gmra.mxu0 %v698
        %v798 = vpop.f32.mrf.mxu0
        %v799 = vadd.f32 %v709, %v798
        %v800 = vpop.f32.mrf.mxu0
        %v801 = vadd.f32 %v713, %v800
        %802 = vmatprep.mubr.f32.mxu0 0.0
        %803 = vmatmul.mubr.f32.gmra.mxu0 %v699
        %v804 = vpop.f32.mrf.mxu0
        %v805 = vadd.f32 %v709, %v804
        %v806 = vpop.f32.mrf.mxu0
        %v807 = vadd.f32 %v713, %v806
        %808 = vmatprep.mubr.f32.mxu0 0.0
        %809 = vmatmul.mubr.f32.gmra.mxu0 %v700
        %v810 = vpop.f32.mrf.mxu0
        %v811 = vadd.f32 %v709, %v810
        %v812 = vpop.f32.mrf.mxu0
        %v813 = vadd.f32 %v713, %v812
        %814 = vmatprep.mubr.f32.mxu0 0.0
        %815 = vmatmul.mubr.f32.gmra.mxu0 %v701
        %v816 = vpop.f32.mrf.mxu0
        %v817 = vadd.f32 %v709, %v816
        %v818 = vpop.f32.mrf.mxu0
        %v819 = vadd.f32 %v713, %v818
        %820 = vmatprep.mubr.f32.mxu0 0.0
        %821 = vmatmul.mubr.f32.gmra.mxu0 %v702
        %v822 = vpop.f32.mrf.mxu0
        %v823 = vadd.f32 %v709, %v822
        %v824 = vpop.f32.mrf.mxu0
        %v825 = vadd.f32 %v713, %v824
        %826 = vmatprep.mubr.f32.mxu0 0.0
        %827 = vmatmul.mubr.f32.gmra.mxu0 %v703
        %v828 = vpop.f32.mrf.mxu0
        %v829 = vadd.f32 %v709, %v828
        %v830 = vpop.f32.mrf.mxu0
        %v831 = vadd.f32 %v713, %v830
        %832 = vmatprep.mubr.f32.mxu0 0.0
        %833 = vmatmul.mubr.f32.gmra.mxu0 %v704
        %v834 = vpop.f32.mrf.mxu0
        %v835 = vadd.f32 %v709, %v834
        %v836 = vpop.f32.mrf.mxu0
        %v837 = vadd.f32 %v713, %v836
        %838 = vdwg.mxu0
        %839 = vmatprep.subr.mxu0 %v631
        %840 = vmatpush1.msra.mxu0 %v630
        %841 = vmatprep.subr.mxu0 %v627
        %842 = vmatpush1.msra.mxu0 %v626
        %843 = vmatprep.subr.mxu0 %v623
        %844 = vmatpush1.msra.mxu0 %v622
        %845 = vmatprep.subr.mxu0 %v619
        %846 = vmatpush1.msra.mxu0 %v618
        %847 = vmatprep.subr.mxu0 %v615
        %848 = vmatpush1.msra.mxu0 %v614
        %849 = vmatprep.subr.mxu0 %v611
        %850 = vmatpush1.msra.mxu0 %v610
        %851 = vmatprep.subr.mxu0 %v607
        %852 = vmatpush1.msra.mxu0 %v606
        %853 = vmatprep.subr.mxu0 %v603
        %854 = vmatpush1.msra.mxu0 %v602
        %855 = vmatprep.subr.mxu0 %v599
        %856 = vmatpush1.msra.mxu0 %v598
        %857 = vmatprep.subr.mxu0 %v595
        %858 = vmatpush1.msra.mxu0 %v594
        %859 = vmatprep.subr.mxu0 %v591
        %860 = vmatpush1.msra.mxu0 %v590
        %861 = vmatprep.subr.mxu0 %v587
        %862 = vmatpush1.msra.mxu0 %v586
        %863 = vmatprep.subr.mxu0 %v583
        %864 = vmatpush1.msra.mxu0 %v582
        %865 = vmatprep.subr.mxu0 %v579
        %866 = vmatpush1.msra.mxu0 %v578
        %867 = vmatprep.subr.mxu0 %v575
        %868 = vmatpush1.msra.mxu0 %v574
        %869 = vmatprep.subr.mxu0 %v571
        %870 = vmatpush1.msra.mxu0 %v570
        %871 = vmatprep.subr.mxu0 0.0
        %872 = vmatpush2.msra.mxu0 0.0
        %873 = vmatprep.subr.mxu0 0.0
        %874 = vmatpush2.msra.mxu0 0.0
        %875 = vmatprep.subr.mxu0 0.0
        %876 = vmatpush2.msra.mxu0 0.0
        %877 = vmatprep.subr.mxu0 0.0
        %878 = vmatpush2.msra.mxu0 0.0
        %879 = vmatprep.subr.mxu0 0.0
        %880 = vmatpush2.msra.mxu0 0.0
        %881 = vmatprep.subr.mxu0 0.0
        %882 = vmatpush2.msra.mxu0 0.0
        %883 = vmatprep.subr.mxu0 0.0
        %884 = vmatpush2.msra.mxu0 0.0
        %885 = vmatprep.subr.mxu0 0.0
        %886 = vmatpush2.msra.mxu0 0.0
        %887 = vmatprep.subr.mxu0 0.0
        %888 = vmatpush2.msra.mxu0 0.0
        %889 = vmatprep.subr.mxu0 0.0
        %890 = vmatpush2.msra.mxu0 0.0
        %891 = vmatprep.subr.mxu0 0.0
        %892 = vmatpush2.msra.mxu0 0.0
        %893 = vmatprep.subr.mxu0 0.0
        %894 = vmatpush2.msra.mxu0 0.0
        %895 = vmatprep.subr.mxu0 0.0
        %896 = vmatpush2.msra.mxu0 0.0
        %897 = vmatprep.subr.mxu0 0.0
        %898 = vmatpush2.msra.mxu0 0.0
        %899 = vmatprep.subr.mxu0 0.0
        %900 = vmatpush2.msra.mxu0 0.0
        %901 = vmatprep.subr.mxu0 0.0
        %902 = vmatpush2.msra.mxu0 0.0
        %903 = vmatprep.mubr.f32.mxu0 0.0
        %904 = vmatmul.mubr.f32.gmra.mxu0 %v697
        %v905 = vpop.f32.mrf.mxu0
        %v906 = vadd.f32 %v717, %v905
        %v907 = vpop.f32.mrf.mxu0
        %v908 = vadd.f32 %v721, %v907
        %909 = vmatprep.mubr.f32.mxu0 0.0
        %910 = vmatmul.mubr.f32.gmra.mxu0 %v698
        %v911 = vpop.f32.mrf.mxu0
        %v912 = vadd.f32 %v717, %v911
        %v913 = vpop.f32.mrf.mxu0
        %v914 = vadd.f32 %v721, %v913
        %915 = vmatprep.mubr.f32.mxu0 0.0
        %916 = vmatmul.mubr.f32.gmra.mxu0 %v699
        %v917 = vpop.f32.mrf.mxu0
        %v918 = vadd.f32 %v717, %v917
        %v919 = vpop.f32.mrf.mxu0
        %v920 = vadd.f32 %v721, %v919
        %921 = vmatprep.mubr.f32.mxu0 0.0
        %922 = vmatmul.mubr.f32.gmra.mxu0 %v700
        %v923 = vpop.f32.mrf.mxu0
        %v924 = vadd.f32 %v717, %v923
        %v925 = vpop.f32.mrf.mxu0
        %v926 = vadd.f32 %v721, %v925
        %927 = vmatprep.mubr.f32.mxu0 0.0
        %928 = vmatmul.mubr.f32.gmra.mxu0 %v701
        %v929 = vpop.f32.mrf.mxu0
        %v930 = vadd.f32 %v717, %v929
        %v931 = vpop.f32.mrf.mxu0
        %v932 = vadd.f32 %v721, %v931
        %933 = vmatprep.mubr.f32.mxu0 0.0
        %934 = vmatmul.mubr.f32.gmra.mxu0 %v702
        %v935 = vpop.f32.mrf.mxu0
        %v936 = vadd.f32 %v717, %v935
        %v937 = vpop.f32.mrf.mxu0
        %v938 = vadd.f32 %v721, %v937
        %939 = vmatprep.mubr.f32.mxu0 0.0
        %940 = vmatmul.mubr.f32.gmra.mxu0 %v703
        %v941 = vpop.f32.mrf.mxu0
        %v942 = vadd.f32 %v717, %v941
        %v943 = vpop.f32.mrf.mxu0
        %v944 = vadd.f32 %v721, %v943
        %945 = vmatprep.mubr.f32.mxu0 0.0
        %946 = vmatmul.mubr.f32.gmra.mxu0 %v704
        %v947 = vpop.f32.mrf.mxu0
        %v948 = vadd.f32 %v717, %v947
        %v949 = vpop.f32.mrf.mxu0
        %v950 = vadd.f32 %v721, %v949
        %951 = vdwg.mxu0
        %952 = vst [vmem:[#allocation5] sm:$0xff] %v793
        %953 = vst [vmem:[#allocation5 + $0x8] sm:$0xff] %v795
        %954 = vst [vmem:[#allocation5 + $0x10] sm:$0xff] %v906
        %955 = vst [vmem:[#allocation5 + $0x18] sm:$0xff] %v908
        %956 = vst [vmem:[#allocation5 + $0x20] sm:$0xff] %v799
        %957 = vst [vmem:[#allocation5 + $0x28] sm:$0xff] %v801
        %958 = vst [vmem:[#allocation5 + $0x30] sm:$0xff] %v912
        %959 = vst [vmem:[#allocation5 + $0x38] sm:$0xff] %v914
        %960 = vst [vmem:[#allocation5 + $0x40] sm:$0xff] %v805
        %961 = vst [vmem:[#allocation5 + $0x48] sm:$0xff] %v807
        %962 = vst [vmem:[#allocation5 + $0x50] sm:$0xff] %v918
        %963 = vst [vmem:[#allocation5 + $0x58] sm:$0xff] %v920
        %964 = vst [vmem:[#allocation5 + $0x60] sm:$0xff] %v811
        %965 = vst [vmem:[#allocation5 + $0x68] sm:$0xff] %v813
        %966 = vst [vmem:[#allocation5 + $0x70] sm:$0xff] %v924
        %967 = vst [vmem:[#allocation5 + $0x78] sm:$0xff] %v926
        %968 = vst [vmem:[#allocation5 + $0x80] sm:$0xff] %v817
        %969 = vst [vmem:[#allocation5 + $0x88] sm:$0xff] %v819
        %970 = vst [vmem:[#allocation5 + $0x90] sm:$0xff] %v930
        %971 = vst [vmem:[#allocation5 + $0x98] sm:$0xff] %v932
        %972 = vst [vmem:[#allocation5 + $0xa0] sm:$0xff] %v823
        %973 = vst [vmem:[#allocation5 + $0xa8] sm:$0xff] %v825
        %974 = vst [vmem:[#allocation5 + $0xb0] sm:$0xff] %v936
        %975 = vst [vmem:[#allocation5 + $0xb8] sm:$0xff] %v938
        %976 = vst [vmem:[#allocation5 + $0xc0] sm:$0xff] %v829
        %977 = vst [vmem:[#allocation5 + $0xc8] sm:$0xff] %v831
        %978 = vst [vmem:[#allocation5 + $0xd0] sm:$0xff] %v942
        %979 = vst [vmem:[#allocation5 + $0xd8] sm:$0xff] %v944
        %980 = vst [vmem:[#allocation5 + $0xe0] sm:$0xff] %v835
        %981 = vst [vmem:[#allocation5 + $0xe8] sm:$0xff] %v837
        %982 = vst [vmem:[#allocation5 + $0xf0] sm:$0xff] %v948
        %983 = vst [vmem:[#allocation5 + $0xf8] sm:$0xff] %v950
        %v984 = vld [vmem:[#allocation2] sm:$0xff]
        %v985 = vld [vmem:[#allocation3] sm:$0xff]
        %v986 = vld [vmem:[#allocation5] sm:$0xff]
        %v987 = vld [vmem:[#allocation5 + $0x8] sm:$0xff]
        %v988 = vld [vmem:[#allocation5 + $0x10] sm:$0xff]
        %v989 = vld [vmem:[#allocation5 + $0x18] sm:$0xff]
        %990 = vmatprep.subr.mxu0 %v693
        %991 = vmatpush1.msra.mxu0 %v692
        %992 = vmatprep.subr.mxu0 %v689
        %993 = vmatpush1.msra.mxu0 %v688
        %994 = vmatprep.subr.mxu0 %v685
        %995 = vmatpush1.msra.mxu0 %v684
        %996 = vmatprep.subr.mxu0 %v681
        %997 = vmatpush1.msra.mxu0 %v680
        %998 = vmatprep.subr.mxu0 %v677
        %999 = vmatpush1.msra.mxu0 %v676
        %1000 = vmatprep.subr.mxu0 %v673
        %1001 = vmatpush1.msra.mxu0 %v672
        %1002 = vmatprep.subr.mxu0 %v669
        %1003 = vmatpush1.msra.mxu0 %v668
        %1004 = vmatprep.subr.mxu0 %v665
        %1005 = vmatpush1.msra.mxu0 %v664
        %1006 = vmatprep.subr.mxu0 %v661
        %1007 = vmatpush1.msra.mxu0 %v660
        %1008 = vmatprep.subr.mxu0 %v657
        %1009 = vmatpush1.msra.mxu0 %v656
        %1010 = vmatprep.subr.mxu0 %v653
        %1011 = vmatpush1.msra.mxu0 %v652
        %1012 = vmatprep.subr.mxu0 %v649
        %1013 = vmatpush1.msra.mxu0 %v648
        %1014 = vmatprep.subr.mxu0 %v645
        %1015 = vmatpush1.msra.mxu0 %v644
        %1016 = vmatprep.subr.mxu0 %v641
        %1017 = vmatpush1.msra.mxu0 %v640
        %1018 = vmatprep.subr.mxu0 %v637
        %1019 = vmatpush1.msra.mxu0 %v636
        %1020 = vmatprep.subr.mxu0 %v633
        %1021 = vmatpush1.msra.mxu0 %v632
        %1022 = vmatprep.subr.mxu0 0.0
        %1023 = vmatpush2.msra.mxu0 0.0
        %1024 = vmatprep.subr.mxu0 0.0
        %1025 = vmatpush2.msra.mxu0 0.0
        %1026 = vmatprep.subr.mxu0 0.0
        %1027 = vmatpush2.msra.mxu0 0.0
        %1028 = vmatprep.subr.mxu0 0.0
        %1029 = vmatpush2.msra.mxu0 0.0
        %1030 = vmatprep.subr.mxu0 0.0
        %1031 = vmatpush2.msra.mxu0 0.0
        %1032 = vmatprep.subr.mxu0 0.0
        %1033 = vmatpush2.msra.mxu0 0.0
        %1034 = vmatprep.subr.mxu0 0.0
        %1035 = vmatpush2.msra.mxu0 0.0
        %1036 = vmatprep.subr.mxu0 0.0
        %1037 = vmatpush2.msra.mxu0 0.0
        %1038 = vmatprep.subr.mxu0 0.0
        %1039 = vmatpush2.msra.mxu0 0.0
        %1040 = vmatprep.subr.mxu0 0.0
        %1041 = vmatpush2.msra.mxu0 0.0
        %1042 = vmatprep.subr.mxu0 0.0
        %1043 = vmatpush2.msra.mxu0 0.0
        %1044 = vmatprep.subr.mxu0 0.0
        %1045 = vmatpush2.msra.mxu0 0.0
        %1046 = vmatprep.subr.mxu0 0.0
        %1047 = vmatpush2.msra.mxu0 0.0
        %1048 = vmatprep.subr.mxu0 0.0
        %1049 = vmatpush2.msra.mxu0 0.0
        %1050 = vmatprep.subr.mxu0 0.0
        %1051 = vmatpush2.msra.mxu0 0.0
        %1052 = vmatprep.subr.mxu0 0.0
        %1053 = vmatpush2.msra.mxu0 0.0
        %1054 = vmatprep.mubr.f32.mxu0 0.0
        %1055 = vmatmul.mubr.f32.gmra.mxu0 %v984
        %v1056 = vpop.f32.mrf.mxu0
        %v1057 = vadd.f32 %v986, %v1056
        %v1058 = vpop.f32.mrf.mxu0
        %v1059 = vadd.f32 %v987, %v1058
        %1060 = vdwg.mxu0
        %1061 = vmatprep.subr.mxu0 %v695
        %1062 = vmatpush1.msra.mxu0 %v694
        %1063 = vmatprep.subr.mxu0 %v691
        %1064 = vmatpush1.msra.mxu0 %v690
        %1065 = vmatprep.subr.mxu0 %v687
        %1066 = vmatpush1.msra.mxu0 %v686
        %1067 = vmatprep.subr.mxu0 %v683
        %1068 = vmatpush1.msra.mxu0 %v682
        %1069 = vmatprep.subr.mxu0 %v679
        %1070 = vmatpush1.msra.mxu0 %v678
        %1071 = vmatprep.subr.mxu0 %v675
        %1072 = vmatpush1.msra.mxu0 %v674
        %1073 = vmatprep.subr.mxu0 %v671
        %1074 = vmatpush1.msra.mxu0 %v670
        %1075 = vmatprep.subr.mxu0 %v667
        %1076 = vmatpush1.msra.mxu0 %v666
        %1077 = vmatprep.subr.mxu0 %v663
        %1078 = vmatpush1.msra.mxu0 %v662
        %1079 = vmatprep.subr.mxu0 %v659
        %1080 = vmatpush1.msra.mxu0 %v658
        %1081 = vmatprep.subr.mxu0 %v655
        %1082 = vmatpush1.msra.mxu0 %v654
        %1083 = vmatprep.subr.mxu0 %v651
        %1084 = vmatpush1.msra.mxu0 %v650
        %1085 = vmatprep.subr.mxu0 %v647
        %1086 = vmatpush1.msra.mxu0 %v646
        %1087 = vmatprep.subr.mxu0 %v643
        %1088 = vmatpush1.msra.mxu0 %v642
        %1089 = vmatprep.subr.mxu0 %v639
        %1090 = vmatpush1.msra.mxu0 %v638
        %1091 = vmatprep.subr.mxu0 %v635
        %1092 = vmatpush1.msra.mxu0 %v634
        %1093 = vmatprep.subr.mxu0 0.0
        %1094 = vmatpush2.msra.mxu0 0.0
        %1095 = vmatprep.subr.mxu0 0.0
        %1096 = vmatpush2.msra.mxu0 0.0
        %1097 = vmatprep.subr.mxu0 0.0
        %1098 = vmatpush2.msra.mxu0 0.0
        %1099 = vmatprep.subr.mxu0 0.0
        %1100 = vmatpush2.msra.mxu0 0.0
        %1101 = vmatprep.subr.mxu0 0.0
        %1102 = vmatpush2.msra.mxu0 0.0
        %1103 = vmatprep.subr.mxu0 0.0
        %1104 = vmatpush2.msra.mxu0 0.0
        %1105 = vmatprep.subr.mxu0 0.0
        %1106 = vmatpush2.msra.mxu0 0.0
        %1107 = vmatprep.subr.mxu0 0.0
        %1108 = vmatpush2.msra.mxu0 0.0
        %1109 = vmatprep.subr.mxu0 0.0
        %1110 = vmatpush2.msra.mxu0 0.0
        %1111 = vmatprep.subr.mxu0 0.0
        %1112 = vmatpush2.msra.mxu0 0.0
        %1113 = vmatprep.subr.mxu0 0.0
        %1114 = vmatpush2.msra.mxu0 0.0
        %1115 = vmatprep.subr.mxu0 0.0
        %1116 = vmatpush2.msra.mxu0 0.0
        %1117 = vmatprep.subr.mxu0 0.0
        %1118 = vmatpush2.msra.mxu0 0.0
        %1119 = vmatprep.subr.mxu0 0.0
        %1120 = vmatpush2.msra.mxu0 0.0
        %1121 = vmatprep.subr.mxu0 0.0
        %1122 = vmatpush2.msra.mxu0 0.0
        %1123 = vmatprep.subr.mxu0 0.0
        %1124 = vmatpush2.msra.mxu0 0.0
        %1125 = vmatprep.mubr.f32.mxu0 0.0
        %1126 = vmatmul.mubr.f32.gmra.mxu0 %v984
        %v1127 = vpop.f32.mrf.mxu0
        %v1128 = vadd.f32 %v988, %v1127
        %v1129 = vpop.f32.mrf.mxu0
        %v1130 = vadd.f32 %v989, %v1129
        %1131 = vdwg.mxu0
        %v1132 = vmul.f32 %v1057, 0.5
        %v1133 = vmul.f32 %v1059, 0.5
        %v1134 = vmul.f32 %v1128, 0.5
        %v1135 = vtanh.pop %v1132
        %v1136 = vtanh.pop %v1133
        %v1137 = vtanh.pop %v1134
        %v1138 = vmul.f32 %v1135, 0.5
        %v1139 = vmul.f32 %v1136, 0.5
        %v1140 = vmul.f32 %v1137, 0.5
        %v1141 = vadd.f32 %v1138, 0.5
        %v1142 = vadd.f32 %v1139, 0.5
        %v1143 = vadd.f32 %v1140, 0.5
        %v1144 = vtanh.pop %v1130
        %v1145 = vmul.f32 %v1142, %v985
        %v1146 = vmul.f32 %v1141, %v1144
        %v1147 = vadd.f32 %v1145, %v1146
        %v1148 = vtanh.pop %v1147
        %v1149 = vmul.f32 %v1143, %v1148
        %1150 = vst [vmem:[#allocation4] sm:$0xff] %v1149
        %s1151 = scalar_lea.vmem [#allocation5], 32
        %v1152 = vld [vmem:[%s1151] sm:$0xff]
        %v1153 = vld [vmem:[%s1151 + $0x8] sm:$0xff]
        %v1154 = vld [vmem:[%s1151 + $0x10] sm:$0xff]
        %v1155 = vld [vmem:[%s1151 + $0x18] sm:$0xff]
        %1156 = vmatprep.subr.mxu0 %v693
        %1157 = vmatpush1.msra.mxu0 %v692
        %1158 = vmatprep.subr.mxu0 %v689
        %1159 = vmatpush1.msra.mxu0 %v688
        %1160 = vmatprep.subr.mxu0 %v685
        %1161 = vmatpush1.msra.mxu0 %v684
        %1162 = vmatprep.subr.mxu0 %v681
        %1163 = vmatpush1.msra.mxu0 %v680
        %1164 = vmatprep.subr.mxu0 %v677
        %1165 = vmatpush1.msra.mxu0 %v676
        %1166 = vmatprep.subr.mxu0 %v673
        %1167 = vmatpush1.msra.mxu0 %v672
        %1168 = vmatprep.subr.mxu0 %v669
        %1169 = vmatpush1.msra.mxu0 %v668
        %1170 = vmatprep.subr.mxu0 %v665
        %1171 = vmatpush1.msra.mxu0 %v664
        %1172 = vmatprep.subr.mxu0 %v661
        %1173 = vmatpush1.msra.mxu0 %v660
        %1174 = vmatprep.subr.mxu0 %v657
        %1175 = vmatpush1.msra.mxu0 %v656
        %1176 = vmatprep.subr.mxu0 %v653
        %1177 = vmatpush1.msra.mxu0 %v652
        %1178 = vmatprep.subr.mxu0 %v649
        %1179 = vmatpush1.msra.mxu0 %v648
        %1180 = vmatprep.subr.mxu0 %v645
        %1181 = vmatpush1.msra.mxu0 %v644
        %1182 = vmatprep.subr.mxu0 %v641
        %1183 = vmatpush1.msra.mxu0 %v640
        %1184 = vmatprep.subr.mxu0 %v637
        %1185 = vmatpush1.msra.mxu0 %v636
        %1186 = vmatprep.subr.mxu0 %v633
        %1187 = vmatpush1.msra.mxu0 %v632
        %1188 = vmatprep.subr.mxu0 0.0
        %1189 = vmatpush2.msra.mxu0 0.0
        %1190 = vmatprep.subr.mxu0 0.0
        %1191 = vmatpush2.msra.mxu0 0.0
        %1192 = vmatprep.subr.mxu0 0.0
        %1193 = vmatpush2.msra.mxu0 0.0
        %1194 = vmatprep.subr.mxu0 0.0
        %1195 = vmatpush2.msra.mxu0 0.0
        %1196 = vmatprep.subr.mxu0 0.0
        %1197 = vmatpush2.msra.mxu0 0.0
        %1198 = vmatprep.subr.mxu0 0.0
        %1199 = vmatpush2.msra.mxu0 0.0
        %1200 = vmatprep.subr.mxu0 0.0
        %1201 = vmatpush2.msra.mxu0 0.0
        %1202 = vmatprep.subr.mxu0 0.0
        %1203 = vmatpush2.msra.mxu0 0.0
        %1204 = vmatprep.subr.mxu0 0.0
        %1205 = vmatpush2.msra.mxu0 0.0
        %1206 = vmatprep.subr.mxu0 0.0
        %1207 = vmatpush2.msra.mxu0 0.0
        %1208 = vmatprep.subr.mxu0 0.0
        %1209 = vmatpush2.msra.mxu0 0.0
        %1210 = vmatprep.subr.mxu0 0.0
        %1211 = vmatpush2.msra.mxu0 0.0
        %1212 = vmatprep.subr.mxu0 0.0
        %1213 = vmatpush2.msra.mxu0 0.0
        %1214 = vmatprep.subr.mxu0 0.0
        %1215 = vmatpush2.msra.mxu0 0.0
        %1216 = vmatprep.subr.mxu0 0.0
        %1217 = vmatpush2.msra.mxu0 0.0
        %1218 = vmatprep.subr.mxu0 0.0
        %1219 = vmatpush2.msra.mxu0 0.0
        %1220 = vmatprep.mubr.f32.mxu0 0.0
        %1221 = vmatmul.mubr.f32.gmra.mxu0 %v1149
        %v1222 = vpop.f32.mrf.mxu0
        %v1223 = vadd.f32 %v1152, %v1222
        %v1224 = vpop.f32.mrf.mxu0
        %v1225 = vadd.f32 %v1153, %v1224
        %1226 = vdwg.mxu0
        %1227 = vmatprep.subr.mxu0 %v695
        %1228 = vmatpush1.msra.mxu0 %v694
        %1229 = vmatprep.subr.mxu0 %v691
        %1230 = vmatpush1.msra.mxu0 %v690
        %1231 = vmatprep.subr.mxu0 %v687
        %1232 = vmatpush1.msra.mxu0 %v686
        %1233 = vmatprep.subr.mxu0 %v683
        %1234 = vmatpush1.msra.mxu0 %v682
        %1235 = vmatprep.subr.mxu0 %v679
        %1236 = vmatpush1.msra.mxu0 %v678
        %1237 = vmatprep.subr.mxu0 %v675
        %1238 = vmatpush1.msra.mxu0 %v674
        %1239 = vmatprep.subr.mxu0 %v671
        %1240 = vmatpush1.msra.mxu0 %v670
        %1241 = vmatprep.subr.mxu0 %v667
        %1242 = vmatpush1.msra.mxu0 %v666
        %1243 = vmatprep.subr.mxu0 %v663
        %1244 = vmatpush1.msra.mxu0 %v662
        %1245 = vmatprep.subr.mxu0 %v659
        %1246 = vmatpush1.msra.mxu0 %v658
        %1247 = vmatprep.subr.mxu0 %v655
        %1248 = vmatpush1.msra.mxu0 %v654
        %1249 = vmatprep.subr.mxu0 %v651
        %1250 = vmatpush1.msra.mxu0 %v650
        %1251 = vmatprep.subr.mxu0 %v647
        %1252 = vmatpush1.msra.mxu0 %v646
        %1253 = vmatprep.subr.mxu0 %v643
        %1254 = vmatpush1.msra.mxu0 %v642
        %1255 = vmatprep.subr.mxu0 %v639
        %1256 = vmatpush1.msra.mxu0 %v638
        %1257 = vmatprep.subr.mxu0 %v635
        %1258 = vmatpush1.msra.mxu0 %v634
        %1259 = vmatprep.subr.mxu0 0.0
        %1260 = vmatpush2.msra.mxu0 0.0
        %1261 = vmatprep.subr.mxu0 0.0
        %1262 = vmatpush2.msra.mxu0 0.0
        %1263 = vmatprep.subr.mxu0 0.0
        %1264 = vmatpush2.msra.mxu0 0.0
        %1265 = vmatprep.subr.mxu0 0.0
        %1266 = vmatpush2.msra.mxu0 0.0
        %1267 = vmatprep.subr.mxu0 0.0
        %1268 = vmatpush2.msra.mxu0 0.0
        %1269 = vmatprep.subr.mxu0 0.0
        %1270 = vmatpush2.msra.mxu0 0.0
        %1271 = vmatprep.subr.mxu0 0.0
        %1272 = vmatpush2.msra.mxu0 0.0
        %1273 = vmatprep.subr.mxu0 0.0
        %1274 = vmatpush2.msra.mxu0 0.0
        %1275 = vmatprep.subr.mxu0 0.0
        %1276 = vmatpush2.msra.mxu0 0.0
        %1277 = vmatprep.subr.mxu0 0.0
        %1278 = vmatpush2.msra.mxu0 0.0
        %1279 = vmatprep.subr.mxu0 0.0
        %1280 = vmatpush2.msra.mxu0 0.0
        %1281 = vmatprep.subr.mxu0 0.0
        %1282 = vmatpush2.msra.mxu0 0.0
        %1283 = vmatprep.subr.mxu0 0.0
        %1284 = vmatpush2.msra.mxu0 0.0
        %1285 = vmatprep.subr.mxu0 0.0
        %1286 = vmatpush2.msra.mxu0 0.0
        %1287 = vmatprep.subr.mxu0 0.0
        %1288 = vmatpush2.msra.mxu0 0.0
        %1289 = vmatprep.subr.mxu0 0.0
        %1290 = vmatpush2.msra.mxu0 0.0
        %1291 = vmatprep.mubr.f32.mxu0 0.0
        %1292 = vmatmul.mubr.f32.gmra.mxu0 %v1149
        %v1293 = vpop.f32.mrf.mxu0
        %v1294 = vadd.f32 %v1154, %v1293
        %v1295 = vpop.f32.mrf.mxu0
        %v1296 = vadd.f32 %v1155, %v1295
        %1297 = vdwg.mxu0
        %v1298 = vmul.f32 %v1223, 0.5
        %v1299 = vmul.f32 %v1225, 0.5
        %v1300 = vmul.f32 %v1294, 0.5
        %v1301 = vtanh.pop %v1298
        %v1302 = vtanh.pop %v1299
        %v1303 = vtanh.pop %v1300
        %v1304 = vmul.f32 %v1301, 0.5
        %v1305 = vmul.f32 %v1302, 0.5
        %v1306 = vmul.f32 %v1303, 0.5
        %v1307 = vadd.f32 %v1304, 0.5
        %v1308 = vadd.f32 %v1305, 0.5
        %v1309 = vadd.f32 %v1306, 0.5
        %v1310 = vtanh.pop %v1296
        %v1311 = vmul.f32 %v1308, %v1147
        %v1312 = vmul.f32 %v1307, %v1310
        %v1313 = vadd.f32 %v1311, %v1312
        %v1314 = vtanh.pop %v1313
        %v1315 = vmul.f32 %v1309, %v1314
        %s1316 = scalar_lea.vmem [#allocation4], 8
        %1317 = vst [vmem:[%s1316] sm:$0xff] %v1315
        %s1318 = scalar_lea.vmem [#allocation5], 64
        %v1319 = vld [vmem:[%s1318] sm:$0xff]
        %v1320 = vld [vmem:[%s1318 + $0x8] sm:$0xff]
        %v1321 = vld [vmem:[%s1318 + $0x10] sm:$0xff]
        %v1322 = vld [vmem:[%s1318 + $0x18] sm:$0xff]
        %1323 = vmatprep.subr.mxu0 %v693
        %1324 = vmatpush1.msra.mxu0 %v692
        %1325 = vmatprep.subr.mxu0 %v689
        %1326 = vmatpush1.msra.mxu0 %v688
        %1327 = vmatprep.subr.mxu0 %v685
        %1328 = vmatpush1.msra.mxu0 %v684
        %1329 = vmatprep.subr.mxu0 %v681
        %1330 = vmatpush1.msra.mxu0 %v680
        %1331 = vmatprep.subr.mxu0 %v677
        %1332 = vmatpush1.msra.mxu0 %v676
        %1333 = vmatprep.subr.mxu0 %v673
        %1334 = vmatpush1.msra.mxu0 %v672
        %1335 = vmatprep.subr.mxu0 %v669
        %1336 = vmatpush1.msra.mxu0 %v668
        %1337 = vmatprep.subr.mxu0 %v665
        %1338 = vmatpush1.msra.mxu0 %v664
        %1339 = vmatprep.subr.mxu0 %v661
        %1340 = vmatpush1.msra.mxu0 %v660
        %1341 = vmatprep.subr.mxu0 %v657
        %1342 = vmatpush1.msra.mxu0 %v656
        %1343 = vmatprep.subr.mxu0 %v653
        %1344 = vmatpush1.msra.mxu0 %v652
        %1345 = vmatprep.subr.mxu0 %v649
        %1346 = vmatpush1.msra.mxu0 %v648
        %1347 = vmatprep.subr.mxu0 %v645
        %1348 = vmatpush1.msra.mxu0 %v644
        %1349 = vmatprep.subr.mxu0 %v641
        %1350 = vmatpush1.msra.mxu0 %v640
        %1351 = vmatprep.subr.mxu0 %v637
        %1352 = vmatpush1.msra.mxu0 %v636
        %1353 = vmatprep.subr.mxu0 %v633
        %1354 = vmatpush1.msra.mxu0 %v632
        %1355 = vmatprep.subr.mxu0 0.0
        %1356 = vmatpush2.msra.mxu0 0.0
        %1357 = vmatprep.subr.mxu0 0.0
        %1358 = vmatpush2.msra.mxu0 0.0
        %1359 = vmatprep.subr.mxu0 0.0
        %1360 = vmatpush2.msra.mxu0 0.0
        %1361 = vmatprep.subr.mxu0 0.0
        %1362 = vmatpush2.msra.mxu0 0.0
        %1363 = vmatprep.subr.mxu0 0.0
        %1364 = vmatpush2.msra.mxu0 0.0
        %1365 = vmatprep.subr.mxu0 0.0
        %1366 = vmatpush2.msra.mxu0 0.0
        %1367 = vmatprep.subr.mxu0 0.0
        %1368 = vmatpush2.msra.mxu0 0.0
        %1369 = vmatprep.subr.mxu0 0.0
        %1370 = vmatpush2.msra.mxu0 0.0
        %1371 = vmatprep.subr.mxu0 0.0
        %1372 = vmatpush2.msra.mxu0 0.0
        %1373 = vmatprep.subr.mxu0 0.0
        %1374 = vmatpush2.msra.mxu0 0.0
        %1375 = vmatprep.subr.mxu0 0.0
        %1376 = vmatpush2.msra.mxu0 0.0
        %1377 = vmatprep.subr.mxu0 0.0
        %1378 = vmatpush2.msra.mxu0 0.0
        %1379 = vmatprep.subr.mxu0 0.0
        %1380 = vmatpush2.msra.mxu0 0.0
        %1381 = vmatprep.subr.mxu0 0.0
        %1382 = vmatpush2.msra.mxu0 0.0
        %1383 = vmatprep.subr.mxu0 0.0
        %1384 = vmatpush2.msra.mxu0 0.0
        %1385 = vmatprep.subr.mxu0 0.0
        %1386 = vmatpush2.msra.mxu0 0.0
        %1387 = vmatprep.mubr.f32.mxu0 0.0
        %1388 = vmatmul.mubr.f32.gmra.mxu0 %v1315
        %v1389 = vpop.f32.mrf.mxu0
        %v1390 = vadd.f32 %v1319, %v1389
        %v1391 = vpop.f32.mrf.mxu0
        %v1392 = vadd.f32 %v1320, %v1391
        %1393 = vdwg.mxu0
        %1394 = vmatprep.subr.mxu0 %v695
        %1395 = vmatpush1.msra.mxu0 %v694
        %1396 = vmatprep.subr.mxu0 %v691
        %1397 = vmatpush1.msra.mxu0 %v690
        %1398 = vmatprep.subr.mxu0 %v687
        %1399 = vmatpush1.msra.mxu0 %v686
        %1400 = vmatprep.subr.mxu0 %v683
        %1401 = vmatpush1.msra.mxu0 %v682
        %1402 = vmatprep.subr.mxu0 %v679
        %1403 = vmatpush1.msra.mxu0 %v678
        %1404 = vmatprep.subr.mxu0 %v675
        %1405 = vmatpush1.msra.mxu0 %v674
        %1406 = vmatprep.subr.mxu0 %v671
        %1407 = vmatpush1.msra.mxu0 %v670
        %1408 = vmatprep.subr.mxu0 %v667
        %1409 = vmatpush1.msra.mxu0 %v666
        %1410 = vmatprep.subr.mxu0 %v663
        %1411 = vmatpush1.msra.mxu0 %v662
        %1412 = vmatprep.subr.mxu0 %v659
        %1413 = vmatpush1.msra.mxu0 %v658
        %1414 = vmatprep.subr.mxu0 %v655
        %1415 = vmatpush1.msra.mxu0 %v654
        %1416 = vmatprep.subr.mxu0 %v651
        %1417 = vmatpush1.msra.mxu0 %v650
        %1418 = vmatprep.subr.mxu0 %v647
        %1419 = vmatpush1.msra.mxu0 %v646
        %1420 = vmatprep.subr.mxu0 %v643
        %1421 = vmatpush1.msra.mxu0 %v642
        %1422 = vmatprep.subr.mxu0 %v639
        %1423 = vmatpush1.msra.mxu0 %v638
        %1424 = vmatprep.subr.mxu0 %v635
        %1425 = vmatpush1.msra.mxu0 %v634
        %1426 = vmatprep.subr.mxu0 0.0
        %1427 = vmatpush2.msra.mxu0 0.0
        %1428 = vmatprep.subr.mxu0 0.0
        %1429 = vmatpush2.msra.mxu0 0.0
        %1430 = vmatprep.subr.mxu0 0.0
        %1431 = vmatpush2.msra.mxu0 0.0
        %1432 = vmatprep.subr.mxu0 0.0
        %1433 = vmatpush2.msra.mxu0 0.0
        %1434 = vmatprep.subr.mxu0 0.0
        %1435 = vmatpush2.msra.mxu0 0.0
        %1436 = vmatprep.subr.mxu0 0.0
        %1437 = vmatpush2.msra.mxu0 0.0
        %1438 = vmatprep.subr.mxu0 0.0
        %1439 = vmatpush2.msra.mxu0 0.0
        %1440 = vmatprep.subr.mxu0 0.0
        %1441 = vmatpush2.msra.mxu0 0.0
        %1442 = vmatprep.subr.mxu0 0.0
        %1443 = vmatpush2.msra.mxu0 0.0
        %1444 = vmatprep.subr.mxu0 0.0
        %1445 = vmatpush2.msra.mxu0 0.0
        %1446 = vmatprep.subr.mxu0 0.0
        %1447 = vmatpush2.msra.mxu0 0.0
        %1448 = vmatprep.subr.mxu0 0.0
        %1449 = vmatpush2.msra.mxu0 0.0
        %1450 = vmatprep.subr.mxu0 0.0
        %1451 = vmatpush2.msra.mxu0 0.0
        %1452 = vmatprep.subr.mxu0 0.0
        %1453 = vmatpush2.msra.mxu0 0.0
        %1454 = vmatprep.subr.mxu0 0.0
        %1455 = vmatpush2.msra.mxu0 0.0
        %1456 = vmatprep.subr.mxu0 0.0
        %1457 = vmatpush2.msra.mxu0 0.0
        %1458 = vmatprep.mubr.f32.mxu0 0.0
        %1459 = vmatmul.mubr.f32.gmra.mxu0 %v1315
        %v1460 = vpop.f32.mrf.mxu0
        %v1461 = vadd.f32 %v1321, %v1460
        %v1462 = vpop.f32.mrf.mxu0
        %v1463 = vadd.f32 %v1322, %v1462
        %1464 = vdwg.mxu0
        %v1465 = vmul.f32 %v1390, 0.5
        %v1466 = vmul.f32 %v1392, 0.5
        %v1467 = vmul.f32 %v1461, 0.5
        %v1468 = vtanh.pop %v1465
        %v1469 = vtanh.pop %v1466
        %v1470 = vtanh.pop %v1467
        %v1471 = vmul.f32 %v1468, 0.5
        %v1472 = vmul.f32 %v1469, 0.5
        %v1473 = vmul.f32 %v1470, 0.5
        %v1474 = vadd.f32 %v1471, 0.5
        %v1475 = vadd.f32 %v1472, 0.5
        %v1476 = vadd.f32 %v1473, 0.5
        %v1477 = vtanh.pop %v1463
        %v1478 = vmul.f32 %v1475, %v1313
        %v1479 = vmul.f32 %v1474, %v1477
        %v1480 = vadd.f32 %v1478, %v1479
        %v1481 = vtanh.pop %v1480
        %v1482 = vmul.f32 %v1476, %v1481
        %s1483 = scalar_lea.vmem [#allocation4], 16
        %1484 = vst [vmem:[%s1483] sm:$0xff] %v1482
        %s1485 = scalar_lea.vmem [#allocation5], 96
        %v1486 = vld [vmem:[%s1485] sm:$0xff]
        %v1487 = vld [vmem:[%s1485 + $0x8] sm:$0xff]
        %v1488 = vld [vmem:[%s1485 + $0x10] sm:$0xff]
        %v1489 = vld [vmem:[%s1485 + $0x18] sm:$0xff]
        %1490 = vmatprep.subr.mxu0 %v693
        %1491 = vmatpush1.msra.mxu0 %v692
        %1492 = vmatprep.subr.mxu0 %v689
        %1493 = vmatpush1.msra.mxu0 %v688
        %1494 = vmatprep.subr.mxu0 %v685
        %1495 = vmatpush1.msra.mxu0 %v684
        %1496 = vmatprep.subr.mxu0 %v681
        %1497 = vmatpush1.msra.mxu0 %v680
        %1498 = vmatprep.subr.mxu0 %v677
        %1499 = vmatpush1.msra.mxu0 %v676
        %1500 = vmatprep.subr.mxu0 %v673
        %1501 = vmatpush1.msra.mxu0 %v672
        %1502 = vmatprep.subr.mxu0 %v669
        %1503 = vmatpush1.msra.mxu0 %v668
        %1504 = vmatprep.subr.mxu0 %v665
        %1505 = vmatpush1.msra.mxu0 %v664
        %1506 = vmatprep.subr.mxu0 %v661
        %1507 = vmatpush1.msra.mxu0 %v660
        %1508 = vmatprep.subr.mxu0 %v657
        %1509 = vmatpush1.msra.mxu0 %v656
        %1510 = vmatprep.subr.mxu0 %v653
        %1511 = vmatpush1.msra.mxu0 %v652
        %1512 = vmatprep.subr.mxu0 %v649
        %1513 = vmatpush1.msra.mxu0 %v648
        %1514 = vmatprep.subr.mxu0 %v645
        %1515 = vmatpush1.msra.mxu0 %v644
        %1516 = vmatprep.subr.mxu0 %v641
        %1517 = vmatpush1.msra.mxu0 %v640
        %1518 = vmatprep.subr.mxu0 %v637
        %1519 = vmatpush1.msra.mxu0 %v636
        %1520 = vmatprep.subr.mxu0 %v633
        %1521 = vmatpush1.msra.mxu0 %v632
        %1522 = vmatprep.subr.mxu0 0.0
        %1523 = vmatpush2.msra.mxu0 0.0
        %1524 = vmatprep.subr.mxu0 0.0
        %1525 = vmatpush2.msra.mxu0 0.0
        %1526 = vmatprep.subr.mxu0 0.0
        %1527 = vmatpush2.msra.mxu0 0.0
        %1528 = vmatprep.subr.mxu0 0.0
        %1529 = vmatpush2.msra.mxu0 0.0
        %1530 = vmatprep.subr.mxu0 0.0
        %1531 = vmatpush2.msra.mxu0 0.0
        %1532 = vmatprep.subr.mxu0 0.0
        %1533 = vmatpush2.msra.mxu0 0.0
        %1534 = vmatprep.subr.mxu0 0.0
        %1535 = vmatpush2.msra.mxu0 0.0
        %1536 = vmatprep.subr.mxu0 0.0
        %1537 = vmatpush2.msra.mxu0 0.0
        %1538 = vmatprep.subr.mxu0 0.0
        %1539 = vmatpush2.msra.mxu0 0.0
        %1540 = vmatprep.subr.mxu0 0.0
        %1541 = vmatpush2.msra.mxu0 0.0
        %1542 = vmatprep.subr.mxu0 0.0
        %1543 = vmatpush2.msra.mxu0 0.0
        %1544 = vmatprep.subr.mxu0 0.0
        %1545 = vmatpush2.msra.mxu0 0.0
        %1546 = vmatprep.subr.mxu0 0.0
        %1547 = vmatpush2.msra.mxu0 0.0
        %1548 = vmatprep.subr.mxu0 0.0
        %1549 = vmatpush2.msra.mxu0 0.0
        %1550 = vmatprep.subr.mxu0 0.0
        %1551 = vmatpush2.msra.mxu0 0.0
        %1552 = vmatprep.subr.mxu0 0.0
        %1553 = vmatpush2.msra.mxu0 0.0
        %1554 = vmatprep.mubr.f32.mxu0 0.0
        %1555 = vmatmul.mubr.f32.gmra.mxu0 %v1482
        %v1556 = vpop.f32.mrf.mxu0
        %v1557 = vadd.f32 %v1486, %v1556
        %v1558 = vpop.f32.mrf.mxu0
        %v1559 = vadd.f32 %v1487, %v1558
        %1560 = vdwg.mxu0
        %1561 = vmatprep.subr.mxu0 %v695
        %1562 = vmatpush1.msra.mxu0 %v694
        %1563 = vmatprep.subr.mxu0 %v691
        %1564 = vmatpush1.msra.mxu0 %v690
        %1565 = vmatprep.subr.mxu0 %v687
        %1566 = vmatpush1.msra.mxu0 %v686
        %1567 = vmatprep.subr.mxu0 %v683
        %1568 = vmatpush1.msra.mxu0 %v682
        %1569 = vmatprep.subr.mxu0 %v679
        %1570 = vmatpush1.msra.mxu0 %v678
        %1571 = vmatprep.subr.mxu0 %v675
        %1572 = vmatpush1.msra.mxu0 %v674
        %1573 = vmatprep.subr.mxu0 %v671
        %1574 = vmatpush1.msra.mxu0 %v670
        %1575 = vmatprep.subr.mxu0 %v667
        %1576 = vmatpush1.msra.mxu0 %v666
        %1577 = vmatprep.subr.mxu0 %v663
        %1578 = vmatpush1.msra.mxu0 %v662
        %1579 = vmatprep.subr.mxu0 %v659
        %1580 = vmatpush1.msra.mxu0 %v658
        %1581 = vmatprep.subr.mxu0 %v655
        %1582 = vmatpush1.msra.mxu0 %v654
        %1583 = vmatprep.subr.mxu0 %v651
        %1584 = vmatpush1.msra.mxu0 %v650
        %1585 = vmatprep.subr.mxu0 %v647
        %1586 = vmatpush1.msra.mxu0 %v646
        %1587 = vmatprep.subr.mxu0 %v643
        %1588 = vmatpush1.msra.mxu0 %v642
        %1589 = vmatprep.subr.mxu0 %v639
        %1590 = vmatpush1.msra.mxu0 %v638
        %1591 = vmatprep.subr.mxu0 %v635
        %1592 = vmatpush1.msra.mxu0 %v634
        %1593 = vmatprep.subr.mxu0 0.0
        %1594 = vmatpush2.msra.mxu0 0.0
        %1595 = vmatprep.subr.mxu0 0.0
        %1596 = vmatpush2.msra.mxu0 0.0
        %1597 = vmatprep.subr.mxu0 0.0
        %1598 = vmatpush2.msra.mxu0 0.0
        %1599 = vmatprep.subr.mxu0 0.0
        %1600 = vmatpush2.msra.mxu0 0.0
        %1601 = vmatprep.subr.mxu0 0.0
        %1602 = vmatpush2.msra.mxu0 0.0
        %1603 = vmatprep.subr.mxu0 0.0
        %1604 = vmatpush2.msra.mxu0 0.0
        %1605 = vmatprep.subr.mxu0 0.0
        %1606 = vmatpush2.msra.mxu0 0.0
        %1607 = vmatprep.subr.mxu0 0.0
        %1608 = vmatpush2.msra.mxu0 0.0
        %1609 = vmatprep.subr.mxu0 0.0
        %1610 = vmatpush2.msra.mxu0 0.0
        %1611 = vmatprep.subr.mxu0 0.0
        %1612 = vmatpush2.msra.mxu0 0.0
        %1613 = vmatprep.subr.mxu0 0.0
        %1614 = vmatpush2.msra.mxu0 0.0
        %1615 = vmatprep.subr.mxu0 0.0
        %1616 = vmatpush2.msra.mxu0 0.0
        %1617 = vmatprep.subr.mxu0 0.0
        %1618 = vmatpush2.msra.mxu0 0.0
        %1619 = vmatprep.subr.mxu0 0.0
        %1620 = vmatpush2.msra.mxu0 0.0
        %1621 = vmatprep.subr.mxu0 0.0
        %1622 = vmatpush2.msra.mxu0 0.0
        %1623 = vmatprep.subr.mxu0 0.0
        %1624 = vmatpush2.msra.mxu0 0.0
        %1625 = vmatprep.mubr.f32.mxu0 0.0
        %1626 = vmatmul.mubr.f32.gmra.mxu0 %v1482
        %v1627 = vpop.f32.mrf.mxu0
        %v1628 = vadd.f32 %v1488, %v1627
        %v1629 = vpop.f32.mrf.mxu0
        %v1630 = vadd.f32 %v1489, %v1629
        %1631 = vdwg.mxu0
        %v1632 = vmul.f32 %v1557, 0.5
        %v1633 = vmul.f32 %v1559, 0.5
        %v1634 = vmul.f32 %v1628, 0.5
        %v1635 = vtanh.pop %v1632
        %v1636 = vtanh.pop %v1633
        %v1637 = vtanh.pop %v1634
        %v1638 = vmul.f32 %v1635, 0.5
        %v1639 = vmul.f32 %v1636, 0.5
        %v1640 = vmul.f32 %v1637, 0.5
        %v1641 = vadd.f32 %v1638, 0.5
        %v1642 = vadd.f32 %v1639, 0.5
        %v1643 = vadd.f32 %v1640, 0.5
        %v1644 = vtanh.pop %v1630
        %v1645 = vmul.f32 %v1642, %v1480
        %v1646 = vmul.f32 %v1641, %v1644
        %v1647 = vadd.f32 %v1645, %v1646
        %v1648 = vtanh.pop %v1647
        %v1649 = vmul.f32 %v1643, %v1648
        %s1650 = scalar_lea.vmem [#allocation4], 24
        %1651 = vst [vmem:[%s1650] sm:$0xff] %v1649
        %s1652 = scalar_lea.vmem [#allocation5], 128
        %v1653 = vld [vmem:[%s1652] sm:$0xff]
        %v1654 = vld [vmem:[%s1652 + $0x8] sm:$0xff]
        %v1655 = vld [vmem:[%s1652 + $0x10] sm:$0xff]
        %v1656 = vld [vmem:[%s1652 + $0x18] sm:$0xff]
        %1657 = vmatprep.subr.mxu0 %v693
        %1658 = vmatpush1.msra.mxu0 %v692
        %1659 = vmatprep.subr.mxu0 %v689
        %1660 = vmatpush1.msra.mxu0 %v688
        %1661 = vmatprep.subr.mxu0 %v685
        %1662 = vmatpush1.msra.mxu0 %v684
        %1663 = vmatprep.subr.mxu0 %v681
        %1664 = vmatpush1.msra.mxu0 %v680
        %1665 = vmatprep.subr.mxu0 %v677
        %1666 = vmatpush1.msra.mxu0 %v676
        %1667 = vmatprep.subr.mxu0 %v673
        %1668 = vmatpush1.msra.mxu0 %v672
        %1669 = vmatprep.subr.mxu0 %v669
        %1670 = vmatpush1.msra.mxu0 %v668
        %1671 = vmatprep.subr.mxu0 %v665
        %1672 = vmatpush1.msra.mxu0 %v664
        %1673 = vmatprep.subr.mxu0 %v661
        %1674 = vmatpush1.msra.mxu0 %v660
        %1675 = vmatprep.subr.mxu0 %v657
        %1676 = vmatpush1.msra.mxu0 %v656
        %1677 = vmatprep.subr.mxu0 %v653
        %1678 = vmatpush1.msra.mxu0 %v652
        %1679 = vmatprep.subr.mxu0 %v649
        %1680 = vmatpush1.msra.mxu0 %v648
        %1681 = vmatprep.subr.mxu0 %v645
        %1682 = vmatpush1.msra.mxu0 %v644
        %1683 = vmatprep.subr.mxu0 %v641
        %1684 = vmatpush1.msra.mxu0 %v640
        %1685 = vmatprep.subr.mxu0 %v637
        %1686 = vmatpush1.msra.mxu0 %v636
        %1687 = vmatprep.subr.mxu0 %v633
        %1688 = vmatpush1.msra.mxu0 %v632
        %1689 = vmatprep.subr.mxu0 0.0
        %1690 = vmatpush2.msra.mxu0 0.0
        %1691 = vmatprep.subr.mxu0 0.0
        %1692 = vmatpush2.msra.mxu0 0.0
        %1693 = vmatprep.subr.mxu0 0.0
        %1694 = vmatpush2.msra.mxu0 0.0
        %1695 = vmatprep.subr.mxu0 0.0
        %1696 = vmatpush2.msra.mxu0 0.0
        %1697 = vmatprep.subr.mxu0 0.0
        %1698 = vmatpush2.msra.mxu0 0.0
        %1699 = vmatprep.subr.mxu0 0.0
        %1700 = vmatpush2.msra.mxu0 0.0
        %1701 = vmatprep.subr.mxu0 0.0
        %1702 = vmatpush2.msra.mxu0 0.0
        %1703 = vmatprep.subr.mxu0 0.0
        %1704 = vmatpush2.msra.mxu0 0.0
        %1705 = vmatprep.subr.mxu0 0.0
        %1706 = vmatpush2.msra.mxu0 0.0
        %1707 = vmatprep.subr.mxu0 0.0
        %1708 = vmatpush2.msra.mxu0 0.0
        %1709 = vmatprep.subr.mxu0 0.0
        %1710 = vmatpush2.msra.mxu0 0.0
        %1711 = vmatprep.subr.mxu0 0.0
        %1712 = vmatpush2.msra.mxu0 0.0
        %1713 = vmatprep.subr.mxu0 0.0
        %1714 = vmatpush2.msra.mxu0 0.0
        %1715 = vmatprep.subr.mxu0 0.0
        %1716 = vmatpush2.msra.mxu0 0.0
        %1717 = vmatprep.subr.mxu0 0.0
        %1718 = vmatpush2.msra.mxu0 0.0
        %1719 = vmatprep.subr.mxu0 0.0
        %1720 = vmatpush2.msra.mxu0 0.0
        %1721 = vmatprep.mubr.f32.mxu0 0.0
        %1722 = vmatmul.mubr.f32.gmra.mxu0 %v1649
        %v1723 = vpop.f32.mrf.mxu0
        %v1724 = vadd.f32 %v1653, %v1723
        %v1725 = vpop.f32.mrf.mxu0
        %v1726 = vadd.f32 %v1654, %v1725
        %1727 = vdwg.mxu0
        %1728 = vmatprep.subr.mxu0 %v695
        %1729 = vmatpush1.msra.mxu0 %v694
        %1730 = vmatprep.subr.mxu0 %v691
        %1731 = vmatpush1.msra.mxu0 %v690
        %1732 = vmatprep.subr.mxu0 %v687
        %1733 = vmatpush1.msra.mxu0 %v686
        %1734 = vmatprep.subr.mxu0 %v683
        %1735 = vmatpush1.msra.mxu0 %v682
        %1736 = vmatprep.subr.mxu0 %v679
        %1737 = vmatpush1.msra.mxu0 %v678
        %1738 = vmatprep.subr.mxu0 %v675
        %1739 = vmatpush1.msra.mxu0 %v674
        %1740 = vmatprep.subr.mxu0 %v671
        %1741 = vmatpush1.msra.mxu0 %v670
        %1742 = vmatprep.subr.mxu0 %v667
        %1743 = vmatpush1.msra.mxu0 %v666
        %1744 = vmatprep.subr.mxu0 %v663
        %1745 = vmatpush1.msra.mxu0 %v662
        %1746 = vmatprep.subr.mxu0 %v659
        %1747 = vmatpush1.msra.mxu0 %v658
        %1748 = vmatprep.subr.mxu0 %v655
        %1749 = vmatpush1.msra.mxu0 %v654
        %1750 = vmatprep.subr.mxu0 %v651
        %1751 = vmatpush1.msra.mxu0 %v650
        %1752 = vmatprep.subr.mxu0 %v647
        %1753 = vmatpush1.msra.mxu0 %v646
        %1754 = vmatprep.subr.mxu0 %v643
        %1755 = vmatpush1.msra.mxu0 %v642
        %1756 = vmatprep.subr.mxu0 %v639
        %1757 = vmatpush1.msra.mxu0 %v638
        %1758 = vmatprep.subr.mxu0 %v635
        %1759 = vmatpush1.msra.mxu0 %v634
        %1760 = vmatprep.subr.mxu0 0.0
        %1761 = vmatpush2.msra.mxu0 0.0
        %1762 = vmatprep.subr.mxu0 0.0
        %1763 = vmatpush2.msra.mxu0 0.0
        %1764 = vmatprep.subr.mxu0 0.0
        %1765 = vmatpush2.msra.mxu0 0.0
        %1766 = vmatprep.subr.mxu0 0.0
        %1767 = vmatpush2.msra.mxu0 0.0
        %1768 = vmatprep.subr.mxu0 0.0
        %1769 = vmatpush2.msra.mxu0 0.0
        %1770 = vmatprep.subr.mxu0 0.0
        %1771 = vmatpush2.msra.mxu0 0.0
        %1772 = vmatprep.subr.mxu0 0.0
        %1773 = vmatpush2.msra.mxu0 0.0
        %1774 = vmatprep.subr.mxu0 0.0
        %1775 = vmatpush2.msra.mxu0 0.0
        %1776 = vmatprep.subr.mxu0 0.0
        %1777 = vmatpush2.msra.mxu0 0.0
        %1778 = vmatprep.subr.mxu0 0.0
        %1779 = vmatpush2.msra.mxu0 0.0
        %1780 = vmatprep.subr.mxu0 0.0
        %1781 = vmatpush2.msra.mxu0 0.0
        %1782 = vmatprep.subr.mxu0 0.0
        %1783 = vmatpush2.msra.mxu0 0.0
        %1784 = vmatprep.subr.mxu0 0.0
        %1785 = vmatpush2.msra.mxu0 0.0
        %1786 = vmatprep.subr.mxu0 0.0
        %1787 = vmatpush2.msra.mxu0 0.0
        %1788 = vmatprep.subr.mxu0 0.0
        %1789 = vmatpush2.msra.mxu0 0.0
        %1790 = vmatprep.subr.mxu0 0.0
        %1791 = vmatpush2.msra.mxu0 0.0
        %1792 = vmatprep.mubr.f32.mxu0 0.0
        %1793 = vmatmul.mubr.f32.gmra.mxu0 %v1649
        %v1794 = vpop.f32.mrf.mxu0
        %v1795 = vadd.f32 %v1655, %v1794
        %v1796 = vpop.f32.mrf.mxu0
        %v1797 = vadd.f32 %v1656, %v1796
        %1798 = vdwg.mxu0
        %v1799 = vmul.f32 %v1724, 0.5
        %v1800 = vmul.f32 %v1726, 0.5
        %v1801 = vmul.f32 %v1795, 0.5
        %v1802 = vtanh.pop %v1799
        %v1803 = vtanh.pop %v1800
        %v1804 = vtanh.pop %v1801
        %v1805 = vmul.f32 %v1802, 0.5
        %v1806 = vmul.f32 %v1803, 0.5
        %v1807 = vmul.f32 %v1804, 0.5
        %v1808 = vadd.f32 %v1805, 0.5
        %v1809 = vadd.f32 %v1806, 0.5
        %v1810 = vadd.f32 %v1807, 0.5
        %v1811 = vtanh.pop %v1797
        %v1812 = vmul.f32 %v1809, %v1647
        %v1813 = vmul.f32 %v1808, %v1811
        %v1814 = vadd.f32 %v1812, %v1813
        %v1815 = vtanh.pop %v1814
        %v1816 = vmul.f32 %v1810, %v1815
        %s1817 = scalar_lea.vmem [#allocation4], 32
        %1818 = vst [vmem:[%s1817] sm:$0xff] %v1816
        %s1819 = scalar_lea.vmem [#allocation5], 160
        %v1820 = vld [vmem:[%s1819] sm:$0xff]
        %v1821 = vld [vmem:[%s1819 + $0x8] sm:$0xff]
        %v1822 = vld [vmem:[%s1819 + $0x10] sm:$0xff]
        %v1823 = vld [vmem:[%s1819 + $0x18] sm:$0xff]
        %1824 = vmatprep.subr.mxu0 %v693
        %1825 = vmatpush1.msra.mxu0 %v692
        %1826 = vmatprep.subr.mxu0 %v689
        %1827 = vmatpush1.msra.mxu0 %v688
        %1828 = vmatprep.subr.mxu0 %v685
        %1829 = vmatpush1.msra.mxu0 %v684
        %1830 = vmatprep.subr.mxu0 %v681
        %1831 = vmatpush1.msra.mxu0 %v680
        %1832 = vmatprep.subr.mxu0 %v677
        %1833 = vmatpush1.msra.mxu0 %v676
        %1834 = vmatprep.subr.mxu0 %v673
        %1835 = vmatpush1.msra.mxu0 %v672
        %1836 = vmatprep.subr.mxu0 %v669
        %1837 = vmatpush1.msra.mxu0 %v668
        %1838 = vmatprep.subr.mxu0 %v665
        %1839 = vmatpush1.msra.mxu0 %v664
        %1840 = vmatprep.subr.mxu0 %v661
        %1841 = vmatpush1.msra.mxu0 %v660
        %1842 = vmatprep.subr.mxu0 %v657
        %1843 = vmatpush1.msra.mxu0 %v656
        %1844 = vmatprep.subr.mxu0 %v653
        %1845 = vmatpush1.msra.mxu0 %v652
        %1846 = vmatprep.subr.mxu0 %v649
        %1847 = vmatpush1.msra.mxu0 %v648
        %1848 = vmatprep.subr.mxu0 %v645
        %1849 = vmatpush1.msra.mxu0 %v644
        %1850 = vmatprep.subr.mxu0 %v641
        %1851 = vmatpush1.msra.mxu0 %v640
        %1852 = vmatprep.subr.mxu0 %v637
        %1853 = vmatpush1.msra.mxu0 %v636
        %1854 = vmatprep.subr.mxu0 %v633
        %1855 = vmatpush1.msra.mxu0 %v632
        %1856 = vmatprep.subr.mxu0 0.0
        %1857 = vmatpush2.msra.mxu0 0.0
        %1858 = vmatprep.subr.mxu0 0.0
        %1859 = vmatpush2.msra.mxu0 0.0
        %1860 = vmatprep.subr.mxu0 0.0
        %1861 = vmatpush2.msra.mxu0 0.0
        %1862 = vmatprep.subr.mxu0 0.0
        %1863 = vmatpush2.msra.mxu0 0.0
        %1864 = vmatprep.subr.mxu0 0.0
        %1865 = vmatpush2.msra.mxu0 0.0
        %1866 = vmatprep.subr.mxu0 0.0
        %1867 = vmatpush2.msra.mxu0 0.0
        %1868 = vmatprep.subr.mxu0 0.0
        %1869 = vmatpush2.msra.mxu0 0.0
        %1870 = vmatprep.subr.mxu0 0.0
        %1871 = vmatpush2.msra.mxu0 0.0
        %1872 = vmatprep.subr.mxu0 0.0
        %1873 = vmatpush2.msra.mxu0 0.0
        %1874 = vmatprep.subr.mxu0 0.0
        %1875 = vmatpush2.msra.mxu0 0.0
        %1876 = vmatprep.subr.mxu0 0.0
        %1877 = vmatpush2.msra.mxu0 0.0
        %1878 = vmatprep.subr.mxu0 0.0
        %1879 = vmatpush2.msra.mxu0 0.0
        %1880 = vmatprep.subr.mxu0 0.0
        %1881 = vmatpush2.msra.mxu0 0.0
        %1882 = vmatprep.subr.mxu0 0.0
        %1883 = vmatpush2.msra.mxu0 0.0
        %1884 = vmatprep.subr.mxu0 0.0
        %1885 = vmatpush2.msra.mxu0 0.0
        %1886 = vmatprep.subr.mxu0 0.0
        %1887 = vmatpush2.msra.mxu0 0.0
        %1888 = vmatprep.mubr.f32.mxu0 0.0
        %1889 = vmatmul.mubr.f32.gmra.mxu0 %v1816
        %v1890 = vpop.f32.mrf.mxu0
        %v1891 = vadd.f32 %v1820, %v1890
        %v1892 = vpop.f32.mrf.mxu0
        %v1893 = vadd.f32 %v1821, %v1892
        %1894 = vdwg.mxu0
        %1895 = vmatprep.subr.mxu0 %v695
        %1896 = vmatpush1.msra.mxu0 %v694
        %1897 = vmatprep.subr.mxu0 %v691
        %1898 = vmatpush1.msra.mxu0 %v690
        %1899 = vmatprep.subr.mxu0 %v687
        %1900 = vmatpush1.msra.mxu0 %v686
        %1901 = vmatprep.subr.mxu0 %v683
        %1902 = vmatpush1.msra.mxu0 %v682
        %1903 = vmatprep.subr.mxu0 %v679
        %1904 = vmatpush1.msra.mxu0 %v678
        %1905 = vmatprep.subr.mxu0 %v675
        %1906 = vmatpush1.msra.mxu0 %v674
        %1907 = vmatprep.subr.mxu0 %v671
        %1908 = vmatpush1.msra.mxu0 %v670
        %1909 = vmatprep.subr.mxu0 %v667
        %1910 = vmatpush1.msra.mxu0 %v666
        %1911 = vmatprep.subr.mxu0 %v663
        %1912 = vmatpush1.msra.mxu0 %v662
        %1913 = vmatprep.subr.mxu0 %v659
        %1914 = vmatpush1.msra.mxu0 %v658
        %1915 = vmatprep.subr.mxu0 %v655
        %1916 = vmatpush1.msra.mxu0 %v654
        %1917 = vmatprep.subr.mxu0 %v651
        %1918 = vmatpush1.msra.mxu0 %v650
        %1919 = vmatprep.subr.mxu0 %v647
        %1920 = vmatpush1.msra.mxu0 %v646
        %1921 = vmatprep.subr.mxu0 %v643
        %1922 = vmatpush1.msra.mxu0 %v642
        %1923 = vmatprep.subr.mxu0 %v639
        %1924 = vmatpush1.msra.mxu0 %v638
        %1925 = vmatprep.subr.mxu0 %v635
        %1926 = vmatpush1.msra.mxu0 %v634
        %1927 = vmatprep.subr.mxu0 0.0
        %1928 = vmatpush2.msra.mxu0 0.0
        %1929 = vmatprep.subr.mxu0 0.0
        %1930 = vmatpush2.msra.mxu0 0.0
        %1931 = vmatprep.subr.mxu0 0.0
        %1932 = vmatpush2.msra.mxu0 0.0
        %1933 = vmatprep.subr.mxu0 0.0
        %1934 = vmatpush2.msra.mxu0 0.0
        %1935 = vmatprep.subr.mxu0 0.0
        %1936 = vmatpush2.msra.mxu0 0.0
        %1937 = vmatprep.subr.mxu0 0.0
        %1938 = vmatpush2.msra.mxu0 0.0
        %1939 = vmatprep.subr.mxu0 0.0
        %1940 = vmatpush2.msra.mxu0 0.0
        %1941 = vmatprep.subr.mxu0 0.0
        %1942 = vmatpush2.msra.mxu0 0.0
        %1943 = vmatprep.subr.mxu0 0.0
        %1944 = vmatpush2.msra.mxu0 0.0
        %1945 = vmatprep.subr.mxu0 0.0
        %1946 = vmatpush2.msra.mxu0 0.0
        %1947 = vmatprep.subr.mxu0 0.0
        %1948 = vmatpush2.msra.mxu0 0.0
        %1949 = vmatprep.subr.mxu0 0.0
        %1950 = vmatpush2.msra.mxu0 0.0
        %1951 = vmatprep.subr.mxu0 0.0
        %1952 = vmatpush2.msra.mxu0 0.0
        %1953 = vmatprep.subr.mxu0 0.0
        %1954 = vmatpush2.msra.mxu0 0.0
        %1955 = vmatprep.subr.mxu0 0.0
        %1956 = vmatpush2.msra.mxu0 0.0
        %1957 = vmatprep.subr.mxu0 0.0
        %1958 = vmatpush2.msra.mxu0 0.0
        %1959 = vmatprep.mubr.f32.mxu0 0.0
        %1960 = vmatmul.mubr.f32.gmra.mxu0 %v1816
        %v1961 = vpop.f32.mrf.mxu0
        %v1962 = vadd.f32 %v1822, %v1961
        %v1963 = vpop.f32.mrf.mxu0
        %v1964 = vadd.f32 %v1823, %v1963
        %1965 = vdwg.mxu0
        %v1966 = vmul.f32 %v1891, 0.5
        %v1967 = vmul.f32 %v1893, 0.5
        %v1968 = vmul.f32 %v1962, 0.5
        %v1969 = vtanh.pop %v1966
        %v1970 = vtanh.pop %v1967
        %v1971 = vtanh.pop %v1968
        %v1972 = vmul.f32 %v1969, 0.5
        %v1973 = vmul.f32 %v1970, 0.5
        %v1974 = vmul.f32 %v1971, 0.5
        %v1975 = vadd.f32 %v1972, 0.5
        %v1976 = vadd.f32 %v1973, 0.5
        %v1977 = vadd.f32 %v1974, 0.5
        %v1978 = vtanh.pop %v1964
        %v1979 = vmul.f32 %v1976, %v1814
        %v1980 = vmul.f32 %v1975, %v1978
        %v1981 = vadd.f32 %v1979, %v1980
        %v1982 = vtanh.pop %v1981
        %v1983 = vmul.f32 %v1977, %v1982
        %s1984 = scalar_lea.vmem [#allocation4], 40
        %1985 = vst [vmem:[%s1984] sm:$0xff] %v1983
        %s1986 = scalar_lea.vmem [#allocation5], 192
        %v1987 = vld [vmem:[%s1986] sm:$0xff]
        %v1988 = vld [vmem:[%s1986 + $0x8] sm:$0xff]
        %v1989 = vld [vmem:[%s1986 + $0x10] sm:$0xff]
        %v1990 = vld [vmem:[%s1986 + $0x18] sm:$0xff]
        %1991 = vmatprep.subr.mxu0 %v693
        %1992 = vmatpush1.msra.mxu0 %v692
        %1993 = vmatprep.subr.mxu0 %v689
        %1994 = vmatpush1.msra.mxu0 %v688
        %1995 = vmatprep.subr.mxu0 %v685
        %1996 = vmatpush1.msra.mxu0 %v684
        %1997 = vmatprep.subr.mxu0 %v681
        %1998 = vmatpush1.msra.mxu0 %v680
        %1999 = vmatprep.subr.mxu0 %v677
        %2000 = vmatpush1.msra.mxu0 %v676
        %2001 = vmatprep.subr.mxu0 %v673
        %2002 = vmatpush1.msra.mxu0 %v672
        %2003 = vmatprep.subr.mxu0 %v669
        %2004 = vmatpush1.msra.mxu0 %v668
        %2005 = vmatprep.subr.mxu0 %v665
        %2006 = vmatpush1.msra.mxu0 %v664
        %2007 = vmatprep.subr.mxu0 %v661
        %2008 = vmatpush1.msra.mxu0 %v660
        %2009 = vmatprep.subr.mxu0 %v657
        %2010 = vmatpush1.msra.mxu0 %v656
        %2011 = vmatprep.subr.mxu0 %v653
        %2012 = vmatpush1.msra.mxu0 %v652
        %2013 = vmatprep.subr.mxu0 %v649
        %2014 = vmatpush1.msra.mxu0 %v648
        %2015 = vmatprep.subr.mxu0 %v645
        %2016 = vmatpush1.msra.mxu0 %v644
        %2017 = vmatprep.subr.mxu0 %v641
        %2018 = vmatpush1.msra.mxu0 %v640
        %2019 = vmatprep.subr.mxu0 %v637
        %2020 = vmatpush1.msra.mxu0 %v636
        %2021 = vmatprep.subr.mxu0 %v633
        %2022 = vmatpush1.msra.mxu0 %v632
        %2023 = vmatprep.subr.mxu0 0.0
        %2024 = vmatpush2.msra.mxu0 0.0
        %2025 = vmatprep.subr.mxu0 0.0
        %2026 = vmatpush2.msra.mxu0 0.0
        %2027 = vmatprep.subr.mxu0 0.0
        %2028 = vmatpush2.msra.mxu0 0.0
        %2029 = vmatprep.subr.mxu0 0.0
        %2030 = vmatpush2.msra.mxu0 0.0
        %2031 = vmatprep.subr.mxu0 0.0
        %2032 = vmatpush2.msra.mxu0 0.0
        %2033 = vmatprep.subr.mxu0 0.0
        %2034 = vmatpush2.msra.mxu0 0.0
        %2035 = vmatprep.subr.mxu0 0.0
        %2036 = vmatpush2.msra.mxu0 0.0
        %2037 = vmatprep.subr.mxu0 0.0
        %2038 = vmatpush2.msra.mxu0 0.0
        %2039 = vmatprep.subr.mxu0 0.0
        %2040 = vmatpush2.msra.mxu0 0.0
        %2041 = vmatprep.subr.mxu0 0.0
        %2042 = vmatpush2.msra.mxu0 0.0
        %2043 = vmatprep.subr.mxu0 0.0
        %2044 = vmatpush2.msra.mxu0 0.0
        %2045 = vmatprep.subr.mxu0 0.0
        %2046 = vmatpush2.msra.mxu0 0.0
        %2047 = vmatprep.subr.mxu0 0.0
        %2048 = vmatpush2.msra.mxu0 0.0
        %2049 = vmatprep.subr.mxu0 0.0
        %2050 = vmatpush2.msra.mxu0 0.0
        %2051 = vmatprep.subr.mxu0 0.0
        %2052 = vmatpush2.msra.mxu0 0.0
        %2053 = vmatprep.subr.mxu0 0.0
        %2054 = vmatpush2.msra.mxu0 0.0
        %2055 = vmatprep.mubr.f32.mxu0 0.0
        %2056 = vmatmul.mubr.f32.gmra.mxu0 %v1983
        %v2057 = vpop.f32.mrf.mxu0
        %v2058 = vadd.f32 %v1987, %v2057
        %v2059 = vpop.f32.mrf.mxu0
        %v2060 = vadd.f32 %v1988, %v2059
        %2061 = vdwg.mxu0
        %2062 = vmatprep.subr.mxu0 %v695
        %2063 = vmatpush1.msra.mxu0 %v694
        %2064 = vmatprep.subr.mxu0 %v691
        %2065 = vmatpush1.msra.mxu0 %v690
        %2066 = vmatprep.subr.mxu0 %v687
        %2067 = vmatpush1.msra.mxu0 %v686
        %2068 = vmatprep.subr.mxu0 %v683
        %2069 = vmatpush1.msra.mxu0 %v682
        %2070 = vmatprep.subr.mxu0 %v679
        %2071 = vmatpush1.msra.mxu0 %v678
        %2072 = vmatprep.subr.mxu0 %v675
        %2073 = vmatpush1.msra.mxu0 %v674
        %2074 = vmatprep.subr.mxu0 %v671
        %2075 = vmatpush1.msra.mxu0 %v670
        %2076 = vmatprep.subr.mxu0 %v667
        %2077 = vmatpush1.msra.mxu0 %v666
        %2078 = vmatprep.subr.mxu0 %v663
        %2079 = vmatpush1.msra.mxu0 %v662
        %2080 = vmatprep.subr.mxu0 %v659
        %2081 = vmatpush1.msra.mxu0 %v658
        %2082 = vmatprep.subr.mxu0 %v655
        %2083 = vmatpush1.msra.mxu0 %v654
        %2084 = vmatprep.subr.mxu0 %v651
        %2085 = vmatpush1.msra.mxu0 %v650
        %2086 = vmatprep.subr.mxu0 %v647
        %2087 = vmatpush1.msra.mxu0 %v646
        %2088 = vmatprep.subr.mxu0 %v643
        %2089 = vmatpush1.msra.mxu0 %v642
        %2090 = vmatprep.subr.mxu0 %v639
        %2091 = vmatpush1.msra.mxu0 %v638
        %2092 = vmatprep.subr.mxu0 %v635
        %2093 = vmatpush1.msra.mxu0 %v634
        %2094 = vmatprep.subr.mxu0 0.0
        %2095 = vmatpush2.msra.mxu0 0.0
        %2096 = vmatprep.subr.mxu0 0.0
        %2097 = vmatpush2.msra.mxu0 0.0
        %2098 = vmatprep.subr.mxu0 0.0
        %2099 = vmatpush2.msra.mxu0 0.0
        %2100 = vmatprep.subr.mxu0 0.0
        %2101 = vmatpush2.msra.mxu0 0.0
        %2102 = vmatprep.subr.mxu0 0.0
        %2103 = vmatpush2.msra.mxu0 0.0
        %2104 = vmatprep.subr.mxu0 0.0
        %2105 = vmatpush2.msra.mxu0 0.0
        %2106 = vmatprep.subr.mxu0 0.0
        %2107 = vmatpush2.msra.mxu0 0.0
        %2108 = vmatprep.subr.mxu0 0.0
        %2109 = vmatpush2.msra.mxu0 0.0
        %2110 = vmatprep.subr.mxu0 0.0
        %2111 = vmatpush2.msra.mxu0 0.0
        %2112 = vmatprep.subr.mxu0 0.0
        %2113 = vmatpush2.msra.mxu0 0.0
        %2114 = vmatprep.subr.mxu0 0.0
        %2115 = vmatpush2.msra.mxu0 0.0
        %2116 = vmatprep.subr.mxu0 0.0
        %2117 = vmatpush2.msra.mxu0 0.0
        %2118 = vmatprep.subr.mxu0 0.0
        %2119 = vmatpush2.msra.mxu0 0.0
        %2120 = vmatprep.subr.mxu0 0.0
        %2121 = vmatpush2.msra.mxu0 0.0
        %2122 = vmatprep.subr.mxu0 0.0
        %2123 = vmatpush2.msra.mxu0 0.0
        %2124 = vmatprep.subr.mxu0 0.0
        %2125 = vmatpush2.msra.mxu0 0.0
        %2126 = vmatprep.mubr.f32.mxu0 0.0
        %2127 = vmatmul.mubr.f32.gmra.mxu0 %v1983
        %v2128 = vpop.f32.mrf.mxu0
        %v2129 = vadd.f32 %v1989, %v2128
        %v2130 = vpop.f32.mrf.mxu0
        %v2131 = vadd.f32 %v1990, %v2130
        %2132 = vdwg.mxu0
        %v2133 = vmul.f32 %v2058, 0.5
        %v2134 = vmul.f32 %v2060, 0.5
        %v2135 = vmul.f32 %v2129, 0.5
        %v2136 = vtanh.pop %v2133
        %v2137 = vtanh.pop %v2134
        %v2138 = vtanh.pop %v2135
        %v2139 = vmul.f32 %v2136, 0.5
        %v2140 = vmul.f32 %v2137, 0.5
        %v2141 = vmul.f32 %v2138, 0.5
        %v2142 = vadd.f32 %v2139, 0.5
        %v2143 = vadd.f32 %v2140, 0.5
        %v2144 = vadd.f32 %v2141, 0.5
        %v2145 = vtanh.pop %v2131
        %v2146 = vmul.f32 %v2143, %v1981
        %v2147 = vmul.f32 %v2142, %v2145
        %v2148 = vadd.f32 %v2146, %v2147
        %v2149 = vtanh.pop %v2148
        %v2150 = vmul.f32 %v2144, %v2149
        %s2151 = scalar_lea.vmem [#allocation4], 48
        %2152 = vst [vmem:[%s2151] sm:$0xff] %v2150
        %s2153 = scalar_lea.vmem [#allocation5], 224
        %v2154 = vld [vmem:[%s2153] sm:$0xff]
        %v2155 = vld [vmem:[%s2153 + $0x8] sm:$0xff]
        %v2156 = vld [vmem:[%s2153 + $0x10] sm:$0xff]
        %v2157 = vld [vmem:[%s2153 + $0x18] sm:$0xff]
        %2158 = vmatprep.subr.mxu0 %v693
        %2159 = vmatpush1.msra.mxu0 %v692
        %2160 = vmatprep.subr.mxu0 %v689
        %2161 = vmatpush1.msra.mxu0 %v688
        %2162 = vmatprep.subr.mxu0 %v685
        %2163 = vmatpush1.msra.mxu0 %v684
        %2164 = vmatprep.subr.mxu0 %v681
        %2165 = vmatpush1.msra.mxu0 %v680
        %2166 = vmatprep.subr.mxu0 %v677
        %2167 = vmatpush1.msra.mxu0 %v676
        %2168 = vmatprep.subr.mxu0 %v673
        %2169 = vmatpush1.msra.mxu0 %v672
        %2170 = vmatprep.subr.mxu0 %v669
        %2171 = vmatpush1.msra.mxu0 %v668
        %2172 = vmatprep.subr.mxu0 %v665
        %2173 = vmatpush1.msra.mxu0 %v664
        %2174 = vmatprep.subr.mxu0 %v661
        %2175 = vmatpush1.msra.mxu0 %v660
        %2176 = vmatprep.subr.mxu0 %v657
        %2177 = vmatpush1.msra.mxu0 %v656
        %2178 = vmatprep.subr.mxu0 %v653
        %2179 = vmatpush1.msra.mxu0 %v652
        %2180 = vmatprep.subr.mxu0 %v649
        %2181 = vmatpush1.msra.mxu0 %v648
        %2182 = vmatprep.subr.mxu0 %v645
        %2183 = vmatpush1.msra.mxu0 %v644
        %2184 = vmatprep.subr.mxu0 %v641
        %2185 = vmatpush1.msra.mxu0 %v640
        %2186 = vmatprep.subr.mxu0 %v637
        %2187 = vmatpush1.msra.mxu0 %v636
        %2188 = vmatprep.subr.mxu0 %v633
        %2189 = vmatpush1.msra.mxu0 %v632
        %2190 = vmatprep.subr.mxu0 0.0
        %2191 = vmatpush2.msra.mxu0 0.0
        %2192 = vmatprep.subr.mxu0 0.0
        %2193 = vmatpush2.msra.mxu0 0.0
        %2194 = vmatprep.subr.mxu0 0.0
        %2195 = vmatpush2.msra.mxu0 0.0
        %2196 = vmatprep.subr.mxu0 0.0
        %2197 = vmatpush2.msra.mxu0 0.0
        %2198 = vmatprep.subr.mxu0 0.0
        %2199 = vmatpush2.msra.mxu0 0.0
        %2200 = vmatprep.subr.mxu0 0.0
        %2201 = vmatpush2.msra.mxu0 0.0
        %2202 = vmatprep.subr.mxu0 0.0
        %2203 = vmatpush2.msra.mxu0 0.0
        %2204 = vmatprep.subr.mxu0 0.0
        %2205 = vmatpush2.msra.mxu0 0.0
        %2206 = vmatprep.subr.mxu0 0.0
        %2207 = vmatpush2.msra.mxu0 0.0
        %2208 = vmatprep.subr.mxu0 0.0
        %2209 = vmatpush2.msra.mxu0 0.0
        %2210 = vmatprep.subr.mxu0 0.0
        %2211 = vmatpush2.msra.mxu0 0.0
        %2212 = vmatprep.subr.mxu0 0.0
        %2213 = vmatpush2.msra.mxu0 0.0
        %2214 = vmatprep.subr.mxu0 0.0
        %2215 = vmatpush2.msra.mxu0 0.0
        %2216 = vmatprep.subr.mxu0 0.0
        %2217 = vmatpush2.msra.mxu0 0.0
        %2218 = vmatprep.subr.mxu0 0.0
        %2219 = vmatpush2.msra.mxu0 0.0
        %2220 = vmatprep.subr.mxu0 0.0
        %2221 = vmatpush2.msra.mxu0 0.0
        %2222 = vmatprep.mubr.f32.mxu0 0.0
        %2223 = vmatmul.mubr.f32.gmra.mxu0 %v2150
        %v2224 = vpop.f32.mrf.mxu0
        %v2225 = vadd.f32 %v2154, %v2224
        %v2226 = vpop.f32.mrf.mxu0
        %v2227 = vadd.f32 %v2155, %v2226
        %2228 = vdwg.mxu0
        %2229 = vmatprep.subr.mxu0 %v695
        %2230 = vmatpush1.msra.mxu0 %v694
        %2231 = vmatprep.subr.mxu0 %v691
        %2232 = vmatpush1.msra.mxu0 %v690
        %2233 = vmatprep.subr.mxu0 %v687
        %2234 = vmatpush1.msra.mxu0 %v686
        %2235 = vmatprep.subr.mxu0 %v683
        %2236 = vmatpush1.msra.mxu0 %v682
        %2237 = vmatprep.subr.mxu0 %v679
        %2238 = vmatpush1.msra.mxu0 %v678
        %2239 = vmatprep.subr.mxu0 %v675
        %2240 = vmatpush1.msra.mxu0 %v674
        %2241 = vmatprep.subr.mxu0 %v671
        %2242 = vmatpush1.msra.mxu0 %v670
        %2243 = vmatprep.subr.mxu0 %v667
        %2244 = vmatpush1.msra.mxu0 %v666
        %2245 = vmatprep.subr.mxu0 %v663
        %2246 = vmatpush1.msra.mxu0 %v662
        %2247 = vmatprep.subr.mxu0 %v659
        %2248 = vmatpush1.msra.mxu0 %v658
        %2249 = vmatprep.subr.mxu0 %v655
        %2250 = vmatpush1.msra.mxu0 %v654
        %2251 = vmatprep.subr.mxu0 %v651
        %2252 = vmatpush1.msra.mxu0 %v650
        %2253 = vmatprep.subr.mxu0 %v647
        %2254 = vmatpush1.msra.mxu0 %v646
        %2255 = vmatprep.subr.mxu0 %v643
        %2256 = vmatpush1.msra.mxu0 %v642
        %2257 = vmatprep.subr.mxu0 %v639
        %2258 = vmatpush1.msra.mxu0 %v638
        %2259 = vmatprep.subr.mxu0 %v635
        %2260 = vmatpush1.msra.mxu0 %v634
        %2261 = vmatprep.subr.mxu0 0.0
        %2262 = vmatpush2.msra.mxu0 0.0
        %2263 = vmatprep.subr.mxu0 0.0
        %2264 = vmatpush2.msra.mxu0 0.0
        %2265 = vmatprep.subr.mxu0 0.0
        %2266 = vmatpush2.msra.mxu0 0.0
        %2267 = vmatprep.subr.mxu0 0.0
        %2268 = vmatpush2.msra.mxu0 0.0
        %2269 = vmatprep.subr.mxu0 0.0
        %2270 = vmatpush2.msra.mxu0 0.0
        %2271 = vmatprep.subr.mxu0 0.0
        %2272 = vmatpush2.msra.mxu0 0.0
        %2273 = vmatprep.subr.mxu0 0.0
        %2274 = vmatpush2.msra.mxu0 0.0
        %2275 = vmatprep.subr.mxu0 0.0
        %2276 = vmatpush2.msra.mxu0 0.0
        %2277 = vmatprep.subr.mxu0 0.0
        %2278 = vmatpush2.msra.mxu0 0.0
        %2279 = vmatprep.subr.mxu0 0.0
        %2280 = vmatpush2.msra.mxu0 0.0
        %2281 = vmatprep.subr.mxu0 0.0
        %2282 = vmatpush2.msra.mxu0 0.0
        %2283 = vmatprep.subr.mxu0 0.0
        %2284 = vmatpush2.msra.mxu0 0.0
        %2285 = vmatprep.subr.mxu0 0.0
        %2286 = vmatpush2.msra.mxu0 0.0
        %2287 = vmatprep.subr.mxu0 0.0
        %2288 = vmatpush2.msra.mxu0 0.0
        %2289 = vmatprep.subr.mxu0 0.0
        %2290 = vmatpush2.msra.mxu0 0.0
        %2291 = vmatprep.subr.mxu0 0.0
        %2292 = vmatpush2.msra.mxu0 0.0
        %2293 = vmatprep.mubr.f32.mxu0 0.0
        %2294 = vmatmul.mubr.f32.gmra.mxu0 %v2150
        %v2295 = vpop.f32.mrf.mxu0
        %v2296 = vadd.f32 %v2156, %v2295
        %v2297 = vpop.f32.mrf.mxu0
        %v2298 = vadd.f32 %v2157, %v2297
        %2299 = vdwg.mxu0
        %v2300 = vmul.f32 %v2225, 0.5
        %v2301 = vmul.f32 %v2227, 0.5
        %v2302 = vmul.f32 %v2296, 0.5
        %v2303 = vtanh.pop %v2300
        %v2304 = vtanh.pop %v2301
        %v2305 = vtanh.pop %v2302
        %v2306 = vmul.f32 %v2303, 0.5
        %v2307 = vmul.f32 %v2304, 0.5
        %v2308 = vmul.f32 %v2305, 0.5
        %v2309 = vadd.f32 %v2306, 0.5
        %v2310 = vadd.f32 %v2307, 0.5
        %v2311 = vadd.f32 %v2308, 0.5
        %v2312 = vtanh.pop %v2298
        %v2313 = vmul.f32 %v2310, %v2148
        %v2314 = vmul.f32 %v2309, %v2312
        %v2315 = vadd.f32 %v2313, %v2314
        %v2316 = vtanh.pop %v2315
        %v2317 = vmul.f32 %v2311, %v2316
        %s2318 = scalar_lea.vmem [#allocation4], 56
        %2319 = vst [vmem:[%s2318] sm:$0xff] %v2317
        %2320 = vst [vmem:[#allocation2] sm:$0xff] %v2317
        %2321 = vst [vmem:[#allocation3] sm:$0xff] %v2315
        %s2322 = scalar_lea.vmem [#allocation9], 512
        %v2323 = vld [vmem:[%s2322] sm:$0xff]
        %v2324 = vld [vmem:[%s2322 + $0x8] sm:$0xff]
        %v2325 = vld [vmem:[%s2322 + $0x10] sm:$0xff]
        %v2326 = vld [vmem:[%s2322 + $0x18] sm:$0xff]
        %v2327 = vld [vmem:[%s2322 + $0x20] sm:$0xff]
        %v2328 = vld [vmem:[%s2322 + $0x28] sm:$0xff]
        %v2329 = vld [vmem:[%s2322 + $0x30] sm:$0xff]
        %v2330 = vld [vmem:[%s2322 + $0x38] sm:$0xff]
        %v2331 = vld [vmem:[%s2322 + $0x40] sm:$0xff]
        %v2332 = vld [vmem:[%s2322 + $0x48] sm:$0xff]
        %v2333 = vld [vmem:[%s2322 + $0x50] sm:$0xff]
        %v2334 = vld [vmem:[%s2322 + $0x58] sm:$0xff]
        %v2335 = vld [vmem:[%s2322 + $0x60] sm:$0xff]
        %v2336 = vld [vmem:[%s2322 + $0x68] sm:$0xff]
        %v2337 = vld [vmem:[%s2322 + $0x70] sm:$0xff]
        %v2338 = vld [vmem:[%s2322 + $0x78] sm:$0xff]
        %v2339 = vld [vmem:[%s2322 + $0x80] sm:$0xff]
        %v2340 = vld [vmem:[%s2322 + $0x88] sm:$0xff]
        %v2341 = vld [vmem:[%s2322 + $0x90] sm:$0xff]
        %v2342 = vld [vmem:[%s2322 + $0x98] sm:$0xff]
        %v2343 = vld [vmem:[%s2322 + $0xa0] sm:$0xff]
        %v2344 = vld [vmem:[%s2322 + $0xa8] sm:$0xff]
        %v2345 = vld [vmem:[%s2322 + $0xb0] sm:$0xff]
        %v2346 = vld [vmem:[%s2322 + $0xb8] sm:$0xff]
        %v2347 = vld [vmem:[%s2322 + $0xc0] sm:$0xff]
        %v2348 = vld [vmem:[%s2322 + $0xc8] sm:$0xff]
        %v2349 = vld [vmem:[%s2322 + $0xd0] sm:$0xff]
        %v2350 = vld [vmem:[%s2322 + $0xd8] sm:$0xff]
        %v2351 = vld [vmem:[%s2322 + $0xe0] sm:$0xff]
        %v2352 = vld [vmem:[%s2322 + $0xe8] sm:$0xff]
        %v2353 = vld [vmem:[%s2322 + $0xf0] sm:$0xff]
        %v2354 = vld [vmem:[%s2322 + $0xf8] sm:$0xff]
        %v2355 = vld [vmem:[%s2322 + $0x100] sm:$0xff]
        %v2356 = vld [vmem:[%s2322 + $0x108] sm:$0xff]
        %v2357 = vld [vmem:[%s2322 + $0x110] sm:$0xff]
        %v2358 = vld [vmem:[%s2322 + $0x118] sm:$0xff]
        %v2359 = vld [vmem:[%s2322 + $0x120] sm:$0xff]
        %v2360 = vld [vmem:[%s2322 + $0x128] sm:$0xff]
        %v2361 = vld [vmem:[%s2322 + $0x130] sm:$0xff]
        %v2362 = vld [vmem:[%s2322 + $0x138] sm:$0xff]
        %v2363 = vld [vmem:[%s2322 + $0x140] sm:$0xff]
        %v2364 = vld [vmem:[%s2322 + $0x148] sm:$0xff]
        %v2365 = vld [vmem:[%s2322 + $0x150] sm:$0xff]
        %v2366 = vld [vmem:[%s2322 + $0x158] sm:$0xff]
        %v2367 = vld [vmem:[%s2322 + $0x160] sm:$0xff]
        %v2368 = vld [vmem:[%s2322 + $0x168] sm:$0xff]
        %v2369 = vld [vmem:[%s2322 + $0x170] sm:$0xff]
        %v2370 = vld [vmem:[%s2322 + $0x178] sm:$0xff]
        %v2371 = vld [vmem:[%s2322 + $0x180] sm:$0xff]
        %v2372 = vld [vmem:[%s2322 + $0x188] sm:$0xff]
        %v2373 = vld [vmem:[%s2322 + $0x190] sm:$0xff]
        %v2374 = vld [vmem:[%s2322 + $0x198] sm:$0xff]
        %v2375 = vld [vmem:[%s2322 + $0x1a0] sm:$0xff]
        %v2376 = vld [vmem:[%s2322 + $0x1a8] sm:$0xff]
        %v2377 = vld [vmem:[%s2322 + $0x1b0] sm:$0xff]
        %v2378 = vld [vmem:[%s2322 + $0x1b8] sm:$0xff]
        %v2379 = vld [vmem:[%s2322 + $0x1c0] sm:$0xff]
        %v2380 = vld [vmem:[%s2322 + $0x1c8] sm:$0xff]
        %v2381 = vld [vmem:[%s2322 + $0x1d0] sm:$0xff]
        %v2382 = vld [vmem:[%s2322 + $0x1d8] sm:$0xff]
        %v2383 = vld [vmem:[%s2322 + $0x1e0] sm:$0xff]
        %v2384 = vld [vmem:[%s2322 + $0x1e8] sm:$0xff]
        %v2385 = vld [vmem:[%s2322 + $0x1f0] sm:$0xff]
        %v2386 = vld [vmem:[%s2322 + $0x1f8] sm:$0xff]
        %s2387 = scalar_lea.vmem [#allocation11], 512
        %v2388 = vld [vmem:[%s2387] sm:$0xff]
        %v2389 = vld [vmem:[%s2387 + $0x8] sm:$0xff]
        %v2390 = vld [vmem:[%s2387 + $0x10] sm:$0xff]
        %v2391 = vld [vmem:[%s2387 + $0x18] sm:$0xff]
        %v2392 = vld [vmem:[%s2387 + $0x20] sm:$0xff]
        %v2393 = vld [vmem:[%s2387 + $0x28] sm:$0xff]
        %v2394 = vld [vmem:[%s2387 + $0x30] sm:$0xff]
        %v2395 = vld [vmem:[%s2387 + $0x38] sm:$0xff]
        %v2396 = vld [vmem:[%s2387 + $0x40] sm:$0xff]
        %v2397 = vld [vmem:[%s2387 + $0x48] sm:$0xff]
        %v2398 = vld [vmem:[%s2387 + $0x50] sm:$0xff]
        %v2399 = vld [vmem:[%s2387 + $0x58] sm:$0xff]
        %v2400 = vld [vmem:[%s2387 + $0x60] sm:$0xff]
        %v2401 = vld [vmem:[%s2387 + $0x68] sm:$0xff]
        %v2402 = vld [vmem:[%s2387 + $0x70] sm:$0xff]
        %v2403 = vld [vmem:[%s2387 + $0x78] sm:$0xff]
        %v2404 = vld [vmem:[%s2387 + $0x80] sm:$0xff]
        %v2405 = vld [vmem:[%s2387 + $0x88] sm:$0xff]
        %v2406 = vld [vmem:[%s2387 + $0x90] sm:$0xff]
        %v2407 = vld [vmem:[%s2387 + $0x98] sm:$0xff]
        %v2408 = vld [vmem:[%s2387 + $0xa0] sm:$0xff]
        %v2409 = vld [vmem:[%s2387 + $0xa8] sm:$0xff]
        %v2410 = vld [vmem:[%s2387 + $0xb0] sm:$0xff]
        %v2411 = vld [vmem:[%s2387 + $0xb8] sm:$0xff]
        %v2412 = vld [vmem:[%s2387 + $0xc0] sm:$0xff]
        %v2413 = vld [vmem:[%s2387 + $0xc8] sm:$0xff]
        %v2414 = vld [vmem:[%s2387 + $0xd0] sm:$0xff]
        %v2415 = vld [vmem:[%s2387 + $0xd8] sm:$0xff]
        %v2416 = vld [vmem:[%s2387 + $0xe0] sm:$0xff]
        %v2417 = vld [vmem:[%s2387 + $0xe8] sm:$0xff]
        %v2418 = vld [vmem:[%s2387 + $0xf0] sm:$0xff]
        %v2419 = vld [vmem:[%s2387 + $0xf8] sm:$0xff]
        %v2420 = vld [vmem:[%s2387 + $0x100] sm:$0xff]
        %v2421 = vld [vmem:[%s2387 + $0x108] sm:$0xff]
        %v2422 = vld [vmem:[%s2387 + $0x110] sm:$0xff]
        %v2423 = vld [vmem:[%s2387 + $0x118] sm:$0xff]
        %v2424 = vld [vmem:[%s2387 + $0x120] sm:$0xff]
        %v2425 = vld [vmem:[%s2387 + $0x128] sm:$0xff]
        %v2426 = vld [vmem:[%s2387 + $0x130] sm:$0xff]
        %v2427 = vld [vmem:[%s2387 + $0x138] sm:$0xff]
        %v2428 = vld [vmem:[%s2387 + $0x140] sm:$0xff]
        %v2429 = vld [vmem:[%s2387 + $0x148] sm:$0xff]
        %v2430 = vld [vmem:[%s2387 + $0x150] sm:$0xff]
        %v2431 = vld [vmem:[%s2387 + $0x158] sm:$0xff]
        %v2432 = vld [vmem:[%s2387 + $0x160] sm:$0xff]
        %v2433 = vld [vmem:[%s2387 + $0x168] sm:$0xff]
        %v2434 = vld [vmem:[%s2387 + $0x170] sm:$0xff]
        %v2435 = vld [vmem:[%s2387 + $0x178] sm:$0xff]
        %v2436 = vld [vmem:[%s2387 + $0x180] sm:$0xff]
        %v2437 = vld [vmem:[%s2387 + $0x188] sm:$0xff]
        %v2438 = vld [vmem:[%s2387 + $0x190] sm:$0xff]
        %v2439 = vld [vmem:[%s2387 + $0x198] sm:$0xff]
        %v2440 = vld [vmem:[%s2387 + $0x1a0] sm:$0xff]
        %v2441 = vld [vmem:[%s2387 + $0x1a8] sm:$0xff]
        %v2442 = vld [vmem:[%s2387 + $0x1b0] sm:$0xff]
        %v2443 = vld [vmem:[%s2387 + $0x1b8] sm:$0xff]
        %v2444 = vld [vmem:[%s2387 + $0x1c0] sm:$0xff]
        %v2445 = vld [vmem:[%s2387 + $0x1c8] sm:$0xff]
        %v2446 = vld [vmem:[%s2387 + $0x1d0] sm:$0xff]
        %v2447 = vld [vmem:[%s2387 + $0x1d8] sm:$0xff]
        %v2448 = vld [vmem:[%s2387 + $0x1e0] sm:$0xff]
        %v2449 = vld [vmem:[%s2387 + $0x1e8] sm:$0xff]
        %v2450 = vld [vmem:[%s2387 + $0x1f0] sm:$0xff]
        %v2451 = vld [vmem:[%s2387 + $0x1f8] sm:$0xff]
        %s2452 = scalar_lea.vmem [#allocation12], 4
        %v2453 = vld [vmem:[%s2452] sm:$0xf]
        %v2454 = vld [vmem:[#allocation4] sm:$0xff]
        %v2455 = vld [vmem:[#allocation4 + $0x8] sm:$0xff]
        %v2456 = vld [vmem:[#allocation4 + $0x10] sm:$0xff]
        %v2457 = vld [vmem:[#allocation4 + $0x18] sm:$0xff]
        %v2458 = vld [vmem:[#allocation4 + $0x20] sm:$0xff]
        %v2459 = vld [vmem:[#allocation4 + $0x28] sm:$0xff]
        %v2460 = vld [vmem:[#allocation4 + $0x30] sm:$0xff]
        %v2461 = vld [vmem:[#allocation4 + $0x38] sm:$0xff]
        %v2463 = vlaneseq
        %v2464 = vshrl.u32 %v2463, 7
        %v2465 = vsub.s32 0, %v2464
        %v2466 = vrot.slane %v2453, %v2465
        %v2467 = vlaneseq
        %v2468 = vshrl.u32 %v2467, 7
        %v2469 = vsub.s32 1, %v2468
        %v2470 = vrot.slane %v2453, %v2469
        %v2471 = vlaneseq
        %v2472 = vshrl.u32 %v2471, 7
        %v2473 = vsub.s32 2, %v2472
        %v2474 = vrot.slane %v2453, %v2473
        %v2475 = vlaneseq
        %v2476 = vshrl.u32 %v2475, 7
        %v2477 = vsub.s32 3, %v2476
        %v2478 = vrot.slane %v2453, %v2477
        %2483 = vmatprep.subr.mxu0 %v2384
        %2484 = vmatpush1.msra.mxu0 %v2383
        %2485 = vmatprep.subr.mxu0 %v2380
        %2486 = vmatpush1.msra.mxu0 %v2379
        %2487 = vmatprep.subr.mxu0 %v2376
        %2488 = vmatpush1.msra.mxu0 %v2375
        %2489 = vmatprep.subr.mxu0 %v2372
        %2490 = vmatpush1.msra.mxu0 %v2371
        %2491 = vmatprep.subr.mxu0 %v2368
        %2492 = vmatpush1.msra.mxu0 %v2367
        %2493 = vmatprep.subr.mxu0 %v2364
        %2494 = vmatpush1.msra.mxu0 %v2363
        %2495 = vmatprep.subr.mxu0 %v2360
        %2496 = vmatpush1.msra.mxu0 %v2359
        %2497 = vmatprep.subr.mxu0 %v2356
        %2498 = vmatpush1.msra.mxu0 %v2355
        %2499 = vmatprep.subr.mxu0 %v2352
        %2500 = vmatpush1.msra.mxu0 %v2351
        %2501 = vmatprep.subr.mxu0 %v2348
        %2502 = vmatpush1.msra.mxu0 %v2347
        %2503 = vmatprep.subr.mxu0 %v2344
        %2504 = vmatpush1.msra.mxu0 %v2343
        %2505 = vmatprep.subr.mxu0 %v2340
        %2506 = vmatpush1.msra.mxu0 %v2339
        %2507 = vmatprep.subr.mxu0 %v2336
        %2508 = vmatpush1.msra.mxu0 %v2335
        %2509 = vmatprep.subr.mxu0 %v2332
        %2510 = vmatpush1.msra.mxu0 %v2331
        %2511 = vmatprep.subr.mxu0 %v2328
        %2512 = vmatpush1.msra.mxu0 %v2327
        %2513 = vmatprep.subr.mxu0 %v2324
        %2514 = vmatpush1.msra.mxu0 %v2323
        %2515 = vmatprep.subr.mxu0 0.0
        %2516 = vmatpush2.msra.mxu0 0.0
        %2517 = vmatprep.subr.mxu0 0.0
        %2518 = vmatpush2.msra.mxu0 0.0
        %2519 = vmatprep.subr.mxu0 0.0
        %2520 = vmatpush2.msra.mxu0 0.0
        %2521 = vmatprep.subr.mxu0 0.0
        %2522 = vmatpush2.msra.mxu0 0.0
        %2523 = vmatprep.subr.mxu0 0.0
        %2524 = vmatpush2.msra.mxu0 0.0
        %2525 = vmatprep.subr.mxu0 0.0
        %2526 = vmatpush2.msra.mxu0 0.0
        %2527 = vmatprep.subr.mxu0 0.0
        %2528 = vmatpush2.msra.mxu0 0.0
        %2529 = vmatprep.subr.mxu0 0.0
        %2530 = vmatpush2.msra.mxu0 0.0
        %2531 = vmatprep.subr.mxu0 0.0
        %2532 = vmatpush2.msra.mxu0 0.0
        %2533 = vmatprep.subr.mxu0 0.0
        %2534 = vmatpush2.msra.mxu0 0.0
        %2535 = vmatprep.subr.mxu0 0.0
        %2536 = vmatpush2.msra.mxu0 0.0
        %2537 = vmatprep.subr.mxu0 0.0
        %2538 = vmatpush2.msra.mxu0 0.0
        %2539 = vmatprep.subr.mxu0 0.0
        %2540 = vmatpush2.msra.mxu0 0.0
        %2541 = vmatprep.subr.mxu0 0.0
        %2542 = vmatpush2.msra.mxu0 0.0
        %2543 = vmatprep.subr.mxu0 0.0
        %2544 = vmatpush2.msra.mxu0 0.0
        %2545 = vmatprep.subr.mxu0 0.0
        %2546 = vmatpush2.msra.mxu0 0.0
        %2547 = vmatprep.mubr.f32.mxu0 0.0
        %2548 = vmatmul.mubr.f32.gmra.mxu0 %v2454
        %v2549 = vpop.f32.mrf.mxu0
        %v2550 = vadd.f32 %v2466, %v2549
        %v2551 = vpop.f32.mrf.mxu0
        %v2552 = vadd.f32 %v2470, %v2551
        %2553 = vmatprep.mubr.f32.mxu0 0.0
        %2554 = vmatmul.mubr.f32.gmra.mxu0 %v2455
        %v2555 = vpop.f32.mrf.mxu0
        %v2556 = vadd.f32 %v2466, %v2555
        %v2557 = vpop.f32.mrf.mxu0
        %v2558 = vadd.f32 %v2470, %v2557
        %2559 = vmatprep.mubr.f32.mxu0 0.0
        %2560 = vmatmul.mubr.f32.gmra.mxu0 %v2456
        %v2561 = vpop.f32.mrf.mxu0
        %v2562 = vadd.f32 %v2466, %v2561
        %v2563 = vpop.f32.mrf.mxu0
        %v2564 = vadd.f32 %v2470, %v2563
        %2565 = vmatprep.mubr.f32.mxu0 0.0
        %2566 = vmatmul.mubr.f32.gmra.mxu0 %v2457
        %v2567 = vpop.f32.mrf.mxu0
        %v2568 = vadd.f32 %v2466, %v2567
        %v2569 = vpop.f32.mrf.mxu0
        %v2570 = vadd.f32 %v2470, %v2569
        %2571 = vmatprep.mubr.f32.mxu0 0.0
        %2572 = vmatmul.mubr.f32.gmra.mxu0 %v2458
        %v2573 = vpop.f32.mrf.mxu0
        %v2574 = vadd.f32 %v2466, %v2573
        %v2575 = vpop.f32.mrf.mxu0
        %v2576 = vadd.f32 %v2470, %v2575
        %2577 = vmatprep.mubr.f32.mxu0 0.0
        %2578 = vmatmul.mubr.f32.gmra.mxu0 %v2459
        %v2579 = vpop.f32.mrf.mxu0
        %v2580 = vadd.f32 %v2466, %v2579
        %v2581 = vpop.f32.mrf.mxu0
        %v2582 = vadd.f32 %v2470, %v2581
        %2583 = vmatprep.mubr.f32.mxu0 0.0
        %2584 = vmatmul.mubr.f32.gmra.mxu0 %v2460
        %v2585 = vpop.f32.mrf.mxu0
        %v2586 = vadd.f32 %v2466, %v2585
        %v2587 = vpop.f32.mrf.mxu0
        %v2588 = vadd.f32 %v2470, %v2587
        %2589 = vmatprep.mubr.f32.mxu0 0.0
        %2590 = vmatmul.mubr.f32.gmra.mxu0 %v2461
        %v2591 = vpop.f32.mrf.mxu0
        %v2592 = vadd.f32 %v2466, %v2591
        %v2593 = vpop.f32.mrf.mxu0
        %v2594 = vadd.f32 %v2470, %v2593
        %2595 = vdwg.mxu0
        %2596 = vmatprep.subr.mxu0 %v2386
        %2597 = vmatpush1.msra.mxu0 %v2385
        %2598 = vmatprep.subr.mxu0 %v2382
        %2599 = vmatpush1.msra.mxu0 %v2381
        %2600 = vmatprep.subr.mxu0 %v2378
        %2601 = vmatpush1.msra.mxu0 %v2377
        %2602 = vmatprep.subr.mxu0 %v2374
        %2603 = vmatpush1.msra.mxu0 %v2373
        %2604 = vmatprep.subr.mxu0 %v2370
        %2605 = vmatpush1.msra.mxu0 %v2369
        %2606 = vmatprep.subr.mxu0 %v2366
        %2607 = vmatpush1.msra.mxu0 %v2365
        %2608 = vmatprep.subr.mxu0 %v2362
        %2609 = vmatpush1.msra.mxu0 %v2361
        %2610 = vmatprep.subr.mxu0 %v2358
        %2611 = vmatpush1.msra.mxu0 %v2357
        %2612 = vmatprep.subr.mxu0 %v2354
        %2613 = vmatpush1.msra.mxu0 %v2353
        %2614 = vmatprep.subr.mxu0 %v2350
        %2615 = vmatpush1.msra.mxu0 %v2349
        %2616 = vmatprep.subr.mxu0 %v2346
        %2617 = vmatpush1.msra.mxu0 %v2345
        %2618 = vmatprep.subr.mxu0 %v2342
        %2619 = vmatpush1.msra.mxu0 %v2341
        %2620 = vmatprep.subr.mxu0 %v2338
        %2621 = vmatpush1.msra.mxu0 %v2337
        %2622 = vmatprep.subr.mxu0 %v2334
        %2623 = vmatpush1.msra.mxu0 %v2333
        %2624 = vmatprep.subr.mxu0 %v2330
        %2625 = vmatpush1.msra.mxu0 %v2329
        %2626 = vmatprep.subr.mxu0 %v2326
        %2627 = vmatpush1.msra.mxu0 %v2325
        %2628 = vmatprep.subr.mxu0 0.0
        %2629 = vmatpush2.msra.mxu0 0.0
        %2630 = vmatprep.subr.mxu0 0.0
        %2631 = vmatpush2.msra.mxu0 0.0
        %2632 = vmatprep.subr.mxu0 0.0
        %2633 = vmatpush2.msra.mxu0 0.0
        %2634 = vmatprep.subr.mxu0 0.0
        %2635 = vmatpush2.msra.mxu0 0.0
        %2636 = vmatprep.subr.mxu0 0.0
        %2637 = vmatpush2.msra.mxu0 0.0
        %2638 = vmatprep.subr.mxu0 0.0
        %2639 = vmatpush2.msra.mxu0 0.0
        %2640 = vmatprep.subr.mxu0 0.0
        %2641 = vmatpush2.msra.mxu0 0.0
        %2642 = vmatprep.subr.mxu0 0.0
        %2643 = vmatpush2.msra.mxu0 0.0
        %2644 = vmatprep.subr.mxu0 0.0
        %2645 = vmatpush2.msra.mxu0 0.0
        %2646 = vmatprep.subr.mxu0 0.0
        %2647 = vmatpush2.msra.mxu0 0.0
        %2648 = vmatprep.subr.mxu0 0.0
        %2649 = vmatpush2.msra.mxu0 0.0
        %2650 = vmatprep.subr.mxu0 0.0
        %2651 = vmatpush2.msra.mxu0 0.0
        %2652 = vmatprep.subr.mxu0 0.0
        %2653 = vmatpush2.msra.mxu0 0.0
        %2654 = vmatprep.subr.mxu0 0.0
        %2655 = vmatpush2.msra.mxu0 0.0
        %2656 = vmatprep.subr.mxu0 0.0
        %2657 = vmatpush2.msra.mxu0 0.0
        %2658 = vmatprep.subr.mxu0 0.0
        %2659 = vmatpush2.msra.mxu0 0.0
        %2660 = vmatprep.mubr.f32.mxu0 0.0
        %2661 = vmatmul.mubr.f32.gmra.mxu0 %v2454
        %v2662 = vpop.f32.mrf.mxu0
        %v2663 = vadd.f32 %v2474, %v2662
        %v2664 = vpop.f32.mrf.mxu0
        %v2665 = vadd.f32 %v2478, %v2664
        %2666 = vmatprep.mubr.f32.mxu0 0.0
        %2667 = vmatmul.mubr.f32.gmra.mxu0 %v2455
        %v2668 = vpop.f32.mrf.mxu0
        %v2669 = vadd.f32 %v2474, %v2668
        %v2670 = vpop.f32.mrf.mxu0
        %v2671 = vadd.f32 %v2478, %v2670
        %2672 = vmatprep.mubr.f32.mxu0 0.0
        %2673 = vmatmul.mubr.f32.gmra.mxu0 %v2456
        %v2674 = vpop.f32.mrf.mxu0
        %v2675 = vadd.f32 %v2474, %v2674
        %v2676 = vpop.f32.mrf.mxu0
        %v2677 = vadd.f32 %v2478, %v2676
        %2678 = vmatprep.mubr.f32.mxu0 0.0
        %2679 = vmatmul.mubr.f32.gmra.mxu0 %v2457
        %v2680 = vpop.f32.mrf.mxu0
        %v2681 = vadd.f32 %v2474, %v2680
        %v2682 = vpop.f32.mrf.mxu0
        %v2683 = vadd.f32 %v2478, %v2682
        %2684 = vmatprep.mubr.f32.mxu0 0.0
        %2685 = vmatmul.mubr.f32.gmra.mxu0 %v2458
        %v2686 = vpop.f32.mrf.mxu0
        %v2687 = vadd.f32 %v2474, %v2686
        %v2688 = vpop.f32.mrf.mxu0
        %v2689 = vadd.f32 %v2478, %v2688
        %2690 = vmatprep.mubr.f32.mxu0 0.0
        %2691 = vmatmul.mubr.f32.gmra.mxu0 %v2459
        %v2692 = vpop.f32.mrf.mxu0
        %v2693 = vadd.f32 %v2474, %v2692
        %v2694 = vpop.f32.mrf.mxu0
        %v2695 = vadd.f32 %v2478, %v2694
        %2696 = vmatprep.mubr.f32.mxu0 0.0
        %2697 = vmatmul.mubr.f32.gmra.mxu0 %v2460
        %v2698 = vpop.f32.mrf.mxu0
        %v2699 = vadd.f32 %v2474, %v2698
        %v2700 = vpop.f32.mrf.mxu0
        %v2701 = vadd.f32 %v2478, %v2700
        %2702 = vmatprep.mubr.f32.mxu0 0.0
        %2703 = vmatmul.mubr.f32.gmra.mxu0 %v2461
        %v2704 = vpop.f32.mrf.mxu0
        %v2705 = vadd.f32 %v2474, %v2704
        %v2706 = vpop.f32.mrf.mxu0
        %v2707 = vadd.f32 %v2478, %v2706
        %2708 = vdwg.mxu0
        %2709 = vst [vmem:[#allocation5] sm:$0xff] %v2550
        %2710 = vst [vmem:[#allocation5 + $0x8] sm:$0xff] %v2552
        %2711 = vst [vmem:[#allocation5 + $0x10] sm:$0xff] %v2663
        %2712 = vst [vmem:[#allocation5 + $0x18] sm:$0xff] %v2665
        %2713 = vst [vmem:[#allocation5 + $0x20] sm:$0xff] %v2556
        %2714 = vst [vmem:[#allocation5 + $0x28] sm:$0xff] %v2558
        %2715 = vst [vmem:[#allocation5 + $0x30] sm:$0xff] %v2669
        %2716 = vst [vmem:[#allocation5 + $0x38] sm:$0xff] %v2671
        %2717 = vst [vmem:[#allocation5 + $0x40] sm:$0xff] %v2562
        %2718 = vst [vmem:[#allocation5 + $0x48] sm:$0xff] %v2564
        %2719 = vst [vmem:[#allocation5 + $0x50] sm:$0xff] %v2675
        %2720 = vst [vmem:[#allocation5 + $0x58] sm:$0xff] %v2677
        %2721 = vst [vmem:[#allocation5 + $0x60] sm:$0xff] %v2568
        %2722 = vst [vmem:[#allocation5 + $0x68] sm:$0xff] %v2570
        %2723 = vst [vmem:[#allocation5 + $0x70] sm:$0xff] %v2681
        %2724 = vst [vmem:[#allocation5 + $0x78] sm:$0xff] %v2683
        %2725 = vst [vmem:[#allocation5 + $0x80] sm:$0xff] %v2574
        %2726 = vst [vmem:[#allocation5 + $0x88] sm:$0xff] %v2576
        %2727 = vst [vmem:[#allocation5 + $0x90] sm:$0xff] %v2687
        %2728 = vst [vmem:[#allocation5 + $0x98] sm:$0xff] %v2689
        %2729 = vst [vmem:[#allocation5 + $0xa0] sm:$0xff] %v2580
        %2730 = vst [vmem:[#allocation5 + $0xa8] sm:$0xff] %v2582
        %2731 = vst [vmem:[#allocation5 + $0xb0] sm:$0xff] %v2693
        %2732 = vst [vmem:[#allocation5 + $0xb8] sm:$0xff] %v2695
        %2733 = vst [vmem:[#allocation5 + $0xc0] sm:$0xff] %v2586
        %2734 = vst [vmem:[#allocation5 + $0xc8] sm:$0xff] %v2588
        %2735 = vst [vmem:[#allocation5 + $0xd0] sm:$0xff] %v2699
        %2736 = vst [vmem:[#allocation5 + $0xd8] sm:$0xff] %v2701
        %2737 = vst [vmem:[#allocation5 + $0xe0] sm:$0xff] %v2592
        %2738 = vst [vmem:[#allocation5 + $0xe8] sm:$0xff] %v2594
        %2739 = vst [vmem:[#allocation5 + $0xf0] sm:$0xff] %v2705
        %2740 = vst [vmem:[#allocation5 + $0xf8] sm:$0xff] %v2707
        %s2741 = scalar_lea.vmem [#allocation2], 8
        %v2742 = vld [vmem:[%s2741] sm:$0xff]
        %s2743 = scalar_lea.vmem [#allocation3], 8
        %v2744 = vld [vmem:[%s2743] sm:$0xff]
        %v2745 = vld [vmem:[#allocation5] sm:$0xff]
        %v2746 = vld [vmem:[#allocation5 + $0x8] sm:$0xff]
        %v2747 = vld [vmem:[#allocation5 + $0x10] sm:$0xff]
        %v2748 = vld [vmem:[#allocation5 + $0x18] sm:$0xff]
        %2749 = vmatprep.subr.mxu0 %v2449
        %2750 = vmatpush1.msra.mxu0 %v2448
        %2751 = vmatprep.subr.mxu0 %v2445
        %2752 = vmatpush1.msra.mxu0 %v2444
        %2753 = vmatprep.subr.mxu0 %v2441
        %2754 = vmatpush1.msra.mxu0 %v2440
        %2755 = vmatprep.subr.mxu0 %v2437
        %2756 = vmatpush1.msra.mxu0 %v2436
        %2757 = vmatprep.subr.mxu0 %v2433
        %2758 = vmatpush1.msra.mxu0 %v2432
        %2759 = vmatprep.subr.mxu0 %v2429
        %2760 = vmatpush1.msra.mxu0 %v2428
        %2761 = vmatprep.subr.mxu0 %v2425
        %2762 = vmatpush1.msra.mxu0 %v2424
        %2763 = vmatprep.subr.mxu0 %v2421
        %2764 = vmatpush1.msra.mxu0 %v2420
        %2765 = vmatprep.subr.mxu0 %v2417
        %2766 = vmatpush1.msra.mxu0 %v2416
        %2767 = vmatprep.subr.mxu0 %v2413
        %2768 = vmatpush1.msra.mxu0 %v2412
        %2769 = vmatprep.subr.mxu0 %v2409
        %2770 = vmatpush1.msra.mxu0 %v2408
        %2771 = vmatprep.subr.mxu0 %v2405
        %2772 = vmatpush1.msra.mxu0 %v2404
        %2773 = vmatprep.subr.mxu0 %v2401
        %2774 = vmatpush1.msra.mxu0 %v2400
        %2775 = vmatprep.subr.mxu0 %v2397
        %2776 = vmatpush1.msra.mxu0 %v2396
        %2777 = vmatprep.subr.mxu0 %v2393
        %2778 = vmatpush1.msra.mxu0 %v2392
        %2779 = vmatprep.subr.mxu0 %v2389
        %2780 = vmatpush1.msra.mxu0 %v2388
        %2781 = vmatprep.subr.mxu0 0.0
        %2782 = vmatpush2.msra.mxu0 0.0
        %2783 = vmatprep.subr.mxu0 0.0
        %2784 = vmatpush2.msra.mxu0 0.0
        %2785 = vmatprep.subr.mxu0 0.0
        %2786 = vmatpush2.msra.mxu0 0.0
        %2787 = vmatprep.subr.mxu0 0.0
        %2788 = vmatpush2.msra.mxu0 0.0
        %2789 = vmatprep.subr.mxu0 0.0
        %2790 = vmatpush2.msra.mxu0 0.0
        %2791 = vmatprep.subr.mxu0 0.0
        %2792 = vmatpush2.msra.mxu0 0.0
        %2793 = vmatprep.subr.mxu0 0.0
        %2794 = vmatpush2.msra.mxu0 0.0
        %2795 = vmatprep.subr.mxu0 0.0
        %2796 = vmatpush2.msra.mxu0 0.0
        %2797 = vmatprep.subr.mxu0 0.0
        %2798 = vmatpush2.msra.mxu0 0.0
        %2799 = vmatprep.subr.mxu0 0.0
        %2800 = vmatpush2.msra.mxu0 0.0
        %2801 = vmatprep.subr.mxu0 0.0
        %2802 = vmatpush2.msra.mxu0 0.0
        %2803 = vmatprep.subr.mxu0 0.0
        %2804 = vmatpush2.msra.mxu0 0.0
        %2805 = vmatprep.subr.mxu0 0.0
        %2806 = vmatpush2.msra.mxu0 0.0
        %2807 = vmatprep.subr.mxu0 0.0
        %2808 = vmatpush2.msra.mxu0 0.0
        %2809 = vmatprep.subr.mxu0 0.0
        %2810 = vmatpush2.msra.mxu0 0.0
        %2811 = vmatprep.subr.mxu0 0.0
        %2812 = vmatpush2.msra.mxu0 0.0
        %2813 = vmatprep.mubr.f32.mxu0 0.0
        %2814 = vmatmul.mubr.f32.gmra.mxu0 %v2742
        %v2815 = vpop.f32.mrf.mxu0
        %v2816 = vadd.f32 %v2745, %v2815
        %v2817 = vpop.f32.mrf.mxu0
        %v2818 = vadd.f32 %v2746, %v2817
        %2819 = vdwg.mxu0
        %2820 = vmatprep.subr.mxu0 %v2451
        %2821 = vmatpush1.msra.mxu0 %v2450
        %2822 = vmatprep.subr.mxu0 %v2447
        %2823 = vmatpush1.msra.mxu0 %v2446
        %2824 = vmatprep.subr.mxu0 %v2443
        %2825 = vmatpush1.msra.mxu0 %v2442
        %2826 = vmatprep.subr.mxu0 %v2439
        %2827 = vmatpush1.msra.mxu0 %v2438
        %2828 = vmatprep.subr.mxu0 %v2435
        %2829 = vmatpush1.msra.mxu0 %v2434
        %2830 = vmatprep.subr.mxu0 %v2431
        %2831 = vmatpush1.msra.mxu0 %v2430
        %2832 = vmatprep.subr.mxu0 %v2427
        %2833 = vmatpush1.msra.mxu0 %v2426
        %2834 = vmatprep.subr.mxu0 %v2423
        %2835 = vmatpush1.msra.mxu0 %v2422
        %2836 = vmatprep.subr.mxu0 %v2419
        %2837 = vmatpush1.msra.mxu0 %v2418
        %2838 = vmatprep.subr.mxu0 %v2415
        %2839 = vmatpush1.msra.mxu0 %v2414
        %2840 = vmatprep.subr.mxu0 %v2411
        %2841 = vmatpush1.msra.mxu0 %v2410
        %2842 = vmatprep.subr.mxu0 %v2407
        %2843 = vmatpush1.msra.mxu0 %v2406
        %2844 = vmatprep.subr.mxu0 %v2403
        %2845 = vmatpush1.msra.mxu0 %v2402
        %2846 = vmatprep.subr.mxu0 %v2399
        %2847 = vmatpush1.msra.mxu0 %v2398
        %2848 = vmatprep.subr.mxu0 %v2395
        %2849 = vmatpush1.msra.mxu0 %v2394
        %2850 = vmatprep.subr.mxu0 %v2391
        %2851 = vmatpush1.msra.mxu0 %v2390
        %2852 = vmatprep.subr.mxu0 0.0
        %2853 = vmatpush2.msra.mxu0 0.0
        %2854 = vmatprep.subr.mxu0 0.0
        %2855 = vmatpush2.msra.mxu0 0.0
        %2856 = vmatprep.subr.mxu0 0.0
        %2857 = vmatpush2.msra.mxu0 0.0
        %2858 = vmatprep.subr.mxu0 0.0
        %2859 = vmatpush2.msra.mxu0 0.0
        %2860 = vmatprep.subr.mxu0 0.0
        %2861 = vmatpush2.msra.mxu0 0.0
        %2862 = vmatprep.subr.mxu0 0.0
        %2863 = vmatpush2.msra.mxu0 0.0
        %2864 = vmatprep.subr.mxu0 0.0
        %2865 = vmatpush2.msra.mxu0 0.0
        %2866 = vmatprep.subr.mxu0 0.0
        %2867 = vmatpush2.msra.mxu0 0.0
        %2868 = vmatprep.subr.mxu0 0.0
        %2869 = vmatpush2.msra.mxu0 0.0
        %2870 = vmatprep.subr.mxu0 0.0
        %2871 = vmatpush2.msra.mxu0 0.0
        %2872 = vmatprep.subr.mxu0 0.0
        %2873 = vmatpush2.msra.mxu0 0.0
        %2874 = vmatprep.subr.mxu0 0.0
        %2875 = vmatpush2.msra.mxu0 0.0
        %2876 = vmatprep.subr.mxu0 0.0
        %2877 = vmatpush2.msra.mxu0 0.0
        %2878 = vmatprep.subr.mxu0 0.0
        %2879 = vmatpush2.msra.mxu0 0.0
        %2880 = vmatprep.subr.mxu0 0.0
        %2881 = vmatpush2.msra.mxu0 0.0
        %2882 = vmatprep.subr.mxu0 0.0
        %2883 = vmatpush2.msra.mxu0 0.0
        %2884 = vmatprep.mubr.f32.mxu0 0.0
        %2885 = vmatmul.mubr.f32.gmra.mxu0 %v2742
        %v2886 = vpop.f32.mrf.mxu0
        %v2887 = vadd.f32 %v2747, %v2886
        %v2888 = vpop.f32.mrf.mxu0
        %v2889 = vadd.f32 %v2748, %v2888
        %2890 = vdwg.mxu0
        %v2891 = vmul.f32 %v2816, 0.5
        %v2892 = vmul.f32 %v2818, 0.5
        %v2893 = vmul.f32 %v2887, 0.5
        %v2894 = vtanh.pop %v2891
        %v2895 = vtanh.pop %v2892
        %v2896 = vtanh.pop %v2893
        %v2897 = vmul.f32 %v2894, 0.5
        %v2898 = vmul.f32 %v2895, 0.5
        %v2899 = vmul.f32 %v2896, 0.5
        %v2900 = vadd.f32 %v2897, 0.5
        %v2901 = vadd.f32 %v2898, 0.5
        %v2902 = vadd.f32 %v2899, 0.5
        %v2903 = vtanh.pop %v2889
        %v2904 = vmul.f32 %v2901, %v2744
        %v2905 = vmul.f32 %v2900, %v2903
        %v2906 = vadd.f32 %v2904, %v2905
        %v2907 = vtanh.pop %v2906
        %v2908 = vmul.f32 %v2902, %v2907
        %2909 = vst [vmem:[#allocation4] sm:$0xff] %v2908
        %v2910 = vld [vmem:[%s1151] sm:$0xff]
        %v2911 = vld [vmem:[%s1151 + $0x8] sm:$0xff]
        %v2912 = vld [vmem:[%s1151 + $0x10] sm:$0xff]
        %v2913 = vld [vmem:[%s1151 + $0x18] sm:$0xff]
        %2914 = vmatprep.subr.mxu0 %v2449
        %2915 = vmatpush1.msra.mxu0 %v2448
        %2916 = vmatprep.subr.mxu0 %v2445
        %2917 = vmatpush1.msra.mxu0 %v2444
        %2918 = vmatprep.subr.mxu0 %v2441
        %2919 = vmatpush1.msra.mxu0 %v2440
        %2920 = vmatprep.subr.mxu0 %v2437
        %2921 = vmatpush1.msra.mxu0 %v2436
        %2922 = vmatprep.subr.mxu0 %v2433
        %2923 = vmatpush1.msra.mxu0 %v2432
        %2924 = vmatprep.subr.mxu0 %v2429
        %2925 = vmatpush1.msra.mxu0 %v2428
        %2926 = vmatprep.subr.mxu0 %v2425
        %2927 = vmatpush1.msra.mxu0 %v2424
        %2928 = vmatprep.subr.mxu0 %v2421
        %2929 = vmatpush1.msra.mxu0 %v2420
        %2930 = vmatprep.subr.mxu0 %v2417
        %2931 = vmatpush1.msra.mxu0 %v2416
        %2932 = vmatprep.subr.mxu0 %v2413
        %2933 = vmatpush1.msra.mxu0 %v2412
        %2934 = vmatprep.subr.mxu0 %v2409
        %2935 = vmatpush1.msra.mxu0 %v2408
        %2936 = vmatprep.subr.mxu0 %v2405
        %2937 = vmatpush1.msra.mxu0 %v2404
        %2938 = vmatprep.subr.mxu0 %v2401
        %2939 = vmatpush1.msra.mxu0 %v2400
        %2940 = vmatprep.subr.mxu0 %v2397
        %2941 = vmatpush1.msra.mxu0 %v2396
        %2942 = vmatprep.subr.mxu0 %v2393
        %2943 = vmatpush1.msra.mxu0 %v2392
        %2944 = vmatprep.subr.mxu0 %v2389
        %2945 = vmatpush1.msra.mxu0 %v2388
        %2946 = vmatprep.subr.mxu0 0.0
        %2947 = vmatpush2.msra.mxu0 0.0
        %2948 = vmatprep.subr.mxu0 0.0
        %2949 = vmatpush2.msra.mxu0 0.0
        %2950 = vmatprep.subr.mxu0 0.0
        %2951 = vmatpush2.msra.mxu0 0.0
        %2952 = vmatprep.subr.mxu0 0.0
        %2953 = vmatpush2.msra.mxu0 0.0
        %2954 = vmatprep.subr.mxu0 0.0
        %2955 = vmatpush2.msra.mxu0 0.0
        %2956 = vmatprep.subr.mxu0 0.0
        %2957 = vmatpush2.msra.mxu0 0.0
        %2958 = vmatprep.subr.mxu0 0.0
        %2959 = vmatpush2.msra.mxu0 0.0
        %2960 = vmatprep.subr.mxu0 0.0
        %2961 = vmatpush2.msra.mxu0 0.0
        %2962 = vmatprep.subr.mxu0 0.0
        %2963 = vmatpush2.msra.mxu0 0.0
        %2964 = vmatprep.subr.mxu0 0.0
        %2965 = vmatpush2.msra.mxu0 0.0
        %2966 = vmatprep.subr.mxu0 0.0
        %2967 = vmatpush2.msra.mxu0 0.0
        %2968 = vmatprep.subr.mxu0 0.0
        %2969 = vmatpush2.msra.mxu0 0.0
        %2970 = vmatprep.subr.mxu0 0.0
        %2971 = vmatpush2.msra.mxu0 0.0
        %2972 = vmatprep.subr.mxu0 0.0
        %2973 = vmatpush2.msra.mxu0 0.0
        %2974 = vmatprep.subr.mxu0 0.0
        %2975 = vmatpush2.msra.mxu0 0.0
        %2976 = vmatprep.subr.mxu0 0.0
        %2977 = vmatpush2.msra.mxu0 0.0
        %2978 = vmatprep.mubr.f32.mxu0 0.0
        %2979 = vmatmul.mubr.f32.gmra.mxu0 %v2908
        %v2980 = vpop.f32.mrf.mxu0
        %v2981 = vadd.f32 %v2910, %v2980
        %v2982 = vpop.f32.mrf.mxu0
        %v2983 = vadd.f32 %v2911, %v2982
        %2984 = vdwg.mxu0
        %2985 = vmatprep.subr.mxu0 %v2451
        %2986 = vmatpush1.msra.mxu0 %v2450
        %2987 = vmatprep.subr.mxu0 %v2447
        %2988 = vmatpush1.msra.mxu0 %v2446
        %2989 = vmatprep.subr.mxu0 %v2443
        %2990 = vmatpush1.msra.mxu0 %v2442
        %2991 = vmatprep.subr.mxu0 %v2439
        %2992 = vmatpush1.msra.mxu0 %v2438
        %2993 = vmatprep.subr.mxu0 %v2435
        %2994 = vmatpush1.msra.mxu0 %v2434
        %2995 = vmatprep.subr.mxu0 %v2431
        %2996 = vmatpush1.msra.mxu0 %v2430
        %2997 = vmatprep.subr.mxu0 %v2427
        %2998 = vmatpush1.msra.mxu0 %v2426
        %2999 = vmatprep.subr.mxu0 %v2423
        %3000 = vmatpush1.msra.mxu0 %v2422
        %3001 = vmatprep.subr.mxu0 %v2419
        %3002 = vmatpush1.msra.mxu0 %v2418
        %3003 = vmatprep.subr.mxu0 %v2415
        %3004 = vmatpush1.msra.mxu0 %v2414
        %3005 = vmatprep.subr.mxu0 %v2411
        %3006 = vmatpush1.msra.mxu0 %v2410
        %3007 = vmatprep.subr.mxu0 %v2407
        %3008 = vmatpush1.msra.mxu0 %v2406
        %3009 = vmatprep.subr.mxu0 %v2403
        %3010 = vmatpush1.msra.mxu0 %v2402
        %3011 = vmatprep.subr.mxu0 %v2399
        %3012 = vmatpush1.msra.mxu0 %v2398
        %3013 = vmatprep.subr.mxu0 %v2395
        %3014 = vmatpush1.msra.mxu0 %v2394
        %3015 = vmatprep.subr.mxu0 %v2391
        %3016 = vmatpush1.msra.mxu0 %v2390
        %3017 = vmatprep.subr.mxu0 0.0
        %3018 = vmatpush2.msra.mxu0 0.0
        %3019 = vmatprep.subr.mxu0 0.0
        %3020 = vmatpush2.msra.mxu0 0.0
        %3021 = vmatprep.subr.mxu0 0.0
        %3022 = vmatpush2.msra.mxu0 0.0
        %3023 = vmatprep.subr.mxu0 0.0
        %3024 = vmatpush2.msra.mxu0 0.0
        %3025 = vmatprep.subr.mxu0 0.0
        %3026 = vmatpush2.msra.mxu0 0.0
        %3027 = vmatprep.subr.mxu0 0.0
        %3028 = vmatpush2.msra.mxu0 0.0
        %3029 = vmatprep.subr.mxu0 0.0
        %3030 = vmatpush2.msra.mxu0 0.0
        %3031 = vmatprep.subr.mxu0 0.0
        %3032 = vmatpush2.msra.mxu0 0.0
        %3033 = vmatprep.subr.mxu0 0.0
        %3034 = vmatpush2.msra.mxu0 0.0
        %3035 = vmatprep.subr.mxu0 0.0
        %3036 = vmatpush2.msra.mxu0 0.0
        %3037 = vmatprep.subr.mxu0 0.0
        %3038 = vmatpush2.msra.mxu0 0.0
        %3039 = vmatprep.subr.mxu0 0.0
        %3040 = vmatpush2.msra.mxu0 0.0
        %3041 = vmatprep.subr.mxu0 0.0
        %3042 = vmatpush2.msra.mxu0 0.0
        %3043 = vmatprep.subr.mxu0 0.0
        %3044 = vmatpush2.msra.mxu0 0.0
        %3045 = vmatprep.subr.mxu0 0.0
        %3046 = vmatpush2.msra.mxu0 0.0
        %3047 = vmatprep.subr.mxu0 0.0
        %3048 = vmatpush2.msra.mxu0 0.0
        %3049 = vmatprep.mubr.f32.mxu0 0.0
        %3050 = vmatmul.mubr.f32.gmra.mxu0 %v2908
        %v3051 = vpop.f32.mrf.mxu0
        %v3052 = vadd.f32 %v2912, %v3051
        %v3053 = vpop.f32.mrf.mxu0
        %v3054 = vadd.f32 %v2913, %v3053
        %3055 = vdwg.mxu0
        %v3056 = vmul.f32 %v2981, 0.5
        %v3057 = vmul.f32 %v2983, 0.5
        %v3058 = vmul.f32 %v3052, 0.5
        %v3059 = vtanh.pop %v3056
        %v3060 = vtanh.pop %v3057
        %v3061 = vtanh.pop %v3058
        %v3062 = vmul.f32 %v3059, 0.5
        %v3063 = vmul.f32 %v3060, 0.5
        %v3064 = vmul.f32 %v3061, 0.5
        %v3065 = vadd.f32 %v3062, 0.5
        %v3066 = vadd.f32 %v3063, 0.5
        %v3067 = vadd.f32 %v3064, 0.5
        %v3068 = vtanh.pop %v3054
        %v3069 = vmul.f32 %v3066, %v2906
        %v3070 = vmul.f32 %v3065, %v3068
        %v3071 = vadd.f32 %v3069, %v3070
        %v3072 = vtanh.pop %v3071
        %v3073 = vmul.f32 %v3067, %v3072
        %3074 = vst [vmem:[%s1316] sm:$0xff] %v3073
        %v3075 = vld [vmem:[%s1318] sm:$0xff]
        %v3076 = vld [vmem:[%s1318 + $0x8] sm:$0xff]
        %v3077 = vld [vmem:[%s1318 + $0x10] sm:$0xff]
        %v3078 = vld [vmem:[%s1318 + $0x18] sm:$0xff]
        %3079 = vmatprep.subr.mxu0 %v2449
        %3080 = vmatpush1.msra.mxu0 %v2448
        %3081 = vmatprep.subr.mxu0 %v2445
        %3082 = vmatpush1.msra.mxu0 %v2444
        %3083 = vmatprep.subr.mxu0 %v2441
        %3084 = vmatpush1.msra.mxu0 %v2440
        %3085 = vmatprep.subr.mxu0 %v2437
        %3086 = vmatpush1.msra.mxu0 %v2436
        %3087 = vmatprep.subr.mxu0 %v2433
        %3088 = vmatpush1.msra.mxu0 %v2432
        %3089 = vmatprep.subr.mxu0 %v2429
        %3090 = vmatpush1.msra.mxu0 %v2428
        %3091 = vmatprep.subr.mxu0 %v2425
        %3092 = vmatpush1.msra.mxu0 %v2424
        %3093 = vmatprep.subr.mxu0 %v2421
        %3094 = vmatpush1.msra.mxu0 %v2420
        %3095 = vmatprep.subr.mxu0 %v2417
        %3096 = vmatpush1.msra.mxu0 %v2416
        %3097 = vmatprep.subr.mxu0 %v2413
        %3098 = vmatpush1.msra.mxu0 %v2412
        %3099 = vmatprep.subr.mxu0 %v2409
        %3100 = vmatpush1.msra.mxu0 %v2408
        %3101 = vmatprep.subr.mxu0 %v2405
        %3102 = vmatpush1.msra.mxu0 %v2404
        %3103 = vmatprep.subr.mxu0 %v2401
        %3104 = vmatpush1.msra.mxu0 %v2400
        %3105 = vmatprep.subr.mxu0 %v2397
        %3106 = vmatpush1.msra.mxu0 %v2396
        %3107 = vmatprep.subr.mxu0 %v2393
        %3108 = vmatpush1.msra.mxu0 %v2392
        %3109 = vmatprep.subr.mxu0 %v2389
        %3110 = vmatpush1.msra.mxu0 %v2388
        %3111 = vmatprep.subr.mxu0 0.0
        %3112 = vmatpush2.msra.mxu0 0.0
        %3113 = vmatprep.subr.mxu0 0.0
        %3114 = vmatpush2.msra.mxu0 0.0
        %3115 = vmatprep.subr.mxu0 0.0
        %3116 = vmatpush2.msra.mxu0 0.0
        %3117 = vmatprep.subr.mxu0 0.0
        %3118 = vmatpush2.msra.mxu0 0.0
        %3119 = vmatprep.subr.mxu0 0.0
        %3120 = vmatpush2.msra.mxu0 0.0
        %3121 = vmatprep.subr.mxu0 0.0
        %3122 = vmatpush2.msra.mxu0 0.0
        %3123 = vmatprep.subr.mxu0 0.0
        %3124 = vmatpush2.msra.mxu0 0.0
        %3125 = vmatprep.subr.mxu0 0.0
        %3126 = vmatpush2.msra.mxu0 0.0
        %3127 = vmatprep.subr.mxu0 0.0
        %3128 = vmatpush2.msra.mxu0 0.0
        %3129 = vmatprep.subr.mxu0 0.0
        %3130 = vmatpush2.msra.mxu0 0.0
        %3131 = vmatprep.subr.mxu0 0.0
        %3132 = vmatpush2.msra.mxu0 0.0
        %3133 = vmatprep.subr.mxu0 0.0
        %3134 = vmatpush2.msra.mxu0 0.0
        %3135 = vmatprep.subr.mxu0 0.0
        %3136 = vmatpush2.msra.mxu0 0.0
        %3137 = vmatprep.subr.mxu0 0.0
        %3138 = vmatpush2.msra.mxu0 0.0
        %3139 = vmatprep.subr.mxu0 0.0
        %3140 = vmatpush2.msra.mxu0 0.0
        %3141 = vmatprep.subr.mxu0 0.0
        %3142 = vmatpush2.msra.mxu0 0.0
        %3143 = vmatprep.mubr.f32.mxu0 0.0
        %3144 = vmatmul.mubr.f32.gmra.mxu0 %v3073
        %v3145 = vpop.f32.mrf.mxu0
        %v3146 = vadd.f32 %v3075, %v3145
        %v3147 = vpop.f32.mrf.mxu0
        %v3148 = vadd.f32 %v3076, %v3147
        %3149 = vdwg.mxu0
        %3150 = vmatprep.subr.mxu0 %v2451
        %3151 = vmatpush1.msra.mxu0 %v2450
        %3152 = vmatprep.subr.mxu0 %v2447
        %3153 = vmatpush1.msra.mxu0 %v2446
        %3154 = vmatprep.subr.mxu0 %v2443
        %3155 = vmatpush1.msra.mxu0 %v2442
        %3156 = vmatprep.subr.mxu0 %v2439
        %3157 = vmatpush1.msra.mxu0 %v2438
        %3158 = vmatprep.subr.mxu0 %v2435
        %3159 = vmatpush1.msra.mxu0 %v2434
        %3160 = vmatprep.subr.mxu0 %v2431
        %3161 = vmatpush1.msra.mxu0 %v2430
        %3162 = vmatprep.subr.mxu0 %v2427
        %3163 = vmatpush1.msra.mxu0 %v2426
        %3164 = vmatprep.subr.mxu0 %v2423
        %3165 = vmatpush1.msra.mxu0 %v2422
        %3166 = vmatprep.subr.mxu0 %v2419
        %3167 = vmatpush1.msra.mxu0 %v2418
        %3168 = vmatprep.subr.mxu0 %v2415
        %3169 = vmatpush1.msra.mxu0 %v2414
        %3170 = vmatprep.subr.mxu0 %v2411
        %3171 = vmatpush1.msra.mxu0 %v2410
        %3172 = vmatprep.subr.mxu0 %v2407
        %3173 = vmatpush1.msra.mxu0 %v2406
        %3174 = vmatprep.subr.mxu0 %v2403
        %3175 = vmatpush1.msra.mxu0 %v2402
        %3176 = vmatprep.subr.mxu0 %v2399
        %3177 = vmatpush1.msra.mxu0 %v2398
        %3178 = vmatprep.subr.mxu0 %v2395
        %3179 = vmatpush1.msra.mxu0 %v2394
        %3180 = vmatprep.subr.mxu0 %v2391
        %3181 = vmatpush1.msra.mxu0 %v2390
        %3182 = vmatprep.subr.mxu0 0.0
        %3183 = vmatpush2.msra.mxu0 0.0
        %3184 = vmatprep.subr.mxu0 0.0
        %3185 = vmatpush2.msra.mxu0 0.0
        %3186 = vmatprep.subr.mxu0 0.0
        %3187 = vmatpush2.msra.mxu0 0.0
        %3188 = vmatprep.subr.mxu0 0.0
        %3189 = vmatpush2.msra.mxu0 0.0
        %3190 = vmatprep.subr.mxu0 0.0
        %3191 = vmatpush2.msra.mxu0 0.0
        %3192 = vmatprep.subr.mxu0 0.0
        %3193 = vmatpush2.msra.mxu0 0.0
        %3194 = vmatprep.subr.mxu0 0.0
        %3195 = vmatpush2.msra.mxu0 0.0
        %3196 = vmatprep.subr.mxu0 0.0
        %3197 = vmatpush2.msra.mxu0 0.0
        %3198 = vmatprep.subr.mxu0 0.0
        %3199 = vmatpush2.msra.mxu0 0.0
        %3200 = vmatprep.subr.mxu0 0.0
        %3201 = vmatpush2.msra.mxu0 0.0
        %3202 = vmatprep.subr.mxu0 0.0
        %3203 = vmatpush2.msra.mxu0 0.0
        %3204 = vmatprep.subr.mxu0 0.0
        %3205 = vmatpush2.msra.mxu0 0.0
        %3206 = vmatprep.subr.mxu0 0.0
        %3207 = vmatpush2.msra.mxu0 0.0
        %3208 = vmatprep.subr.mxu0 0.0
        %3209 = vmatpush2.msra.mxu0 0.0
        %3210 = vmatprep.subr.mxu0 0.0
        %3211 = vmatpush2.msra.mxu0 0.0
        %3212 = vmatprep.subr.mxu0 0.0
        %3213 = vmatpush2.msra.mxu0 0.0
        %3214 = vmatprep.mubr.f32.mxu0 0.0
        %3215 = vmatmul.mubr.f32.gmra.mxu0 %v3073
        %v3216 = vpop.f32.mrf.mxu0
        %v3217 = vadd.f32 %v3077, %v3216
        %v3218 = vpop.f32.mrf.mxu0
        %v3219 = vadd.f32 %v3078, %v3218
        %3220 = vdwg.mxu0
        %v3221 = vmul.f32 %v3146, 0.5
        %v3222 = vmul.f32 %v3148, 0.5
        %v3223 = vmul.f32 %v3217, 0.5
        %v3224 = vtanh.pop %v3221
        %v3225 = vtanh.pop %v3222
        %v3226 = vtanh.pop %v3223
        %v3227 = vmul.f32 %v3224, 0.5
        %v3228 = vmul.f32 %v3225, 0.5
        %v3229 = vmul.f32 %v3226, 0.5
        %v3230 = vadd.f32 %v3227, 0.5
        %v3231 = vadd.f32 %v3228, 0.5
        %v3232 = vadd.f32 %v3229, 0.5
        %v3233 = vtanh.pop %v3219
        %v3234 = vmul.f32 %v3231, %v3071
        %v3235 = vmul.f32 %v3230, %v3233
        %v3236 = vadd.f32 %v3234, %v3235
        %v3237 = vtanh.pop %v3236
        %v3238 = vmul.f32 %v3232, %v3237
        %3239 = vst [vmem:[%s1483] sm:$0xff] %v3238
        %v3240 = vld [vmem:[%s1485] sm:$0xff]
        %v3241 = vld [vmem:[%s1485 + $0x8] sm:$0xff]
        %v3242 = vld [vmem:[%s1485 + $0x10] sm:$0xff]
        %v3243 = vld [vmem:[%s1485 + $0x18] sm:$0xff]
        %3244 = vmatprep.subr.mxu0 %v2449
        %3245 = vmatpush1.msra.mxu0 %v2448
        %3246 = vmatprep.subr.mxu0 %v2445
        %3247 = vmatpush1.msra.mxu0 %v2444
        %3248 = vmatprep.subr.mxu0 %v2441
        %3249 = vmatpush1.msra.mxu0 %v2440
        %3250 = vmatprep.subr.mxu0 %v2437
        %3251 = vmatpush1.msra.mxu0 %v2436
        %3252 = vmatprep.subr.mxu0 %v2433
        %3253 = vmatpush1.msra.mxu0 %v2432
        %3254 = vmatprep.subr.mxu0 %v2429
        %3255 = vmatpush1.msra.mxu0 %v2428
        %3256 = vmatprep.subr.mxu0 %v2425
        %3257 = vmatpush1.msra.mxu0 %v2424
        %3258 = vmatprep.subr.mxu0 %v2421
        %3259 = vmatpush1.msra.mxu0 %v2420
        %3260 = vmatprep.subr.mxu0 %v2417
        %3261 = vmatpush1.msra.mxu0 %v2416
        %3262 = vmatprep.subr.mxu0 %v2413
        %3263 = vmatpush1.msra.mxu0 %v2412
        %3264 = vmatprep.subr.mxu0 %v2409
        %3265 = vmatpush1.msra.mxu0 %v2408
        %3266 = vmatprep.subr.mxu0 %v2405
        %3267 = vmatpush1.msra.mxu0 %v2404
        %3268 = vmatprep.subr.mxu0 %v2401
        %3269 = vmatpush1.msra.mxu0 %v2400
        %3270 = vmatprep.subr.mxu0 %v2397
        %3271 = vmatpush1.msra.mxu0 %v2396
        %3272 = vmatprep.subr.mxu0 %v2393
        %3273 = vmatpush1.msra.mxu0 %v2392
        %3274 = vmatprep.subr.mxu0 %v2389
        %3275 = vmatpush1.msra.mxu0 %v2388
        %3276 = vmatprep.subr.mxu0 0.0
        %3277 = vmatpush2.msra.mxu0 0.0
        %3278 = vmatprep.subr.mxu0 0.0
        %3279 = vmatpush2.msra.mxu0 0.0
        %3280 = vmatprep.subr.mxu0 0.0
        %3281 = vmatpush2.msra.mxu0 0.0
        %3282 = vmatprep.subr.mxu0 0.0
        %3283 = vmatpush2.msra.mxu0 0.0
        %3284 = vmatprep.subr.mxu0 0.0
        %3285 = vmatpush2.msra.mxu0 0.0
        %3286 = vmatprep.subr.mxu0 0.0
        %3287 = vmatpush2.msra.mxu0 0.0
        %3288 = vmatprep.subr.mxu0 0.0
        %3289 = vmatpush2.msra.mxu0 0.0
        %3290 = vmatprep.subr.mxu0 0.0
        %3291 = vmatpush2.msra.mxu0 0.0
        %3292 = vmatprep.subr.mxu0 0.0
        %3293 = vmatpush2.msra.mxu0 0.0
        %3294 = vmatprep.subr.mxu0 0.0
        %3295 = vmatpush2.msra.mxu0 0.0
        %3296 = vmatprep.subr.mxu0 0.0
        %3297 = vmatpush2.msra.mxu0 0.0
        %3298 = vmatprep.subr.mxu0 0.0
        %3299 = vmatpush2.msra.mxu0 0.0
        %3300 = vmatprep.subr.mxu0 0.0
        %3301 = vmatpush2.msra.mxu0 0.0
        %3302 = vmatprep.subr.mxu0 0.0
        %3303 = vmatpush2.msra.mxu0 0.0
        %3304 = vmatprep.subr.mxu0 0.0
        %3305 = vmatpush2.msra.mxu0 0.0
        %3306 = vmatprep.subr.mxu0 0.0
        %3307 = vmatpush2.msra.mxu0 0.0
        %3308 = vmatprep.mubr.f32.mxu0 0.0
        %3309 = vmatmul.mubr.f32.gmra.mxu0 %v3238
        %v3310 = vpop.f32.mrf.mxu0
        %v3311 = vadd.f32 %v3240, %v3310
        %v3312 = vpop.f32.mrf.mxu0
        %v3313 = vadd.f32 %v3241, %v3312
        %3314 = vdwg.mxu0
        %3315 = vmatprep.subr.mxu0 %v2451
        %3316 = vmatpush1.msra.mxu0 %v2450
        %3317 = vmatprep.subr.mxu0 %v2447
        %3318 = vmatpush1.msra.mxu0 %v2446
        %3319 = vmatprep.subr.mxu0 %v2443
        %3320 = vmatpush1.msra.mxu0 %v2442
        %3321 = vmatprep.subr.mxu0 %v2439
        %3322 = vmatpush1.msra.mxu0 %v2438
        %3323 = vmatprep.subr.mxu0 %v2435
        %3324 = vmatpush1.msra.mxu0 %v2434
        %3325 = vmatprep.subr.mxu0 %v2431
        %3326 = vmatpush1.msra.mxu0 %v2430
        %3327 = vmatprep.subr.mxu0 %v2427
        %3328 = vmatpush1.msra.mxu0 %v2426
        %3329 = vmatprep.subr.mxu0 %v2423
        %3330 = vmatpush1.msra.mxu0 %v2422
        %3331 = vmatprep.subr.mxu0 %v2419
        %3332 = vmatpush1.msra.mxu0 %v2418
        %3333 = vmatprep.subr.mxu0 %v2415
        %3334 = vmatpush1.msra.mxu0 %v2414
        %3335 = vmatprep.subr.mxu0 %v2411
        %3336 = vmatpush1.msra.mxu0 %v2410
        %3337 = vmatprep.subr.mxu0 %v2407
        %3338 = vmatpush1.msra.mxu0 %v2406
        %3339 = vmatprep.subr.mxu0 %v2403
        %3340 = vmatpush1.msra.mxu0 %v2402
        %3341 = vmatprep.subr.mxu0 %v2399
        %3342 = vmatpush1.msra.mxu0 %v2398
        %3343 = vmatprep.subr.mxu0 %v2395
        %3344 = vmatpush1.msra.mxu0 %v2394
        %3345 = vmatprep.subr.mxu0 %v2391
        %3346 = vmatpush1.msra.mxu0 %v2390
        %3347 = vmatprep.subr.mxu0 0.0
        %3348 = vmatpush2.msra.mxu0 0.0
        %3349 = vmatprep.subr.mxu0 0.0
        %3350 = vmatpush2.msra.mxu0 0.0
        %3351 = vmatprep.subr.mxu0 0.0
        %3352 = vmatpush2.msra.mxu0 0.0
        %3353 = vmatprep.subr.mxu0 0.0
        %3354 = vmatpush2.msra.mxu0 0.0
        %3355 = vmatprep.subr.mxu0 0.0
        %3356 = vmatpush2.msra.mxu0 0.0
        %3357 = vmatprep.subr.mxu0 0.0
        %3358 = vmatpush2.msra.mxu0 0.0
        %3359 = vmatprep.subr.mxu0 0.0
        %3360 = vmatpush2.msra.mxu0 0.0
        %3361 = vmatprep.subr.mxu0 0.0
        %3362 = vmatpush2.msra.mxu0 0.0
        %3363 = vmatprep.subr.mxu0 0.0
        %3364 = vmatpush2.msra.mxu0 0.0
        %3365 = vmatprep.subr.mxu0 0.0
        %3366 = vmatpush2.msra.mxu0 0.0
        %3367 = vmatprep.subr.mxu0 0.0
        %3368 = vmatpush2.msra.mxu0 0.0
        %3369 = vmatprep.subr.mxu0 0.0
        %3370 = vmatpush2.msra.mxu0 0.0
        %3371 = vmatprep.subr.mxu0 0.0
        %3372 = vmatpush2.msra.mxu0 0.0
        %3373 = vmatprep.subr.mxu0 0.0
        %3374 = vmatpush2.msra.mxu0 0.0
        %3375 = vmatprep.subr.mxu0 0.0
        %3376 = vmatpush2.msra.mxu0 0.0
        %3377 = vmatprep.subr.mxu0 0.0
        %3378 = vmatpush2.msra.mxu0 0.0
        %3379 = vmatprep.mubr.f32.mxu0 0.0
        %3380 = vmatmul.mubr.f32.gmra.mxu0 %v3238
        %v3381 = vpop.f32.mrf.mxu0
        %v3382 = vadd.f32 %v3242, %v3381
        %v3383 = vpop.f32.mrf.mxu0
        %v3384 = vadd.f32 %v3243, %v3383
        %3385 = vdwg.mxu0
        %v3386 = vmul.f32 %v3311, 0.5
        %v3387 = vmul.f32 %v3313, 0.5
        %v3388 = vmul.f32 %v3382, 0.5
        %v3389 = vtanh.pop %v3386
        %v3390 = vtanh.pop %v3387
        %v3391 = vtanh.pop %v3388
        %v3392 = vmul.f32 %v3389, 0.5
        %v3393 = vmul.f32 %v3390, 0.5
        %v3394 = vmul.f32 %v3391, 0.5
        %v3395 = vadd.f32 %v3392, 0.5
        %v3396 = vadd.f32 %v3393, 0.5
        %v3397 = vadd.f32 %v3394, 0.5
        %v3398 = vtanh.pop %v3384
        %v3399 = vmul.f32 %v3396, %v3236
        %v3400 = vmul.f32 %v3395, %v3398
        %v3401 = vadd.f32 %v3399, %v3400
        %v3402 = vtanh.pop %v3401
        %v3403 = vmul.f32 %v3397, %v3402
        %3404 = vst [vmem:[%s1650] sm:$0xff] %v3403
        %v3405 = vld [vmem:[%s1652] sm:$0xff]
        %v3406 = vld [vmem:[%s1652 + $0x8] sm:$0xff]
        %v3407 = vld [vmem:[%s1652 + $0x10] sm:$0xff]
        %v3408 = vld [vmem:[%s1652 + $0x18] sm:$0xff]
        %3409 = vmatprep.subr.mxu0 %v2449
        %3410 = vmatpush1.msra.mxu0 %v2448
        %3411 = vmatprep.subr.mxu0 %v2445
        %3412 = vmatpush1.msra.mxu0 %v2444
        %3413 = vmatprep.subr.mxu0 %v2441
        %3414 = vmatpush1.msra.mxu0 %v2440
        %3415 = vmatprep.subr.mxu0 %v2437
        %3416 = vmatpush1.msra.mxu0 %v2436
        %3417 = vmatprep.subr.mxu0 %v2433
        %3418 = vmatpush1.msra.mxu0 %v2432
        %3419 = vmatprep.subr.mxu0 %v2429
        %3420 = vmatpush1.msra.mxu0 %v2428
        %3421 = vmatprep.subr.mxu0 %v2425
        %3422 = vmatpush1.msra.mxu0 %v2424
        %3423 = vmatprep.subr.mxu0 %v2421
        %3424 = vmatpush1.msra.mxu0 %v2420
        %3425 = vmatprep.subr.mxu0 %v2417
        %3426 = vmatpush1.msra.mxu0 %v2416
        %3427 = vmatprep.subr.mxu0 %v2413
        %3428 = vmatpush1.msra.mxu0 %v2412
        %3429 = vmatprep.subr.mxu0 %v2409
        %3430 = vmatpush1.msra.mxu0 %v2408
        %3431 = vmatprep.subr.mxu0 %v2405
        %3432 = vmatpush1.msra.mxu0 %v2404
        %3433 = vmatprep.subr.mxu0 %v2401
        %3434 = vmatpush1.msra.mxu0 %v2400
        %3435 = vmatprep.subr.mxu0 %v2397
        %3436 = vmatpush1.msra.mxu0 %v2396
        %3437 = vmatprep.subr.mxu0 %v2393
        %3438 = vmatpush1.msra.mxu0 %v2392
        %3439 = vmatprep.subr.mxu0 %v2389
        %3440 = vmatpush1.msra.mxu0 %v2388
        %3441 = vmatprep.subr.mxu0 0.0
        %3442 = vmatpush2.msra.mxu0 0.0
        %3443 = vmatprep.subr.mxu0 0.0
        %3444 = vmatpush2.msra.mxu0 0.0
        %3445 = vmatprep.subr.mxu0 0.0
        %3446 = vmatpush2.msra.mxu0 0.0
        %3447 = vmatprep.subr.mxu0 0.0
        %3448 = vmatpush2.msra.mxu0 0.0
        %3449 = vmatprep.subr.mxu0 0.0
        %3450 = vmatpush2.msra.mxu0 0.0
        %3451 = vmatprep.subr.mxu0 0.0
        %3452 = vmatpush2.msra.mxu0 0.0
        %3453 = vmatprep.subr.mxu0 0.0
        %3454 = vmatpush2.msra.mxu0 0.0
        %3455 = vmatprep.subr.mxu0 0.0
        %3456 = vmatpush2.msra.mxu0 0.0
        %3457 = vmatprep.subr.mxu0 0.0
        %3458 = vmatpush2.msra.mxu0 0.0
        %3459 = vmatprep.subr.mxu0 0.0
        %3460 = vmatpush2.msra.mxu0 0.0
        %3461 = vmatprep.subr.mxu0 0.0
        %3462 = vmatpush2.msra.mxu0 0.0
        %3463 = vmatprep.subr.mxu0 0.0
        %3464 = vmatpush2.msra.mxu0 0.0
        %3465 = vmatprep.subr.mxu0 0.0
        %3466 = vmatpush2.msra.mxu0 0.0
        %3467 = vmatprep.subr.mxu0 0.0
        %3468 = vmatpush2.msra.mxu0 0.0
        %3469 = vmatprep.subr.mxu0 0.0
        %3470 = vmatpush2.msra.mxu0 0.0
        %3471 = vmatprep.subr.mxu0 0.0
        %3472 = vmatpush2.msra.mxu0 0.0
        %3473 = vmatprep.mubr.f32.mxu0 0.0
        %3474 = vmatmul.mubr.f32.gmra.mxu0 %v3403
        %v3475 = vpop.f32.mrf.mxu0
        %v3476 = vadd.f32 %v3405, %v3475
        %v3477 = vpop.f32.mrf.mxu0
        %v3478 = vadd.f32 %v3406, %v3477
        %3479 = vdwg.mxu0
        %3480 = vmatprep.subr.mxu0 %v2451
        %3481 = vmatpush1.msra.mxu0 %v2450
        %3482 = vmatprep.subr.mxu0 %v2447
        %3483 = vmatpush1.msra.mxu0 %v2446
        %3484 = vmatprep.subr.mxu0 %v2443
        %3485 = vmatpush1.msra.mxu0 %v2442
        %3486 = vmatprep.subr.mxu0 %v2439
        %3487 = vmatpush1.msra.mxu0 %v2438
        %3488 = vmatprep.subr.mxu0 %v2435
        %3489 = vmatpush1.msra.mxu0 %v2434
        %3490 = vmatprep.subr.mxu0 %v2431
        %3491 = vmatpush1.msra.mxu0 %v2430
        %3492 = vmatprep.subr.mxu0 %v2427
        %3493 = vmatpush1.msra.mxu0 %v2426
        %3494 = vmatprep.subr.mxu0 %v2423
        %3495 = vmatpush1.msra.mxu0 %v2422
        %3496 = vmatprep.subr.mxu0 %v2419
        %3497 = vmatpush1.msra.mxu0 %v2418
        %3498 = vmatprep.subr.mxu0 %v2415
        %3499 = vmatpush1.msra.mxu0 %v2414
        %3500 = vmatprep.subr.mxu0 %v2411
        %3501 = vmatpush1.msra.mxu0 %v2410
        %3502 = vmatprep.subr.mxu0 %v2407
        %3503 = vmatpush1.msra.mxu0 %v2406
        %3504 = vmatprep.subr.mxu0 %v2403
        %3505 = vmatpush1.msra.mxu0 %v2402
        %3506 = vmatprep.subr.mxu0 %v2399
        %3507 = vmatpush1.msra.mxu0 %v2398
        %3508 = vmatprep.subr.mxu0 %v2395
        %3509 = vmatpush1.msra.mxu0 %v2394
        %3510 = vmatprep.subr.mxu0 %v2391
        %3511 = vmatpush1.msra.mxu0 %v2390
        %3512 = vmatprep.subr.mxu0 0.0
        %3513 = vmatpush2.msra.mxu0 0.0
        %3514 = vmatprep.subr.mxu0 0.0
        %3515 = vmatpush2.msra.mxu0 0.0
        %3516 = vmatprep.subr.mxu0 0.0
        %3517 = vmatpush2.msra.mxu0 0.0
        %3518 = vmatprep.subr.mxu0 0.0
        %3519 = vmatpush2.msra.mxu0 0.0
        %3520 = vmatprep.subr.mxu0 0.0
        %3521 = vmatpush2.msra.mxu0 0.0
        %3522 = vmatprep.subr.mxu0 0.0
        %3523 = vmatpush2.msra.mxu0 0.0
        %3524 = vmatprep.subr.mxu0 0.0
        %3525 = vmatpush2.msra.mxu0 0.0
        %3526 = vmatprep.subr.mxu0 0.0
        %3527 = vmatpush2.msra.mxu0 0.0
        %3528 = vmatprep.subr.mxu0 0.0
        %3529 = vmatpush2.msra.mxu0 0.0
        %3530 = vmatprep.subr.mxu0 0.0
        %3531 = vmatpush2.msra.mxu0 0.0
        %3532 = vmatprep.subr.mxu0 0.0
        %3533 = vmatpush2.msra.mxu0 0.0
        %3534 = vmatprep.subr.mxu0 0.0
        %3535 = vmatpush2.msra.mxu0 0.0
        %3536 = vmatprep.subr.mxu0 0.0
        %3537 = vmatpush2.msra.mxu0 0.0
        %3538 = vmatprep.subr.mxu0 0.0
        %3539 = vmatpush2.msra.mxu0 0.0
        %3540 = vmatprep.subr.mxu0 0.0
        %3541 = vmatpush2.msra.mxu0 0.0
        %3542 = vmatprep.subr.mxu0 0.0
        %3543 = vmatpush2.msra.mxu0 0.0
        %3544 = vmatprep.mubr.f32.mxu0 0.0
        %3545 = vmatmul.mubr.f32.gmra.mxu0 %v3403
        %v3546 = vpop.f32.mrf.mxu0
        %v3547 = vadd.f32 %v3407, %v3546
        %v3548 = vpop.f32.mrf.mxu0
        %v3549 = vadd.f32 %v3408, %v3548
        %3550 = vdwg.mxu0
        %v3551 = vmul.f32 %v3476, 0.5
        %v3552 = vmul.f32 %v3478, 0.5
        %v3553 = vmul.f32 %v3547, 0.5
        %v3554 = vtanh.pop %v3551
        %v3555 = vtanh.pop %v3552
        %v3556 = vtanh.pop %v3553
        %v3557 = vmul.f32 %v3554, 0.5
        %v3558 = vmul.f32 %v3555, 0.5
        %v3559 = vmul.f32 %v3556, 0.5
        %v3560 = vadd.f32 %v3557, 0.5
        %v3561 = vadd.f32 %v3558, 0.5
        %v3562 = vadd.f32 %v3559, 0.5
        %v3563 = vtanh.pop %v3549
        %v3564 = vmul.f32 %v3561, %v3401
        %v3565 = vmul.f32 %v3560, %v3563
        %v3566 = vadd.f32 %v3564, %v3565
        %v3567 = vtanh.pop %v3566
        %v3568 = vmul.f32 %v3562, %v3567
        %3569 = vst [vmem:[%s1817] sm:$0xff] %v3568
        %v3570 = vld [vmem:[%s1819] sm:$0xff]
        %v3571 = vld [vmem:[%s1819 + $0x8] sm:$0xff]
        %v3572 = vld [vmem:[%s1819 + $0x10] sm:$0xff]
        %v3573 = vld [vmem:[%s1819 + $0x18] sm:$0xff]
        %3574 = vmatprep.subr.mxu0 %v2449
        %3575 = vmatpush1.msra.mxu0 %v2448
        %3576 = vmatprep.subr.mxu0 %v2445
        %3577 = vmatpush1.msra.mxu0 %v2444
        %3578 = vmatprep.subr.mxu0 %v2441
        %3579 = vmatpush1.msra.mxu0 %v2440
        %3580 = vmatprep.subr.mxu0 %v2437
        %3581 = vmatpush1.msra.mxu0 %v2436
        %3582 = vmatprep.subr.mxu0 %v2433
        %3583 = vmatpush1.msra.mxu0 %v2432
        %3584 = vmatprep.subr.mxu0 %v2429
        %3585 = vmatpush1.msra.mxu0 %v2428
        %3586 = vmatprep.subr.mxu0 %v2425
        %3587 = vmatpush1.msra.mxu0 %v2424
        %3588 = vmatprep.subr.mxu0 %v2421
        %3589 = vmatpush1.msra.mxu0 %v2420
        %3590 = vmatprep.subr.mxu0 %v2417
        %3591 = vmatpush1.msra.mxu0 %v2416
        %3592 = vmatprep.subr.mxu0 %v2413
        %3593 = vmatpush1.msra.mxu0 %v2412
        %3594 = vmatprep.subr.mxu0 %v2409
        %3595 = vmatpush1.msra.mxu0 %v2408
        %3596 = vmatprep.subr.mxu0 %v2405
        %3597 = vmatpush1.msra.mxu0 %v2404
        %3598 = vmatprep.subr.mxu0 %v2401
        %3599 = vmatpush1.msra.mxu0 %v2400
        %3600 = vmatprep.subr.mxu0 %v2397
        %3601 = vmatpush1.msra.mxu0 %v2396
        %3602 = vmatprep.subr.mxu0 %v2393
        %3603 = vmatpush1.msra.mxu0 %v2392
        %3604 = vmatprep.subr.mxu0 %v2389
        %3605 = vmatpush1.msra.mxu0 %v2388
        %3606 = vmatprep.subr.mxu0 0.0
        %3607 = vmatpush2.msra.mxu0 0.0
        %3608 = vmatprep.subr.mxu0 0.0
        %3609 = vmatpush2.msra.mxu0 0.0
        %3610 = vmatprep.subr.mxu0 0.0
        %3611 = vmatpush2.msra.mxu0 0.0
        %3612 = vmatprep.subr.mxu0 0.0
        %3613 = vmatpush2.msra.mxu0 0.0
        %3614 = vmatprep.subr.mxu0 0.0
        %3615 = vmatpush2.msra.mxu0 0.0
        %3616 = vmatprep.subr.mxu0 0.0
        %3617 = vmatpush2.msra.mxu0 0.0
        %3618 = vmatprep.subr.mxu0 0.0
        %3619 = vmatpush2.msra.mxu0 0.0
        %3620 = vmatprep.subr.mxu0 0.0
        %3621 = vmatpush2.msra.mxu0 0.0
        %3622 = vmatprep.subr.mxu0 0.0
        %3623 = vmatpush2.msra.mxu0 0.0
        %3624 = vmatprep.subr.mxu0 0.0
        %3625 = vmatpush2.msra.mxu0 0.0
        %3626 = vmatprep.subr.mxu0 0.0
        %3627 = vmatpush2.msra.mxu0 0.0
        %3628 = vmatprep.subr.mxu0 0.0
        %3629 = vmatpush2.msra.mxu0 0.0
        %3630 = vmatprep.subr.mxu0 0.0
        %3631 = vmatpush2.msra.mxu0 0.0
        %3632 = vmatprep.subr.mxu0 0.0
        %3633 = vmatpush2.msra.mxu0 0.0
        %3634 = vmatprep.subr.mxu0 0.0
        %3635 = vmatpush2.msra.mxu0 0.0
        %3636 = vmatprep.subr.mxu0 0.0
        %3637 = vmatpush2.msra.mxu0 0.0
        %3638 = vmatprep.mubr.f32.mxu0 0.0
        %3639 = vmatmul.mubr.f32.gmra.mxu0 %v3568
        %v3640 = vpop.f32.mrf.mxu0
        %v3641 = vadd.f32 %v3570, %v3640
        %v3642 = vpop.f32.mrf.mxu0
        %v3643 = vadd.f32 %v3571, %v3642
        %3644 = vdwg.mxu0
        %3645 = vmatprep.subr.mxu0 %v2451
        %3646 = vmatpush1.msra.mxu0 %v2450
        %3647 = vmatprep.subr.mxu0 %v2447
        %3648 = vmatpush1.msra.mxu0 %v2446
        %3649 = vmatprep.subr.mxu0 %v2443
        %3650 = vmatpush1.msra.mxu0 %v2442
        %3651 = vmatprep.subr.mxu0 %v2439
        %3652 = vmatpush1.msra.mxu0 %v2438
        %3653 = vmatprep.subr.mxu0 %v2435
        %3654 = vmatpush1.msra.mxu0 %v2434
        %3655 = vmatprep.subr.mxu0 %v2431
        %3656 = vmatpush1.msra.mxu0 %v2430
        %3657 = vmatprep.subr.mxu0 %v2427
        %3658 = vmatpush1.msra.mxu0 %v2426
        %3659 = vmatprep.subr.mxu0 %v2423
        %3660 = vmatpush1.msra.mxu0 %v2422
        %3661 = vmatprep.subr.mxu0 %v2419
        %3662 = vmatpush1.msra.mxu0 %v2418
        %3663 = vmatprep.subr.mxu0 %v2415
        %3664 = vmatpush1.msra.mxu0 %v2414
        %3665 = vmatprep.subr.mxu0 %v2411
        %3666 = vmatpush1.msra.mxu0 %v2410
        %3667 = vmatprep.subr.mxu0 %v2407
        %3668 = vmatpush1.msra.mxu0 %v2406
        %3669 = vmatprep.subr.mxu0 %v2403
        %3670 = vmatpush1.msra.mxu0 %v2402
        %3671 = vmatprep.subr.mxu0 %v2399
        %3672 = vmatpush1.msra.mxu0 %v2398
        %3673 = vmatprep.subr.mxu0 %v2395
        %3674 = vmatpush1.msra.mxu0 %v2394
        %3675 = vmatprep.subr.mxu0 %v2391
        %3676 = vmatpush1.msra.mxu0 %v2390
        %3677 = vmatprep.subr.mxu0 0.0
        %3678 = vmatpush2.msra.mxu0 0.0
        %3679 = vmatprep.subr.mxu0 0.0
        %3680 = vmatpush2.msra.mxu0 0.0
        %3681 = vmatprep.subr.mxu0 0.0
        %3682 = vmatpush2.msra.mxu0 0.0
        %3683 = vmatprep.subr.mxu0 0.0
        %3684 = vmatpush2.msra.mxu0 0.0
        %3685 = vmatprep.subr.mxu0 0.0
        %3686 = vmatpush2.msra.mxu0 0.0
        %3687 = vmatprep.subr.mxu0 0.0
        %3688 = vmatpush2.msra.mxu0 0.0
        %3689 = vmatprep.subr.mxu0 0.0
        %3690 = vmatpush2.msra.mxu0 0.0
        %3691 = vmatprep.subr.mxu0 0.0
        %3692 = vmatpush2.msra.mxu0 0.0
        %3693 = vmatprep.subr.mxu0 0.0
        %3694 = vmatpush2.msra.mxu0 0.0
        %3695 = vmatprep.subr.mxu0 0.0
        %3696 = vmatpush2.msra.mxu0 0.0
        %3697 = vmatprep.subr.mxu0 0.0
        %3698 = vmatpush2.msra.mxu0 0.0
        %3699 = vmatprep.subr.mxu0 0.0
        %3700 = vmatpush2.msra.mxu0 0.0
        %3701 = vmatprep.subr.mxu0 0.0
        %3702 = vmatpush2.msra.mxu0 0.0
        %3703 = vmatprep.subr.mxu0 0.0
        %3704 = vmatpush2.msra.mxu0 0.0
        %3705 = vmatprep.subr.mxu0 0.0
        %3706 = vmatpush2.msra.mxu0 0.0
        %3707 = vmatprep.subr.mxu0 0.0
        %3708 = vmatpush2.msra.mxu0 0.0
        %3709 = vmatprep.mubr.f32.mxu0 0.0
        %3710 = vmatmul.mubr.f32.gmra.mxu0 %v3568
        %v3711 = vpop.f32.mrf.mxu0
        %v3712 = vadd.f32 %v3572, %v3711
        %v3713 = vpop.f32.mrf.mxu0
        %v3714 = vadd.f32 %v3573, %v3713
        %3715 = vdwg.mxu0
        %v3716 = vmul.f32 %v3641, 0.5
        %v3717 = vmul.f32 %v3643, 0.5
        %v3718 = vmul.f32 %v3712, 0.5
        %v3719 = vtanh.pop %v3716
        %v3720 = vtanh.pop %v3717
        %v3721 = vtanh.pop %v3718
        %v3722 = vmul.f32 %v3719, 0.5
        %v3723 = vmul.f32 %v3720, 0.5
        %v3724 = vmul.f32 %v3721, 0.5
        %v3725 = vadd.f32 %v3722, 0.5
        %v3726 = vadd.f32 %v3723, 0.5
        %v3727 = vadd.f32 %v3724, 0.5
        %v3728 = vtanh.pop %v3714
        %v3729 = vmul.f32 %v3726, %v3566
        %v3730 = vmul.f32 %v3725, %v3728
        %v3731 = vadd.f32 %v3729, %v3730
        %v3732 = vtanh.pop %v3731
        %v3733 = vmul.f32 %v3727, %v3732
        %3734 = vst [vmem:[%s1984] sm:$0xff] %v3733
        %v3735 = vld [vmem:[%s1986] sm:$0xff]
        %v3736 = vld [vmem:[%s1986 + $0x8] sm:$0xff]
        %v3737 = vld [vmem:[%s1986 + $0x10] sm:$0xff]
        %v3738 = vld [vmem:[%s1986 + $0x18] sm:$0xff]
        %3739 = vmatprep.subr.mxu0 %v2449
        %3740 = vmatpush1.msra.mxu0 %v2448
        %3741 = vmatprep.subr.mxu0 %v2445
        %3742 = vmatpush1.msra.mxu0 %v2444
        %3743 = vmatprep.subr.mxu0 %v2441
        %3744 = vmatpush1.msra.mxu0 %v2440
        %3745 = vmatprep.subr.mxu0 %v2437
        %3746 = vmatpush1.msra.mxu0 %v2436
        %3747 = vmatprep.subr.mxu0 %v2433
        %3748 = vmatpush1.msra.mxu0 %v2432
        %3749 = vmatprep.subr.mxu0 %v2429
        %3750 = vmatpush1.msra.mxu0 %v2428
        %3751 = vmatprep.subr.mxu0 %v2425
        %3752 = vmatpush1.msra.mxu0 %v2424
        %3753 = vmatprep.subr.mxu0 %v2421
        %3754 = vmatpush1.msra.mxu0 %v2420
        %3755 = vmatprep.subr.mxu0 %v2417
        %3756 = vmatpush1.msra.mxu0 %v2416
        %3757 = vmatprep.subr.mxu0 %v2413
        %3758 = vmatpush1.msra.mxu0 %v2412
        %3759 = vmatprep.subr.mxu0 %v2409
        %3760 = vmatpush1.msra.mxu0 %v2408
        %3761 = vmatprep.subr.mxu0 %v2405
        %3762 = vmatpush1.msra.mxu0 %v2404
        %3763 = vmatprep.subr.mxu0 %v2401
        %3764 = vmatpush1.msra.mxu0 %v2400
        %3765 = vmatprep.subr.mxu0 %v2397
        %3766 = vmatpush1.msra.mxu0 %v2396
        %3767 = vmatprep.subr.mxu0 %v2393
        %3768 = vmatpush1.msra.mxu0 %v2392
        %3769 = vmatprep.subr.mxu0 %v2389
        %3770 = vmatpush1.msra.mxu0 %v2388
        %3771 = vmatprep.subr.mxu0 0.0
        %3772 = vmatpush2.msra.mxu0 0.0
        %3773 = vmatprep.subr.mxu0 0.0
        %3774 = vmatpush2.msra.mxu0 0.0
        %3775 = vmatprep.subr.mxu0 0.0
        %3776 = vmatpush2.msra.mxu0 0.0
        %3777 = vmatprep.subr.mxu0 0.0
        %3778 = vmatpush2.msra.mxu0 0.0
        %3779 = vmatprep.subr.mxu0 0.0
        %3780 = vmatpush2.msra.mxu0 0.0
        %3781 = vmatprep.subr.mxu0 0.0
        %3782 = vmatpush2.msra.mxu0 0.0
        %3783 = vmatprep.subr.mxu0 0.0
        %3784 = vmatpush2.msra.mxu0 0.0
        %3785 = vmatprep.subr.mxu0 0.0
        %3786 = vmatpush2.msra.mxu0 0.0
        %3787 = vmatprep.subr.mxu0 0.0
        %3788 = vmatpush2.msra.mxu0 0.0
        %3789 = vmatprep.subr.mxu0 0.0
        %3790 = vmatpush2.msra.mxu0 0.0
        %3791 = vmatprep.subr.mxu0 0.0
        %3792 = vmatpush2.msra.mxu0 0.0
        %3793 = vmatprep.subr.mxu0 0.0
        %3794 = vmatpush2.msra.mxu0 0.0
        %3795 = vmatprep.subr.mxu0 0.0
        %3796 = vmatpush2.msra.mxu0 0.0
        %3797 = vmatprep.subr.mxu0 0.0
        %3798 = vmatpush2.msra.mxu0 0.0
        %3799 = vmatprep.subr.mxu0 0.0
        %3800 = vmatpush2.msra.mxu0 0.0
        %3801 = vmatprep.subr.mxu0 0.0
        %3802 = vmatpush2.msra.mxu0 0.0
        %3803 = vmatprep.mubr.f32.mxu0 0.0
        %3804 = vmatmul.mubr.f32.gmra.mxu0 %v3733
        %v3805 = vpop.f32.mrf.mxu0
        %v3806 = vadd.f32 %v3735, %v3805
        %v3807 = vpop.f32.mrf.mxu0
        %v3808 = vadd.f32 %v3736, %v3807
        %3809 = vdwg.mxu0
        %3810 = vmatprep.subr.mxu0 %v2451
        %3811 = vmatpush1.msra.mxu0 %v2450
        %3812 = vmatprep.subr.mxu0 %v2447
        %3813 = vmatpush1.msra.mxu0 %v2446
        %3814 = vmatprep.subr.mxu0 %v2443
        %3815 = vmatpush1.msra.mxu0 %v2442
        %3816 = vmatprep.subr.mxu0 %v2439
        %3817 = vmatpush1.msra.mxu0 %v2438
        %3818 = vmatprep.subr.mxu0 %v2435
        %3819 = vmatpush1.msra.mxu0 %v2434
        %3820 = vmatprep.subr.mxu0 %v2431
        %3821 = vmatpush1.msra.mxu0 %v2430
        %3822 = vmatprep.subr.mxu0 %v2427
        %3823 = vmatpush1.msra.mxu0 %v2426
        %3824 = vmatprep.subr.mxu0 %v2423
        %3825 = vmatpush1.msra.mxu0 %v2422
        %3826 = vmatprep.subr.mxu0 %v2419
        %3827 = vmatpush1.msra.mxu0 %v2418
        %3828 = vmatprep.subr.mxu0 %v2415
        %3829 = vmatpush1.msra.mxu0 %v2414
        %3830 = vmatprep.subr.mxu0 %v2411
        %3831 = vmatpush1.msra.mxu0 %v2410
        %3832 = vmatprep.subr.mxu0 %v2407
        %3833 = vmatpush1.msra.mxu0 %v2406
        %3834 = vmatprep.subr.mxu0 %v2403
        %3835 = vmatpush1.msra.mxu0 %v2402
        %3836 = vmatprep.subr.mxu0 %v2399
        %3837 = vmatpush1.msra.mxu0 %v2398
        %3838 = vmatprep.subr.mxu0 %v2395
        %3839 = vmatpush1.msra.mxu0 %v2394
        %3840 = vmatprep.subr.mxu0 %v2391
        %3841 = vmatpush1.msra.mxu0 %v2390
        %3842 = vmatprep.subr.mxu0 0.0
        %3843 = vmatpush2.msra.mxu0 0.0
        %3844 = vmatprep.subr.mxu0 0.0
        %3845 = vmatpush2.msra.mxu0 0.0
        %3846 = vmatprep.subr.mxu0 0.0
        %3847 = vmatpush2.msra.mxu0 0.0
        %3848 = vmatprep.subr.mxu0 0.0
        %3849 = vmatpush2.msra.mxu0 0.0
        %3850 = vmatprep.subr.mxu0 0.0
        %3851 = vmatpush2.msra.mxu0 0.0
        %3852 = vmatprep.subr.mxu0 0.0
        %3853 = vmatpush2.msra.mxu0 0.0
        %3854 = vmatprep.subr.mxu0 0.0
        %3855 = vmatpush2.msra.mxu0 0.0
        %3856 = vmatprep.subr.mxu0 0.0
        %3857 = vmatpush2.msra.mxu0 0.0
        %3858 = vmatprep.subr.mxu0 0.0
        %3859 = vmatpush2.msra.mxu0 0.0
        %3860 = vmatprep.subr.mxu0 0.0
        %3861 = vmatpush2.msra.mxu0 0.0
        %3862 = vmatprep.subr.mxu0 0.0
        %3863 = vmatpush2.msra.mxu0 0.0
        %3864 = vmatprep.subr.mxu0 0.0
        %3865 = vmatpush2.msra.mxu0 0.0
        %3866 = vmatprep.subr.mxu0 0.0
        %3867 = vmatpush2.msra.mxu0 0.0
        %3868 = vmatprep.subr.mxu0 0.0
        %3869 = vmatpush2.msra.mxu0 0.0
        %3870 = vmatprep.subr.mxu0 0.0
        %3871 = vmatpush2.msra.mxu0 0.0
        %3872 = vmatprep.subr.mxu0 0.0
        %3873 = vmatpush2.msra.mxu0 0.0
        %3874 = vmatprep.mubr.f32.mxu0 0.0
        %3875 = vmatmul.mubr.f32.gmra.mxu0 %v3733
        %v3876 = vpop.f32.mrf.mxu0
        %v3877 = vadd.f32 %v3737, %v3876
        %v3878 = vpop.f32.mrf.mxu0
        %v3879 = vadd.f32 %v3738, %v3878
        %3880 = vdwg.mxu0
        %v3881 = vmul.f32 %v3806, 0.5
        %v3882 = vmul.f32 %v3808, 0.5
        %v3883 = vmul.f32 %v3877, 0.5
        %v3884 = vtanh.pop %v3881
        %v3885 = vtanh.pop %v3882
        %v3886 = vtanh.pop %v3883
        %v3887 = vmul.f32 %v3884, 0.5
        %v3888 = vmul.f32 %v3885, 0.5
        %v3889 = vmul.f32 %v3886, 0.5
        %v3890 = vadd.f32 %v3887, 0.5
        %v3891 = vadd.f32 %v3888, 0.5
        %v3892 = vadd.f32 %v3889, 0.5
        %v3893 = vtanh.pop %v3879
        %v3894 = vmul.f32 %v3891, %v3731
        %v3895 = vmul.f32 %v3890, %v3893
        %v3896 = vadd.f32 %v3894, %v3895
        %v3897 = vtanh.pop %v3896
        %v3898 = vmul.f32 %v3892, %v3897
        %3899 = vst [vmem:[%s2151] sm:$0xff] %v3898
        %v3900 = vld [vmem:[%s2153] sm:$0xff]
        %v3901 = vld [vmem:[%s2153 + $0x8] sm:$0xff]
        %v3902 = vld [vmem:[%s2153 + $0x10] sm:$0xff]
        %v3903 = vld [vmem:[%s2153 + $0x18] sm:$0xff]
        %3904 = vmatprep.subr.mxu0 %v2449
        %3905 = vmatpush1.msra.mxu0 %v2448
        %3906 = vmatprep.subr.mxu0 %v2445
        %3907 = vmatpush1.msra.mxu0 %v2444
        %3908 = vmatprep.subr.mxu0 %v2441
        %3909 = vmatpush1.msra.mxu0 %v2440
        %3910 = vmatprep.subr.mxu0 %v2437
        %3911 = vmatpush1.msra.mxu0 %v2436
        %3912 = vmatprep.subr.mxu0 %v2433
        %3913 = vmatpush1.msra.mxu0 %v2432
        %3914 = vmatprep.subr.mxu0 %v2429
        %3915 = vmatpush1.msra.mxu0 %v2428
        %3916 = vmatprep.subr.mxu0 %v2425
        %3917 = vmatpush1.msra.mxu0 %v2424
        %3918 = vmatprep.subr.mxu0 %v2421
        %3919 = vmatpush1.msra.mxu0 %v2420
        %3920 = vmatprep.subr.mxu0 %v2417
        %3921 = vmatpush1.msra.mxu0 %v2416
        %3922 = vmatprep.subr.mxu0 %v2413
        %3923 = vmatpush1.msra.mxu0 %v2412
        %3924 = vmatprep.subr.mxu0 %v2409
        %3925 = vmatpush1.msra.mxu0 %v2408
        %3926 = vmatprep.subr.mxu0 %v2405
        %3927 = vmatpush1.msra.mxu0 %v2404
        %3928 = vmatprep.subr.mxu0 %v2401
        %3929 = vmatpush1.msra.mxu0 %v2400
        %3930 = vmatprep.subr.mxu0 %v2397
        %3931 = vmatpush1.msra.mxu0 %v2396
        %3932 = vmatprep.subr.mxu0 %v2393
        %3933 = vmatpush1.msra.mxu0 %v2392
        %3934 = vmatprep.subr.mxu0 %v2389
        %3935 = vmatpush1.msra.mxu0 %v2388
        %3936 = vmatprep.subr.mxu0 0.0
        %3937 = vmatpush2.msra.mxu0 0.0
        %3938 = vmatprep.subr.mxu0 0.0
        %3939 = vmatpush2.msra.mxu0 0.0
        %3940 = vmatprep.subr.mxu0 0.0
        %3941 = vmatpush2.msra.mxu0 0.0
        %3942 = vmatprep.subr.mxu0 0.0
        %3943 = vmatpush2.msra.mxu0 0.0
        %3944 = vmatprep.subr.mxu0 0.0
        %3945 = vmatpush2.msra.mxu0 0.0
        %3946 = vmatprep.subr.mxu0 0.0
        %3947 = vmatpush2.msra.mxu0 0.0
        %3948 = vmatprep.subr.mxu0 0.0
        %3949 = vmatpush2.msra.mxu0 0.0
        %3950 = vmatprep.subr.mxu0 0.0
        %3951 = vmatpush2.msra.mxu0 0.0
        %3952 = vmatprep.subr.mxu0 0.0
        %3953 = vmatpush2.msra.mxu0 0.0
        %3954 = vmatprep.subr.mxu0 0.0
        %3955 = vmatpush2.msra.mxu0 0.0
        %3956 = vmatprep.subr.mxu0 0.0
        %3957 = vmatpush2.msra.mxu0 0.0
        %3958 = vmatprep.subr.mxu0 0.0
        %3959 = vmatpush2.msra.mxu0 0.0
        %3960 = vmatprep.subr.mxu0 0.0
        %3961 = vmatpush2.msra.mxu0 0.0
        %3962 = vmatprep.subr.mxu0 0.0
        %3963 = vmatpush2.msra.mxu0 0.0
        %3964 = vmatprep.subr.mxu0 0.0
        %3965 = vmatpush2.msra.mxu0 0.0
        %3966 = vmatprep.subr.mxu0 0.0
        %3967 = vmatpush2.msra.mxu0 0.0
        %3968 = vmatprep.mubr.f32.mxu0 0.0
        %3969 = vmatmul.mubr.f32.gmra.mxu0 %v3898
        %v3970 = vpop.f32.mrf.mxu0
        %v3971 = vadd.f32 %v3900, %v3970
        %v3972 = vpop.f32.mrf.mxu0
        %v3973 = vadd.f32 %v3901, %v3972
        %3974 = vdwg.mxu0
        %3975 = vmatprep.subr.mxu0 %v2451
        %3976 = vmatpush1.msra.mxu0 %v2450
        %3977 = vmatprep.subr.mxu0 %v2447
        %3978 = vmatpush1.msra.mxu0 %v2446
        %3979 = vmatprep.subr.mxu0 %v2443
        %3980 = vmatpush1.msra.mxu0 %v2442
        %3981 = vmatprep.subr.mxu0 %v2439
        %3982 = vmatpush1.msra.mxu0 %v2438
        %3983 = vmatprep.subr.mxu0 %v2435
        %3984 = vmatpush1.msra.mxu0 %v2434
        %3985 = vmatprep.subr.mxu0 %v2431
        %3986 = vmatpush1.msra.mxu0 %v2430
        %3987 = vmatprep.subr.mxu0 %v2427
        %3988 = vmatpush1.msra.mxu0 %v2426
        %3989 = vmatprep.subr.mxu0 %v2423
        %3990 = vmatpush1.msra.mxu0 %v2422
        %3991 = vmatprep.subr.mxu0 %v2419
        %3992 = vmatpush1.msra.mxu0 %v2418
        %3993 = vmatprep.subr.mxu0 %v2415
        %3994 = vmatpush1.msra.mxu0 %v2414
        %3995 = vmatprep.subr.mxu0 %v2411
        %3996 = vmatpush1.msra.mxu0 %v2410
        %3997 = vmatprep.subr.mxu0 %v2407
        %3998 = vmatpush1.msra.mxu0 %v2406
        %3999 = vmatprep.subr.mxu0 %v2403
        %4000 = vmatpush1.msra.mxu0 %v2402
        %4001 = vmatprep.subr.mxu0 %v2399
        %4002 = vmatpush1.msra.mxu0 %v2398
        %4003 = vmatprep.subr.mxu0 %v2395
        %4004 = vmatpush1.msra.mxu0 %v2394
        %4005 = vmatprep.subr.mxu0 %v2391
        %4006 = vmatpush1.msra.mxu0 %v2390
        %4007 = vmatprep.subr.mxu0 0.0
        %4008 = vmatpush2.msra.mxu0 0.0
        %4009 = vmatprep.subr.mxu0 0.0
        %4010 = vmatpush2.msra.mxu0 0.0
        %4011 = vmatprep.subr.mxu0 0.0
        %4012 = vmatpush2.msra.mxu0 0.0
        %4013 = vmatprep.subr.mxu0 0.0
        %4014 = vmatpush2.msra.mxu0 0.0
        %4015 = vmatprep.subr.mxu0 0.0
        %4016 = vmatpush2.msra.mxu0 0.0
        %4017 = vmatprep.subr.mxu0 0.0
        %4018 = vmatpush2.msra.mxu0 0.0
        %4019 = vmatprep.subr.mxu0 0.0
        %4020 = vmatpush2.msra.mxu0 0.0
        %4021 = vmatprep.subr.mxu0 0.0
        %4022 = vmatpush2.msra.mxu0 0.0
        %4023 = vmatprep.subr.mxu0 0.0
        %4024 = vmatpush2.msra.mxu0 0.0
        %4025 = vmatprep.subr.mxu0 0.0
        %4026 = vmatpush2.msra.mxu0 0.0
        %4027 = vmatprep.subr.mxu0 0.0
        %4028 = vmatpush2.msra.mxu0 0.0
        %4029 = vmatprep.subr.mxu0 0.0
        %4030 = vmatpush2.msra.mxu0 0.0
        %4031 = vmatprep.subr.mxu0 0.0
        %4032 = vmatpush2.msra.mxu0 0.0
        %4033 = vmatprep.subr.mxu0 0.0
        %4034 = vmatpush2.msra.mxu0 0.0
        %4035 = vmatprep.subr.mxu0 0.0
        %4036 = vmatpush2.msra.mxu0 0.0
        %4037 = vmatprep.subr.mxu0 0.0
        %4038 = vmatpush2.msra.mxu0 0.0
        %4039 = vmatprep.mubr.f32.mxu0 0.0
        %4040 = vmatmul.mubr.f32.gmra.mxu0 %v3898
        %v4041 = vpop.f32.mrf.mxu0
        %v4042 = vadd.f32 %v3902, %v4041
        %v4043 = vpop.f32.mrf.mxu0
        %v4044 = vadd.f32 %v3903, %v4043
        %4045 = vdwg.mxu0
        %v4046 = vmul.f32 %v3971, 0.5
        %v4047 = vmul.f32 %v3973, 0.5
        %v4048 = vmul.f32 %v4042, 0.5
        %v4049 = vtanh.pop %v4046
        %v4050 = vtanh.pop %v4047
        %v4051 = vtanh.pop %v4048
        %v4052 = vmul.f32 %v4049, 0.5
        %v4053 = vmul.f32 %v4050, 0.5
        %v4054 = vmul.f32 %v4051, 0.5
        %v4055 = vadd.f32 %v4052, 0.5
        %v4056 = vadd.f32 %v4053, 0.5
        %v4057 = vadd.f32 %v4054, 0.5
        %v4058 = vtanh.pop %v4044
        %v4059 = vmul.f32 %v4056, %v3896
        %v4060 = vmul.f32 %v4055, %v4058
        %v4061 = vadd.f32 %v4059, %v4060
        %v4062 = vtanh.pop %v4061
        %v4063 = vmul.f32 %v4057, %v4062
        %4064 = vst [vmem:[%s2318] sm:$0xff] %v4063
        %4065 = vst [vmem:[%s2741] sm:$0xff] %v4063
        %4066 = vst [vmem:[%s2743] sm:$0xff] %v4061
        %s4067 = scalar_lea.vmem [#allocation9], 1024
        %v4068 = vld [vmem:[%s4067] sm:$0xff]
        %v4069 = vld [vmem:[%s4067 + $0x8] sm:$0xff]
        %v4070 = vld [vmem:[%s4067 + $0x10] sm:$0xff]
        %v4071 = vld [vmem:[%s4067 + $0x18] sm:$0xff]
        %v4072 = vld [vmem:[%s4067 + $0x20] sm:$0xff]
        %v4073 = vld [vmem:[%s4067 + $0x28] sm:$0xff]
        %v4074 = vld [vmem:[%s4067 + $0x30] sm:$0xff]
        %v4075 = vld [vmem:[%s4067 + $0x38] sm:$0xff]
        %v4076 = vld [vmem:[%s4067 + $0x40] sm:$0xff]
        %v4077 = vld [vmem:[%s4067 + $0x48] sm:$0xff]
        %v4078 = vld [vmem:[%s4067 + $0x50] sm:$0xff]
        %v4079 = vld [vmem:[%s4067 + $0x58] sm:$0xff]
        %v4080 = vld [vmem:[%s4067 + $0x60] sm:$0xff]
        %v4081 = vld [vmem:[%s4067 + $0x68] sm:$0xff]
        %v4082 = vld [vmem:[%s4067 + $0x70] sm:$0xff]
        %v4083 = vld [vmem:[%s4067 + $0x78] sm:$0xff]
        %v4084 = vld [vmem:[%s4067 + $0x80] sm:$0xff]
        %v4085 = vld [vmem:[%s4067 + $0x88] sm:$0xff]
        %v4086 = vld [vmem:[%s4067 + $0x90] sm:$0xff]
        %v4087 = vld [vmem:[%s4067 + $0x98] sm:$0xff]
        %v4088 = vld [vmem:[%s4067 + $0xa0] sm:$0xff]
        %v4089 = vld [vmem:[%s4067 + $0xa8] sm:$0xff]
        %v4090 = vld [vmem:[%s4067 + $0xb0] sm:$0xff]
        %v4091 = vld [vmem:[%s4067 + $0xb8] sm:$0xff]
        %v4092 = vld [vmem:[%s4067 + $0xc0] sm:$0xff]
        %v4093 = vld [vmem:[%s4067 + $0xc8] sm:$0xff]
        %v4094 = vld [vmem:[%s4067 + $0xd0] sm:$0xff]
        %v4095 = vld [vmem:[%s4067 + $0xd8] sm:$0xff]
        %v4096 = vld [vmem:[%s4067 + $0xe0] sm:$0xff]
        %v4097 = vld [vmem:[%s4067 + $0xe8] sm:$0xff]
        %v4098 = vld [vmem:[%s4067 + $0xf0] sm:$0xff]
        %v4099 = vld [vmem:[%s4067 + $0xf8] sm:$0xff]
        %v4100 = vld [vmem:[%s4067 + $0x100] sm:$0xff]
        %v4101 = vld [vmem:[%s4067 + $0x108] sm:$0xff]
        %v4102 = vld [vmem:[%s4067 + $0x110] sm:$0xff]
        %v4103 = vld [vmem:[%s4067 + $0x118] sm:$0xff]
        %v4104 = vld [vmem:[%s4067 + $0x120] sm:$0xff]
        %v4105 = vld [vmem:[%s4067 + $0x128] sm:$0xff]
        %v4106 = vld [vmem:[%s4067 + $0x130] sm:$0xff]
        %v4107 = vld [vmem:[%s4067 + $0x138] sm:$0xff]
        %v4108 = vld [vmem:[%s4067 + $0x140] sm:$0xff]
        %v4109 = vld [vmem:[%s4067 + $0x148] sm:$0xff]
        %v4110 = vld [vmem:[%s4067 + $0x150] sm:$0xff]
        %v4111 = vld [vmem:[%s4067 + $0x158] sm:$0xff]
        %v4112 = vld [vmem:[%s4067 + $0x160] sm:$0xff]
        %v4113 = vld [vmem:[%s4067 + $0x168] sm:$0xff]
        %v4114 = vld [vmem:[%s4067 + $0x170] sm:$0xff]
        %v4115 = vld [vmem:[%s4067 + $0x178] sm:$0xff]
        %v4116 = vld [vmem:[%s4067 + $0x180] sm:$0xff]
        %v4117 = vld [vmem:[%s4067 + $0x188] sm:$0xff]
        %v4118 = vld [vmem:[%s4067 + $0x190] sm:$0xff]
        %v4119 = vld [vmem:[%s4067 + $0x198] sm:$0xff]
        %v4120 = vld [vmem:[%s4067 + $0x1a0] sm:$0xff]
        %v4121 = vld [vmem:[%s4067 + $0x1a8] sm:$0xff]
        %v4122 = vld [vmem:[%s4067 + $0x1b0] sm:$0xff]
        %v4123 = vld [vmem:[%s4067 + $0x1b8] sm:$0xff]
        %v4124 = vld [vmem:[%s4067 + $0x1c0] sm:$0xff]
        %v4125 = vld [vmem:[%s4067 + $0x1c8] sm:$0xff]
        %v4126 = vld [vmem:[%s4067 + $0x1d0] sm:$0xff]
        %v4127 = vld [vmem:[%s4067 + $0x1d8] sm:$0xff]
        %v4128 = vld [vmem:[%s4067 + $0x1e0] sm:$0xff]
        %v4129 = vld [vmem:[%s4067 + $0x1e8] sm:$0xff]
        %v4130 = vld [vmem:[%s4067 + $0x1f0] sm:$0xff]
        %v4131 = vld [vmem:[%s4067 + $0x1f8] sm:$0xff]
        %s4132 = scalar_lea.vmem [#allocation11], 1024
        %v4133 = vld [vmem:[%s4132] sm:$0xff]
        %v4134 = vld [vmem:[%s4132 + $0x8] sm:$0xff]
        %v4135 = vld [vmem:[%s4132 + $0x10] sm:$0xff]
        %v4136 = vld [vmem:[%s4132 + $0x18] sm:$0xff]
        %v4137 = vld [vmem:[%s4132 + $0x20] sm:$0xff]
        %v4138 = vld [vmem:[%s4132 + $0x28] sm:$0xff]
        %v4139 = vld [vmem:[%s4132 + $0x30] sm:$0xff]
        %v4140 = vld [vmem:[%s4132 + $0x38] sm:$0xff]
        %v4141 = vld [vmem:[%s4132 + $0x40] sm:$0xff]
        %v4142 = vld [vmem:[%s4132 + $0x48] sm:$0xff]
        %v4143 = vld [vmem:[%s4132 + $0x50] sm:$0xff]
        %v4144 = vld [vmem:[%s4132 + $0x58] sm:$0xff]
        %v4145 = vld [vmem:[%s4132 + $0x60] sm:$0xff]
        %v4146 = vld [vmem:[%s4132 + $0x68] sm:$0xff]
        %v4147 = vld [vmem:[%s4132 + $0x70] sm:$0xff]
        %v4148 = vld [vmem:[%s4132 + $0x78] sm:$0xff]
        %v4149 = vld [vmem:[%s4132 + $0x80] sm:$0xff]
        %v4150 = vld [vmem:[%s4132 + $0x88] sm:$0xff]
        %v4151 = vld [vmem:[%s4132 + $0x90] sm:$0xff]
        %v4152 = vld [vmem:[%s4132 + $0x98] sm:$0xff]
        %v4153 = vld [vmem:[%s4132 + $0xa0] sm:$0xff]
        %v4154 = vld [vmem:[%s4132 + $0xa8] sm:$0xff]
        %v4155 = vld [vmem:[%s4132 + $0xb0] sm:$0xff]
        %v4156 = vld [vmem:[%s4132 + $0xb8] sm:$0xff]
        %v4157 = vld [vmem:[%s4132 + $0xc0] sm:$0xff]
        %v4158 = vld [vmem:[%s4132 + $0xc8] sm:$0xff]
        %v4159 = vld [vmem:[%s4132 + $0xd0] sm:$0xff]
        %v4160 = vld [vmem:[%s4132 + $0xd8] sm:$0xff]
        %v4161 = vld [vmem:[%s4132 + $0xe0] sm:$0xff]
        %v4162 = vld [vmem:[%s4132 + $0xe8] sm:$0xff]
        %v4163 = vld [vmem:[%s4132 + $0xf0] sm:$0xff]
        %v4164 = vld [vmem:[%s4132 + $0xf8] sm:$0xff]
        %v4165 = vld [vmem:[%s4132 + $0x100] sm:$0xff]
        %v4166 = vld [vmem:[%s4132 + $0x108] sm:$0xff]
        %v4167 = vld [vmem:[%s4132 + $0x110] sm:$0xff]
        %v4168 = vld [vmem:[%s4132 + $0x118] sm:$0xff]
        %v4169 = vld [vmem:[%s4132 + $0x120] sm:$0xff]
        %v4170 = vld [vmem:[%s4132 + $0x128] sm:$0xff]
        %v4171 = vld [vmem:[%s4132 + $0x130] sm:$0xff]
        %v4172 = vld [vmem:[%s4132 + $0x138] sm:$0xff]
        %v4173 = vld [vmem:[%s4132 + $0x140] sm:$0xff]
        %v4174 = vld [vmem:[%s4132 + $0x148] sm:$0xff]
        %v4175 = vld [vmem:[%s4132 + $0x150] sm:$0xff]
        %v4176 = vld [vmem:[%s4132 + $0x158] sm:$0xff]
        %v4177 = vld [vmem:[%s4132 + $0x160] sm:$0xff]
        %v4178 = vld [vmem:[%s4132 + $0x168] sm:$0xff]
        %v4179 = vld [vmem:[%s4132 + $0x170] sm:$0xff]
        %v4180 = vld [vmem:[%s4132 + $0x178] sm:$0xff]
        %v4181 = vld [vmem:[%s4132 + $0x180] sm:$0xff]
        %v4182 = vld [vmem:[%s4132 + $0x188] sm:$0xff]
        %v4183 = vld [vmem:[%s4132 + $0x190] sm:$0xff]
        %v4184 = vld [vmem:[%s4132 + $0x198] sm:$0xff]
        %v4185 = vld [vmem:[%s4132 + $0x1a0] sm:$0xff]
        %v4186 = vld [vmem:[%s4132 + $0x1a8] sm:$0xff]
        %v4187 = vld [vmem:[%s4132 + $0x1b0] sm:$0xff]
        %v4188 = vld [vmem:[%s4132 + $0x1b8] sm:$0xff]
        %v4189 = vld [vmem:[%s4132 + $0x1c0] sm:$0xff]
        %v4190 = vld [vmem:[%s4132 + $0x1c8] sm:$0xff]
        %v4191 = vld [vmem:[%s4132 + $0x1d0] sm:$0xff]
        %v4192 = vld [vmem:[%s4132 + $0x1d8] sm:$0xff]
        %v4193 = vld [vmem:[%s4132 + $0x1e0] sm:$0xff]
        %v4194 = vld [vmem:[%s4132 + $0x1e8] sm:$0xff]
        %v4195 = vld [vmem:[%s4132 + $0x1f0] sm:$0xff]
        %v4196 = vld [vmem:[%s4132 + $0x1f8] sm:$0xff]
        %s4197 = scalar_lea.vmem [#allocation12], 8
        %v4198 = vld [vmem:[%s4197] sm:$0xf]
        %v4199 = vld [vmem:[#allocation4] sm:$0xff]
        %v4200 = vld [vmem:[#allocation4 + $0x8] sm:$0xff]
        %v4201 = vld [vmem:[#allocation4 + $0x10] sm:$0xff]
        %v4202 = vld [vmem:[#allocation4 + $0x18] sm:$0xff]
        %v4203 = vld [vmem:[#allocation4 + $0x20] sm:$0xff]
        %v4204 = vld [vmem:[#allocation4 + $0x28] sm:$0xff]
        %v4205 = vld [vmem:[#allocation4 + $0x30] sm:$0xff]
        %v4206 = vld [vmem:[#allocation4 + $0x38] sm:$0xff]
        %v4208 = vlaneseq
        %v4209 = vshrl.u32 %v4208, 7
        %v4210 = vsub.s32 0, %v4209
        %v4211 = vrot.slane %v4198, %v4210
        %v4212 = vlaneseq
        %v4213 = vshrl.u32 %v4212, 7
        %v4214 = vsub.s32 1, %v4213
        %v4215 = vrot.slane %v4198, %v4214
        %v4216 = vlaneseq
        %v4217 = vshrl.u32 %v4216, 7
        %v4218 = vsub.s32 2, %v4217
        %v4219 = vrot.slane %v4198, %v4218
        %v4220 = vlaneseq
        %v4221 = vshrl.u32 %v4220, 7
        %v4222 = vsub.s32 3, %v4221
        %v4223 = vrot.slane %v4198, %v4222
        %4228 = vmatprep.subr.mxu0 %v4129
        %4229 = vmatpush1.msra.mxu0 %v4128
        %4230 = vmatprep.subr.mxu0 %v4125
        %4231 = vmatpush1.msra.mxu0 %v4124
        %4232 = vmatprep.subr.mxu0 %v4121
        %4233 = vmatpush1.msra.mxu0 %v4120
        %4234 = vmatprep.subr.mxu0 %v4117
        %4235 = vmatpush1.msra.mxu0 %v4116
        %4236 = vmatprep.subr.mxu0 %v4113
        %4237 = vmatpush1.msra.mxu0 %v4112
        %4238 = vmatprep.subr.mxu0 %v4109
        %4239 = vmatpush1.msra.mxu0 %v4108
        %4240 = vmatprep.subr.mxu0 %v4105
        %4241 = vmatpush1.msra.mxu0 %v4104
        %4242 = vmatprep.subr.mxu0 %v4101
        %4243 = vmatpush1.msra.mxu0 %v4100
        %4244 = vmatprep.subr.mxu0 %v4097
        %4245 = vmatpush1.msra.mxu0 %v4096
        %4246 = vmatprep.subr.mxu0 %v4093
        %4247 = vmatpush1.msra.mxu0 %v4092
        %4248 = vmatprep.subr.mxu0 %v4089
        %4249 = vmatpush1.msra.mxu0 %v4088
        %4250 = vmatprep.subr.mxu0 %v4085
        %4251 = vmatpush1.msra.mxu0 %v4084
        %4252 = vmatprep.subr.mxu0 %v4081
        %4253 = vmatpush1.msra.mxu0 %v4080
        %4254 = vmatprep.subr.mxu0 %v4077
        %4255 = vmatpush1.msra.mxu0 %v4076
        %4256 = vmatprep.subr.mxu0 %v4073
        %4257 = vmatpush1.msra.mxu0 %v4072
        %4258 = vmatprep.subr.mxu0 %v4069
        %4259 = vmatpush1.msra.mxu0 %v4068
        %4260 = vmatprep.subr.mxu0 0.0
        %4261 = vmatpush2.msra.mxu0 0.0
        %4262 = vmatprep.subr.mxu0 0.0
        %4263 = vmatpush2.msra.mxu0 0.0
        %4264 = vmatprep.subr.mxu0 0.0
        %4265 = vmatpush2.msra.mxu0 0.0
        %4266 = vmatprep.subr.mxu0 0.0
        %4267 = vmatpush2.msra.mxu0 0.0
        %4268 = vmatprep.subr.mxu0 0.0
        %4269 = vmatpush2.msra.mxu0 0.0
        %4270 = vmatprep.subr.mxu0 0.0
        %4271 = vmatpush2.msra.mxu0 0.0
        %4272 = vmatprep.subr.mxu0 0.0
        %4273 = vmatpush2.msra.mxu0 0.0
        %4274 = vmatprep.subr.mxu0 0.0
        %4275 = vmatpush2.msra.mxu0 0.0
        %4276 = vmatprep.subr.mxu0 0.0
        %4277 = vmatpush2.msra.mxu0 0.0
        %4278 = vmatprep.subr.mxu0 0.0
        %4279 = vmatpush2.msra.mxu0 0.0
        %4280 = vmatprep.subr.mxu0 0.0
        %4281 = vmatpush2.msra.mxu0 0.0
        %4282 = vmatprep.subr.mxu0 0.0
        %4283 = vmatpush2.msra.mxu0 0.0
        %4284 = vmatprep.subr.mxu0 0.0
        %4285 = vmatpush2.msra.mxu0 0.0
        %4286 = vmatprep.subr.mxu0 0.0
        %4287 = vmatpush2.msra.mxu0 0.0
        %4288 = vmatprep.subr.mxu0 0.0
        %4289 = vmatpush2.msra.mxu0 0.0
        %4290 = vmatprep.subr.mxu0 0.0
        %4291 = vmatpush2.msra.mxu0 0.0
        %4292 = vmatprep.mubr.f32.mxu0 0.0
        %4293 = vmatmul.mubr.f32.gmra.mxu0 %v4199
        %v4294 = vpop.f32.mrf.mxu0
        %v4295 = vadd.f32 %v4211, %v4294
        %v4296 = vpop.f32.mrf.mxu0
        %v4297 = vadd.f32 %v4215, %v4296
        %4298 = vmatprep.mubr.f32.mxu0 0.0
        %4299 = vmatmul.mubr.f32.gmra.mxu0 %v4200
        %v4300 = vpop.f32.mrf.mxu0
        %v4301 = vadd.f32 %v4211, %v4300
        %v4302 = vpop.f32.mrf.mxu0
        %v4303 = vadd.f32 %v4215, %v4302
        %4304 = vmatprep.mubr.f32.mxu0 0.0
        %4305 = vmatmul.mubr.f32.gmra.mxu0 %v4201
        %v4306 = vpop.f32.mrf.mxu0
        %v4307 = vadd.f32 %v4211, %v4306
        %v4308 = vpop.f32.mrf.mxu0
        %v4309 = vadd.f32 %v4215, %v4308
        %4310 = vmatprep.mubr.f32.mxu0 0.0
        %4311 = vmatmul.mubr.f32.gmra.mxu0 %v4202
        %v4312 = vpop.f32.mrf.mxu0
        %v4313 = vadd.f32 %v4211, %v4312
        %v4314 = vpop.f32.mrf.mxu0
        %v4315 = vadd.f32 %v4215, %v4314
        %4316 = vmatprep.mubr.f32.mxu0 0.0
        %4317 = vmatmul.mubr.f32.gmra.mxu0 %v4203
        %v4318 = vpop.f32.mrf.mxu0
        %v4319 = vadd.f32 %v4211, %v4318
        %v4320 = vpop.f32.mrf.mxu0
        %v4321 = vadd.f32 %v4215, %v4320
        %4322 = vmatprep.mubr.f32.mxu0 0.0
        %4323 = vmatmul.mubr.f32.gmra.mxu0 %v4204
        %v4324 = vpop.f32.mrf.mxu0
        %v4325 = vadd.f32 %v4211, %v4324
        %v4326 = vpop.f32.mrf.mxu0
        %v4327 = vadd.f32 %v4215, %v4326
        %4328 = vmatprep.mubr.f32.mxu0 0.0
        %4329 = vmatmul.mubr.f32.gmra.mxu0 %v4205
        %v4330 = vpop.f32.mrf.mxu0
        %v4331 = vadd.f32 %v4211, %v4330
        %v4332 = vpop.f32.mrf.mxu0
        %v4333 = vadd.f32 %v4215, %v4332
        %4334 = vmatprep.mubr.f32.mxu0 0.0
        %4335 = vmatmul.mubr.f32.gmra.mxu0 %v4206
        %v4336 = vpop.f32.mrf.mxu0
        %v4337 = vadd.f32 %v4211, %v4336
        %v4338 = vpop.f32.mrf.mxu0
        %v4339 = vadd.f32 %v4215, %v4338
        %4340 = vdwg.mxu0
        %4341 = vmatprep.subr.mxu0 %v4131
        %4342 = vmatpush1.msra.mxu0 %v4130
        %4343 = vmatprep.subr.mxu0 %v4127
        %4344 = vmatpush1.msra.mxu0 %v4126
        %4345 = vmatprep.subr.mxu0 %v4123
        %4346 = vmatpush1.msra.mxu0 %v4122
        %4347 = vmatprep.subr.mxu0 %v4119
        %4348 = vmatpush1.msra.mxu0 %v4118
        %4349 = vmatprep.subr.mxu0 %v4115
        %4350 = vmatpush1.msra.mxu0 %v4114
        %4351 = vmatprep.subr.mxu0 %v4111
        %4352 = vmatpush1.msra.mxu0 %v4110
        %4353 = vmatprep.subr.mxu0 %v4107
        %4354 = vmatpush1.msra.mxu0 %v4106
        %4355 = vmatprep.subr.mxu0 %v4103
        %4356 = vmatpush1.msra.mxu0 %v4102
        %4357 = vmatprep.subr.mxu0 %v4099
        %4358 = vmatpush1.msra.mxu0 %v4098
        %4359 = vmatprep.subr.mxu0 %v4095
        %4360 = vmatpush1.msra.mxu0 %v4094
        %4361 = vmatprep.subr.mxu0 %v4091
        %4362 = vmatpush1.msra.mxu0 %v4090
        %4363 = vmatprep.subr.mxu0 %v4087
        %4364 = vmatpush1.msra.mxu0 %v4086
        %4365 = vmatprep.subr.mxu0 %v4083
        %4366 = vmatpush1.msra.mxu0 %v4082
        %4367 = vmatprep.subr.mxu0 %v4079
        %4368 = vmatpush1.msra.mxu0 %v4078
        %4369 = vmatprep.subr.mxu0 %v4075
        %4370 = vmatpush1.msra.mxu0 %v4074
        %4371 = vmatprep.subr.mxu0 %v4071
        %4372 = vmatpush1.msra.mxu0 %v4070
        %4373 = vmatprep.subr.mxu0 0.0
        %4374 = vmatpush2.msra.mxu0 0.0
        %4375 = vmatprep.subr.mxu0 0.0
        %4376 = vmatpush2.msra.mxu0 0.0
        %4377 = vmatprep.subr.mxu0 0.0
        %4378 = vmatpush2.msra.mxu0 0.0
        %4379 = vmatprep.subr.mxu0 0.0
        %4380 = vmatpush2.msra.mxu0 0.0
        %4381 = vmatprep.subr.mxu0 0.0
        %4382 = vmatpush2.msra.mxu0 0.0
        %4383 = vmatprep.subr.mxu0 0.0
        %4384 = vmatpush2.msra.mxu0 0.0
        %4385 = vmatprep.subr.mxu0 0.0
        %4386 = vmatpush2.msra.mxu0 0.0
        %4387 = vmatprep.subr.mxu0 0.0
        %4388 = vmatpush2.msra.mxu0 0.0
        %4389 = vmatprep.subr.mxu0 0.0
        %4390 = vmatpush2.msra.mxu0 0.0
        %4391 = vmatprep.subr.mxu0 0.0
        %4392 = vmatpush2.msra.mxu0 0.0
        %4393 = vmatprep.subr.mxu0 0.0
        %4394 = vmatpush2.msra.mxu0 0.0
        %4395 = vmatprep.subr.mxu0 0.0
        %4396 = vmatpush2.msra.mxu0 0.0
        %4397 = vmatprep.subr.mxu0 0.0
        %4398 = vmatpush2.msra.mxu0 0.0
        %4399 = vmatprep.subr.mxu0 0.0
        %4400 = vmatpush2.msra.mxu0 0.0
        %4401 = vmatprep.subr.mxu0 0.0
        %4402 = vmatpush2.msra.mxu0 0.0
        %4403 = vmatprep.subr.mxu0 0.0
        %4404 = vmatpush2.msra.mxu0 0.0
        %4405 = vmatprep.mubr.f32.mxu0 0.0
        %4406 = vmatmul.mubr.f32.gmra.mxu0 %v4199
        %v4407 = vpop.f32.mrf.mxu0
        %v4408 = vadd.f32 %v4219, %v4407
        %v4409 = vpop.f32.mrf.mxu0
        %v4410 = vadd.f32 %v4223, %v4409
        %4411 = vmatprep.mubr.f32.mxu0 0.0
        %4412 = vmatmul.mubr.f32.gmra.mxu0 %v4200
        %v4413 = vpop.f32.mrf.mxu0
        %v4414 = vadd.f32 %v4219, %v4413
        %v4415 = vpop.f32.mrf.mxu0
        %v4416 = vadd.f32 %v4223, %v4415
        %4417 = vmatprep.mubr.f32.mxu0 0.0
        %4418 = vmatmul.mubr.f32.gmra.mxu0 %v4201
        %v4419 = vpop.f32.mrf.mxu0
        %v4420 = vadd.f32 %v4219, %v4419
        %v4421 = vpop.f32.mrf.mxu0
        %v4422 = vadd.f32 %v4223, %v4421
        %4423 = vmatprep.mubr.f32.mxu0 0.0
        %4424 = vmatmul.mubr.f32.gmra.mxu0 %v4202
        %v4425 = vpop.f32.mrf.mxu0
        %v4426 = vadd.f32 %v4219, %v4425
        %v4427 = vpop.f32.mrf.mxu0
        %v4428 = vadd.f32 %v4223, %v4427
        %4429 = vmatprep.mubr.f32.mxu0 0.0
        %4430 = vmatmul.mubr.f32.gmra.mxu0 %v4203
        %v4431 = vpop.f32.mrf.mxu0
        %v4432 = vadd.f32 %v4219, %v4431
        %v4433 = vpop.f32.mrf.mxu0
        %v4434 = vadd.f32 %v4223, %v4433
        %4435 = vmatprep.mubr.f32.mxu0 0.0
        %4436 = vmatmul.mubr.f32.gmra.mxu0 %v4204
        %v4437 = vpop.f32.mrf.mxu0
        %v4438 = vadd.f32 %v4219, %v4437
        %v4439 = vpop.f32.mrf.mxu0
        %v4440 = vadd.f32 %v4223, %v4439
        %4441 = vmatprep.mubr.f32.mxu0 0.0
        %4442 = vmatmul.mubr.f32.gmra.mxu0 %v4205
        %v4443 = vpop.f32.mrf.mxu0
        %v4444 = vadd.f32 %v4219, %v4443
        %v4445 = vpop.f32.mrf.mxu0
        %v4446 = vadd.f32 %v4223, %v4445
        %4447 = vmatprep.mubr.f32.mxu0 0.0
        %4448 = vmatmul.mubr.f32.gmra.mxu0 %v4206
        %v4449 = vpop.f32.mrf.mxu0
        %v4450 = vadd.f32 %v4219, %v4449
        %v4451 = vpop.f32.mrf.mxu0
        %v4452 = vadd.f32 %v4223, %v4451
        %4453 = vdwg.mxu0
        %4454 = vst [vmem:[#allocation5] sm:$0xff] %v4295
        %4455 = vst [vmem:[#allocation5 + $0x8] sm:$0xff] %v4297
        %4456 = vst [vmem:[#allocation5 + $0x10] sm:$0xff] %v4408
        %4457 = vst [vmem:[#allocation5 + $0x18] sm:$0xff] %v4410
        %4458 = vst [vmem:[#allocation5 + $0x20] sm:$0xff] %v4301
        %4459 = vst [vmem:[#allocation5 + $0x28] sm:$0xff] %v4303
        %4460 = vst [vmem:[#allocation5 + $0x30] sm:$0xff] %v4414
        %4461 = vst [vmem:[#allocation5 + $0x38] sm:$0xff] %v4416
        %4462 = vst [vmem:[#allocation5 + $0x40] sm:$0xff] %v4307
        %4463 = vst [vmem:[#allocation5 + $0x48] sm:$0xff] %v4309
        %4464 = vst [vmem:[#allocation5 + $0x50] sm:$0xff] %v4420
        %4465 = vst [vmem:[#allocation5 + $0x58] sm:$0xff] %v4422
        %4466 = vst [vmem:[#allocation5 + $0x60] sm:$0xff] %v4313
        %4467 = vst [vmem:[#allocation5 + $0x68] sm:$0xff] %v4315
        %4468 = vst [vmem:[#allocation5 + $0x70] sm:$0xff] %v4426
        %4469 = vst [vmem:[#allocation5 + $0x78] sm:$0xff] %v4428
        %4470 = vst [vmem:[#allocation5 + $0x80] sm:$0xff] %v4319
        %4471 = vst [vmem:[#allocation5 + $0x88] sm:$0xff] %v4321
        %4472 = vst [vmem:[#allocation5 + $0x90] sm:$0xff] %v4432
        %4473 = vst [vmem:[#allocation5 + $0x98] sm:$0xff] %v4434
        %4474 = vst [vmem:[#allocation5 + $0xa0] sm:$0xff] %v4325
        %4475 = vst [vmem:[#allocation5 + $0xa8] sm:$0xff] %v4327
        %4476 = vst [vmem:[#allocation5 + $0xb0] sm:$0xff] %v4438
        %4477 = vst [vmem:[#allocation5 + $0xb8] sm:$0xff] %v4440
        %4478 = vst [vmem:[#allocation5 + $0xc0] sm:$0xff] %v4331
        %4479 = vst [vmem:[#allocation5 + $0xc8] sm:$0xff] %v4333
        %4480 = vst [vmem:[#allocation5 + $0xd0] sm:$0xff] %v4444
        %4481 = vst [vmem:[#allocation5 + $0xd8] sm:$0xff] %v4446
        %4482 = vst [vmem:[#allocation5 + $0xe0] sm:$0xff] %v4337
        %4483 = vst [vmem:[#allocation5 + $0xe8] sm:$0xff] %v4339
        %4484 = vst [vmem:[#allocation5 + $0xf0] sm:$0xff] %v4450
        %4485 = vst [vmem:[#allocation5 + $0xf8] sm:$0xff] %v4452
        %s4486 = scalar_lea.vmem [#allocation2], 16
        %v4487 = vld [vmem:[%s4486] sm:$0xff]
        %s4488 = scalar_lea.vmem [#allocation3], 16
        %v4489 = vld [vmem:[%s4488] sm:$0xff]
        %v4490 = vld [vmem:[#allocation5] sm:$0xff]
        %v4491 = vld [vmem:[#allocation5 + $0x8] sm:$0xff]
        %v4492 = vld [vmem:[#allocation5 + $0x10] sm:$0xff]
        %v4493 = vld [vmem:[#allocation5 + $0x18] sm:$0xff]
        %4494 = vmatprep.subr.mxu0 %v4194
        %4495 = vmatpush1.msra.mxu0 %v4193
        %4496 = vmatprep.subr.mxu0 %v4190
        %4497 = vmatpush1.msra.mxu0 %v4189
        %4498 = vmatprep.subr.mxu0 %v4186
        %4499 = vmatpush1.msra.mxu0 %v4185
        %4500 = vmatprep.subr.mxu0 %v4182
        %4501 = vmatpush1.msra.mxu0 %v4181
        %4502 = vmatprep.subr.mxu0 %v4178
        %4503 = vmatpush1.msra.mxu0 %v4177
        %4504 = vmatprep.subr.mxu0 %v4174
        %4505 = vmatpush1.msra.mxu0 %v4173
        %4506 = vmatprep.subr.mxu0 %v4170
        %4507 = vmatpush1.msra.mxu0 %v4169
        %4508 = vmatprep.subr.mxu0 %v4166
        %4509 = vmatpush1.msra.mxu0 %v4165
        %4510 = vmatprep.subr.mxu0 %v4162
        %4511 = vmatpush1.msra.mxu0 %v4161
        %4512 = vmatprep.subr.mxu0 %v4158
        %4513 = vmatpush1.msra.mxu0 %v4157
        %4514 = vmatprep.subr.mxu0 %v4154
        %4515 = vmatpush1.msra.mxu0 %v4153
        %4516 = vmatprep.subr.mxu0 %v4150
        %4517 = vmatpush1.msra.mxu0 %v4149
        %4518 = vmatprep.subr.mxu0 %v4146
        %4519 = vmatpush1.msra.mxu0 %v4145
        %4520 = vmatprep.subr.mxu0 %v4142
        %4521 = vmatpush1.msra.mxu0 %v4141
        %4522 = vmatprep.subr.mxu0 %v4138
        %4523 = vmatpush1.msra.mxu0 %v4137
        %4524 = vmatprep.subr.mxu0 %v4134
        %4525 = vmatpush1.msra.mxu0 %v4133
        %4526 = vmatprep.subr.mxu0 0.0
        %4527 = vmatpush2.msra.mxu0 0.0
        %4528 = vmatprep.subr.mxu0 0.0
        %4529 = vmatpush2.msra.mxu0 0.0
        %4530 = vmatprep.subr.mxu0 0.0
        %4531 = vmatpush2.msra.mxu0 0.0
        %4532 = vmatprep.subr.mxu0 0.0
        %4533 = vmatpush2.msra.mxu0 0.0
        %4534 = vmatprep.subr.mxu0 0.0
        %4535 = vmatpush2.msra.mxu0 0.0
        %4536 = vmatprep.subr.mxu0 0.0
        %4537 = vmatpush2.msra.mxu0 0.0
        %4538 = vmatprep.subr.mxu0 0.0
        %4539 = vmatpush2.msra.mxu0 0.0
        %4540 = vmatprep.subr.mxu0 0.0
        %4541 = vmatpush2.msra.mxu0 0.0
        %4542 = vmatprep.subr.mxu0 0.0
        %4543 = vmatpush2.msra.mxu0 0.0
        %4544 = vmatprep.subr.mxu0 0.0
        %4545 = vmatpush2.msra.mxu0 0.0
        %4546 = vmatprep.subr.mxu0 0.0
        %4547 = vmatpush2.msra.mxu0 0.0
        %4548 = vmatprep.subr.mxu0 0.0
        %4549 = vmatpush2.msra.mxu0 0.0
        %4550 = vmatprep.subr.mxu0 0.0
        %4551 = vmatpush2.msra.mxu0 0.0
        %4552 = vmatprep.subr.mxu0 0.0
        %4553 = vmatpush2.msra.mxu0 0.0
        %4554 = vmatprep.subr.mxu0 0.0
        %4555 = vmatpush2.msra.mxu0 0.0
        %4556 = vmatprep.subr.mxu0 0.0
        %4557 = vmatpush2.msra.mxu0 0.0
        %4558 = vmatprep.mubr.f32.mxu0 0.0
        %4559 = vmatmul.mubr.f32.gmra.mxu0 %v4487
        %v4560 = vpop.f32.mrf.mxu0
        %v4561 = vadd.f32 %v4490, %v4560
        %v4562 = vpop.f32.mrf.mxu0
        %v4563 = vadd.f32 %v4491, %v4562
        %4564 = vdwg.mxu0
        %4565 = vmatprep.subr.mxu0 %v4196
        %4566 = vmatpush1.msra.mxu0 %v4195
        %4567 = vmatprep.subr.mxu0 %v4192
        %4568 = vmatpush1.msra.mxu0 %v4191
        %4569 = vmatprep.subr.mxu0 %v4188
        %4570 = vmatpush1.msra.mxu0 %v4187
        %4571 = vmatprep.subr.mxu0 %v4184
        %4572 = vmatpush1.msra.mxu0 %v4183
        %4573 = vmatprep.subr.mxu0 %v4180
        %4574 = vmatpush1.msra.mxu0 %v4179
        %4575 = vmatprep.subr.mxu0 %v4176
        %4576 = vmatpush1.msra.mxu0 %v4175
        %4577 = vmatprep.subr.mxu0 %v4172
        %4578 = vmatpush1.msra.mxu0 %v4171
        %4579 = vmatprep.subr.mxu0 %v4168
        %4580 = vmatpush1.msra.mxu0 %v4167
        %4581 = vmatprep.subr.mxu0 %v4164
        %4582 = vmatpush1.msra.mxu0 %v4163
        %4583 = vmatprep.subr.mxu0 %v4160
        %4584 = vmatpush1.msra.mxu0 %v4159
        %4585 = vmatprep.subr.mxu0 %v4156
        %4586 = vmatpush1.msra.mxu0 %v4155
        %4587 = vmatprep.subr.mxu0 %v4152
        %4588 = vmatpush1.msra.mxu0 %v4151
        %4589 = vmatprep.subr.mxu0 %v4148
        %4590 = vmatpush1.msra.mxu0 %v4147
        %4591 = vmatprep.subr.mxu0 %v4144
        %4592 = vmatpush1.msra.mxu0 %v4143
        %4593 = vmatprep.subr.mxu0 %v4140
        %4594 = vmatpush1.msra.mxu0 %v4139
        %4595 = vmatprep.subr.mxu0 %v4136
        %4596 = vmatpush1.msra.mxu0 %v4135
        %4597 = vmatprep.subr.mxu0 0.0
        %4598 = vmatpush2.msra.mxu0 0.0
        %4599 = vmatprep.subr.mxu0 0.0
        %4600 = vmatpush2.msra.mxu0 0.0
        %4601 = vmatprep.subr.mxu0 0.0
        %4602 = vmatpush2.msra.mxu0 0.0
        %4603 = vmatprep.subr.mxu0 0.0
        %4604 = vmatpush2.msra.mxu0 0.0
        %4605 = vmatprep.subr.mxu0 0.0
        %4606 = vmatpush2.msra.mxu0 0.0
        %4607 = vmatprep.subr.mxu0 0.0
        %4608 = vmatpush2.msra.mxu0 0.0
        %4609 = vmatprep.subr.mxu0 0.0
        %4610 = vmatpush2.msra.mxu0 0.0
        %4611 = vmatprep.subr.mxu0 0.0
        %4612 = vmatpush2.msra.mxu0 0.0
        %4613 = vmatprep.subr.mxu0 0.0
        %4614 = vmatpush2.msra.mxu0 0.0
        %4615 = vmatprep.subr.mxu0 0.0
        %4616 = vmatpush2.msra.mxu0 0.0
        %4617 = vmatprep.subr.mxu0 0.0
        %4618 = vmatpush2.msra.mxu0 0.0
        %4619 = vmatprep.subr.mxu0 0.0
        %4620 = vmatpush2.msra.mxu0 0.0
        %4621 = vmatprep.subr.mxu0 0.0
        %4622 = vmatpush2.msra.mxu0 0.0
        %4623 = vmatprep.subr.mxu0 0.0
        %4624 = vmatpush2.msra.mxu0 0.0
        %4625 = vmatprep.subr.mxu0 0.0
        %4626 = vmatpush2.msra.mxu0 0.0
        %4627 = vmatprep.subr.mxu0 0.0
        %4628 = vmatpush2.msra.mxu0 0.0
        %4629 = vmatprep.mubr.f32.mxu0 0.0
        %4630 = vmatmul.mubr.f32.gmra.mxu0 %v4487
        %v4631 = vpop.f32.mrf.mxu0
        %v4632 = vadd.f32 %v4492, %v4631
        %v4633 = vpop.f32.mrf.mxu0
        %v4634 = vadd.f32 %v4493, %v4633
        %4635 = vdwg.mxu0
        %v4636 = vmul.f32 %v4561, 0.5
        %v4637 = vmul.f32 %v4563, 0.5
        %v4638 = vmul.f32 %v4632, 0.5
        %v4639 = vtanh.pop %v4636
        %v4640 = vtanh.pop %v4637
        %v4641 = vtanh.pop %v4638
        %v4642 = vmul.f32 %v4639, 0.5
        %v4643 = vmul.f32 %v4640, 0.5
        %v4644 = vmul.f32 %v4641, 0.5
        %v4645 = vadd.f32 %v4642, 0.5
        %v4646 = vadd.f32 %v4643, 0.5
        %v4647 = vadd.f32 %v4644, 0.5
        %v4648 = vtanh.pop %v4634
        %v4649 = vmul.f32 %v4646, %v4489
        %v4650 = vmul.f32 %v4645, %v4648
        %v4651 = vadd.f32 %v4649, %v4650
        %v4652 = vtanh.pop %v4651
        %v4653 = vmul.f32 %v4647, %v4652
        %4654 = vst [vmem:[#allocation4] sm:$0xff] %v4653
        %v4655 = vld [vmem:[%s1151] sm:$0xff]
        %v4656 = vld [vmem:[%s1151 + $0x8] sm:$0xff]
        %v4657 = vld [vmem:[%s1151 + $0x10] sm:$0xff]
        %v4658 = vld [vmem:[%s1151 + $0x18] sm:$0xff]
        %4659 = vmatprep.subr.mxu0 %v4194
        %4660 = vmatpush1.msra.mxu0 %v4193
        %4661 = vmatprep.subr.mxu0 %v4190
        %4662 = vmatpush1.msra.mxu0 %v4189
        %4663 = vmatprep.subr.mxu0 %v4186
        %4664 = vmatpush1.msra.mxu0 %v4185
        %4665 = vmatprep.subr.mxu0 %v4182
        %4666 = vmatpush1.msra.mxu0 %v4181
        %4667 = vmatprep.subr.mxu0 %v4178
        %4668 = vmatpush1.msra.mxu0 %v4177
        %4669 = vmatprep.subr.mxu0 %v4174
        %4670 = vmatpush1.msra.mxu0 %v4173
        %4671 = vmatprep.subr.mxu0 %v4170
        %4672 = vmatpush1.msra.mxu0 %v4169
        %4673 = vmatprep.subr.mxu0 %v4166
        %4674 = vmatpush1.msra.mxu0 %v4165
        %4675 = vmatprep.subr.mxu0 %v4162
        %4676 = vmatpush1.msra.mxu0 %v4161
        %4677 = vmatprep.subr.mxu0 %v4158
        %4678 = vmatpush1.msra.mxu0 %v4157
        %4679 = vmatprep.subr.mxu0 %v4154
        %4680 = vmatpush1.msra.mxu0 %v4153
        %4681 = vmatprep.subr.mxu0 %v4150
        %4682 = vmatpush1.msra.mxu0 %v4149
        %4683 = vmatprep.subr.mxu0 %v4146
        %4684 = vmatpush1.msra.mxu0 %v4145
        %4685 = vmatprep.subr.mxu0 %v4142
        %4686 = vmatpush1.msra.mxu0 %v4141
        %4687 = vmatprep.subr.mxu0 %v4138
        %4688 = vmatpush1.msra.mxu0 %v4137
        %4689 = vmatprep.subr.mxu0 %v4134
        %4690 = vmatpush1.msra.mxu0 %v4133
        %4691 = vmatprep.subr.mxu0 0.0
        %4692 = vmatpush2.msra.mxu0 0.0
        %4693 = vmatprep.subr.mxu0 0.0
        %4694 = vmatpush2.msra.mxu0 0.0
        %4695 = vmatprep.subr.mxu0 0.0
        %4696 = vmatpush2.msra.mxu0 0.0
        %4697 = vmatprep.subr.mxu0 0.0
        %4698 = vmatpush2.msra.mxu0 0.0
        %4699 = vmatprep.subr.mxu0 0.0
        %4700 = vmatpush2.msra.mxu0 0.0
        %4701 = vmatprep.subr.mxu0 0.0
        %4702 = vmatpush2.msra.mxu0 0.0
        %4703 = vmatprep.subr.mxu0 0.0
        %4704 = vmatpush2.msra.mxu0 0.0
        %4705 = vmatprep.subr.mxu0 0.0
        %4706 = vmatpush2.msra.mxu0 0.0
        %4707 = vmatprep.subr.mxu0 0.0
        %4708 = vmatpush2.msra.mxu0 0.0
        %4709 = vmatprep.subr.mxu0 0.0
        %4710 = vmatpush2.msra.mxu0 0.0
        %4711 = vmatprep.subr.mxu0 0.0
        %4712 = vmatpush2.msra.mxu0 0.0
        %4713 = vmatprep.subr.mxu0 0.0
        %4714 = vmatpush2.msra.mxu0 0.0
        %4715 = vmatprep.subr.mxu0 0.0
        %4716 = vmatpush2.msra.mxu0 0.0
        %4717 = vmatprep.subr.mxu0 0.0
        %4718 = vmatpush2.msra.mxu0 0.0
        %4719 = vmatprep.subr.mxu0 0.0
        %4720 = vmatpush2.msra.mxu0 0.0
        %4721 = vmatprep.subr.mxu0 0.0
        %4722 = vmatpush2.msra.mxu0 0.0
        %4723 = vmatprep.mubr.f32.mxu0 0.0
        %4724 = vmatmul.mubr.f32.gmra.mxu0 %v4653
        %v4725 = vpop.f32.mrf.mxu0
        %v4726 = vadd.f32 %v4655, %v4725
        %v4727 = vpop.f32.mrf.mxu0
        %v4728 = vadd.f32 %v4656, %v4727
        %4729 = vdwg.mxu0
        %4730 = vmatprep.subr.mxu0 %v4196
        %4731 = vmatpush1.msra.mxu0 %v4195
        %4732 = vmatprep.subr.mxu0 %v4192
        %4733 = vmatpush1.msra.mxu0 %v4191
        %4734 = vmatprep.subr.mxu0 %v4188
        %4735 = vmatpush1.msra.mxu0 %v4187
        %4736 = vmatprep.subr.mxu0 %v4184
        %4737 = vmatpush1.msra.mxu0 %v4183
        %4738 = vmatprep.subr.mxu0 %v4180
        %4739 = vmatpush1.msra.mxu0 %v4179
        %4740 = vmatprep.subr.mxu0 %v4176
        %4741 = vmatpush1.msra.mxu0 %v4175
        %4742 = vmatprep.subr.mxu0 %v4172
        %4743 = vmatpush1.msra.mxu0 %v4171
        %4744 = vmatprep.subr.mxu0 %v4168
        %4745 = vmatpush1.msra.mxu0 %v4167
        %4746 = vmatprep.subr.mxu0 %v4164
        %4747 = vmatpush1.msra.mxu0 %v4163
        %4748 = vmatprep.subr.mxu0 %v4160
        %4749 = vmatpush1.msra.mxu0 %v4159
        %4750 = vmatprep.subr.mxu0 %v4156
        %4751 = vmatpush1.msra.mxu0 %v4155
        %4752 = vmatprep.subr.mxu0 %v4152
        %4753 = vmatpush1.msra.mxu0 %v4151
        %4754 = vmatprep.subr.mxu0 %v4148
        %4755 = vmatpush1.msra.mxu0 %v4147
        %4756 = vmatprep.subr.mxu0 %v4144
        %4757 = vmatpush1.msra.mxu0 %v4143
        %4758 = vmatprep.subr.mxu0 %v4140
        %4759 = vmatpush1.msra.mxu0 %v4139
        %4760 = vmatprep.subr.mxu0 %v4136
        %4761 = vmatpush1.msra.mxu0 %v4135
        %4762 = vmatprep.subr.mxu0 0.0
        %4763 = vmatpush2.msra.mxu0 0.0
        %4764 = vmatprep.subr.mxu0 0.0
        %4765 = vmatpush2.msra.mxu0 0.0
        %4766 = vmatprep.subr.mxu0 0.0
        %4767 = vmatpush2.msra.mxu0 0.0
        %4768 = vmatprep.subr.mxu0 0.0
        %4769 = vmatpush2.msra.mxu0 0.0
        %4770 = vmatprep.subr.mxu0 0.0
        %4771 = vmatpush2.msra.mxu0 0.0
        %4772 = vmatprep.subr.mxu0 0.0
        %4773 = vmatpush2.msra.mxu0 0.0
        %4774 = vmatprep.subr.mxu0 0.0
        %4775 = vmatpush2.msra.mxu0 0.0
        %4776 = vmatprep.subr.mxu0 0.0
        %4777 = vmatpush2.msra.mxu0 0.0
        %4778 = vmatprep.subr.mxu0 0.0
        %4779 = vmatpush2.msra.mxu0 0.0
        %4780 = vmatprep.subr.mxu0 0.0
        %4781 = vmatpush2.msra.mxu0 0.0
        %4782 = vmatprep.subr.mxu0 0.0
        %4783 = vmatpush2.msra.mxu0 0.0
        %4784 = vmatprep.subr.mxu0 0.0
        %4785 = vmatpush2.msra.mxu0 0.0
        %4786 = vmatprep.subr.mxu0 0.0
        %4787 = vmatpush2.msra.mxu0 0.0
        %4788 = vmatprep.subr.mxu0 0.0
        %4789 = vmatpush2.msra.mxu0 0.0
        %4790 = vmatprep.subr.mxu0 0.0
        %4791 = vmatpush2.msra.mxu0 0.0
        %4792 = vmatprep.subr.mxu0 0.0
        %4793 = vmatpush2.msra.mxu0 0.0
        %4794 = vmatprep.mubr.f32.mxu0 0.0
        %4795 = vmatmul.mubr.f32.gmra.mxu0 %v4653
        %v4796 = vpop.f32.mrf.mxu0
        %v4797 = vadd.f32 %v4657, %v4796
        %v4798 = vpop.f32.mrf.mxu0
        %v4799 = vadd.f32 %v4658, %v4798
        %4800 = vdwg.mxu0
        %v4801 = vmul.f32 %v4726, 0.5
        %v4802 = vmul.f32 %v4728, 0.5
        %v4803 = vmul.f32 %v4797, 0.5
        %v4804 = vtanh.pop %v4801
        %v4805 = vtanh.pop %v4802
        %v4806 = vtanh.pop %v4803
        %v4807 = vmul.f32 %v4804, 0.5
        %v4808 = vmul.f32 %v4805, 0.5
        %v4809 = vmul.f32 %v4806, 0.5
        %v4810 = vadd.f32 %v4807, 0.5
        %v4811 = vadd.f32 %v4808, 0.5
        %v4812 = vadd.f32 %v4809, 0.5
        %v4813 = vtanh.pop %v4799
        %v4814 = vmul.f32 %v4811, %v4651
        %v4815 = vmul.f32 %v4810, %v4813
        %v4816 = vadd.f32 %v4814, %v4815
        %v4817 = vtanh.pop %v4816
        %v4818 = vmul.f32 %v4812, %v4817
        %4819 = vst [vmem:[%s1316] sm:$0xff] %v4818
        %v4820 = vld [vmem:[%s1318] sm:$0xff]
        %v4821 = vld [vmem:[%s1318 + $0x8] sm:$0xff]
        %v4822 = vld [vmem:[%s1318 + $0x10] sm:$0xff]
        %v4823 = vld [vmem:[%s1318 + $0x18] sm:$0xff]
        %4824 = vmatprep.subr.mxu0 %v4194
        %4825 = vmatpush1.msra.mxu0 %v4193
        %4826 = vmatprep.subr.mxu0 %v4190
        %4827 = vmatpush1.msra.mxu0 %v4189
        %4828 = vmatprep.subr.mxu0 %v4186
        %4829 = vmatpush1.msra.mxu0 %v4185
        %4830 = vmatprep.subr.mxu0 %v4182
        %4831 = vmatpush1.msra.mxu0 %v4181
        %4832 = vmatprep.subr.mxu0 %v4178
        %4833 = vmatpush1.msra.mxu0 %v4177
        %4834 = vmatprep.subr.mxu0 %v4174
        %4835 = vmatpush1.msra.mxu0 %v4173
        %4836 = vmatprep.subr.mxu0 %v4170
        %4837 = vmatpush1.msra.mxu0 %v4169
        %4838 = vmatprep.subr.mxu0 %v4166
        %4839 = vmatpush1.msra.mxu0 %v4165
        %4840 = vmatprep.subr.mxu0 %v4162
        %4841 = vmatpush1.msra.mxu0 %v4161
        %4842 = vmatprep.subr.mxu0 %v4158
        %4843 = vmatpush1.msra.mxu0 %v4157
        %4844 = vmatprep.subr.mxu0 %v4154
        %4845 = vmatpush1.msra.mxu0 %v4153
        %4846 = vmatprep.subr.mxu0 %v4150
        %4847 = vmatpush1.msra.mxu0 %v4149
        %4848 = vmatprep.subr.mxu0 %v4146
        %4849 = vmatpush1.msra.mxu0 %v4145
        %4850 = vmatprep.subr.mxu0 %v4142
        %4851 = vmatpush1.msra.mxu0 %v4141
        %4852 = vmatprep.subr.mxu0 %v4138
        %4853 = vmatpush1.msra.mxu0 %v4137
        %4854 = vmatprep.subr.mxu0 %v4134
        %4855 = vmatpush1.msra.mxu0 %v4133
        %4856 = vmatprep.subr.mxu0 0.0
        %4857 = vmatpush2.msra.mxu0 0.0
        %4858 = vmatprep.subr.mxu0 0.0
        %4859 = vmatpush2.msra.mxu0 0.0
        %4860 = vmatprep.subr.mxu0 0.0
        %4861 = vmatpush2.msra.mxu0 0.0
        %4862 = vmatprep.subr.mxu0 0.0
        %4863 = vmatpush2.msra.mxu0 0.0
        %4864 = vmatprep.subr.mxu0 0.0
        %4865 = vmatpush2.msra.mxu0 0.0
        %4866 = vmatprep.subr.mxu0 0.0
        %4867 = vmatpush2.msra.mxu0 0.0
        %4868 = vmatprep.subr.mxu0 0.0
        %4869 = vmatpush2.msra.mxu0 0.0
        %4870 = vmatprep.subr.mxu0 0.0
        %4871 = vmatpush2.msra.mxu0 0.0
        %4872 = vmatprep.subr.mxu0 0.0
        %4873 = vmatpush2.msra.mxu0 0.0
        %4874 = vmatprep.subr.mxu0 0.0
        %4875 = vmatpush2.msra.mxu0 0.0
        %4876 = vmatprep.subr.mxu0 0.0
        %4877 = vmatpush2.msra.mxu0 0.0
        %4878 = vmatprep.subr.mxu0 0.0
        %4879 = vmatpush2.msra.mxu0 0.0
        %4880 = vmatprep.subr.mxu0 0.0
        %4881 = vmatpush2.msra.mxu0 0.0
        %4882 = vmatprep.subr.mxu0 0.0
        %4883 = vmatpush2.msra.mxu0 0.0
        %4884 = vmatprep.subr.mxu0 0.0
        %4885 = vmatpush2.msra.mxu0 0.0
        %4886 = vmatprep.subr.mxu0 0.0
        %4887 = vmatpush2.msra.mxu0 0.0
        %4888 = vmatprep.mubr.f32.mxu0 0.0
        %4889 = vmatmul.mubr.f32.gmra.mxu0 %v4818
        %v4890 = vpop.f32.mrf.mxu0
        %v4891 = vadd.f32 %v4820, %v4890
        %v4892 = vpop.f32.mrf.mxu0
        %v4893 = vadd.f32 %v4821, %v4892
        %4894 = vdwg.mxu0
        %4895 = vmatprep.subr.mxu0 %v4196
        %4896 = vmatpush1.msra.mxu0 %v4195
        %4897 = vmatprep.subr.mxu0 %v4192
        %4898 = vmatpush1.msra.mxu0 %v4191
        %4899 = vmatprep.subr.mxu0 %v4188
        %4900 = vmatpush1.msra.mxu0 %v4187
        %4901 = vmatprep.subr.mxu0 %v4184
        %4902 = vmatpush1.msra.mxu0 %v4183
        %4903 = vmatprep.subr.mxu0 %v4180
        %4904 = vmatpush1.msra.mxu0 %v4179
        %4905 = vmatprep.subr.mxu0 %v4176
        %4906 = vmatpush1.msra.mxu0 %v4175
        %4907 = vmatprep.subr.mxu0 %v4172
        %4908 = vmatpush1.msra.mxu0 %v4171
        %4909 = vmatprep.subr.mxu0 %v4168
        %4910 = vmatpush1.msra.mxu0 %v4167
        %4911 = vmatprep.subr.mxu0 %v4164
        %4912 = vmatpush1.msra.mxu0 %v4163
        %4913 = vmatprep.subr.mxu0 %v4160
        %4914 = vmatpush1.msra.mxu0 %v4159
        %4915 = vmatprep.subr.mxu0 %v4156
        %4916 = vmatpush1.msra.mxu0 %v4155
        %4917 = vmatprep.subr.mxu0 %v4152
        %4918 = vmatpush1.msra.mxu0 %v4151
        %4919 = vmatprep.subr.mxu0 %v4148
        %4920 = vmatpush1.msra.mxu0 %v4147
        %4921 = vmatprep.subr.mxu0 %v4144
        %4922 = vmatpush1.msra.mxu0 %v4143
        %4923 = vmatprep.subr.mxu0 %v4140
        %4924 = vmatpush1.msra.mxu0 %v4139
        %4925 = vmatprep.subr.mxu0 %v4136
        %4926 = vmatpush1.msra.mxu0 %v4135
        %4927 = vmatprep.subr.mxu0 0.0
        %4928 = vmatpush2.msra.mxu0 0.0
        %4929 = vmatprep.subr.mxu0 0.0
        %4930 = vmatpush2.msra.mxu0 0.0
        %4931 = vmatprep.subr.mxu0 0.0
        %4932 = vmatpush2.msra.mxu0 0.0
        %4933 = vmatprep.subr.mxu0 0.0
        %4934 = vmatpush2.msra.mxu0 0.0
        %4935 = vmatprep.subr.mxu0 0.0
        %4936 = vmatpush2.msra.mxu0 0.0
        %4937 = vmatprep.subr.mxu0 0.0
        %4938 = vmatpush2.msra.mxu0 0.0
        %4939 = vmatprep.subr.mxu0 0.0
        %4940 = vmatpush2.msra.mxu0 0.0
        %4941 = vmatprep.subr.mxu0 0.0
        %4942 = vmatpush2.msra.mxu0 0.0
        %4943 = vmatprep.subr.mxu0 0.0
        %4944 = vmatpush2.msra.mxu0 0.0
        %4945 = vmatprep.subr.mxu0 0.0
        %4946 = vmatpush2.msra.mxu0 0.0
        %4947 = vmatprep.subr.mxu0 0.0
        %4948 = vmatpush2.msra.mxu0 0.0
        %4949 = vmatprep.subr.mxu0 0.0
        %4950 = vmatpush2.msra.mxu0 0.0
        %4951 = vmatprep.subr.mxu0 0.0
        %4952 = vmatpush2.msra.mxu0 0.0
        %4953 = vmatprep.subr.mxu0 0.0
        %4954 = vmatpush2.msra.mxu0 0.0
        %4955 = vmatprep.subr.mxu0 0.0
        %4956 = vmatpush2.msra.mxu0 0.0
        %4957 = vmatprep.subr.mxu0 0.0
        %4958 = vmatpush2.msra.mxu0 0.0
        %4959 = vmatprep.mubr.f32.mxu0 0.0
        %4960 = vmatmul.mubr.f32.gmra.mxu0 %v4818
        %v4961 = vpop.f32.mrf.mxu0
        %v4962 = vadd.f32 %v4822, %v4961
        %v4963 = vpop.f32.mrf.mxu0
        %v4964 = vadd.f32 %v4823, %v4963
        %4965 = vdwg.mxu0
        %v4966 = vmul.f32 %v4891, 0.5
        %v4967 = vmul.f32 %v4893, 0.5
        %v4968 = vmul.f32 %v4962, 0.5
        %v4969 = vtanh.pop %v4966
        %v4970 = vtanh.pop %v4967
        %v4971 = vtanh.pop %v4968
        %v4972 = vmul.f32 %v4969, 0.5
        %v4973 = vmul.f32 %v4970, 0.5
        %v4974 = vmul.f32 %v4971, 0.5
        %v4975 = vadd.f32 %v4972, 0.5
        %v4976 = vadd.f32 %v4973, 0.5
        %v4977 = vadd.f32 %v4974, 0.5
        %v4978 = vtanh.pop %v4964
        %v4979 = vmul.f32 %v4976, %v4816
        %v4980 = vmul.f32 %v4975, %v4978
        %v4981 = vadd.f32 %v4979, %v4980
        %v4982 = vtanh.pop %v4981
        %v4983 = vmul.f32 %v4977, %v4982
        %4984 = vst [vmem:[%s1483] sm:$0xff] %v4983
        %v4985 = vld [vmem:[%s1485] sm:$0xff]
        %v4986 = vld [vmem:[%s1485 + $0x8] sm:$0xff]
        %v4987 = vld [vmem:[%s1485 + $0x10] sm:$0xff]
        %v4988 = vld [vmem:[%s1485 + $0x18] sm:$0xff]
        %4989 = vmatprep.subr.mxu0 %v4194
        %4990 = vmatpush1.msra.mxu0 %v4193
        %4991 = vmatprep.subr.mxu0 %v4190
        %4992 = vmatpush1.msra.mxu0 %v4189
        %4993 = vmatprep.subr.mxu0 %v4186
        %4994 = vmatpush1.msra.mxu0 %v4185
        %4995 = vmatprep.subr.mxu0 %v4182
        %4996 = vmatpush1.msra.mxu0 %v4181
        %4997 = vmatprep.subr.mxu0 %v4178
        %4998 = vmatpush1.msra.mxu0 %v4177
        %4999 = vmatprep.subr.mxu0 %v4174
        %5000 = vmatpush1.msra.mxu0 %v4173
        %5001 = vmatprep.subr.mxu0 %v4170
        %5002 = vmatpush1.msra.mxu0 %v4169
        %5003 = vmatprep.subr.mxu0 %v4166
        %5004 = vmatpush1.msra.mxu0 %v4165
        %5005 = vmatprep.subr.mxu0 %v4162
        %5006 = vmatpush1.msra.mxu0 %v4161
        %5007 = vmatprep.subr.mxu0 %v4158
        %5008 = vmatpush1.msra.mxu0 %v4157
        %5009 = vmatprep.subr.mxu0 %v4154
        %5010 = vmatpush1.msra.mxu0 %v4153
        %5011 = vmatprep.subr.mxu0 %v4150
        %5012 = vmatpush1.msra.mxu0 %v4149
        %5013 = vmatprep.subr.mxu0 %v4146
        %5014 = vmatpush1.msra.mxu0 %v4145
        %5015 = vmatprep.subr.mxu0 %v4142
        %5016 = vmatpush1.msra.mxu0 %v4141
        %5017 = vmatprep.subr.mxu0 %v4138
        %5018 = vmatpush1.msra.mxu0 %v4137
        %5019 = vmatprep.subr.mxu0 %v4134
        %5020 = vmatpush1.msra.mxu0 %v4133
        %5021 = vmatprep.subr.mxu0 0.0
        %5022 = vmatpush2.msra.mxu0 0.0
        %5023 = vmatprep.subr.mxu0 0.0
        %5024 = vmatpush2.msra.mxu0 0.0
        %5025 = vmatprep.subr.mxu0 0.0
        %5026 = vmatpush2.msra.mxu0 0.0
        %5027 = vmatprep.subr.mxu0 0.0
        %5028 = vmatpush2.msra.mxu0 0.0
        %5029 = vmatprep.subr.mxu0 0.0
        %5030 = vmatpush2.msra.mxu0 0.0
        %5031 = vmatprep.subr.mxu0 0.0
        %5032 = vmatpush2.msra.mxu0 0.0
        %5033 = vmatprep.subr.mxu0 0.0
        %5034 = vmatpush2.msra.mxu0 0.0
        %5035 = vmatprep.subr.mxu0 0.0
        %5036 = vmatpush2.msra.mxu0 0.0
        %5037 = vmatprep.subr.mxu0 0.0
        %5038 = vmatpush2.msra.mxu0 0.0
        %5039 = vmatprep.subr.mxu0 0.0
        %5040 = vmatpush2.msra.mxu0 0.0
        %5041 = vmatprep.subr.mxu0 0.0
        %5042 = vmatpush2.msra.mxu0 0.0
        %5043 = vmatprep.subr.mxu0 0.0
        %5044 = vmatpush2.msra.mxu0 0.0
        %5045 = vmatprep.subr.mxu0 0.0
        %5046 = vmatpush2.msra.mxu0 0.0
        %5047 = vmatprep.subr.mxu0 0.0
        %5048 = vmatpush2.msra.mxu0 0.0
        %5049 = vmatprep.subr.mxu0 0.0
        %5050 = vmatpush2.msra.mxu0 0.0
        %5051 = vmatprep.subr.mxu0 0.0
        %5052 = vmatpush2.msra.mxu0 0.0
        %5053 = vmatprep.mubr.f32.mxu0 0.0
        %5054 = vmatmul.mubr.f32.gmra.mxu0 %v4983
        %v5055 = vpop.f32.mrf.mxu0
        %v5056 = vadd.f32 %v4985, %v5055
        %v5057 = vpop.f32.mrf.mxu0
        %v5058 = vadd.f32 %v4986, %v5057
        %5059 = vdwg.mxu0
        %5060 = vmatprep.subr.mxu0 %v4196
        %5061 = vmatpush1.msra.mxu0 %v4195
        %5062 = vmatprep.subr.mxu0 %v4192
        %5063 = vmatpush1.msra.mxu0 %v4191
        %5064 = vmatprep.subr.mxu0 %v4188
        %5065 = vmatpush1.msra.mxu0 %v4187
        %5066 = vmatprep.subr.mxu0 %v4184
        %5067 = vmatpush1.msra.mxu0 %v4183
        %5068 = vmatprep.subr.mxu0 %v4180
        %5069 = vmatpush1.msra.mxu0 %v4179
        %5070 = vmatprep.subr.mxu0 %v4176
        %5071 = vmatpush1.msra.mxu0 %v4175
        %5072 = vmatprep.subr.mxu0 %v4172
        %5073 = vmatpush1.msra.mxu0 %v4171
        %5074 = vmatprep.subr.mxu0 %v4168
        %5075 = vmatpush1.msra.mxu0 %v4167
        %5076 = vmatprep.subr.mxu0 %v4164
        %5077 = vmatpush1.msra.mxu0 %v4163
        %5078 = vmatprep.subr.mxu0 %v4160
        %5079 = vmatpush1.msra.mxu0 %v4159
        %5080 = vmatprep.subr.mxu0 %v4156
        %5081 = vmatpush1.msra.mxu0 %v4155
        %5082 = vmatprep.subr.mxu0 %v4152
        %5083 = vmatpush1.msra.mxu0 %v4151
        %5084 = vmatprep.subr.mxu0 %v4148
        %5085 = vmatpush1.msra.mxu0 %v4147
        %5086 = vmatprep.subr.mxu0 %v4144
        %5087 = vmatpush1.msra.mxu0 %v4143
        %5088 = vmatprep.subr.mxu0 %v4140
        %5089 = vmatpush1.msra.mxu0 %v4139
        %5090 = vmatprep.subr.mxu0 %v4136
        %5091 = vmatpush1.msra.mxu0 %v4135
        %5092 = vmatprep.subr.mxu0 0.0
        %5093 = vmatpush2.msra.mxu0 0.0
        %5094 = vmatprep.subr.mxu0 0.0
        %5095 = vmatpush2.msra.mxu0 0.0
        %5096 = vmatprep.subr.mxu0 0.0
        %5097 = vmatpush2.msra.mxu0 0.0
        %5098 = vmatprep.subr.mxu0 0.0
        %5099 = vmatpush2.msra.mxu0 0.0
        %5100 = vmatprep.subr.mxu0 0.0
        %5101 = vmatpush2.msra.mxu0 0.0
        %5102 = vmatprep.subr.mxu0 0.0
        %5103 = vmatpush2.msra.mxu0 0.0
        %5104 = vmatprep.subr.mxu0 0.0
        %5105 = vmatpush2.msra.mxu0 0.0
        %5106 = vmatprep.subr.mxu0 0.0
        %5107 = vmatpush2.msra.mxu0 0.0
        %5108 = vmatprep.subr.mxu0 0.0
        %5109 = vmatpush2.msra.mxu0 0.0
        %5110 = vmatprep.subr.mxu0 0.0
        %5111 = vmatpush2.msra.mxu0 0.0
        %5112 = vmatprep.subr.mxu0 0.0
        %5113 = vmatpush2.msra.mxu0 0.0
        %5114 = vmatprep.subr.mxu0 0.0
        %5115 = vmatpush2.msra.mxu0 0.0
        %5116 = vmatprep.subr.mxu0 0.0
        %5117 = vmatpush2.msra.mxu0 0.0
        %5118 = vmatprep.subr.mxu0 0.0
        %5119 = vmatpush2.msra.mxu0 0.0
        %5120 = vmatprep.subr.mxu0 0.0
        %5121 = vmatpush2.msra.mxu0 0.0
        %5122 = vmatprep.subr.mxu0 0.0
        %5123 = vmatpush2.msra.mxu0 0.0
        %5124 = vmatprep.mubr.f32.mxu0 0.0
        %5125 = vmatmul.mubr.f32.gmra.mxu0 %v4983
        %v5126 = vpop.f32.mrf.mxu0
        %v5127 = vadd.f32 %v4987, %v5126
        %v5128 = vpop.f32.mrf.mxu0
        %v5129 = vadd.f32 %v4988, %v5128
        %5130 = vdwg.mxu0
        %v5131 = vmul.f32 %v5056, 0.5
        %v5132 = vmul.f32 %v5058, 0.5
        %v5133 = vmul.f32 %v5127, 0.5
        %v5134 = vtanh.pop %v5131
        %v5135 = vtanh.pop %v5132
        %v5136 = vtanh.pop %v5133
        %v5137 = vmul.f32 %v5134, 0.5
        %v5138 = vmul.f32 %v5135, 0.5
        %v5139 = vmul.f32 %v5136, 0.5
        %v5140 = vadd.f32 %v5137, 0.5
        %v5141 = vadd.f32 %v5138, 0.5
        %v5142 = vadd.f32 %v5139, 0.5
        %v5143 = vtanh.pop %v5129
        %v5144 = vmul.f32 %v5141, %v4981
        %v5145 = vmul.f32 %v5140, %v5143
        %v5146 = vadd.f32 %v5144, %v5145
        %v5147 = vtanh.pop %v5146
        %v5148 = vmul.f32 %v5142, %v5147
        %5149 = vst [vmem:[%s1650] sm:$0xff] %v5148
        %v5150 = vld [vmem:[%s1652] sm:$0xff]
        %v5151 = vld [vmem:[%s1652 + $0x8] sm:$0xff]
        %v5152 = vld [vmem:[%s1652 + $0x10] sm:$0xff]
        %v5153 = vld [vmem:[%s1652 + $0x18] sm:$0xff]
        %5154 = vmatprep.subr.mxu0 %v4194
        %5155 = vmatpush1.msra.mxu0 %v4193
        %5156 = vmatprep.subr.mxu0 %v4190
        %5157 = vmatpush1.msra.mxu0 %v4189
        %5158 = vmatprep.subr.mxu0 %v4186
        %5159 = vmatpush1.msra.mxu0 %v4185
        %5160 = vmatprep.subr.mxu0 %v4182
        %5161 = vmatpush1.msra.mxu0 %v4181
        %5162 = vmatprep.subr.mxu0 %v4178
        %5163 = vmatpush1.msra.mxu0 %v4177
        %5164 = vmatprep.subr.mxu0 %v4174
        %5165 = vmatpush1.msra.mxu0 %v4173
        %5166 = vmatprep.subr.mxu0 %v4170
        %5167 = vmatpush1.msra.mxu0 %v4169
        %5168 = vmatprep.subr.mxu0 %v4166
        %5169 = vmatpush1.msra.mxu0 %v4165
        %5170 = vmatprep.subr.mxu0 %v4162
        %5171 = vmatpush1.msra.mxu0 %v4161
        %5172 = vmatprep.subr.mxu0 %v4158
        %5173 = vmatpush1.msra.mxu0 %v4157
        %5174 = vmatprep.subr.mxu0 %v4154
        %5175 = vmatpush1.msra.mxu0 %v4153
        %5176 = vmatprep.subr.mxu0 %v4150
        %5177 = vmatpush1.msra.mxu0 %v4149
        %5178 = vmatprep.subr.mxu0 %v4146
        %5179 = vmatpush1.msra.mxu0 %v4145
        %5180 = vmatprep.subr.mxu0 %v4142
        %5181 = vmatpush1.msra.mxu0 %v4141
        %5182 = vmatprep.subr.mxu0 %v4138
        %5183 = vmatpush1.msra.mxu0 %v4137
        %5184 = vmatprep.subr.mxu0 %v4134
        %5185 = vmatpush1.msra.mxu0 %v4133
        %5186 = vmatprep.subr.mxu0 0.0
        %5187 = vmatpush2.msra.mxu0 0.0
        %5188 = vmatprep.subr.mxu0 0.0
        %5189 = vmatpush2.msra.mxu0 0.0
        %5190 = vmatprep.subr.mxu0 0.0
        %5191 = vmatpush2.msra.mxu0 0.0
        %5192 = vmatprep.subr.mxu0 0.0
        %5193 = vmatpush2.msra.mxu0 0.0
        %5194 = vmatprep.subr.mxu0 0.0
        %5195 = vmatpush2.msra.mxu0 0.0
        %5196 = vmatprep.subr.mxu0 0.0
        %5197 = vmatpush2.msra.mxu0 0.0
        %5198 = vmatprep.subr.mxu0 0.0
        %5199 = vmatpush2.msra.mxu0 0.0
        %5200 = vmatprep.subr.mxu0 0.0
        %5201 = vmatpush2.msra.mxu0 0.0
        %5202 = vmatprep.subr.mxu0 0.0
        %5203 = vmatpush2.msra.mxu0 0.0
        %5204 = vmatprep.subr.mxu0 0.0
        %5205 = vmatpush2.msra.mxu0 0.0
        %5206 = vmatprep.subr.mxu0 0.0
        %5207 = vmatpush2.msra.mxu0 0.0
        %5208 = vmatprep.subr.mxu0 0.0
        %5209 = vmatpush2.msra.mxu0 0.0
        %5210 = vmatprep.subr.mxu0 0.0
        %5211 = vmatpush2.msra.mxu0 0.0
        %5212 = vmatprep.subr.mxu0 0.0
        %5213 = vmatpush2.msra.mxu0 0.0
        %5214 = vmatprep.subr.mxu0 0.0
        %5215 = vmatpush2.msra.mxu0 0.0
        %5216 = vmatprep.subr.mxu0 0.0
        %5217 = vmatpush2.msra.mxu0 0.0
        %5218 = vmatprep.mubr.f32.mxu0 0.0
        %5219 = vmatmul.mubr.f32.gmra.mxu0 %v5148
        %v5220 = vpop.f32.mrf.mxu0
        %v5221 = vadd.f32 %v5150, %v5220
        %v5222 = vpop.f32.mrf.mxu0
        %v5223 = vadd.f32 %v5151, %v5222
        %5224 = vdwg.mxu0
        %5225 = vmatprep.subr.mxu0 %v4196
        %5226 = vmatpush1.msra.mxu0 %v4195
        %5227 = vmatprep.subr.mxu0 %v4192
        %5228 = vmatpush1.msra.mxu0 %v4191
        %5229 = vmatprep.subr.mxu0 %v4188
        %5230 = vmatpush1.msra.mxu0 %v4187
        %5231 = vmatprep.subr.mxu0 %v4184
        %5232 = vmatpush1.msra.mxu0 %v4183
        %5233 = vmatprep.subr.mxu0 %v4180
        %5234 = vmatpush1.msra.mxu0 %v4179
        %5235 = vmatprep.subr.mxu0 %v4176
        %5236 = vmatpush1.msra.mxu0 %v4175
        %5237 = vmatprep.subr.mxu0 %v4172
        %5238 = vmatpush1.msra.mxu0 %v4171
        %5239 = vmatprep.subr.mxu0 %v4168
        %5240 = vmatpush1.msra.mxu0 %v4167
        %5241 = vmatprep.subr.mxu0 %v4164
        %5242 = vmatpush1.msra.mxu0 %v4163
        %5243 = vmatprep.subr.mxu0 %v4160
        %5244 = vmatpush1.msra.mxu0 %v4159
        %5245 = vmatprep.subr.mxu0 %v4156
        %5246 = vmatpush1.msra.mxu0 %v4155
        %5247 = vmatprep.subr.mxu0 %v4152
        %5248 = vmatpush1.msra.mxu0 %v4151
        %5249 = vmatprep.subr.mxu0 %v4148
        %5250 = vmatpush1.msra.mxu0 %v4147
        %5251 = vmatprep.subr.mxu0 %v4144
        %5252 = vmatpush1.msra.mxu0 %v4143
        %5253 = vmatprep.subr.mxu0 %v4140
        %5254 = vmatpush1.msra.mxu0 %v4139
        %5255 = vmatprep.subr.mxu0 %v4136
        %5256 = vmatpush1.msra.mxu0 %v4135
        %5257 = vmatprep.subr.mxu0 0.0
        %5258 = vmatpush2.msra.mxu0 0.0
        %5259 = vmatprep.subr.mxu0 0.0
        %5260 = vmatpush2.msra.mxu0 0.0
        %5261 = vmatprep.subr.mxu0 0.0
        %5262 = vmatpush2.msra.mxu0 0.0
        %5263 = vmatprep.subr.mxu0 0.0
        %5264 = vmatpush2.msra.mxu0 0.0
        %5265 = vmatprep.subr.mxu0 0.0
        %5266 = vmatpush2.msra.mxu0 0.0
        %5267 = vmatprep.subr.mxu0 0.0
        %5268 = vmatpush2.msra.mxu0 0.0
        %5269 = vmatprep.subr.mxu0 0.0
        %5270 = vmatpush2.msra.mxu0 0.0
        %5271 = vmatprep.subr.mxu0 0.0
        %5272 = vmatpush2.msra.mxu0 0.0
        %5273 = vmatprep.subr.mxu0 0.0
        %5274 = vmatpush2.msra.mxu0 0.0
        %5275 = vmatprep.subr.mxu0 0.0
        %5276 = vmatpush2.msra.mxu0 0.0
        %5277 = vmatprep.subr.mxu0 0.0
        %5278 = vmatpush2.msra.mxu0 0.0
        %5279 = vmatprep.subr.mxu0 0.0
        %5280 = vmatpush2.msra.mxu0 0.0
        %5281 = vmatprep.subr.mxu0 0.0
        %5282 = vmatpush2.msra.mxu0 0.0
        %5283 = vmatprep.subr.mxu0 0.0
        %5284 = vmatpush2.msra.mxu0 0.0
        %5285 = vmatprep.subr.mxu0 0.0
        %5286 = vmatpush2.msra.mxu0 0.0
        %5287 = vmatprep.subr.mxu0 0.0
        %5288 = vmatpush2.msra.mxu0 0.0
        %5289 = vmatprep.mubr.f32.mxu0 0.0
        %5290 = vmatmul.mubr.f32.gmra.mxu0 %v5148
        %v5291 = vpop.f32.mrf.mxu0
        %v5292 = vadd.f32 %v5152, %v5291
        %v5293 = vpop.f32.mrf.mxu0
        %v5294 = vadd.f32 %v5153, %v5293
        %5295 = vdwg.mxu0
        %v5296 = vmul.f32 %v5221, 0.5
        %v5297 = vmul.f32 %v5223, 0.5
        %v5298 = vmul.f32 %v5292, 0.5
        %v5299 = vtanh.pop %v5296
        %v5300 = vtanh.pop %v5297
        %v5301 = vtanh.pop %v5298
        %v5302 = vmul.f32 %v5299, 0.5
        %v5303 = vmul.f32 %v5300, 0.5
        %v5304 = vmul.f32 %v5301, 0.5
        %v5305 = vadd.f32 %v5302, 0.5
        %v5306 = vadd.f32 %v5303, 0.5
        %v5307 = vadd.f32 %v5304, 0.5
        %v5308 = vtanh.pop %v5294
        %v5309 = vmul.f32 %v5306, %v5146
        %v5310 = vmul.f32 %v5305, %v5308
        %v5311 = vadd.f32 %v5309, %v5310
        %v5312 = vtanh.pop %v5311
        %v5313 = vmul.f32 %v5307, %v5312
        %5314 = vst [vmem:[%s1817] sm:$0xff] %v5313
        %v5315 = vld [vmem:[%s1819] sm:$0xff]
        %v5316 = vld [vmem:[%s1819 + $0x8] sm:$0xff]
        %v5317 = vld [vmem:[%s1819 + $0x10] sm:$0xff]
        %v5318 = vld [vmem:[%s1819 + $0x18] sm:$0xff]
        %5319 = vmatprep.subr.mxu0 %v4194
        %5320 = vmatpush1.msra.mxu0 %v4193
        %5321 = vmatprep.subr.mxu0 %v4190
        %5322 = vmatpush1.msra.mxu0 %v4189
        %5323 = vmatprep.subr.mxu0 %v4186
        %5324 = vmatpush1.msra.mxu0 %v4185
        %5325 = vmatprep.subr.mxu0 %v4182
        %5326 = vmatpush1.msra.mxu0 %v4181
        %5327 = vmatprep.subr.mxu0 %v4178
        %5328 = vmatpush1.msra.mxu0 %v4177
        %5329 = vmatprep.subr.mxu0 %v4174
        %5330 = vmatpush1.msra.mxu0 %v4173
        %5331 = vmatprep.subr.mxu0 %v4170
        %5332 = vmatpush1.msra.mxu0 %v4169
        %5333 = vmatprep.subr.mxu0 %v4166
        %5334 = vmatpush1.msra.mxu0 %v4165
        %5335 = vmatprep.subr.mxu0 %v4162
        %5336 = vmatpush1.msra.mxu0 %v4161
        %5337 = vmatprep.subr.mxu0 %v4158
        %5338 = vmatpush1.msra.mxu0 %v4157
        %5339 = vmatprep.subr.mxu0 %v4154
        %5340 = vmatpush1.msra.mxu0 %v4153
        %5341 = vmatprep.subr.mxu0 %v4150
        %5342 = vmatpush1.msra.mxu0 %v4149
        %5343 = vmatprep.subr.mxu0 %v4146
        %5344 = vmatpush1.msra.mxu0 %v4145
        %5345 = vmatprep.subr.mxu0 %v4142
        %5346 = vmatpush1.msra.mxu0 %v4141
        %5347 = vmatprep.subr.mxu0 %v4138
        %5348 = vmatpush1.msra.mxu0 %v4137
        %5349 = vmatprep.subr.mxu0 %v4134
        %5350 = vmatpush1.msra.mxu0 %v4133
        %5351 = vmatprep.subr.mxu0 0.0
        %5352 = vmatpush2.msra.mxu0 0.0
        %5353 = vmatprep.subr.mxu0 0.0
        %5354 = vmatpush2.msra.mxu0 0.0
        %5355 = vmatprep.subr.mxu0 0.0
        %5356 = vmatpush2.msra.mxu0 0.0
        %5357 = vmatprep.subr.mxu0 0.0
        %5358 = vmatpush2.msra.mxu0 0.0
        %5359 = vmatprep.subr.mxu0 0.0
        %5360 = vmatpush2.msra.mxu0 0.0
        %5361 = vmatprep.subr.mxu0 0.0
        %5362 = vmatpush2.msra.mxu0 0.0
        %5363 = vmatprep.subr.mxu0 0.0
        %5364 = vmatpush2.msra.mxu0 0.0
        %5365 = vmatprep.subr.mxu0 0.0
        %5366 = vmatpush2.msra.mxu0 0.0
        %5367 = vmatprep.subr.mxu0 0.0
        %5368 = vmatpush2.msra.mxu0 0.0
        %5369 = vmatprep.subr.mxu0 0.0
        %5370 = vmatpush2.msra.mxu0 0.0
        %5371 = vmatprep.subr.mxu0 0.0
        %5372 = vmatpush2.msra.mxu0 0.0
        %5373 = vmatprep.subr.mxu0 0.0
        %5374 = vmatpush2.msra.mxu0 0.0
        %5375 = vmatprep.subr.mxu0 0.0
        %5376 = vmatpush2.msra.mxu0 0.0
        %5377 = vmatprep.subr.mxu0 0.0
        %5378 = vmatpush2.msra.mxu0 0.0
        %5379 = vmatprep.subr.mxu0 0.0
        %5380 = vmatpush2.msra.mxu0 0.0
        %5381 = vmatprep.subr.mxu0 0.0
        %5382 = vmatpush2.msra.mxu0 0.0
        %5383 = vmatprep.mubr.f32.mxu0 0.0
        %5384 = vmatmul.mubr.f32.gmra.mxu0 %v5313
        %v5385 = vpop.f32.mrf.mxu0
        %v5386 = vadd.f32 %v5315, %v5385
        %v5387 = vpop.f32.mrf.mxu0
        %v5388 = vadd.f32 %v5316, %v5387
        %5389 = vdwg.mxu0
        %5390 = vmatprep.subr.mxu0 %v4196
        %5391 = vmatpush1.msra.mxu0 %v4195
        %5392 = vmatprep.subr.mxu0 %v4192
        %5393 = vmatpush1.msra.mxu0 %v4191
        %5394 = vmatprep.subr.mxu0 %v4188
        %5395 = vmatpush1.msra.mxu0 %v4187
        %5396 = vmatprep.subr.mxu0 %v4184
        %5397 = vmatpush1.msra.mxu0 %v4183
        %5398 = vmatprep.subr.mxu0 %v4180
        %5399 = vmatpush1.msra.mxu0 %v4179
        %5400 = vmatprep.subr.mxu0 %v4176
        %5401 = vmatpush1.msra.mxu0 %v4175
        %5402 = vmatprep.subr.mxu0 %v4172
        %5403 = vmatpush1.msra.mxu0 %v4171
        %5404 = vmatprep.subr.mxu0 %v4168
        %5405 = vmatpush1.msra.mxu0 %v4167
        %5406 = vmatprep.subr.mxu0 %v4164
        %5407 = vmatpush1.msra.mxu0 %v4163
        %5408 = vmatprep.subr.mxu0 %v4160
        %5409 = vmatpush1.msra.mxu0 %v4159
        %5410 = vmatprep.subr.mxu0 %v4156
        %5411 = vmatpush1.msra.mxu0 %v4155
        %5412 = vmatprep.subr.mxu0 %v4152
        %5413 = vmatpush1.msra.mxu0 %v4151
        %5414 = vmatprep.subr.mxu0 %v4148
        %5415 = vmatpush1.msra.mxu0 %v4147
        %5416 = vmatprep.subr.mxu0 %v4144
        %5417 = vmatpush1.msra.mxu0 %v4143
        %5418 = vmatprep.subr.mxu0 %v4140
        %5419 = vmatpush1.msra.mxu0 %v4139
        %5420 = vmatprep.subr.mxu0 %v4136
        %5421 = vmatpush1.msra.mxu0 %v4135
        %5422 = vmatprep.subr.mxu0 0.0
        %5423 = vmatpush2.msra.mxu0 0.0
        %5424 = vmatprep.subr.mxu0 0.0
        %5425 = vmatpush2.msra.mxu0 0.0
        %5426 = vmatprep.subr.mxu0 0.0
        %5427 = vmatpush2.msra.mxu0 0.0
        %5428 = vmatprep.subr.mxu0 0.0
        %5429 = vmatpush2.msra.mxu0 0.0
        %5430 = vmatprep.subr.mxu0 0.0
        %5431 = vmatpush2.msra.mxu0 0.0
        %5432 = vmatprep.subr.mxu0 0.0
        %5433 = vmatpush2.msra.mxu0 0.0
        %5434 = vmatprep.subr.mxu0 0.0
        %5435 = vmatpush2.msra.mxu0 0.0
        %5436 = vmatprep.subr.mxu0 0.0
        %5437 = vmatpush2.msra.mxu0 0.0
        %5438 = vmatprep.subr.mxu0 0.0
        %5439 = vmatpush2.msra.mxu0 0.0
        %5440 = vmatprep.subr.mxu0 0.0
        %5441 = vmatpush2.msra.mxu0 0.0
        %5442 = vmatprep.subr.mxu0 0.0
        %5443 = vmatpush2.msra.mxu0 0.0
        %5444 = vmatprep.subr.mxu0 0.0
        %5445 = vmatpush2.msra.mxu0 0.0
        %5446 = vmatprep.subr.mxu0 0.0
        %5447 = vmatpush2.msra.mxu0 0.0
        %5448 = vmatprep.subr.mxu0 0.0
        %5449 = vmatpush2.msra.mxu0 0.0
        %5450 = vmatprep.subr.mxu0 0.0
        %5451 = vmatpush2.msra.mxu0 0.0
        %5452 = vmatprep.subr.mxu0 0.0
        %5453 = vmatpush2.msra.mxu0 0.0
        %5454 = vmatprep.mubr.f32.mxu0 0.0
        %5455 = vmatmul.mubr.f32.gmra.mxu0 %v5313
        %v5456 = vpop.f32.mrf.mxu0
        %v5457 = vadd.f32 %v5317, %v5456
        %v5458 = vpop.f32.mrf.mxu0
        %v5459 = vadd.f32 %v5318, %v5458
        %5460 = vdwg.mxu0
        %v5461 = vmul.f32 %v5386, 0.5
        %v5462 = vmul.f32 %v5388, 0.5
        %v5463 = vmul.f32 %v5457, 0.5
        %v5464 = vtanh.pop %v5461
        %v5465 = vtanh.pop %v5462
        %v5466 = vtanh.pop %v5463
        %v5467 = vmul.f32 %v5464, 0.5
        %v5468 = vmul.f32 %v5465, 0.5
        %v5469 = vmul.f32 %v5466, 0.5
        %v5470 = vadd.f32 %v5467, 0.5
        %v5471 = vadd.f32 %v5468, 0.5
        %v5472 = vadd.f32 %v5469, 0.5
        %v5473 = vtanh.pop %v5459
        %v5474 = vmul.f32 %v5471, %v5311
        %v5475 = vmul.f32 %v5470, %v5473
        %v5476 = vadd.f32 %v5474, %v5475
        %v5477 = vtanh.pop %v5476
        %v5478 = vmul.f32 %v5472, %v5477
        %5479 = vst [vmem:[%s1984] sm:$0xff] %v5478
        %v5480 = vld [vmem:[%s1986] sm:$0xff]
        %v5481 = vld [vmem:[%s1986 + $0x8] sm:$0xff]
        %v5482 = vld [vmem:[%s1986 + $0x10] sm:$0xff]
        %v5483 = vld [vmem:[%s1986 + $0x18] sm:$0xff]
        %5484 = vmatprep.subr.mxu0 %v4194
        %5485 = vmatpush1.msra.mxu0 %v4193
        %5486 = vmatprep.subr.mxu0 %v4190
        %5487 = vmatpush1.msra.mxu0 %v4189
        %5488 = vmatprep.subr.mxu0 %v4186
        %5489 = vmatpush1.msra.mxu0 %v4185
        %5490 = vmatprep.subr.mxu0 %v4182
        %5491 = vmatpush1.msra.mxu0 %v4181
        %5492 = vmatprep.subr.mxu0 %v4178
        %5493 = vmatpush1.msra.mxu0 %v4177
        %5494 = vmatprep.subr.mxu0 %v4174
        %5495 = vmatpush1.msra.mxu0 %v4173
        %5496 = vmatprep.subr.mxu0 %v4170
        %5497 = vmatpush1.msra.mxu0 %v4169
        %5498 = vmatprep.subr.mxu0 %v4166
        %5499 = vmatpush1.msra.mxu0 %v4165
        %5500 = vmatprep.subr.mxu0 %v4162
        %5501 = vmatpush1.msra.mxu0 %v4161
        %5502 = vmatprep.subr.mxu0 %v4158
        %5503 = vmatpush1.msra.mxu0 %v4157
        %5504 = vmatprep.subr.mxu0 %v4154
        %5505 = vmatpush1.msra.mxu0 %v4153
        %5506 = vmatprep.subr.mxu0 %v4150
        %5507 = vmatpush1.msra.mxu0 %v4149
        %5508 = vmatprep.subr.mxu0 %v4146
        %5509 = vmatpush1.msra.mxu0 %v4145
        %5510 = vmatprep.subr.mxu0 %v4142
        %5511 = vmatpush1.msra.mxu0 %v4141
        %5512 = vmatprep.subr.mxu0 %v4138
        %5513 = vmatpush1.msra.mxu0 %v4137
        %5514 = vmatprep.subr.mxu0 %v4134
        %5515 = vmatpush1.msra.mxu0 %v4133
        %5516 = vmatprep.subr.mxu0 0.0
        %5517 = vmatpush2.msra.mxu0 0.0
        %5518 = vmatprep.subr.mxu0 0.0
        %5519 = vmatpush2.msra.mxu0 0.0
        %5520 = vmatprep.subr.mxu0 0.0
        %5521 = vmatpush2.msra.mxu0 0.0
        %5522 = vmatprep.subr.mxu0 0.0
        %5523 = vmatpush2.msra.mxu0 0.0
        %5524 = vmatprep.subr.mxu0 0.0
        %5525 = vmatpush2.msra.mxu0 0.0
        %5526 = vmatprep.subr.mxu0 0.0
        %5527 = vmatpush2.msra.mxu0 0.0
        %5528 = vmatprep.subr.mxu0 0.0
        %5529 = vmatpush2.msra.mxu0 0.0
        %5530 = vmatprep.subr.mxu0 0.0
        %5531 = vmatpush2.msra.mxu0 0.0
        %5532 = vmatprep.subr.mxu0 0.0
        %5533 = vmatpush2.msra.mxu0 0.0
        %5534 = vmatprep.subr.mxu0 0.0
        %5535 = vmatpush2.msra.mxu0 0.0
        %5536 = vmatprep.subr.mxu0 0.0
        %5537 = vmatpush2.msra.mxu0 0.0
        %5538 = vmatprep.subr.mxu0 0.0
        %5539 = vmatpush2.msra.mxu0 0.0
        %5540 = vmatprep.subr.mxu0 0.0
        %5541 = vmatpush2.msra.mxu0 0.0
        %5542 = vmatprep.subr.mxu0 0.0
        %5543 = vmatpush2.msra.mxu0 0.0
        %5544 = vmatprep.subr.mxu0 0.0
        %5545 = vmatpush2.msra.mxu0 0.0
        %5546 = vmatprep.subr.mxu0 0.0
        %5547 = vmatpush2.msra.mxu0 0.0
        %5548 = vmatprep.mubr.f32.mxu0 0.0
        %5549 = vmatmul.mubr.f32.gmra.mxu0 %v5478
        %v5550 = vpop.f32.mrf.mxu0
        %v5551 = vadd.f32 %v5480, %v5550
        %v5552 = vpop.f32.mrf.mxu0
        %v5553 = vadd.f32 %v5481, %v5552
        %5554 = vdwg.mxu0
        %5555 = vmatprep.subr.mxu0 %v4196
        %5556 = vmatpush1.msra.mxu0 %v4195
        %5557 = vmatprep.subr.mxu0 %v4192
        %5558 = vmatpush1.msra.mxu0 %v4191
        %5559 = vmatprep.subr.mxu0 %v4188
        %5560 = vmatpush1.msra.mxu0 %v4187
        %5561 = vmatprep.subr.mxu0 %v4184
        %5562 = vmatpush1.msra.mxu0 %v4183
        %5563 = vmatprep.subr.mxu0 %v4180
        %5564 = vmatpush1.msra.mxu0 %v4179
        %5565 = vmatprep.subr.mxu0 %v4176
        %5566 = vmatpush1.msra.mxu0 %v4175
        %5567 = vmatprep.subr.mxu0 %v4172
        %5568 = vmatpush1.msra.mxu0 %v4171
        %5569 = vmatprep.subr.mxu0 %v4168
        %5570 = vmatpush1.msra.mxu0 %v4167
        %5571 = vmatprep.subr.mxu0 %v4164
        %5572 = vmatpush1.msra.mxu0 %v4163
        %5573 = vmatprep.subr.mxu0 %v4160
        %5574 = vmatpush1.msra.mxu0 %v4159
        %5575 = vmatprep.subr.mxu0 %v4156
        %5576 = vmatpush1.msra.mxu0 %v4155
        %5577 = vmatprep.subr.mxu0 %v4152
        %5578 = vmatpush1.msra.mxu0 %v4151
        %5579 = vmatprep.subr.mxu0 %v4148
        %5580 = vmatpush1.msra.mxu0 %v4147
        %5581 = vmatprep.subr.mxu0 %v4144
        %5582 = vmatpush1.msra.mxu0 %v4143
        %5583 = vmatprep.subr.mxu0 %v4140
        %5584 = vmatpush1.msra.mxu0 %v4139
        %5585 = vmatprep.subr.mxu0 %v4136
        %5586 = vmatpush1.msra.mxu0 %v4135
        %5587 = vmatprep.subr.mxu0 0.0
        %5588 = vmatpush2.msra.mxu0 0.0
        %5589 = vmatprep.subr.mxu0 0.0
        %5590 = vmatpush2.msra.mxu0 0.0
        %5591 = vmatprep.subr.mxu0 0.0
        %5592 = vmatpush2.msra.mxu0 0.0
        %5593 = vmatprep.subr.mxu0 0.0
        %5594 = vmatpush2.msra.mxu0 0.0
        %5595 = vmatprep.subr.mxu0 0.0
        %5596 = vmatpush2.msra.mxu0 0.0
        %5597 = vmatprep.subr.mxu0 0.0
        %5598 = vmatpush2.msra.mxu0 0.0
        %5599 = vmatprep.subr.mxu0 0.0
        %5600 = vmatpush2.msra.mxu0 0.0
        %5601 = vmatprep.subr.mxu0 0.0
        %5602 = vmatpush2.msra.mxu0 0.0
        %5603 = vmatprep.subr.mxu0 0.0
        %5604 = vmatpush2.msra.mxu0 0.0
        %5605 = vmatprep.subr.mxu0 0.0
        %5606 = vmatpush2.msra.mxu0 0.0
        %5607 = vmatprep.subr.mxu0 0.0
        %5608 = vmatpush2.msra.mxu0 0.0
        %5609 = vmatprep.subr.mxu0 0.0
        %5610 = vmatpush2.msra.mxu0 0.0
        %5611 = vmatprep.subr.mxu0 0.0
        %5612 = vmatpush2.msra.mxu0 0.0
        %5613 = vmatprep.subr.mxu0 0.0
        %5614 = vmatpush2.msra.mxu0 0.0
        %5615 = vmatprep.subr.mxu0 0.0
        %5616 = vmatpush2.msra.mxu0 0.0
        %5617 = vmatprep.subr.mxu0 0.0
        %5618 = vmatpush2.msra.mxu0 0.0
        %5619 = vmatprep.mubr.f32.mxu0 0.0
        %5620 = vmatmul.mubr.f32.gmra.mxu0 %v5478
        %v5621 = vpop.f32.mrf.mxu0
        %v5622 = vadd.f32 %v5482, %v5621
        %v5623 = vpop.f32.mrf.mxu0
        %v5624 = vadd.f32 %v5483, %v5623
        %5625 = vdwg.mxu0
        %v5626 = vmul.f32 %v5551, 0.5
        %v5627 = vmul.f32 %v5553, 0.5
        %v5628 = vmul.f32 %v5622, 0.5
        %v5629 = vtanh.pop %v5626
        %v5630 = vtanh.pop %v5627
        %v5631 = vtanh.pop %v5628
        %v5632 = vmul.f32 %v5629, 0.5
        %v5633 = vmul.f32 %v5630, 0.5
        %v5634 = vmul.f32 %v5631, 0.5
        %v5635 = vadd.f32 %v5632, 0.5
        %v5636 = vadd.f32 %v5633, 0.5
        %v5637 = vadd.f32 %v5634, 0.5
        %v5638 = vtanh.pop %v5624
        %v5639 = vmul.f32 %v5636, %v5476
        %v5640 = vmul.f32 %v5635, %v5638
        %v5641 = vadd.f32 %v5639, %v5640
        %v5642 = vtanh.pop %v5641
        %v5643 = vmul.f32 %v5637, %v5642
        %5644 = vst [vmem:[%s2151] sm:$0xff] %v5643
        %v5645 = vld [vmem:[%s2153] sm:$0xff]
        %v5646 = vld [vmem:[%s2153 + $0x8] sm:$0xff]
        %v5647 = vld [vmem:[%s2153 + $0x10] sm:$0xff]
        %v5648 = vld [vmem:[%s2153 + $0x18] sm:$0xff]
        %5649 = vmatprep.subr.mxu0 %v4194
        %5650 = vmatpush1.msra.mxu0 %v4193
        %5651 = vmatprep.subr.mxu0 %v4190
        %5652 = vmatpush1.msra.mxu0 %v4189
        %5653 = vmatprep.subr.mxu0 %v4186
        %5654 = vmatpush1.msra.mxu0 %v4185
        %5655 = vmatprep.subr.mxu0 %v4182
        %5656 = vmatpush1.msra.mxu0 %v4181
        %5657 = vmatprep.subr.mxu0 %v4178
        %5658 = vmatpush1.msra.mxu0 %v4177
        %5659 = vmatprep.subr.mxu0 %v4174
        %5660 = vmatpush1.msra.mxu0 %v4173
        %5661 = vmatprep.subr.mxu0 %v4170
        %5662 = vmatpush1.msra.mxu0 %v4169
        %5663 = vmatprep.subr.mxu0 %v4166
        %5664 = vmatpush1.msra.mxu0 %v4165
        %5665 = vmatprep.subr.mxu0 %v4162
        %5666 = vmatpush1.msra.mxu0 %v4161
        %5667 = vmatprep.subr.mxu0 %v4158
        %5668 = vmatpush1.msra.mxu0 %v4157
        %5669 = vmatprep.subr.mxu0 %v4154
        %5670 = vmatpush1.msra.mxu0 %v4153
        %5671 = vmatprep.subr.mxu0 %v4150
        %5672 = vmatpush1.msra.mxu0 %v4149
        %5673 = vmatprep.subr.mxu0 %v4146
        %5674 = vmatpush1.msra.mxu0 %v4145
        %5675 = vmatprep.subr.mxu0 %v4142
        %5676 = vmatpush1.msra.mxu0 %v4141
        %5677 = vmatprep.subr.mxu0 %v4138
        %5678 = vmatpush1.msra.mxu0 %v4137
        %5679 = vmatprep.subr.mxu0 %v4134
        %5680 = vmatpush1.msra.mxu0 %v4133
        %5681 = vmatprep.subr.mxu0 0.0
        %5682 = vmatpush2.msra.mxu0 0.0
        %5683 = vmatprep.subr.mxu0 0.0
        %5684 = vmatpush2.msra.mxu0 0.0
        %5685 = vmatprep.subr.mxu0 0.0
        %5686 = vmatpush2.msra.mxu0 0.0
        %5687 = vmatprep.subr.mxu0 0.0
        %5688 = vmatpush2.msra.mxu0 0.0
        %5689 = vmatprep.subr.mxu0 0.0
        %5690 = vmatpush2.msra.mxu0 0.0
        %5691 = vmatprep.subr.mxu0 0.0
        %5692 = vmatpush2.msra.mxu0 0.0
        %5693 = vmatprep.subr.mxu0 0.0
        %5694 = vmatpush2.msra.mxu0 0.0
        %5695 = vmatprep.subr.mxu0 0.0
        %5696 = vmatpush2.msra.mxu0 0.0
        %5697 = vmatprep.subr.mxu0 0.0
        %5698 = vmatpush2.msra.mxu0 0.0
        %5699 = vmatprep.subr.mxu0 0.0
        %5700 = vmatpush2.msra.mxu0 0.0
        %5701 = vmatprep.subr.mxu0 0.0
        %5702 = vmatpush2.msra.mxu0 0.0
        %5703 = vmatprep.subr.mxu0 0.0
        %5704 = vmatpush2.msra.mxu0 0.0
        %5705 = vmatprep.subr.mxu0 0.0
        %5706 = vmatpush2.msra.mxu0 0.0
        %5707 = vmatprep.subr.mxu0 0.0
        %5708 = vmatpush2.msra.mxu0 0.0
        %5709 = vmatprep.subr.mxu0 0.0
        %5710 = vmatpush2.msra.mxu0 0.0
        %5711 = vmatprep.subr.mxu0 0.0
        %5712 = vmatpush2.msra.mxu0 0.0
        %5713 = vmatprep.mubr.f32.mxu0 0.0
        %5714 = vmatmul.mubr.f32.gmra.mxu0 %v5643
        %v5715 = vpop.f32.mrf.mxu0
        %v5716 = vadd.f32 %v5645, %v5715
        %v5717 = vpop.f32.mrf.mxu0
        %v5718 = vadd.f32 %v5646, %v5717
        %5719 = vdwg.mxu0
        %5720 = vmatprep.subr.mxu0 %v4196
        %5721 = vmatpush1.msra.mxu0 %v4195
        %5722 = vmatprep.subr.mxu0 %v4192
        %5723 = vmatpush1.msra.mxu0 %v4191
        %5724 = vmatprep.subr.mxu0 %v4188
        %5725 = vmatpush1.msra.mxu0 %v4187
        %5726 = vmatprep.subr.mxu0 %v4184
        %5727 = vmatpush1.msra.mxu0 %v4183
        %5728 = vmatprep.subr.mxu0 %v4180
        %5729 = vmatpush1.msra.mxu0 %v4179
        %5730 = vmatprep.subr.mxu0 %v4176
        %5731 = vmatpush1.msra.mxu0 %v4175
        %5732 = vmatprep.subr.mxu0 %v4172
        %5733 = vmatpush1.msra.mxu0 %v4171
        %5734 = vmatprep.subr.mxu0 %v4168
        %5735 = vmatpush1.msra.mxu0 %v4167
        %5736 = vmatprep.subr.mxu0 %v4164
        %5737 = vmatpush1.msra.mxu0 %v4163
        %5738 = vmatprep.subr.mxu0 %v4160
        %5739 = vmatpush1.msra.mxu0 %v4159
        %5740 = vmatprep.subr.mxu0 %v4156
        %5741 = vmatpush1.msra.mxu0 %v4155
        %5742 = vmatprep.subr.mxu0 %v4152
        %5743 = vmatpush1.msra.mxu0 %v4151
        %5744 = vmatprep.subr.mxu0 %v4148
        %5745 = vmatpush1.msra.mxu0 %v4147
        %5746 = vmatprep.subr.mxu0 %v4144
        %5747 = vmatpush1.msra.mxu0 %v4143
        %5748 = vmatprep.subr.mxu0 %v4140
        %5749 = vmatpush1.msra.mxu0 %v4139
        %5750 = vmatprep.subr.mxu0 %v4136
        %5751 = vmatpush1.msra.mxu0 %v4135
        %5752 = vmatprep.subr.mxu0 0.0
        %5753 = vmatpush2.msra.mxu0 0.0
        %5754 = vmatprep.subr.mxu0 0.0
        %5755 = vmatpush2.msra.mxu0 0.0
        %5756 = vmatprep.subr.mxu0 0.0
        %5757 = vmatpush2.msra.mxu0 0.0
        %5758 = vmatprep.subr.mxu0 0.0
        %5759 = vmatpush2.msra.mxu0 0.0
        %5760 = vmatprep.subr.mxu0 0.0
        %5761 = vmatpush2.msra.mxu0 0.0
        %5762 = vmatprep.subr.mxu0 0.0
        %5763 = vmatpush2.msra.mxu0 0.0
        %5764 = vmatprep.subr.mxu0 0.0
        %5765 = vmatpush2.msra.mxu0 0.0
        %5766 = vmatprep.subr.mxu0 0.0
        %5767 = vmatpush2.msra.mxu0 0.0
        %5768 = vmatprep.subr.mxu0 0.0
        %5769 = vmatpush2.msra.mxu0 0.0
        %5770 = vmatprep.subr.mxu0 0.0
        %5771 = vmatpush2.msra.mxu0 0.0
        %5772 = vmatprep.subr.mxu0 0.0
        %5773 = vmatpush2.msra.mxu0 0.0
        %5774 = vmatprep.subr.mxu0 0.0
        %5775 = vmatpush2.msra.mxu0 0.0
        %5776 = vmatprep.subr.mxu0 0.0
        %5777 = vmatpush2.msra.mxu0 0.0
        %5778 = vmatprep.subr.mxu0 0.0
        %5779 = vmatpush2.msra.mxu0 0.0
        %5780 = vmatprep.subr.mxu0 0.0
        %5781 = vmatpush2.msra.mxu0 0.0
        %5782 = vmatprep.subr.mxu0 0.0
        %5783 = vmatpush2.msra.mxu0 0.0
        %5784 = vmatprep.mubr.f32.mxu0 0.0
        %5785 = vmatmul.mubr.f32.gmra.mxu0 %v5643
        %v5786 = vpop.f32.mrf.mxu0
        %v5787 = vadd.f32 %v5647, %v5786
        %v5788 = vpop.f32.mrf.mxu0
        %v5789 = vadd.f32 %v5648, %v5788
        %5790 = vdwg.mxu0
        %v5791 = vmul.f32 %v5716, 0.5
        %v5792 = vmul.f32 %v5718, 0.5
        %v5793 = vmul.f32 %v5787, 0.5
        %v5794 = vtanh.pop %v5791
        %v5795 = vtanh.pop %v5792
        %v5796 = vtanh.pop %v5793
        %v5797 = vmul.f32 %v5794, 0.5
        %v5798 = vmul.f32 %v5795, 0.5
        %v5799 = vmul.f32 %v5796, 0.5
        %v5800 = vadd.f32 %v5797, 0.5
        %v5801 = vadd.f32 %v5798, 0.5
        %v5802 = vadd.f32 %v5799, 0.5
        %v5803 = vtanh.pop %v5789
        %v5804 = vmul.f32 %v5801, %v5641
        %v5805 = vmul.f32 %v5800, %v5803
        %v5806 = vadd.f32 %v5804, %v5805
        %v5807 = vtanh.pop %v5806
        %v5808 = vmul.f32 %v5802, %v5807
        %5809 = vst [vmem:[%s2318] sm:$0xff] %v5808
        %5810 = vst [vmem:[%s4486] sm:$0xff] %v5808
        %5811 = vst [vmem:[%s4488] sm:$0xff] %v5806
        %s5812 = scalar_lea.vmem [#allocation9], 1536
        %v5813 = vld [vmem:[%s5812] sm:$0xff]
        %v5814 = vld [vmem:[%s5812 + $0x8] sm:$0xff]
        %v5815 = vld [vmem:[%s5812 + $0x10] sm:$0xff]
        %v5816 = vld [vmem:[%s5812 + $0x18] sm:$0xff]
        %v5817 = vld [vmem:[%s5812 + $0x20] sm:$0xff]
        %v5818 = vld [vmem:[%s5812 + $0x28] sm:$0xff]
        %v5819 = vld [vmem:[%s5812 + $0x30] sm:$0xff]
        %v5820 = vld [vmem:[%s5812 + $0x38] sm:$0xff]
        %v5821 = vld [vmem:[%s5812 + $0x40] sm:$0xff]
        %v5822 = vld [vmem:[%s5812 + $0x48] sm:$0xff]
        %v5823 = vld [vmem:[%s5812 + $0x50] sm:$0xff]
        %v5824 = vld [vmem:[%s5812 + $0x58] sm:$0xff]
        %v5825 = vld [vmem:[%s5812 + $0x60] sm:$0xff]
        %v5826 = vld [vmem:[%s5812 + $0x68] sm:$0xff]
        %v5827 = vld [vmem:[%s5812 + $0x70] sm:$0xff]
        %v5828 = vld [vmem:[%s5812 + $0x78] sm:$0xff]
        %v5829 = vld [vmem:[%s5812 + $0x80] sm:$0xff]
        %v5830 = vld [vmem:[%s5812 + $0x88] sm:$0xff]
        %v5831 = vld [vmem:[%s5812 + $0x90] sm:$0xff]
        %v5832 = vld [vmem:[%s5812 + $0x98] sm:$0xff]
        %v5833 = vld [vmem:[%s5812 + $0xa0] sm:$0xff]
        %v5834 = vld [vmem:[%s5812 + $0xa8] sm:$0xff]
        %v5835 = vld [vmem:[%s5812 + $0xb0] sm:$0xff]
        %v5836 = vld [vmem:[%s5812 + $0xb8] sm:$0xff]
        %v5837 = vld [vmem:[%s5812 + $0xc0] sm:$0xff]
        %v5838 = vld [vmem:[%s5812 + $0xc8] sm:$0xff]
        %v5839 = vld [vmem:[%s5812 + $0xd0] sm:$0xff]
        %v5840 = vld [vmem:[%s5812 + $0xd8] sm:$0xff]
        %v5841 = vld [vmem:[%s5812 + $0xe0] sm:$0xff]
        %v5842 = vld [vmem:[%s5812 + $0xe8] sm:$0xff]
        %v5843 = vld [vmem:[%s5812 + $0xf0] sm:$0xff]
        %v5844 = vld [vmem:[%s5812 + $0xf8] sm:$0xff]
        %v5845 = vld [vmem:[%s5812 + $0x100] sm:$0xff]
        %v5846 = vld [vmem:[%s5812 + $0x108] sm:$0xff]
        %v5847 = vld [vmem:[%s5812 + $0x110] sm:$0xff]
        %v5848 = vld [vmem:[%s5812 + $0x118] sm:$0xff]
        %v5849 = vld [vmem:[%s5812 + $0x120] sm:$0xff]
        %v5850 = vld [vmem:[%s5812 + $0x128] sm:$0xff]
        %v5851 = vld [vmem:[%s5812 + $0x130] sm:$0xff]
        %v5852 = vld [vmem:[%s5812 + $0x138] sm:$0xff]
        %v5853 = vld [vmem:[%s5812 + $0x140] sm:$0xff]
        %v5854 = vld [vmem:[%s5812 + $0x148] sm:$0xff]
        %v5855 = vld [vmem:[%s5812 + $0x150] sm:$0xff]
        %v5856 = vld [vmem:[%s5812 + $0x158] sm:$0xff]
        %v5857 = vld [vmem:[%s5812 + $0x160] sm:$0xff]
        %v5858 = vld [vmem:[%s5812 + $0x168] sm:$0xff]
        %v5859 = vld [vmem:[%s5812 + $0x170] sm:$0xff]
        %v5860 = vld [vmem:[%s5812 + $0x178] sm:$0xff]
        %v5861 = vld [vmem:[%s5812 + $0x180] sm:$0xff]
        %v5862 = vld [vmem:[%s5812 + $0x188] sm:$0xff]
        %v5863 = vld [vmem:[%s5812 + $0x190] sm:$0xff]
        %v5864 = vld [vmem:[%s5812 + $0x198] sm:$0xff]
        %v5865 = vld [vmem:[%s5812 + $0x1a0] sm:$0xff]
        %v5866 = vld [vmem:[%s5812 + $0x1a8] sm:$0xff]
        %v5867 = vld [vmem:[%s5812 + $0x1b0] sm:$0xff]
        %v5868 = vld [vmem:[%s5812 + $0x1b8] sm:$0xff]
        %v5869 = vld [vmem:[%s5812 + $0x1c0] sm:$0xff]
        %v5870 = vld [vmem:[%s5812 + $0x1c8] sm:$0xff]
        %v5871 = vld [vmem:[%s5812 + $0x1d0] sm:$0xff]
        %v5872 = vld [vmem:[%s5812 + $0x1d8] sm:$0xff]
        %v5873 = vld [vmem:[%s5812 + $0x1e0] sm:$0xff]
        %v5874 = vld [vmem:[%s5812 + $0x1e8] sm:$0xff]
        %v5875 = vld [vmem:[%s5812 + $0x1f0] sm:$0xff]
        %v5876 = vld [vmem:[%s5812 + $0x1f8] sm:$0xff]
        %s5877 = scalar_lea.vmem [#allocation11], 1536
        %v5878 = vld [vmem:[%s5877] sm:$0xff]
        %v5879 = vld [vmem:[%s5877 + $0x8] sm:$0xff]
        %v5880 = vld [vmem:[%s5877 + $0x10] sm:$0xff]
        %v5881 = vld [vmem:[%s5877 + $0x18] sm:$0xff]
        %v5882 = vld [vmem:[%s5877 + $0x20] sm:$0xff]
        %v5883 = vld [vmem:[%s5877 + $0x28] sm:$0xff]
        %v5884 = vld [vmem:[%s5877 + $0x30] sm:$0xff]
        %v5885 = vld [vmem:[%s5877 + $0x38] sm:$0xff]
        %v5886 = vld [vmem:[%s5877 + $0x40] sm:$0xff]
        %v5887 = vld [vmem:[%s5877 + $0x48] sm:$0xff]
        %v5888 = vld [vmem:[%s5877 + $0x50] sm:$0xff]
        %v5889 = vld [vmem:[%s5877 + $0x58] sm:$0xff]
        %v5890 = vld [vmem:[%s5877 + $0x60] sm:$0xff]
        %v5891 = vld [vmem:[%s5877 + $0x68] sm:$0xff]
        %v5892 = vld [vmem:[%s5877 + $0x70] sm:$0xff]
        %v5893 = vld [vmem:[%s5877 + $0x78] sm:$0xff]
        %v5894 = vld [vmem:[%s5877 + $0x80] sm:$0xff]
        %v5895 = vld [vmem:[%s5877 + $0x88] sm:$0xff]
        %v5896 = vld [vmem:[%s5877 + $0x90] sm:$0xff]
        %v5897 = vld [vmem:[%s5877 + $0x98] sm:$0xff]
        %v5898 = vld [vmem:[%s5877 + $0xa0] sm:$0xff]
        %v5899 = vld [vmem:[%s5877 + $0xa8] sm:$0xff]
        %v5900 = vld [vmem:[%s5877 + $0xb0] sm:$0xff]
        %v5901 = vld [vmem:[%s5877 + $0xb8] sm:$0xff]
        %v5902 = vld [vmem:[%s5877 + $0xc0] sm:$0xff]
        %v5903 = vld [vmem:[%s5877 + $0xc8] sm:$0xff]
        %v5904 = vld [vmem:[%s5877 + $0xd0] sm:$0xff]
        %v5905 = vld [vmem:[%s5877 + $0xd8] sm:$0xff]
        %v5906 = vld [vmem:[%s5877 + $0xe0] sm:$0xff]
        %v5907 = vld [vmem:[%s5877 + $0xe8] sm:$0xff]
        %v5908 = vld [vmem:[%s5877 + $0xf0] sm:$0xff]
        %v5909 = vld [vmem:[%s5877 + $0xf8] sm:$0xff]
        %v5910 = vld [vmem:[%s5877 + $0x100] sm:$0xff]
        %v5911 = vld [vmem:[%s5877 + $0x108] sm:$0xff]
        %v5912 = vld [vmem:[%s5877 + $0x110] sm:$0xff]
        %v5913 = vld [vmem:[%s5877 + $0x118] sm:$0xff]
        %v5914 = vld [vmem:[%s5877 + $0x120] sm:$0xff]
        %v5915 = vld [vmem:[%s5877 + $0x128] sm:$0xff]
        %v5916 = vld [vmem:[%s5877 + $0x130] sm:$0xff]
        %v5917 = vld [vmem:[%s5877 + $0x138] sm:$0xff]
        %v5918 = vld [vmem:[%s5877 + $0x140] sm:$0xff]
        %v5919 = vld [vmem:[%s5877 + $0x148] sm:$0xff]
        %v5920 = vld [vmem:[%s5877 + $0x150] sm:$0xff]
        %v5921 = vld [vmem:[%s5877 + $0x158] sm:$0xff]
        %v5922 = vld [vmem:[%s5877 + $0x160] sm:$0xff]
        %v5923 = vld [vmem:[%s5877 + $0x168] sm:$0xff]
        %v5924 = vld [vmem:[%s5877 + $0x170] sm:$0xff]
        %v5925 = vld [vmem:[%s5877 + $0x178] sm:$0xff]
        %v5926 = vld [vmem:[%s5877 + $0x180] sm:$0xff]
        %v5927 = vld [vmem:[%s5877 + $0x188] sm:$0xff]
        %v5928 = vld [vmem:[%s5877 + $0x190] sm:$0xff]
        %v5929 = vld [vmem:[%s5877 + $0x198] sm:$0xff]
        %v5930 = vld [vmem:[%s5877 + $0x1a0] sm:$0xff]
        %v5931 = vld [vmem:[%s5877 + $0x1a8] sm:$0xff]
        %v5932 = vld [vmem:[%s5877 + $0x1b0] sm:$0xff]
        %v5933 = vld [vmem:[%s5877 + $0x1b8] sm:$0xff]
        %v5934 = vld [vmem:[%s5877 + $0x1c0] sm:$0xff]
        %v5935 = vld [vmem:[%s5877 + $0x1c8] sm:$0xff]
        %v5936 = vld [vmem:[%s5877 + $0x1d0] sm:$0xff]
        %v5937 = vld [vmem:[%s5877 + $0x1d8] sm:$0xff]
        %v5938 = vld [vmem:[%s5877 + $0x1e0] sm:$0xff]
        %v5939 = vld [vmem:[%s5877 + $0x1e8] sm:$0xff]
        %v5940 = vld [vmem:[%s5877 + $0x1f0] sm:$0xff]
        %v5941 = vld [vmem:[%s5877 + $0x1f8] sm:$0xff]
        %s5942 = scalar_lea.vmem [#allocation12], 12
        %v5943 = vld [vmem:[%s5942] sm:$0xf]
        %v5944 = vld [vmem:[#allocation4] sm:$0xff]
        %v5945 = vld [vmem:[#allocation4 + $0x8] sm:$0xff]
        %v5946 = vld [vmem:[#allocation4 + $0x10] sm:$0xff]
        %v5947 = vld [vmem:[#allocation4 + $0x18] sm:$0xff]
        %v5948 = vld [vmem:[#allocation4 + $0x20] sm:$0xff]
        %v5949 = vld [vmem:[#allocation4 + $0x28] sm:$0xff]
        %v5950 = vld [vmem:[#allocation4 + $0x30] sm:$0xff]
        %v5951 = vld [vmem:[#allocation4 + $0x38] sm:$0xff]
        %v5953 = vlaneseq
        %v5954 = vshrl.u32 %v5953, 7
        %v5955 = vsub.s32 0, %v5954
        %v5956 = vrot.slane %v5943, %v5955
        %v5957 = vlaneseq
        %v5958 = vshrl.u32 %v5957, 7
        %v5959 = vsub.s32 1, %v5958
        %v5960 = vrot.slane %v5943, %v5959
        %v5961 = vlaneseq
        %v5962 = vshrl.u32 %v5961, 7
        %v5963 = vsub.s32 2, %v5962
        %v5964 = vrot.slane %v5943, %v5963
        %v5965 = vlaneseq
        %v5966 = vshrl.u32 %v5965, 7
        %v5967 = vsub.s32 3, %v5966
        %v5968 = vrot.slane %v5943, %v5967
        %5973 = vmatprep.subr.mxu0 %v5874
        %5974 = vmatpush1.msra.mxu0 %v5873
        %5975 = vmatprep.subr.mxu0 %v5870
        %5976 = vmatpush1.msra.mxu0 %v5869
        %5977 = vmatprep.subr.mxu0 %v5866
        %5978 = vmatpush1.msra.mxu0 %v5865
        %5979 = vmatprep.subr.mxu0 %v5862
        %5980 = vmatpush1.msra.mxu0 %v5861
        %5981 = vmatprep.subr.mxu0 %v5858
        %5982 = vmatpush1.msra.mxu0 %v5857
        %5983 = vmatprep.subr.mxu0 %v5854
        %5984 = vmatpush1.msra.mxu0 %v5853
        %5985 = vmatprep.subr.mxu0 %v5850
        %5986 = vmatpush1.msra.mxu0 %v5849
        %5987 = vmatprep.subr.mxu0 %v5846
        %5988 = vmatpush1.msra.mxu0 %v5845
        %5989 = vmatprep.subr.mxu0 %v5842
        %5990 = vmatpush1.msra.mxu0 %v5841
        %5991 = vmatprep.subr.mxu0 %v5838
        %5992 = vmatpush1.msra.mxu0 %v5837
        %5993 = vmatprep.subr.mxu0 %v5834
        %5994 = vmatpush1.msra.mxu0 %v5833
        %5995 = vmatprep.subr.mxu0 %v5830
        %5996 = vmatpush1.msra.mxu0 %v5829
        %5997 = vmatprep.subr.mxu0 %v5826
        %5998 = vmatpush1.msra.mxu0 %v5825
        %5999 = vmatprep.subr.mxu0 %v5822
        %6000 = vmatpush1.msra.mxu0 %v5821
        %6001 = vmatprep.subr.mxu0 %v5818
        %6002 = vmatpush1.msra.mxu0 %v5817
        %6003 = vmatprep.subr.mxu0 %v5814
        %6004 = vmatpush1.msra.mxu0 %v5813
        %6005 = vmatprep.subr.mxu0 0.0
        %6006 = vmatpush2.msra.mxu0 0.0
        %6007 = vmatprep.subr.mxu0 0.0
        %6008 = vmatpush2.msra.mxu0 0.0
        %6009 = vmatprep.subr.mxu0 0.0
        %6010 = vmatpush2.msra.mxu0 0.0
        %6011 = vmatprep.subr.mxu0 0.0
        %6012 = vmatpush2.msra.mxu0 0.0
        %6013 = vmatprep.subr.mxu0 0.0
        %6014 = vmatpush2.msra.mxu0 0.0
        %6015 = vmatprep.subr.mxu0 0.0
        %6016 = vmatpush2.msra.mxu0 0.0
        %6017 = vmatprep.subr.mxu0 0.0
        %6018 = vmatpush2.msra.mxu0 0.0
        %6019 = vmatprep.subr.mxu0 0.0
        %6020 = vmatpush2.msra.mxu0 0.0
        %6021 = vmatprep.subr.mxu0 0.0
        %6022 = vmatpush2.msra.mxu0 0.0
        %6023 = vmatprep.subr.mxu0 0.0
        %6024 = vmatpush2.msra.mxu0 0.0
        %6025 = vmatprep.subr.mxu0 0.0
        %6026 = vmatpush2.msra.mxu0 0.0
        %6027 = vmatprep.subr.mxu0 0.0
        %6028 = vmatpush2.msra.mxu0 0.0
        %6029 = vmatprep.subr.mxu0 0.0
        %6030 = vmatpush2.msra.mxu0 0.0
        %6031 = vmatprep.subr.mxu0 0.0
        %6032 = vmatpush2.msra.mxu0 0.0
        %6033 = vmatprep.subr.mxu0 0.0
        %6034 = vmatpush2.msra.mxu0 0.0
        %6035 = vmatprep.subr.mxu0 0.0
        %6036 = vmatpush2.msra.mxu0 0.0
        %6037 = vmatprep.mubr.f32.mxu0 0.0
        %6038 = vmatmul.mubr.f32.gmra.mxu0 %v5944
        %v6039 = vpop.f32.mrf.mxu0
        %v6040 = vadd.f32 %v5956, %v6039
        %v6041 = vpop.f32.mrf.mxu0
        %v6042 = vadd.f32 %v5960, %v6041
        %6043 = vmatprep.mubr.f32.mxu0 0.0
        %6044 = vmatmul.mubr.f32.gmra.mxu0 %v5945
        %v6045 = vpop.f32.mrf.mxu0
        %v6046 = vadd.f32 %v5956, %v6045
        %v6047 = vpop.f32.mrf.mxu0
        %v6048 = vadd.f32 %v5960, %v6047
        %6049 = vmatprep.mubr.f32.mxu0 0.0
        %6050 = vmatmul.mubr.f32.gmra.mxu0 %v5946
        %v6051 = vpop.f32.mrf.mxu0
        %v6052 = vadd.f32 %v5956, %v6051
        %v6053 = vpop.f32.mrf.mxu0
        %v6054 = vadd.f32 %v5960, %v6053
        %6055 = vmatprep.mubr.f32.mxu0 0.0
        %6056 = vmatmul.mubr.f32.gmra.mxu0 %v5947
        %v6057 = vpop.f32.mrf.mxu0
        %v6058 = vadd.f32 %v5956, %v6057
        %v6059 = vpop.f32.mrf.mxu0
        %v6060 = vadd.f32 %v5960, %v6059
        %6061 = vmatprep.mubr.f32.mxu0 0.0
        %6062 = vmatmul.mubr.f32.gmra.mxu0 %v5948
        %v6063 = vpop.f32.mrf.mxu0
        %v6064 = vadd.f32 %v5956, %v6063
        %v6065 = vpop.f32.mrf.mxu0
        %v6066 = vadd.f32 %v5960, %v6065
        %6067 = vmatprep.mubr.f32.mxu0 0.0
        %6068 = vmatmul.mubr.f32.gmra.mxu0 %v5949
        %v6069 = vpop.f32.mrf.mxu0
        %v6070 = vadd.f32 %v5956, %v6069
        %v6071 = vpop.f32.mrf.mxu0
        %v6072 = vadd.f32 %v5960, %v6071
        %6073 = vmatprep.mubr.f32.mxu0 0.0
        %6074 = vmatmul.mubr.f32.gmra.mxu0 %v5950
        %v6075 = vpop.f32.mrf.mxu0
        %v6076 = vadd.f32 %v5956, %v6075
        %v6077 = vpop.f32.mrf.mxu0
        %v6078 = vadd.f32 %v5960, %v6077
        %6079 = vmatprep.mubr.f32.mxu0 0.0
        %6080 = vmatmul.mubr.f32.gmra.mxu0 %v5951
        %v6081 = vpop.f32.mrf.mxu0
        %v6082 = vadd.f32 %v5956, %v6081
        %v6083 = vpop.f32.mrf.mxu0
        %v6084 = vadd.f32 %v5960, %v6083
        %6085 = vdwg.mxu0
        %6086 = vmatprep.subr.mxu0 %v5876
        %6087 = vmatpush1.msra.mxu0 %v5875
        %6088 = vmatprep.subr.mxu0 %v5872
        %6089 = vmatpush1.msra.mxu0 %v5871
        %6090 = vmatprep.subr.mxu0 %v5868
        %6091 = vmatpush1.msra.mxu0 %v5867
        %6092 = vmatprep.subr.mxu0 %v5864
        %6093 = vmatpush1.msra.mxu0 %v5863
        %6094 = vmatprep.subr.mxu0 %v5860
        %6095 = vmatpush1.msra.mxu0 %v5859
        %6096 = vmatprep.subr.mxu0 %v5856
        %6097 = vmatpush1.msra.mxu0 %v5855
        %6098 = vmatprep.subr.mxu0 %v5852
        %6099 = vmatpush1.msra.mxu0 %v5851
        %6100 = vmatprep.subr.mxu0 %v5848
        %6101 = vmatpush1.msra.mxu0 %v5847
        %6102 = vmatprep.subr.mxu0 %v5844
        %6103 = vmatpush1.msra.mxu0 %v5843
        %6104 = vmatprep.subr.mxu0 %v5840
        %6105 = vmatpush1.msra.mxu0 %v5839
        %6106 = vmatprep.subr.mxu0 %v5836
        %6107 = vmatpush1.msra.mxu0 %v5835
        %6108 = vmatprep.subr.mxu0 %v5832
        %6109 = vmatpush1.msra.mxu0 %v5831
        %6110 = vmatprep.subr.mxu0 %v5828
        %6111 = vmatpush1.msra.mxu0 %v5827
        %6112 = vmatprep.subr.mxu0 %v5824
        %6113 = vmatpush1.msra.mxu0 %v5823
        %6114 = vmatprep.subr.mxu0 %v5820
        %6115 = vmatpush1.msra.mxu0 %v5819
        %6116 = vmatprep.subr.mxu0 %v5816
        %6117 = vmatpush1.msra.mxu0 %v5815
        %6118 = vmatprep.subr.mxu0 0.0
        %6119 = vmatpush2.msra.mxu0 0.0
        %6120 = vmatprep.subr.mxu0 0.0
        %6121 = vmatpush2.msra.mxu0 0.0
        %6122 = vmatprep.subr.mxu0 0.0
        %6123 = vmatpush2.msra.mxu0 0.0
        %6124 = vmatprep.subr.mxu0 0.0
        %6125 = vmatpush2.msra.mxu0 0.0
        %6126 = vmatprep.subr.mxu0 0.0
        %6127 = vmatpush2.msra.mxu0 0.0
        %6128 = vmatprep.subr.mxu0 0.0
        %6129 = vmatpush2.msra.mxu0 0.0
        %6130 = vmatprep.subr.mxu0 0.0
        %6131 = vmatpush2.msra.mxu0 0.0
        %6132 = vmatprep.subr.mxu0 0.0
        %6133 = vmatpush2.msra.mxu0 0.0
        %6134 = vmatprep.subr.mxu0 0.0
        %6135 = vmatpush2.msra.mxu0 0.0
        %6136 = vmatprep.subr.mxu0 0.0
        %6137 = vmatpush2.msra.mxu0 0.0
        %6138 = vmatprep.subr.mxu0 0.0
        %6139 = vmatpush2.msra.mxu0 0.0
        %6140 = vmatprep.subr.mxu0 0.0
        %6141 = vmatpush2.msra.mxu0 0.0
        %6142 = vmatprep.subr.mxu0 0.0
        %6143 = vmatpush2.msra.mxu0 0.0
        %6144 = vmatprep.subr.mxu0 0.0
        %6145 = vmatpush2.msra.mxu0 0.0
        %6146 = vmatprep.subr.mxu0 0.0
        %6147 = vmatpush2.msra.mxu0 0.0
        %6148 = vmatprep.subr.mxu0 0.0
        %6149 = vmatpush2.msra.mxu0 0.0
        %6150 = vmatprep.mubr.f32.mxu0 0.0
        %6151 = vmatmul.mubr.f32.gmra.mxu0 %v5944
        %v6152 = vpop.f32.mrf.mxu0
        %v6153 = vadd.f32 %v5964, %v6152
        %v6154 = vpop.f32.mrf.mxu0
        %v6155 = vadd.f32 %v5968, %v6154
        %6156 = vmatprep.mubr.f32.mxu0 0.0
        %6157 = vmatmul.mubr.f32.gmra.mxu0 %v5945
        %v6158 = vpop.f32.mrf.mxu0
        %v6159 = vadd.f32 %v5964, %v6158
        %v6160 = vpop.f32.mrf.mxu0
        %v6161 = vadd.f32 %v5968, %v6160
        %6162 = vmatprep.mubr.f32.mxu0 0.0
        %6163 = vmatmul.mubr.f32.gmra.mxu0 %v5946
        %v6164 = vpop.f32.mrf.mxu0
        %v6165 = vadd.f32 %v5964, %v6164
        %v6166 = vpop.f32.mrf.mxu0
        %v6167 = vadd.f32 %v5968, %v6166
        %6168 = vmatprep.mubr.f32.mxu0 0.0
        %6169 = vmatmul.mubr.f32.gmra.mxu0 %v5947
        %v6170 = vpop.f32.mrf.mxu0
        %v6171 = vadd.f32 %v5964, %v6170
        %v6172 = vpop.f32.mrf.mxu0
        %v6173 = vadd.f32 %v5968, %v6172
        %6174 = vmatprep.mubr.f32.mxu0 0.0
        %6175 = vmatmul.mubr.f32.gmra.mxu0 %v5948
        %v6176 = vpop.f32.mrf.mxu0
        %v6177 = vadd.f32 %v5964, %v6176
        %v6178 = vpop.f32.mrf.mxu0
        %v6179 = vadd.f32 %v5968, %v6178
        %6180 = vmatprep.mubr.f32.mxu0 0.0
        %6181 = vmatmul.mubr.f32.gmra.mxu0 %v5949
        %v6182 = vpop.f32.mrf.mxu0
        %v6183 = vadd.f32 %v5964, %v6182
        %v6184 = vpop.f32.mrf.mxu0
        %v6185 = vadd.f32 %v5968, %v6184
        %6186 = vmatprep.mubr.f32.mxu0 0.0
        %6187 = vmatmul.mubr.f32.gmra.mxu0 %v5950
        %v6188 = vpop.f32.mrf.mxu0
        %v6189 = vadd.f32 %v5964, %v6188
        %v6190 = vpop.f32.mrf.mxu0
        %v6191 = vadd.f32 %v5968, %v6190
        %6192 = vmatprep.mubr.f32.mxu0 0.0
        %6193 = vmatmul.mubr.f32.gmra.mxu0 %v5951
        %v6194 = vpop.f32.mrf.mxu0
        %v6195 = vadd.f32 %v5964, %v6194
        %v6196 = vpop.f32.mrf.mxu0
        %v6197 = vadd.f32 %v5968, %v6196
        %6198 = vdwg.mxu0
        %6199 = vst [vmem:[#allocation5] sm:$0xff] %v6040
        %6200 = vst [vmem:[#allocation5 + $0x8] sm:$0xff] %v6042
        %6201 = vst [vmem:[#allocation5 + $0x10] sm:$0xff] %v6153
        %6202 = vst [vmem:[#allocation5 + $0x18] sm:$0xff] %v6155
        %6203 = vst [vmem:[#allocation5 + $0x20] sm:$0xff] %v6046
        %6204 = vst [vmem:[#allocation5 + $0x28] sm:$0xff] %v6048
        %6205 = vst [vmem:[#allocation5 + $0x30] sm:$0xff] %v6159
        %6206 = vst [vmem:[#allocation5 + $0x38] sm:$0xff] %v6161
        %6207 = vst [vmem:[#allocation5 + $0x40] sm:$0xff] %v6052
        %6208 = vst [vmem:[#allocation5 + $0x48] sm:$0xff] %v6054
        %6209 = vst [vmem:[#allocation5 + $0x50] sm:$0xff] %v6165
        %6210 = vst [vmem:[#allocation5 + $0x58] sm:$0xff] %v6167
        %6211 = vst [vmem:[#allocation5 + $0x60] sm:$0xff] %v6058
        %6212 = vst [vmem:[#allocation5 + $0x68] sm:$0xff] %v6060
        %6213 = vst [vmem:[#allocation5 + $0x70] sm:$0xff] %v6171
        %6214 = vst [vmem:[#allocation5 + $0x78] sm:$0xff] %v6173
        %6215 = vst [vmem:[#allocation5 + $0x80] sm:$0xff] %v6064
        %6216 = vst [vmem:[#allocation5 + $0x88] sm:$0xff] %v6066
        %6217 = vst [vmem:[#allocation5 + $0x90] sm:$0xff] %v6177
        %6218 = vst [vmem:[#allocation5 + $0x98] sm:$0xff] %v6179
        %6219 = vst [vmem:[#allocation5 + $0xa0] sm:$0xff] %v6070
        %6220 = vst [vmem:[#allocation5 + $0xa8] sm:$0xff] %v6072
        %6221 = vst [vmem:[#allocation5 + $0xb0] sm:$0xff] %v6183
        %6222 = vst [vmem:[#allocation5 + $0xb8] sm:$0xff] %v6185
        %6223 = vst [vmem:[#allocation5 + $0xc0] sm:$0xff] %v6076
        %6224 = vst [vmem:[#allocation5 + $0xc8] sm:$0xff] %v6078
        %6225 = vst [vmem:[#allocation5 + $0xd0] sm:$0xff] %v6189
        %6226 = vst [vmem:[#allocation5 + $0xd8] sm:$0xff] %v6191
        %6227 = vst [vmem:[#allocation5 + $0xe0] sm:$0xff] %v6082
        %6228 = vst [vmem:[#allocation5 + $0xe8] sm:$0xff] %v6084
        %6229 = vst [vmem:[#allocation5 + $0xf0] sm:$0xff] %v6195
        %6230 = vst [vmem:[#allocation5 + $0xf8] sm:$0xff] %v6197
        %s6231 = scalar_lea.vmem [#allocation2], 24
        %v6232 = vld [vmem:[%s6231] sm:$0xff]
        %s6233 = scalar_lea.vmem [#allocation3], 24
        %v6234 = vld [vmem:[%s6233] sm:$0xff]
        %v6235 = vld [vmem:[#allocation5] sm:$0xff]
        %v6236 = vld [vmem:[#allocation5 + $0x8] sm:$0xff]
        %v6237 = vld [vmem:[#allocation5 + $0x10] sm:$0xff]
        %v6238 = vld [vmem:[#allocation5 + $0x18] sm:$0xff]
        %6239 = vmatprep.subr.mxu0 %v5939
        %6240 = vmatpush1.msra.mxu0 %v5938
        %6241 = vmatprep.subr.mxu0 %v5935
        %6242 = vmatpush1.msra.mxu0 %v5934
        %6243 = vmatprep.subr.mxu0 %v5931
        %6244 = vmatpush1.msra.mxu0 %v5930
        %6245 = vmatprep.subr.mxu0 %v5927
        %6246 = vmatpush1.msra.mxu0 %v5926
        %6247 = vmatprep.subr.mxu0 %v5923
        %6248 = vmatpush1.msra.mxu0 %v5922
        %6249 = vmatprep.subr.mxu0 %v5919
        %6250 = vmatpush1.msra.mxu0 %v5918
        %6251 = vmatprep.subr.mxu0 %v5915
        %6252 = vmatpush1.msra.mxu0 %v5914
        %6253 = vmatprep.subr.mxu0 %v5911
        %6254 = vmatpush1.msra.mxu0 %v5910
        %6255 = vmatprep.subr.mxu0 %v5907
        %6256 = vmatpush1.msra.mxu0 %v5906
        %6257 = vmatprep.subr.mxu0 %v5903
        %6258 = vmatpush1.msra.mxu0 %v5902
        %6259 = vmatprep.subr.mxu0 %v5899
        %6260 = vmatpush1.msra.mxu0 %v5898
        %6261 = vmatprep.subr.mxu0 %v5895
        %6262 = vmatpush1.msra.mxu0 %v5894
        %6263 = vmatprep.subr.mxu0 %v5891
        %6264 = vmatpush1.msra.mxu0 %v5890
        %6265 = vmatprep.subr.mxu0 %v5887
        %6266 = vmatpush1.msra.mxu0 %v5886
        %6267 = vmatprep.subr.mxu0 %v5883
        %6268 = vmatpush1.msra.mxu0 %v5882
        %6269 = vmatprep.subr.mxu0 %v5879
        %6270 = vmatpush1.msra.mxu0 %v5878
        %6271 = vmatprep.subr.mxu0 0.0
        %6272 = vmatpush2.msra.mxu0 0.0
        %6273 = vmatprep.subr.mxu0 0.0
        %6274 = vmatpush2.msra.mxu0 0.0
        %6275 = vmatprep.subr.mxu0 0.0
        %6276 = vmatpush2.msra.mxu0 0.0
        %6277 = vmatprep.subr.mxu0 0.0
        %6278 = vmatpush2.msra.mxu0 0.0
        %6279 = vmatprep.subr.mxu0 0.0
        %6280 = vmatpush2.msra.mxu0 0.0
        %6281 = vmatprep.subr.mxu0 0.0
        %6282 = vmatpush2.msra.mxu0 0.0
        %6283 = vmatprep.subr.mxu0 0.0
        %6284 = vmatpush2.msra.mxu0 0.0
        %6285 = vmatprep.subr.mxu0 0.0
        %6286 = vmatpush2.msra.mxu0 0.0
        %6287 = vmatprep.subr.mxu0 0.0
        %6288 = vmatpush2.msra.mxu0 0.0
        %6289 = vmatprep.subr.mxu0 0.0
        %6290 = vmatpush2.msra.mxu0 0.0
        %6291 = vmatprep.subr.mxu0 0.0
        %6292 = vmatpush2.msra.mxu0 0.0
        %6293 = vmatprep.subr.mxu0 0.0
        %6294 = vmatpush2.msra.mxu0 0.0
        %6295 = vmatprep.subr.mxu0 0.0
        %6296 = vmatpush2.msra.mxu0 0.0
        %6297 = vmatprep.subr.mxu0 0.0
        %6298 = vmatpush2.msra.mxu0 0.0
        %6299 = vmatprep.subr.mxu0 0.0
        %6300 = vmatpush2.msra.mxu0 0.0
        %6301 = vmatprep.subr.mxu0 0.0
        %6302 = vmatpush2.msra.mxu0 0.0
        %6303 = vmatprep.mubr.f32.mxu0 0.0
        %6304 = vmatmul.mubr.f32.gmra.mxu0 %v6232
        %v6305 = vpop.f32.mrf.mxu0
        %v6306 = vadd.f32 %v6235, %v6305
        %v6307 = vpop.f32.mrf.mxu0
        %v6308 = vadd.f32 %v6236, %v6307
        %6309 = vdwg.mxu0
        %6310 = vmatprep.subr.mxu0 %v5941
        %6311 = vmatpush1.msra.mxu0 %v5940
        %6312 = vmatprep.subr.mxu0 %v5937
        %6313 = vmatpush1.msra.mxu0 %v5936
        %6314 = vmatprep.subr.mxu0 %v5933
        %6315 = vmatpush1.msra.mxu0 %v5932
        %6316 = vmatprep.subr.mxu0 %v5929
        %6317 = vmatpush1.msra.mxu0 %v5928
        %6318 = vmatprep.subr.mxu0 %v5925
        %6319 = vmatpush1.msra.mxu0 %v5924
        %6320 = vmatprep.subr.mxu0 %v5921
        %6321 = vmatpush1.msra.mxu0 %v5920
        %6322 = vmatprep.subr.mxu0 %v5917
        %6323 = vmatpush1.msra.mxu0 %v5916
        %6324 = vmatprep.subr.mxu0 %v5913
        %6325 = vmatpush1.msra.mxu0 %v5912
        %6326 = vmatprep.subr.mxu0 %v5909
        %6327 = vmatpush1.msra.mxu0 %v5908
        %6328 = vmatprep.subr.mxu0 %v5905
        %6329 = vmatpush1.msra.mxu0 %v5904
        %6330 = vmatprep.subr.mxu0 %v5901
        %6331 = vmatpush1.msra.mxu0 %v5900
        %6332 = vmatprep.subr.mxu0 %v5897
        %6333 = vmatpush1.msra.mxu0 %v5896
        %6334 = vmatprep.subr.mxu0 %v5893
        %6335 = vmatpush1.msra.mxu0 %v5892
        %6336 = vmatprep.subr.mxu0 %v5889
        %6337 = vmatpush1.msra.mxu0 %v5888
        %6338 = vmatprep.subr.mxu0 %v5885
        %6339 = vmatpush1.msra.mxu0 %v5884
        %6340 = vmatprep.subr.mxu0 %v5881
        %6341 = vmatpush1.msra.mxu0 %v5880
        %6342 = vmatprep.subr.mxu0 0.0
        %6343 = vmatpush2.msra.mxu0 0.0
        %6344 = vmatprep.subr.mxu0 0.0
        %6345 = vmatpush2.msra.mxu0 0.0
        %6346 = vmatprep.subr.mxu0 0.0
        %6347 = vmatpush2.msra.mxu0 0.0
        %6348 = vmatprep.subr.mxu0 0.0
        %6349 = vmatpush2.msra.mxu0 0.0
        %6350 = vmatprep.subr.mxu0 0.0
        %6351 = vmatpush2.msra.mxu0 0.0
        %6352 = vmatprep.subr.mxu0 0.0
        %6353 = vmatpush2.msra.mxu0 0.0
        %6354 = vmatprep.subr.mxu0 0.0
        %6355 = vmatpush2.msra.mxu0 0.0
        %6356 = vmatprep.subr.mxu0 0.0
        %6357 = vmatpush2.msra.mxu0 0.0
        %6358 = vmatprep.subr.mxu0 0.0
        %6359 = vmatpush2.msra.mxu0 0.0
        %6360 = vmatprep.subr.mxu0 0.0
        %6361 = vmatpush2.msra.mxu0 0.0
        %6362 = vmatprep.subr.mxu0 0.0
        %6363 = vmatpush2.msra.mxu0 0.0
        %6364 = vmatprep.subr.mxu0 0.0
        %6365 = vmatpush2.msra.mxu0 0.0
        %6366 = vmatprep.subr.mxu0 0.0
        %6367 = vmatpush2.msra.mxu0 0.0
        %6368 = vmatprep.subr.mxu0 0.0
        %6369 = vmatpush2.msra.mxu0 0.0
        %6370 = vmatprep.subr.mxu0 0.0
        %6371 = vmatpush2.msra.mxu0 0.0
        %6372 = vmatprep.subr.mxu0 0.0
        %6373 = vmatpush2.msra.mxu0 0.0
        %6374 = vmatprep.mubr.f32.mxu0 0.0
        %6375 = vmatmul.mubr.f32.gmra.mxu0 %v6232
        %v6376 = vpop.f32.mrf.mxu0
        %v6377 = vadd.f32 %v6237, %v6376
        %v6378 = vpop.f32.mrf.mxu0
        %v6379 = vadd.f32 %v6238, %v6378
        %6380 = vdwg.mxu0
        %v6381 = vmul.f32 %v6306, 0.5
        %v6382 = vmul.f32 %v6308, 0.5
        %v6383 = vmul.f32 %v6377, 0.5
        %v6384 = vtanh.pop %v6381
        %v6385 = vtanh.pop %v6382
        %v6386 = vtanh.pop %v6383
        %v6387 = vmul.f32 %v6384, 0.5
        %v6388 = vmul.f32 %v6385, 0.5
        %v6389 = vmul.f32 %v6386, 0.5
        %v6390 = vadd.f32 %v6387, 0.5
        %v6391 = vadd.f32 %v6388, 0.5
        %v6392 = vadd.f32 %v6389, 0.5
        %v6393 = vtanh.pop %v6379
        %v6394 = vmul.f32 %v6391, %v6234
        %v6395 = vmul.f32 %v6390, %v6393
        %v6396 = vadd.f32 %v6394, %v6395
        %v6397 = vtanh.pop %v6396
        %v6398 = vmul.f32 %v6392, %v6397
        %6399 = vst [vmem:[#allocation4] sm:$0xff] %v6398
        %v6400 = vld [vmem:[%s1151] sm:$0xff]
        %v6401 = vld [vmem:[%s1151 + $0x8] sm:$0xff]
        %v6402 = vld [vmem:[%s1151 + $0x10] sm:$0xff]
        %v6403 = vld [vmem:[%s1151 + $0x18] sm:$0xff]
        %6404 = vmatprep.subr.mxu0 %v5939
        %6405 = vmatpush1.msra.mxu0 %v5938
        %6406 = vmatprep.subr.mxu0 %v5935
        %6407 = vmatpush1.msra.mxu0 %v5934
        %6408 = vmatprep.subr.mxu0 %v5931
        %6409 = vmatpush1.msra.mxu0 %v5930
        %6410 = vmatprep.subr.mxu0 %v5927
        %6411 = vmatpush1.msra.mxu0 %v5926
        %6412 = vmatprep.subr.mxu0 %v5923
        %6413 = vmatpush1.msra.mxu0 %v5922
        %6414 = vmatprep.subr.mxu0 %v5919
        %6415 = vmatpush1.msra.mxu0 %v5918
        %6416 = vmatprep.subr.mxu0 %v5915
        %6417 = vmatpush1.msra.mxu0 %v5914
        %6418 = vmatprep.subr.mxu0 %v5911
        %6419 = vmatpush1.msra.mxu0 %v5910
        %6420 = vmatprep.subr.mxu0 %v5907
        %6421 = vmatpush1.msra.mxu0 %v5906
        %6422 = vmatprep.subr.mxu0 %v5903
        %6423 = vmatpush1.msra.mxu0 %v5902
        %6424 = vmatprep.subr.mxu0 %v5899
        %6425 = vmatpush1.msra.mxu0 %v5898
        %6426 = vmatprep.subr.mxu0 %v5895
        %6427 = vmatpush1.msra.mxu0 %v5894
        %6428 = vmatprep.subr.mxu0 %v5891
        %6429 = vmatpush1.msra.mxu0 %v5890
        %6430 = vmatprep.subr.mxu0 %v5887
        %6431 = vmatpush1.msra.mxu0 %v5886
        %6432 = vmatprep.subr.mxu0 %v5883
        %6433 = vmatpush1.msra.mxu0 %v5882
        %6434 = vmatprep.subr.mxu0 %v5879
        %6435 = vmatpush1.msra.mxu0 %v5878
        %6436 = vmatprep.subr.mxu0 0.0
        %6437 = vmatpush2.msra.mxu0 0.0
        %6438 = vmatprep.subr.mxu0 0.0
        %6439 = vmatpush2.msra.mxu0 0.0
        %6440 = vmatprep.subr.mxu0 0.0
        %6441 = vmatpush2.msra.mxu0 0.0
        %6442 = vmatprep.subr.mxu0 0.0
        %6443 = vmatpush2.msra.mxu0 0.0
        %6444 = vmatprep.subr.mxu0 0.0
        %6445 = vmatpush2.msra.mxu0 0.0
        %6446 = vmatprep.subr.mxu0 0.0
        %6447 = vmatpush2.msra.mxu0 0.0
        %6448 = vmatprep.subr.mxu0 0.0
        %6449 = vmatpush2.msra.mxu0 0.0
        %6450 = vmatprep.subr.mxu0 0.0
        %6451 = vmatpush2.msra.mxu0 0.0
        %6452 = vmatprep.subr.mxu0 0.0
        %6453 = vmatpush2.msra.mxu0 0.0
        %6454 = vmatprep.subr.mxu0 0.0
        %6455 = vmatpush2.msra.mxu0 0.0
        %6456 = vmatprep.subr.mxu0 0.0
        %6457 = vmatpush2.msra.mxu0 0.0
        %6458 = vmatprep.subr.mxu0 0.0
        %6459 = vmatpush2.msra.mxu0 0.0
        %6460 = vmatprep.subr.mxu0 0.0
        %6461 = vmatpush2.msra.mxu0 0.0
        %6462 = vmatprep.subr.mxu0 0.0
        %6463 = vmatpush2.msra.mxu0 0.0
        %6464 = vmatprep.subr.mxu0 0.0
        %6465 = vmatpush2.msra.mxu0 0.0
        %6466 = vmatprep.subr.mxu0 0.0
        %6467 = vmatpush2.msra.mxu0 0.0
        %6468 = vmatprep.mubr.f32.mxu0 0.0
        %6469 = vmatmul.mubr.f32.gmra.mxu0 %v6398
        %v6470 = vpop.f32.mrf.mxu0
        %v6471 = vadd.f32 %v6400, %v6470
        %v6472 = vpop.f32.mrf.mxu0
        %v6473 = vadd.f32 %v6401, %v6472
        %6474 = vdwg.mxu0
        %6475 = vmatprep.subr.mxu0 %v5941
        %6476 = vmatpush1.msra.mxu0 %v5940
        %6477 = vmatprep.subr.mxu0 %v5937
        %6478 = vmatpush1.msra.mxu0 %v5936
        %6479 = vmatprep.subr.mxu0 %v5933
        %6480 = vmatpush1.msra.mxu0 %v5932
        %6481 = vmatprep.subr.mxu0 %v5929
        %6482 = vmatpush1.msra.mxu0 %v5928
        %6483 = vmatprep.subr.mxu0 %v5925
        %6484 = vmatpush1.msra.mxu0 %v5924
        %6485 = vmatprep.subr.mxu0 %v5921
        %6486 = vmatpush1.msra.mxu0 %v5920
        %6487 = vmatprep.subr.mxu0 %v5917
        %6488 = vmatpush1.msra.mxu0 %v5916
        %6489 = vmatprep.subr.mxu0 %v5913
        %6490 = vmatpush1.msra.mxu0 %v5912
        %6491 = vmatprep.subr.mxu0 %v5909
        %6492 = vmatpush1.msra.mxu0 %v5908
        %6493 = vmatprep.subr.mxu0 %v5905
        %6494 = vmatpush1.msra.mxu0 %v5904
        %6495 = vmatprep.subr.mxu0 %v5901
        %6496 = vmatpush1.msra.mxu0 %v5900
        %6497 = vmatprep.subr.mxu0 %v5897
        %6498 = vmatpush1.msra.mxu0 %v5896
        %6499 = vmatprep.subr.mxu0 %v5893
        %6500 = vmatpush1.msra.mxu0 %v5892
        %6501 = vmatprep.subr.mxu0 %v5889
        %6502 = vmatpush1.msra.mxu0 %v5888
        %6503 = vmatprep.subr.mxu0 %v5885
        %6504 = vmatpush1.msra.mxu0 %v5884
        %6505 = vmatprep.subr.mxu0 %v5881
        %6506 = vmatpush1.msra.mxu0 %v5880
        %6507 = vmatprep.subr.mxu0 0.0
        %6508 = vmatpush2.msra.mxu0 0.0
        %6509 = vmatprep.subr.mxu0 0.0
        %6510 = vmatpush2.msra.mxu0 0.0
        %6511 = vmatprep.subr.mxu0 0.0
        %6512 = vmatpush2.msra.mxu0 0.0
        %6513 = vmatprep.subr.mxu0 0.0
        %6514 = vmatpush2.msra.mxu0 0.0
        %6515 = vmatprep.subr.mxu0 0.0
        %6516 = vmatpush2.msra.mxu0 0.0
        %6517 = vmatprep.subr.mxu0 0.0
        %6518 = vmatpush2.msra.mxu0 0.0
        %6519 = vmatprep.subr.mxu0 0.0
        %6520 = vmatpush2.msra.mxu0 0.0
        %6521 = vmatprep.subr.mxu0 0.0
        %6522 = vmatpush2.msra.mxu0 0.0
        %6523 = vmatprep.subr.mxu0 0.0
        %6524 = vmatpush2.msra.mxu0 0.0
        %6525 = vmatprep.subr.mxu0 0.0
        %6526 = vmatpush2.msra.mxu0 0.0
        %6527 = vmatprep.subr.mxu0 0.0
        %6528 = vmatpush2.msra.mxu0 0.0
        %6529 = vmatprep.subr.mxu0 0.0
        %6530 = vmatpush2.msra.mxu0 0.0
        %6531 = vmatprep.subr.mxu0 0.0
        %6532 = vmatpush2.msra.mxu0 0.0
        %6533 = vmatprep.subr.mxu0 0.0
        %6534 = vmatpush2.msra.mxu0 0.0
        %6535 = vmatprep.subr.mxu0 0.0
        %6536 = vmatpush2.msra.mxu0 0.0
        %6537 = vmatprep.subr.mxu0 0.0
        %6538 = vmatpush2.msra.mxu0 0.0
        %6539 = vmatprep.mubr.f32.mxu0 0.0
        %6540 = vmatmul.mubr.f32.gmra.mxu0 %v6398
        %v6541 = vpop.f32.mrf.mxu0
        %v6542 = vadd.f32 %v6402, %v6541
        %v6543 = vpop.f32.mrf.mxu0
        %v6544 = vadd.f32 %v6403, %v6543
        %6545 = vdwg.mxu0
        %v6546 = vmul.f32 %v6471, 0.5
        %v6547 = vmul.f32 %v6473, 0.5
        %v6548 = vmul.f32 %v6542, 0.5
        %v6549 = vtanh.pop %v6546
        %v6550 = vtanh.pop %v6547
        %v6551 = vtanh.pop %v6548
        %v6552 = vmul.f32 %v6549, 0.5
        %v6553 = vmul.f32 %v6550, 0.5
        %v6554 = vmul.f32 %v6551, 0.5
        %v6555 = vadd.f32 %v6552, 0.5
        %v6556 = vadd.f32 %v6553, 0.5
        %v6557 = vadd.f32 %v6554, 0.5
        %v6558 = vtanh.pop %v6544
        %v6559 = vmul.f32 %v6556, %v6396
        %v6560 = vmul.f32 %v6555, %v6558
        %v6561 = vadd.f32 %v6559, %v6560
        %v6562 = vtanh.pop %v6561
        %v6563 = vmul.f32 %v6557, %v6562
        %6564 = vst [vmem:[%s1316] sm:$0xff] %v6563
        %v6565 = vld [vmem:[%s1318] sm:$0xff]
        %v6566 = vld [vmem:[%s1318 + $0x8] sm:$0xff]
        %v6567 = vld [vmem:[%s1318 + $0x10] sm:$0xff]
        %v6568 = vld [vmem:[%s1318 + $0x18] sm:$0xff]
        %6569 = vmatprep.subr.mxu0 %v5939
        %6570 = vmatpush1.msra.mxu0 %v5938
        %6571 = vmatprep.subr.mxu0 %v5935
        %6572 = vmatpush1.msra.mxu0 %v5934
        %6573 = vmatprep.subr.mxu0 %v5931
        %6574 = vmatpush1.msra.mxu0 %v5930
        %6575 = vmatprep.subr.mxu0 %v5927
        %6576 = vmatpush1.msra.mxu0 %v5926
        %6577 = vmatprep.subr.mxu0 %v5923
        %6578 = vmatpush1.msra.mxu0 %v5922
        %6579 = vmatprep.subr.mxu0 %v5919
        %6580 = vmatpush1.msra.mxu0 %v5918
        %6581 = vmatprep.subr.mxu0 %v5915
        %6582 = vmatpush1.msra.mxu0 %v5914
        %6583 = vmatprep.subr.mxu0 %v5911
        %6584 = vmatpush1.msra.mxu0 %v5910
        %6585 = vmatprep.subr.mxu0 %v5907
        %6586 = vmatpush1.msra.mxu0 %v5906
        %6587 = vmatprep.subr.mxu0 %v5903
        %6588 = vmatpush1.msra.mxu0 %v5902
        %6589 = vmatprep.subr.mxu0 %v5899
        %6590 = vmatpush1.msra.mxu0 %v5898
        %6591 = vmatprep.subr.mxu0 %v5895
        %6592 = vmatpush1.msra.mxu0 %v5894
        %6593 = vmatprep.subr.mxu0 %v5891
        %6594 = vmatpush1.msra.mxu0 %v5890
        %6595 = vmatprep.subr.mxu0 %v5887
        %6596 = vmatpush1.msra.mxu0 %v5886
        %6597 = vmatprep.subr.mxu0 %v5883
        %6598 = vmatpush1.msra.mxu0 %v5882
        %6599 = vmatprep.subr.mxu0 %v5879
        %6600 = vmatpush1.msra.mxu0 %v5878
        %6601 = vmatprep.subr.mxu0 0.0
        %6602 = vmatpush2.msra.mxu0 0.0
        %6603 = vmatprep.subr.mxu0 0.0
        %6604 = vmatpush2.msra.mxu0 0.0
        %6605 = vmatprep.subr.mxu0 0.0
        %6606 = vmatpush2.msra.mxu0 0.0
        %6607 = vmatprep.subr.mxu0 0.0
        %6608 = vmatpush2.msra.mxu0 0.0
        %6609 = vmatprep.subr.mxu0 0.0
        %6610 = vmatpush2.msra.mxu0 0.0
        %6611 = vmatprep.subr.mxu0 0.0
        %6612 = vmatpush2.msra.mxu0 0.0
        %6613 = vmatprep.subr.mxu0 0.0
        %6614 = vmatpush2.msra.mxu0 0.0
        %6615 = vmatprep.subr.mxu0 0.0
        %6616 = vmatpush2.msra.mxu0 0.0
        %6617 = vmatprep.subr.mxu0 0.0
        %6618 = vmatpush2.msra.mxu0 0.0
        %6619 = vmatprep.subr.mxu0 0.0
        %6620 = vmatpush2.msra.mxu0 0.0
        %6621 = vmatprep.subr.mxu0 0.0
        %6622 = vmatpush2.msra.mxu0 0.0
        %6623 = vmatprep.subr.mxu0 0.0
        %6624 = vmatpush2.msra.mxu0 0.0
        %6625 = vmatprep.subr.mxu0 0.0
        %6626 = vmatpush2.msra.mxu0 0.0
        %6627 = vmatprep.subr.mxu0 0.0
        %6628 = vmatpush2.msra.mxu0 0.0
        %6629 = vmatprep.subr.mxu0 0.0
        %6630 = vmatpush2.msra.mxu0 0.0
        %6631 = vmatprep.subr.mxu0 0.0
        %6632 = vmatpush2.msra.mxu0 0.0
        %6633 = vmatprep.mubr.f32.mxu0 0.0
        %6634 = vmatmul.mubr.f32.gmra.mxu0 %v6563
        %v6635 = vpop.f32.mrf.mxu0
        %v6636 = vadd.f32 %v6565, %v6635
        %v6637 = vpop.f32.mrf.mxu0
        %v6638 = vadd.f32 %v6566, %v6637
        %6639 = vdwg.mxu0
        %6640 = vmatprep.subr.mxu0 %v5941
        %6641 = vmatpush1.msra.mxu0 %v5940
        %6642 = vmatprep.subr.mxu0 %v5937
        %6643 = vmatpush1.msra.mxu0 %v5936
        %6644 = vmatprep.subr.mxu0 %v5933
        %6645 = vmatpush1.msra.mxu0 %v5932
        %6646 = vmatprep.subr.mxu0 %v5929
        %6647 = vmatpush1.msra.mxu0 %v5928
        %6648 = vmatprep.subr.mxu0 %v5925
        %6649 = vmatpush1.msra.mxu0 %v5924
        %6650 = vmatprep.subr.mxu0 %v5921
        %6651 = vmatpush1.msra.mxu0 %v5920
        %6652 = vmatprep.subr.mxu0 %v5917
        %6653 = vmatpush1.msra.mxu0 %v5916
        %6654 = vmatprep.subr.mxu0 %v5913
        %6655 = vmatpush1.msra.mxu0 %v5912
        %6656 = vmatprep.subr.mxu0 %v5909
        %6657 = vmatpush1.msra.mxu0 %v5908
        %6658 = vmatprep.subr.mxu0 %v5905
        %6659 = vmatpush1.msra.mxu0 %v5904
        %6660 = vmatprep.subr.mxu0 %v5901
        %6661 = vmatpush1.msra.mxu0 %v5900
        %6662 = vmatprep.subr.mxu0 %v5897
        %6663 = vmatpush1.msra.mxu0 %v5896
        %6664 = vmatprep.subr.mxu0 %v5893
        %6665 = vmatpush1.msra.mxu0 %v5892
        %6666 = vmatprep.subr.mxu0 %v5889
        %6667 = vmatpush1.msra.mxu0 %v5888
        %6668 = vmatprep.subr.mxu0 %v5885
        %6669 = vmatpush1.msra.mxu0 %v5884
        %6670 = vmatprep.subr.mxu0 %v5881
        %6671 = vmatpush1.msra.mxu0 %v5880
        %6672 = vmatprep.subr.mxu0 0.0
        %6673 = vmatpush2.msra.mxu0 0.0
        %6674 = vmatprep.subr.mxu0 0.0
        %6675 = vmatpush2.msra.mxu0 0.0
        %6676 = vmatprep.subr.mxu0 0.0
        %6677 = vmatpush2.msra.mxu0 0.0
        %6678 = vmatprep.subr.mxu0 0.0
        %6679 = vmatpush2.msra.mxu0 0.0
        %6680 = vmatprep.subr.mxu0 0.0
        %6681 = vmatpush2.msra.mxu0 0.0
        %6682 = vmatprep.subr.mxu0 0.0
        %6683 = vmatpush2.msra.mxu0 0.0
        %6684 = vmatprep.subr.mxu0 0.0
        %6685 = vmatpush2.msra.mxu0 0.0
        %6686 = vmatprep.subr.mxu0 0.0
        %6687 = vmatpush2.msra.mxu0 0.0
        %6688 = vmatprep.subr.mxu0 0.0
        %6689 = vmatpush2.msra.mxu0 0.0
        %6690 = vmatprep.subr.mxu0 0.0
        %6691 = vmatpush2.msra.mxu0 0.0
        %6692 = vmatprep.subr.mxu0 0.0
        %6693 = vmatpush2.msra.mxu0 0.0
        %6694 = vmatprep.subr.mxu0 0.0
        %6695 = vmatpush2.msra.mxu0 0.0
        %6696 = vmatprep.subr.mxu0 0.0
        %6697 = vmatpush2.msra.mxu0 0.0
        %6698 = vmatprep.subr.mxu0 0.0
        %6699 = vmatpush2.msra.mxu0 0.0
        %6700 = vmatprep.subr.mxu0 0.0
        %6701 = vmatpush2.msra.mxu0 0.0
        %6702 = vmatprep.subr.mxu0 0.0
        %6703 = vmatpush2.msra.mxu0 0.0
        %6704 = vmatprep.mubr.f32.mxu0 0.0
        %6705 = vmatmul.mubr.f32.gmra.mxu0 %v6563
        %v6706 = vpop.f32.mrf.mxu0
        %v6707 = vadd.f32 %v6567, %v6706
        %v6708 = vpop.f32.mrf.mxu0
        %v6709 = vadd.f32 %v6568, %v6708
        %6710 = vdwg.mxu0
        %v6711 = vmul.f32 %v6636, 0.5
        %v6712 = vmul.f32 %v6638, 0.5
        %v6713 = vmul.f32 %v6707, 0.5
        %v6714 = vtanh.pop %v6711
        %v6715 = vtanh.pop %v6712
        %v6716 = vtanh.pop %v6713
        %v6717 = vmul.f32 %v6714, 0.5
        %v6718 = vmul.f32 %v6715, 0.5
        %v6719 = vmul.f32 %v6716, 0.5
        %v6720 = vadd.f32 %v6717, 0.5
        %v6721 = vadd.f32 %v6718, 0.5
        %v6722 = vadd.f32 %v6719, 0.5
        %v6723 = vtanh.pop %v6709
        %v6724 = vmul.f32 %v6721, %v6561
        %v6725 = vmul.f32 %v6720, %v6723
        %v6726 = vadd.f32 %v6724, %v6725
        %v6727 = vtanh.pop %v6726
        %v6728 = vmul.f32 %v6722, %v6727
        %6729 = vst [vmem:[%s1483] sm:$0xff] %v6728
        %v6730 = vld [vmem:[%s1485] sm:$0xff]
        %v6731 = vld [vmem:[%s1485 + $0x8] sm:$0xff]
        %v6732 = vld [vmem:[%s1485 + $0x10] sm:$0xff]
        %v6733 = vld [vmem:[%s1485 + $0x18] sm:$0xff]
        %6734 = vmatprep.subr.mxu0 %v5939
        %6735 = vmatpush1.msra.mxu0 %v5938
        %6736 = vmatprep.subr.mxu0 %v5935
        %6737 = vmatpush1.msra.mxu0 %v5934
        %6738 = vmatprep.subr.mxu0 %v5931
        %6739 = vmatpush1.msra.mxu0 %v5930
        %6740 = vmatprep.subr.mxu0 %v5927
        %6741 = vmatpush1.msra.mxu0 %v5926
        %6742 = vmatprep.subr.mxu0 %v5923
        %6743 = vmatpush1.msra.mxu0 %v5922
        %6744 = vmatprep.subr.mxu0 %v5919
        %6745 = vmatpush1.msra.mxu0 %v5918
        %6746 = vmatprep.subr.mxu0 %v5915
        %6747 = vmatpush1.msra.mxu0 %v5914
        %6748 = vmatprep.subr.mxu0 %v5911
        %6749 = vmatpush1.msra.mxu0 %v5910
        %6750 = vmatprep.subr.mxu0 %v5907
        %6751 = vmatpush1.msra.mxu0 %v5906
        %6752 = vmatprep.subr.mxu0 %v5903
        %6753 = vmatpush1.msra.mxu0 %v5902
        %6754 = vmatprep.subr.mxu0 %v5899
        %6755 = vmatpush1.msra.mxu0 %v5898
        %6756 = vmatprep.subr.mxu0 %v5895
        %6757 = vmatpush1.msra.mxu0 %v5894
        %6758 = vmatprep.subr.mxu0 %v5891
        %6759 = vmatpush1.msra.mxu0 %v5890
        %6760 = vmatprep.subr.mxu0 %v5887
        %6761 = vmatpush1.msra.mxu0 %v5886
        %6762 = vmatprep.subr.mxu0 %v5883
        %6763 = vmatpush1.msra.mxu0 %v5882
        %6764 = vmatprep.subr.mxu0 %v5879
        %6765 = vmatpush1.msra.mxu0 %v5878
        %6766 = vmatprep.subr.mxu0 0.0
        %6767 = vmatpush2.msra.mxu0 0.0
        %6768 = vmatprep.subr.mxu0 0.0
        %6769 = vmatpush2.msra.mxu0 0.0
        %6770 = vmatprep.subr.mxu0 0.0
        %6771 = vmatpush2.msra.mxu0 0.0
        %6772 = vmatprep.subr.mxu0 0.0
        %6773 = vmatpush2.msra.mxu0 0.0
        %6774 = vmatprep.subr.mxu0 0.0
        %6775 = vmatpush2.msra.mxu0 0.0
        %6776 = vmatprep.subr.mxu0 0.0
        %6777 = vmatpush2.msra.mxu0 0.0
        %6778 = vmatprep.subr.mxu0 0.0
        %6779 = vmatpush2.msra.mxu0 0.0
        %6780 = vmatprep.subr.mxu0 0.0
        %6781 = vmatpush2.msra.mxu0 0.0
        %6782 = vmatprep.subr.mxu0 0.0
        %6783 = vmatpush2.msra.mxu0 0.0
        %6784 = vmatprep.subr.mxu0 0.0
        %6785 = vmatpush2.msra.mxu0 0.0
        %6786 = vmatprep.subr.mxu0 0.0
        %6787 = vmatpush2.msra.mxu0 0.0
        %6788 = vmatprep.subr.mxu0 0.0
        %6789 = vmatpush2.msra.mxu0 0.0
        %6790 = vmatprep.subr.mxu0 0.0
        %6791 = vmatpush2.msra.mxu0 0.0
        %6792 = vmatprep.subr.mxu0 0.0
        %6793 = vmatpush2.msra.mxu0 0.0
        %6794 = vmatprep.subr.mxu0 0.0
        %6795 = vmatpush2.msra.mxu0 0.0
        %6796 = vmatprep.subr.mxu0 0.0
        %6797 = vmatpush2.msra.mxu0 0.0
        %6798 = vmatprep.mubr.f32.mxu0 0.0
        %6799 = vmatmul.mubr.f32.gmra.mxu0 %v6728
        %v6800 = vpop.f32.mrf.mxu0
        %v6801 = vadd.f32 %v6730, %v6800
        %v6802 = vpop.f32.mrf.mxu0
        %v6803 = vadd.f32 %v6731, %v6802
        %6804 = vdwg.mxu0
        %6805 = vmatprep.subr.mxu0 %v5941
        %6806 = vmatpush1.msra.mxu0 %v5940
        %6807 = vmatprep.subr.mxu0 %v5937
        %6808 = vmatpush1.msra.mxu0 %v5936
        %6809 = vmatprep.subr.mxu0 %v5933
        %6810 = vmatpush1.msra.mxu0 %v5932
        %6811 = vmatprep.subr.mxu0 %v5929
        %6812 = vmatpush1.msra.mxu0 %v5928
        %6813 = vmatprep.subr.mxu0 %v5925
        %6814 = vmatpush1.msra.mxu0 %v5924
        %6815 = vmatprep.subr.mxu0 %v5921
        %6816 = vmatpush1.msra.mxu0 %v5920
        %6817 = vmatprep.subr.mxu0 %v5917
        %6818 = vmatpush1.msra.mxu0 %v5916
        %6819 = vmatprep.subr.mxu0 %v5913
        %6820 = vmatpush1.msra.mxu0 %v5912
        %6821 = vmatprep.subr.mxu0 %v5909
        %6822 = vmatpush1.msra.mxu0 %v5908
        %6823 = vmatprep.subr.mxu0 %v5905
        %6824 = vmatpush1.msra.mxu0 %v5904
        %6825 = vmatprep.subr.mxu0 %v5901
        %6826 = vmatpush1.msra.mxu0 %v5900
        %6827 = vmatprep.subr.mxu0 %v5897
        %6828 = vmatpush1.msra.mxu0 %v5896
        %6829 = vmatprep.subr.mxu0 %v5893
        %6830 = vmatpush1.msra.mxu0 %v5892
        %6831 = vmatprep.subr.mxu0 %v5889
        %6832 = vmatpush1.msra.mxu0 %v5888
        %6833 = vmatprep.subr.mxu0 %v5885
        %6834 = vmatpush1.msra.mxu0 %v5884
        %6835 = vmatprep.subr.mxu0 %v5881
        %6836 = vmatpush1.msra.mxu0 %v5880
        %6837 = vmatprep.subr.mxu0 0.0
        %6838 = vmatpush2.msra.mxu0 0.0
        %6839 = vmatprep.subr.mxu0 0.0
        %6840 = vmatpush2.msra.mxu0 0.0
        %6841 = vmatprep.subr.mxu0 0.0
        %6842 = vmatpush2.msra.mxu0 0.0
        %6843 = vmatprep.subr.mxu0 0.0
        %6844 = vmatpush2.msra.mxu0 0.0
        %6845 = vmatprep.subr.mxu0 0.0
        %6846 = vmatpush2.msra.mxu0 0.0
        %6847 = vmatprep.subr.mxu0 0.0
        %6848 = vmatpush2.msra.mxu0 0.0
        %6849 = vmatprep.subr.mxu0 0.0
        %6850 = vmatpush2.msra.mxu0 0.0
        %6851 = vmatprep.subr.mxu0 0.0
        %6852 = vmatpush2.msra.mxu0 0.0
        %6853 = vmatprep.subr.mxu0 0.0
        %6854 = vmatpush2.msra.mxu0 0.0
        %6855 = vmatprep.subr.mxu0 0.0
        %6856 = vmatpush2.msra.mxu0 0.0
        %6857 = vmatprep.subr.mxu0 0.0
        %6858 = vmatpush2.msra.mxu0 0.0
        %6859 = vmatprep.subr.mxu0 0.0
        %6860 = vmatpush2.msra.mxu0 0.0
        %6861 = vmatprep.subr.mxu0 0.0
        %6862 = vmatpush2.msra.mxu0 0.0
        %6863 = vmatprep.subr.mxu0 0.0
        %6864 = vmatpush2.msra.mxu0 0.0
        %6865 = vmatprep.subr.mxu0 0.0
        %6866 = vmatpush2.msra.mxu0 0.0
        %6867 = vmatprep.subr.mxu0 0.0
        %6868 = vmatpush2.msra.mxu0 0.0
        %6869 = vmatprep.mubr.f32.mxu0 0.0
        %6870 = vmatmul.mubr.f32.gmra.mxu0 %v6728
        %v6871 = vpop.f32.mrf.mxu0
        %v6872 = vadd.f32 %v6732, %v6871
        %v6873 = vpop.f32.mrf.mxu0
        %v6874 = vadd.f32 %v6733, %v6873
        %6875 = vdwg.mxu0
        %v6876 = vmul.f32 %v6801, 0.5
        %v6877 = vmul.f32 %v6803, 0.5
        %v6878 = vmul.f32 %v6872, 0.5
        %v6879 = vtanh.pop %v6876
        %v6880 = vtanh.pop %v6877
        %v6881 = vtanh.pop %v6878
        %v6882 = vmul.f32 %v6879, 0.5
        %v6883 = vmul.f32 %v6880, 0.5
        %v6884 = vmul.f32 %v6881, 0.5
        %v6885 = vadd.f32 %v6882, 0.5
        %v6886 = vadd.f32 %v6883, 0.5
        %v6887 = vadd.f32 %v6884, 0.5
        %v6888 = vtanh.pop %v6874
        %v6889 = vmul.f32 %v6886, %v6726
        %v6890 = vmul.f32 %v6885, %v6888
        %v6891 = vadd.f32 %v6889, %v6890
        %v6892 = vtanh.pop %v6891
        %v6893 = vmul.f32 %v6887, %v6892
        %6894 = vst [vmem:[%s1650] sm:$0xff] %v6893
        %v6895 = vld [vmem:[%s1652] sm:$0xff]
        %v6896 = vld [vmem:[%s1652 + $0x8] sm:$0xff]
        %v6897 = vld [vmem:[%s1652 + $0x10] sm:$0xff]
        %v6898 = vld [vmem:[%s1652 + $0x18] sm:$0xff]
        %6899 = vmatprep.subr.mxu0 %v5939
        %6900 = vmatpush1.msra.mxu0 %v5938
        %6901 = vmatprep.subr.mxu0 %v5935
        %6902 = vmatpush1.msra.mxu0 %v5934
        %6903 = vmatprep.subr.mxu0 %v5931
        %6904 = vmatpush1.msra.mxu0 %v5930
        %6905 = vmatprep.subr.mxu0 %v5927
        %6906 = vmatpush1.msra.mxu0 %v5926
        %6907 = vmatprep.subr.mxu0 %v5923
        %6908 = vmatpush1.msra.mxu0 %v5922
        %6909 = vmatprep.subr.mxu0 %v5919
        %6910 = vmatpush1.msra.mxu0 %v5918
        %6911 = vmatprep.subr.mxu0 %v5915
        %6912 = vmatpush1.msra.mxu0 %v5914
        %6913 = vmatprep.subr.mxu0 %v5911
        %6914 = vmatpush1.msra.mxu0 %v5910
        %6915 = vmatprep.subr.mxu0 %v5907
        %6916 = vmatpush1.msra.mxu0 %v5906
        %6917 = vmatprep.subr.mxu0 %v5903
        %6918 = vmatpush1.msra.mxu0 %v5902
        %6919 = vmatprep.subr.mxu0 %v5899
        %6920 = vmatpush1.msra.mxu0 %v5898
        %6921 = vmatprep.subr.mxu0 %v5895
        %6922 = vmatpush1.msra.mxu0 %v5894
        %6923 = vmatprep.subr.mxu0 %v5891
        %6924 = vmatpush1.msra.mxu0 %v5890
        %6925 = vmatprep.subr.mxu0 %v5887
        %6926 = vmatpush1.msra.mxu0 %v5886
        %6927 = vmatprep.subr.mxu0 %v5883
        %6928 = vmatpush1.msra.mxu0 %v5882
        %6929 = vmatprep.subr.mxu0 %v5879
        %6930 = vmatpush1.msra.mxu0 %v5878
        %6931 = vmatprep.subr.mxu0 0.0
        %6932 = vmatpush2.msra.mxu0 0.0
        %6933 = vmatprep.subr.mxu0 0.0
        %6934 = vmatpush2.msra.mxu0 0.0
        %6935 = vmatprep.subr.mxu0 0.0
        %6936 = vmatpush2.msra.mxu0 0.0
        %6937 = vmatprep.subr.mxu0 0.0
        %6938 = vmatpush2.msra.mxu0 0.0
        %6939 = vmatprep.subr.mxu0 0.0
        %6940 = vmatpush2.msra.mxu0 0.0
        %6941 = vmatprep.subr.mxu0 0.0
        %6942 = vmatpush2.msra.mxu0 0.0
        %6943 = vmatprep.subr.mxu0 0.0
        %6944 = vmatpush2.msra.mxu0 0.0
        %6945 = vmatprep.subr.mxu0 0.0
        %6946 = vmatpush2.msra.mxu0 0.0
        %6947 = vmatprep.subr.mxu0 0.0
        %6948 = vmatpush2.msra.mxu0 0.0
        %6949 = vmatprep.subr.mxu0 0.0
        %6950 = vmatpush2.msra.mxu0 0.0
        %6951 = vmatprep.subr.mxu0 0.0
        %6952 = vmatpush2.msra.mxu0 0.0
        %6953 = vmatprep.subr.mxu0 0.0
        %6954 = vmatpush2.msra.mxu0 0.0
        %6955 = vmatprep.subr.mxu0 0.0
        %6956 = vmatpush2.msra.mxu0 0.0
        %6957 = vmatprep.subr.mxu0 0.0
        %6958 = vmatpush2.msra.mxu0 0.0
        %6959 = vmatprep.subr.mxu0 0.0
        %6960 = vmatpush2.msra.mxu0 0.0
        %6961 = vmatprep.subr.mxu0 0.0
        %6962 = vmatpush2.msra.mxu0 0.0
        %6963 = vmatprep.mubr.f32.mxu0 0.0
        %6964 = vmatmul.mubr.f32.gmra.mxu0 %v6893
        %v6965 = vpop.f32.mrf.mxu0
        %v6966 = vadd.f32 %v6895, %v6965
        %v6967 = vpop.f32.mrf.mxu0
        %v6968 = vadd.f32 %v6896, %v6967
        %6969 = vdwg.mxu0
        %6970 = vmatprep.subr.mxu0 %v5941
        %6971 = vmatpush1.msra.mxu0 %v5940
        %6972 = vmatprep.subr.mxu0 %v5937
        %6973 = vmatpush1.msra.mxu0 %v5936
        %6974 = vmatprep.subr.mxu0 %v5933
        %6975 = vmatpush1.msra.mxu0 %v5932
        %6976 = vmatprep.subr.mxu0 %v5929
        %6977 = vmatpush1.msra.mxu0 %v5928
        %6978 = vmatprep.subr.mxu0 %v5925
        %6979 = vmatpush1.msra.mxu0 %v5924
        %6980 = vmatprep.subr.mxu0 %v5921
        %6981 = vmatpush1.msra.mxu0 %v5920
        %6982 = vmatprep.subr.mxu0 %v5917
        %6983 = vmatpush1.msra.mxu0 %v5916
        %6984 = vmatprep.subr.mxu0 %v5913
        %6985 = vmatpush1.msra.mxu0 %v5912
        %6986 = vmatprep.subr.mxu0 %v5909
        %6987 = vmatpush1.msra.mxu0 %v5908
        %6988 = vmatprep.subr.mxu0 %v5905
        %6989 = vmatpush1.msra.mxu0 %v5904
        %6990 = vmatprep.subr.mxu0 %v5901
        %6991 = vmatpush1.msra.mxu0 %v5900
        %6992 = vmatprep.subr.mxu0 %v5897
        %6993 = vmatpush1.msra.mxu0 %v5896
        %6994 = vmatprep.subr.mxu0 %v5893
        %6995 = vmatpush1.msra.mxu0 %v5892
        %6996 = vmatprep.subr.mxu0 %v5889
        %6997 = vmatpush1.msra.mxu0 %v5888
        %6998 = vmatprep.subr.mxu0 %v5885
        %6999 = vmatpush1.msra.mxu0 %v5884
        %7000 = vmatprep.subr.mxu0 %v5881
        %7001 = vmatpush1.msra.mxu0 %v5880
        %7002 = vmatprep.subr.mxu0 0.0
        %7003 = vmatpush2.msra.mxu0 0.0
        %7004 = vmatprep.subr.mxu0 0.0
        %7005 = vmatpush2.msra.mxu0 0.0
        %7006 = vmatprep.subr.mxu0 0.0
        %7007 = vmatpush2.msra.mxu0 0.0
        %7008 = vmatprep.subr.mxu0 0.0
        %7009 = vmatpush2.msra.mxu0 0.0
        %7010 = vmatprep.subr.mxu0 0.0
        %7011 = vmatpush2.msra.mxu0 0.0
        %7012 = vmatprep.subr.mxu0 0.0
        %7013 = vmatpush2.msra.mxu0 0.0
        %7014 = vmatprep.subr.mxu0 0.0
        %7015 = vmatpush2.msra.mxu0 0.0
        %7016 = vmatprep.subr.mxu0 0.0
        %7017 = vmatpush2.msra.mxu0 0.0
        %7018 = vmatprep.subr.mxu0 0.0
        %7019 = vmatpush2.msra.mxu0 0.0
        %7020 = vmatprep.subr.mxu0 0.0
        %7021 = vmatpush2.msra.mxu0 0.0
        %7022 = vmatprep.subr.mxu0 0.0
        %7023 = vmatpush2.msra.mxu0 0.0
        %7024 = vmatprep.subr.mxu0 0.0
        %7025 = vmatpush2.msra.mxu0 0.0
        %7026 = vmatprep.subr.mxu0 0.0
        %7027 = vmatpush2.msra.mxu0 0.0
        %7028 = vmatprep.subr.mxu0 0.0
        %7029 = vmatpush2.msra.mxu0 0.0
        %7030 = vmatprep.subr.mxu0 0.0
        %7031 = vmatpush2.msra.mxu0 0.0
        %7032 = vmatprep.subr.mxu0 0.0
        %7033 = vmatpush2.msra.mxu0 0.0
        %7034 = vmatprep.mubr.f32.mxu0 0.0
        %7035 = vmatmul.mubr.f32.gmra.mxu0 %v6893
        %v7036 = vpop.f32.mrf.mxu0
        %v7037 = vadd.f32 %v6897, %v7036
        %v7038 = vpop.f32.mrf.mxu0
        %v7039 = vadd.f32 %v6898, %v7038
        %7040 = vdwg.mxu0
        %v7041 = vmul.f32 %v6966, 0.5
        %v7042 = vmul.f32 %v6968, 0.5
        %v7043 = vmul.f32 %v7037, 0.5
        %v7044 = vtanh.pop %v7041
        %v7045 = vtanh.pop %v7042
        %v7046 = vtanh.pop %v7043
        %v7047 = vmul.f32 %v7044, 0.5
        %v7048 = vmul.f32 %v7045, 0.5
        %v7049 = vmul.f32 %v7046, 0.5
        %v7050 = vadd.f32 %v7047, 0.5
        %v7051 = vadd.f32 %v7048, 0.5
        %v7052 = vadd.f32 %v7049, 0.5
        %v7053 = vtanh.pop %v7039
        %v7054 = vmul.f32 %v7051, %v6891
        %v7055 = vmul.f32 %v7050, %v7053
        %v7056 = vadd.f32 %v7054, %v7055
        %v7057 = vtanh.pop %v7056
        %v7058 = vmul.f32 %v7052, %v7057
        %7059 = vst [vmem:[%s1817] sm:$0xff] %v7058
        %v7060 = vld [vmem:[%s1819] sm:$0xff]
        %v7061 = vld [vmem:[%s1819 + $0x8] sm:$0xff]
        %v7062 = vld [vmem:[%s1819 + $0x10] sm:$0xff]
        %v7063 = vld [vmem:[%s1819 + $0x18] sm:$0xff]
        %7064 = vmatprep.subr.mxu0 %v5939
        %7065 = vmatpush1.msra.mxu0 %v5938
        %7066 = vmatprep.subr.mxu0 %v5935
        %7067 = vmatpush1.msra.mxu0 %v5934
        %7068 = vmatprep.subr.mxu0 %v5931
        %7069 = vmatpush1.msra.mxu0 %v5930
        %7070 = vmatprep.subr.mxu0 %v5927
        %7071 = vmatpush1.msra.mxu0 %v5926
        %7072 = vmatprep.subr.mxu0 %v5923
        %7073 = vmatpush1.msra.mxu0 %v5922
        %7074 = vmatprep.subr.mxu0 %v5919
        %7075 = vmatpush1.msra.mxu0 %v5918
        %7076 = vmatprep.subr.mxu0 %v5915
        %7077 = vmatpush1.msra.mxu0 %v5914
        %7078 = vmatprep.subr.mxu0 %v5911
        %7079 = vmatpush1.msra.mxu0 %v5910
        %7080 = vmatprep.subr.mxu0 %v5907
        %7081 = vmatpush1.msra.mxu0 %v5906
        %7082 = vmatprep.subr.mxu0 %v5903
        %7083 = vmatpush1.msra.mxu0 %v5902
        %7084 = vmatprep.subr.mxu0 %v5899
        %7085 = vmatpush1.msra.mxu0 %v5898
        %7086 = vmatprep.subr.mxu0 %v5895
        %7087 = vmatpush1.msra.mxu0 %v5894
        %7088 = vmatprep.subr.mxu0 %v5891
        %7089 = vmatpush1.msra.mxu0 %v5890
        %7090 = vmatprep.subr.mxu0 %v5887
        %7091 = vmatpush1.msra.mxu0 %v5886
        %7092 = vmatprep.subr.mxu0 %v5883
        %7093 = vmatpush1.msra.mxu0 %v5882
        %7094 = vmatprep.subr.mxu0 %v5879
        %7095 = vmatpush1.msra.mxu0 %v5878
        %7096 = vmatprep.subr.mxu0 0.0
        %7097 = vmatpush2.msra.mxu0 0.0
        %7098 = vmatprep.subr.mxu0 0.0
        %7099 = vmatpush2.msra.mxu0 0.0
        %7100 = vmatprep.subr.mxu0 0.0
        %7101 = vmatpush2.msra.mxu0 0.0
        %7102 = vmatprep.subr.mxu0 0.0
        %7103 = vmatpush2.msra.mxu0 0.0
        %7104 = vmatprep.subr.mxu0 0.0
        %7105 = vmatpush2.msra.mxu0 0.0
        %7106 = vmatprep.subr.mxu0 0.0
        %7107 = vmatpush2.msra.mxu0 0.0
        %7108 = vmatprep.subr.mxu0 0.0
        %7109 = vmatpush2.msra.mxu0 0.0
        %7110 = vmatprep.subr.mxu0 0.0
        %7111 = vmatpush2.msra.mxu0 0.0
        %7112 = vmatprep.subr.mxu0 0.0
        %7113 = vmatpush2.msra.mxu0 0.0
        %7114 = vmatprep.subr.mxu0 0.0
        %7115 = vmatpush2.msra.mxu0 0.0
        %7116 = vmatprep.subr.mxu0 0.0
        %7117 = vmatpush2.msra.mxu0 0.0
        %7118 = vmatprep.subr.mxu0 0.0
        %7119 = vmatpush2.msra.mxu0 0.0
        %7120 = vmatprep.subr.mxu0 0.0
        %7121 = vmatpush2.msra.mxu0 0.0
        %7122 = vmatprep.subr.mxu0 0.0
        %7123 = vmatpush2.msra.mxu0 0.0
        %7124 = vmatprep.subr.mxu0 0.0
        %7125 = vmatpush2.msra.mxu0 0.0
        %7126 = vmatprep.subr.mxu0 0.0
        %7127 = vmatpush2.msra.mxu0 0.0
        %7128 = vmatprep.mubr.f32.mxu0 0.0
        %7129 = vmatmul.mubr.f32.gmra.mxu0 %v7058
        %v7130 = vpop.f32.mrf.mxu0
        %v7131 = vadd.f32 %v7060, %v7130
        %v7132 = vpop.f32.mrf.mxu0
        %v7133 = vadd.f32 %v7061, %v7132
        %7134 = vdwg.mxu0
        %7135 = vmatprep.subr.mxu0 %v5941
        %7136 = vmatpush1.msra.mxu0 %v5940
        %7137 = vmatprep.subr.mxu0 %v5937
        %7138 = vmatpush1.msra.mxu0 %v5936
        %7139 = vmatprep.subr.mxu0 %v5933
        %7140 = vmatpush1.msra.mxu0 %v5932
        %7141 = vmatprep.subr.mxu0 %v5929
        %7142 = vmatpush1.msra.mxu0 %v5928
        %7143 = vmatprep.subr.mxu0 %v5925
        %7144 = vmatpush1.msra.mxu0 %v5924
        %7145 = vmatprep.subr.mxu0 %v5921
        %7146 = vmatpush1.msra.mxu0 %v5920
        %7147 = vmatprep.subr.mxu0 %v5917
        %7148 = vmatpush1.msra.mxu0 %v5916
        %7149 = vmatprep.subr.mxu0 %v5913
        %7150 = vmatpush1.msra.mxu0 %v5912
        %7151 = vmatprep.subr.mxu0 %v5909
        %7152 = vmatpush1.msra.mxu0 %v5908
        %7153 = vmatprep.subr.mxu0 %v5905
        %7154 = vmatpush1.msra.mxu0 %v5904
        %7155 = vmatprep.subr.mxu0 %v5901
        %7156 = vmatpush1.msra.mxu0 %v5900
        %7157 = vmatprep.subr.mxu0 %v5897
        %7158 = vmatpush1.msra.mxu0 %v5896
        %7159 = vmatprep.subr.mxu0 %v5893
        %7160 = vmatpush1.msra.mxu0 %v5892
        %7161 = vmatprep.subr.mxu0 %v5889
        %7162 = vmatpush1.msra.mxu0 %v5888
        %7163 = vmatprep.subr.mxu0 %v5885
        %7164 = vmatpush1.msra.mxu0 %v5884
        %7165 = vmatprep.subr.mxu0 %v5881
        %7166 = vmatpush1.msra.mxu0 %v5880
        %7167 = vmatprep.subr.mxu0 0.0
        %7168 = vmatpush2.msra.mxu0 0.0
        %7169 = vmatprep.subr.mxu0 0.0
        %7170 = vmatpush2.msra.mxu0 0.0
        %7171 = vmatprep.subr.mxu0 0.0
        %7172 = vmatpush2.msra.mxu0 0.0
        %7173 = vmatprep.subr.mxu0 0.0
        %7174 = vmatpush2.msra.mxu0 0.0
        %7175 = vmatprep.subr.mxu0 0.0
        %7176 = vmatpush2.msra.mxu0 0.0
        %7177 = vmatprep.subr.mxu0 0.0
        %7178 = vmatpush2.msra.mxu0 0.0
        %7179 = vmatprep.subr.mxu0 0.0
        %7180 = vmatpush2.msra.mxu0 0.0
        %7181 = vmatprep.subr.mxu0 0.0
        %7182 = vmatpush2.msra.mxu0 0.0
        %7183 = vmatprep.subr.mxu0 0.0
        %7184 = vmatpush2.msra.mxu0 0.0
        %7185 = vmatprep.subr.mxu0 0.0
        %7186 = vmatpush2.msra.mxu0 0.0
        %7187 = vmatprep.subr.mxu0 0.0
        %7188 = vmatpush2.msra.mxu0 0.0
        %7189 = vmatprep.subr.mxu0 0.0
        %7190 = vmatpush2.msra.mxu0 0.0
        %7191 = vmatprep.subr.mxu0 0.0
        %7192 = vmatpush2.msra.mxu0 0.0
        %7193 = vmatprep.subr.mxu0 0.0
        %7194 = vmatpush2.msra.mxu0 0.0
        %7195 = vmatprep.subr.mxu0 0.0
        %7196 = vmatpush2.msra.mxu0 0.0
        %7197 = vmatprep.subr.mxu0 0.0
        %7198 = vmatpush2.msra.mxu0 0.0
        %7199 = vmatprep.mubr.f32.mxu0 0.0
        %7200 = vmatmul.mubr.f32.gmra.mxu0 %v7058
        %v7201 = vpop.f32.mrf.mxu0
        %v7202 = vadd.f32 %v7062, %v7201
        %v7203 = vpop.f32.mrf.mxu0
        %v7204 = vadd.f32 %v7063, %v7203
        %7205 = vdwg.mxu0
        %v7206 = vmul.f32 %v7131, 0.5
        %v7207 = vmul.f32 %v7133, 0.5
        %v7208 = vmul.f32 %v7202, 0.5
        %v7209 = vtanh.pop %v7206
        %v7210 = vtanh.pop %v7207
        %v7211 = vtanh.pop %v7208
        %v7212 = vmul.f32 %v7209, 0.5
        %v7213 = vmul.f32 %v7210, 0.5
        %v7214 = vmul.f32 %v7211, 0.5
        %v7215 = vadd.f32 %v7212, 0.5
        %v7216 = vadd.f32 %v7213, 0.5
        %v7217 = vadd.f32 %v7214, 0.5
        %v7218 = vtanh.pop %v7204
        %v7219 = vmul.f32 %v7216, %v7056
        %v7220 = vmul.f32 %v7215, %v7218
        %v7221 = vadd.f32 %v7219, %v7220
        %v7222 = vtanh.pop %v7221
        %v7223 = vmul.f32 %v7217, %v7222
        %7224 = vst [vmem:[%s1984] sm:$0xff] %v7223
        %v7225 = vld [vmem:[%s1986] sm:$0xff]
        %v7226 = vld [vmem:[%s1986 + $0x8] sm:$0xff]
        %v7227 = vld [vmem:[%s1986 + $0x10] sm:$0xff]
        %v7228 = vld [vmem:[%s1986 + $0x18] sm:$0xff]
        %7229 = vmatprep.subr.mxu0 %v5939
        %7230 = vmatpush1.msra.mxu0 %v5938
        %7231 = vmatprep.subr.mxu0 %v5935
        %7232 = vmatpush1.msra.mxu0 %v5934
        %7233 = vmatprep.subr.mxu0 %v5931
        %7234 = vmatpush1.msra.mxu0 %v5930
        %7235 = vmatprep.subr.mxu0 %v5927
        %7236 = vmatpush1.msra.mxu0 %v5926
        %7237 = vmatprep.subr.mxu0 %v5923
        %7238 = vmatpush1.msra.mxu0 %v5922
        %7239 = vmatprep.subr.mxu0 %v5919
        %7240 = vmatpush1.msra.mxu0 %v5918
        %7241 = vmatprep.subr.mxu0 %v5915
        %7242 = vmatpush1.msra.mxu0 %v5914
        %7243 = vmatprep.subr.mxu0 %v5911
        %7244 = vmatpush1.msra.mxu0 %v5910
        %7245 = vmatprep.subr.mxu0 %v5907
        %7246 = vmatpush1.msra.mxu0 %v5906
        %7247 = vmatprep.subr.mxu0 %v5903
        %7248 = vmatpush1.msra.mxu0 %v5902
        %7249 = vmatprep.subr.mxu0 %v5899
        %7250 = vmatpush1.msra.mxu0 %v5898
        %7251 = vmatprep.subr.mxu0 %v5895
        %7252 = vmatpush1.msra.mxu0 %v5894
        %7253 = vmatprep.subr.mxu0 %v5891
        %7254 = vmatpush1.msra.mxu0 %v5890
        %7255 = vmatprep.subr.mxu0 %v5887
        %7256 = vmatpush1.msra.mxu0 %v5886
        %7257 = vmatprep.subr.mxu0 %v5883
        %7258 = vmatpush1.msra.mxu0 %v5882
        %7259 = vmatprep.subr.mxu0 %v5879
        %7260 = vmatpush1.msra.mxu0 %v5878
        %7261 = vmatprep.subr.mxu0 0.0
        %7262 = vmatpush2.msra.mxu0 0.0
        %7263 = vmatprep.subr.mxu0 0.0
        %7264 = vmatpush2.msra.mxu0 0.0
        %7265 = vmatprep.subr.mxu0 0.0
        %7266 = vmatpush2.msra.mxu0 0.0
        %7267 = vmatprep.subr.mxu0 0.0
        %7268 = vmatpush2.msra.mxu0 0.0
        %7269 = vmatprep.subr.mxu0 0.0
        %7270 = vmatpush2.msra.mxu0 0.0
        %7271 = vmatprep.subr.mxu0 0.0
        %7272 = vmatpush2.msra.mxu0 0.0
        %7273 = vmatprep.subr.mxu0 0.0
        %7274 = vmatpush2.msra.mxu0 0.0
        %7275 = vmatprep.subr.mxu0 0.0
        %7276 = vmatpush2.msra.mxu0 0.0
        %7277 = vmatprep.subr.mxu0 0.0
        %7278 = vmatpush2.msra.mxu0 0.0
        %7279 = vmatprep.subr.mxu0 0.0
        %7280 = vmatpush2.msra.mxu0 0.0
        %7281 = vmatprep.subr.mxu0 0.0
        %7282 = vmatpush2.msra.mxu0 0.0
        %7283 = vmatprep.subr.mxu0 0.0
        %7284 = vmatpush2.msra.mxu0 0.0
        %7285 = vmatprep.subr.mxu0 0.0
        %7286 = vmatpush2.msra.mxu0 0.0
        %7287 = vmatprep.subr.mxu0 0.0
        %7288 = vmatpush2.msra.mxu0 0.0
        %7289 = vmatprep.subr.mxu0 0.0
        %7290 = vmatpush2.msra.mxu0 0.0
        %7291 = vmatprep.subr.mxu0 0.0
        %7292 = vmatpush2.msra.mxu0 0.0
        %7293 = vmatprep.mubr.f32.mxu0 0.0
        %7294 = vmatmul.mubr.f32.gmra.mxu0 %v7223
        %v7295 = vpop.f32.mrf.mxu0
        %v7296 = vadd.f32 %v7225, %v7295
        %v7297 = vpop.f32.mrf.mxu0
        %v7298 = vadd.f32 %v7226, %v7297
        %7299 = vdwg.mxu0
        %7300 = vmatprep.subr.mxu0 %v5941
        %7301 = vmatpush1.msra.mxu0 %v5940
        %7302 = vmatprep.subr.mxu0 %v5937
        %7303 = vmatpush1.msra.mxu0 %v5936
        %7304 = vmatprep.subr.mxu0 %v5933
        %7305 = vmatpush1.msra.mxu0 %v5932
        %7306 = vmatprep.subr.mxu0 %v5929
        %7307 = vmatpush1.msra.mxu0 %v5928
        %7308 = vmatprep.subr.mxu0 %v5925
        %7309 = vmatpush1.msra.mxu0 %v5924
        %7310 = vmatprep.subr.mxu0 %v5921
        %7311 = vmatpush1.msra.mxu0 %v5920
        %7312 = vmatprep.subr.mxu0 %v5917
        %7313 = vmatpush1.msra.mxu0 %v5916
        %7314 = vmatprep.subr.mxu0 %v5913
        %7315 = vmatpush1.msra.mxu0 %v5912
        %7316 = vmatprep.subr.mxu0 %v5909
        %7317 = vmatpush1.msra.mxu0 %v5908
        %7318 = vmatprep.subr.mxu0 %v5905
        %7319 = vmatpush1.msra.mxu0 %v5904
        %7320 = vmatprep.subr.mxu0 %v5901
        %7321 = vmatpush1.msra.mxu0 %v5900
        %7322 = vmatprep.subr.mxu0 %v5897
        %7323 = vmatpush1.msra.mxu0 %v5896
        %7324 = vmatprep.subr.mxu0 %v5893
        %7325 = vmatpush1.msra.mxu0 %v5892
        %7326 = vmatprep.subr.mxu0 %v5889
        %7327 = vmatpush1.msra.mxu0 %v5888
        %7328 = vmatprep.subr.mxu0 %v5885
        %7329 = vmatpush1.msra.mxu0 %v5884
        %7330 = vmatprep.subr.mxu0 %v5881
        %7331 = vmatpush1.msra.mxu0 %v5880
        %7332 = vmatprep.subr.mxu0 0.0
        %7333 = vmatpush2.msra.mxu0 0.0
        %7334 = vmatprep.subr.mxu0 0.0
        %7335 = vmatpush2.msra.mxu0 0.0
        %7336 = vmatprep.subr.mxu0 0.0
        %7337 = vmatpush2.msra.mxu0 0.0
        %7338 = vmatprep.subr.mxu0 0.0
        %7339 = vmatpush2.msra.mxu0 0.0
        %7340 = vmatprep.subr.mxu0 0.0
        %7341 = vmatpush2.msra.mxu0 0.0
        %7342 = vmatprep.subr.mxu0 0.0
        %7343 = vmatpush2.msra.mxu0 0.0
        %7344 = vmatprep.subr.mxu0 0.0
        %7345 = vmatpush2.msra.mxu0 0.0
        %7346 = vmatprep.subr.mxu0 0.0
        %7347 = vmatpush2.msra.mxu0 0.0
        %7348 = vmatprep.subr.mxu0 0.0
        %7349 = vmatpush2.msra.mxu0 0.0
        %7350 = vmatprep.subr.mxu0 0.0
        %7351 = vmatpush2.msra.mxu0 0.0
        %7352 = vmatprep.subr.mxu0 0.0
        %7353 = vmatpush2.msra.mxu0 0.0
        %7354 = vmatprep.subr.mxu0 0.0
        %7355 = vmatpush2.msra.mxu0 0.0
        %7356 = vmatprep.subr.mxu0 0.0
        %7357 = vmatpush2.msra.mxu0 0.0
        %7358 = vmatprep.subr.mxu0 0.0
        %7359 = vmatpush2.msra.mxu0 0.0
        %7360 = vmatprep.subr.mxu0 0.0
        %7361 = vmatpush2.msra.mxu0 0.0
        %7362 = vmatprep.subr.mxu0 0.0
        %7363 = vmatpush2.msra.mxu0 0.0
        %7364 = vmatprep.mubr.f32.mxu0 0.0
        %7365 = vmatmul.mubr.f32.gmra.mxu0 %v7223
        %v7366 = vpop.f32.mrf.mxu0
        %v7367 = vadd.f32 %v7227, %v7366
        %v7368 = vpop.f32.mrf.mxu0
        %v7369 = vadd.f32 %v7228, %v7368
        %7370 = vdwg.mxu0
        %v7371 = vmul.f32 %v7296, 0.5
        %v7372 = vmul.f32 %v7298, 0.5
        %v7373 = vmul.f32 %v7367, 0.5
        %v7374 = vtanh.pop %v7371
        %v7375 = vtanh.pop %v7372
        %v7376 = vtanh.pop %v7373
        %v7377 = vmul.f32 %v7374, 0.5
        %v7378 = vmul.f32 %v7375, 0.5
        %v7379 = vmul.f32 %v7376, 0.5
        %v7380 = vadd.f32 %v7377, 0.5
        %v7381 = vadd.f32 %v7378, 0.5
        %v7382 = vadd.f32 %v7379, 0.5
        %v7383 = vtanh.pop %v7369
        %v7384 = vmul.f32 %v7381, %v7221
        %v7385 = vmul.f32 %v7380, %v7383
        %v7386 = vadd.f32 %v7384, %v7385
        %v7387 = vtanh.pop %v7386
        %v7388 = vmul.f32 %v7382, %v7387
        %7389 = vst [vmem:[%s2151] sm:$0xff] %v7388
        %v7390 = vld [vmem:[%s2153] sm:$0xff]
        %v7391 = vld [vmem:[%s2153 + $0x8] sm:$0xff]
        %v7392 = vld [vmem:[%s2153 + $0x10] sm:$0xff]
        %v7393 = vld [vmem:[%s2153 + $0x18] sm:$0xff]
        %7394 = vmatprep.subr.mxu0 %v5939
        %7395 = vmatpush1.msra.mxu0 %v5938
        %7396 = vmatprep.subr.mxu0 %v5935
        %7397 = vmatpush1.msra.mxu0 %v5934
        %7398 = vmatprep.subr.mxu0 %v5931
        %7399 = vmatpush1.msra.mxu0 %v5930
        %7400 = vmatprep.subr.mxu0 %v5927
        %7401 = vmatpush1.msra.mxu0 %v5926
        %7402 = vmatprep.subr.mxu0 %v5923
        %7403 = vmatpush1.msra.mxu0 %v5922
        %7404 = vmatprep.subr.mxu0 %v5919
        %7405 = vmatpush1.msra.mxu0 %v5918
        %7406 = vmatprep.subr.mxu0 %v5915
        %7407 = vmatpush1.msra.mxu0 %v5914
        %7408 = vmatprep.subr.mxu0 %v5911
        %7409 = vmatpush1.msra.mxu0 %v5910
        %7410 = vmatprep.subr.mxu0 %v5907
        %7411 = vmatpush1.msra.mxu0 %v5906
        %7412 = vmatprep.subr.mxu0 %v5903
        %7413 = vmatpush1.msra.mxu0 %v5902
        %7414 = vmatprep.subr.mxu0 %v5899
        %7415 = vmatpush1.msra.mxu0 %v5898
        %7416 = vmatprep.subr.mxu0 %v5895
        %7417 = vmatpush1.msra.mxu0 %v5894
        %7418 = vmatprep.subr.mxu0 %v5891
        %7419 = vmatpush1.msra.mxu0 %v5890
        %7420 = vmatprep.subr.mxu0 %v5887
        %7421 = vmatpush1.msra.mxu0 %v5886
        %7422 = vmatprep.subr.mxu0 %v5883
        %7423 = vmatpush1.msra.mxu0 %v5882
        %7424 = vmatprep.subr.mxu0 %v5879
        %7425 = vmatpush1.msra.mxu0 %v5878
        %7426 = vmatprep.subr.mxu0 0.0
        %7427 = vmatpush2.msra.mxu0 0.0
        %7428 = vmatprep.subr.mxu0 0.0
        %7429 = vmatpush2.msra.mxu0 0.0
        %7430 = vmatprep.subr.mxu0 0.0
        %7431 = vmatpush2.msra.mxu0 0.0
        %7432 = vmatprep.subr.mxu0 0.0
        %7433 = vmatpush2.msra.mxu0 0.0
        %7434 = vmatprep.subr.mxu0 0.0
        %7435 = vmatpush2.msra.mxu0 0.0
        %7436 = vmatprep.subr.mxu0 0.0
        %7437 = vmatpush2.msra.mxu0 0.0
        %7438 = vmatprep.subr.mxu0 0.0
        %7439 = vmatpush2.msra.mxu0 0.0
        %7440 = vmatprep.subr.mxu0 0.0
        %7441 = vmatpush2.msra.mxu0 0.0
        %7442 = vmatprep.subr.mxu0 0.0
        %7443 = vmatpush2.msra.mxu0 0.0
        %7444 = vmatprep.subr.mxu0 0.0
        %7445 = vmatpush2.msra.mxu0 0.0
        %7446 = vmatprep.subr.mxu0 0.0
        %7447 = vmatpush2.msra.mxu0 0.0
        %7448 = vmatprep.subr.mxu0 0.0
        %7449 = vmatpush2.msra.mxu0 0.0
        %7450 = vmatprep.subr.mxu0 0.0
        %7451 = vmatpush2.msra.mxu0 0.0
        %7452 = vmatprep.subr.mxu0 0.0
        %7453 = vmatpush2.msra.mxu0 0.0
        %7454 = vmatprep.subr.mxu0 0.0
        %7455 = vmatpush2.msra.mxu0 0.0
        %7456 = vmatprep.subr.mxu0 0.0
        %7457 = vmatpush2.msra.mxu0 0.0
        %7458 = vmatprep.mubr.f32.mxu0 0.0
        %7459 = vmatmul.mubr.f32.gmra.mxu0 %v7388
        %v7460 = vpop.f32.mrf.mxu0
        %v7461 = vadd.f32 %v7390, %v7460
        %v7462 = vpop.f32.mrf.mxu0
        %v7463 = vadd.f32 %v7391, %v7462
        %7464 = vdwg.mxu0
        %7465 = vmatprep.subr.mxu0 %v5941
        %7466 = vmatpush1.msra.mxu0 %v5940
        %7467 = vmatprep.subr.mxu0 %v5937
        %7468 = vmatpush1.msra.mxu0 %v5936
        %7469 = vmatprep.subr.mxu0 %v5933
        %7470 = vmatpush1.msra.mxu0 %v5932
        %7471 = vmatprep.subr.mxu0 %v5929
        %7472 = vmatpush1.msra.mxu0 %v5928
        %7473 = vmatprep.subr.mxu0 %v5925
        %7474 = vmatpush1.msra.mxu0 %v5924
        %7475 = vmatprep.subr.mxu0 %v5921
        %7476 = vmatpush1.msra.mxu0 %v5920
        %7477 = vmatprep.subr.mxu0 %v5917
        %7478 = vmatpush1.msra.mxu0 %v5916
        %7479 = vmatprep.subr.mxu0 %v5913
        %7480 = vmatpush1.msra.mxu0 %v5912
        %7481 = vmatprep.subr.mxu0 %v5909
        %7482 = vmatpush1.msra.mxu0 %v5908
        %7483 = vmatprep.subr.mxu0 %v5905
        %7484 = vmatpush1.msra.mxu0 %v5904
        %7485 = vmatprep.subr.mxu0 %v5901
        %7486 = vmatpush1.msra.mxu0 %v5900
        %7487 = vmatprep.subr.mxu0 %v5897
        %7488 = vmatpush1.msra.mxu0 %v5896
        %7489 = vmatprep.subr.mxu0 %v5893
        %7490 = vmatpush1.msra.mxu0 %v5892
        %7491 = vmatprep.subr.mxu0 %v5889
        %7492 = vmatpush1.msra.mxu0 %v5888
        %7493 = vmatprep.subr.mxu0 %v5885
        %7494 = vmatpush1.msra.mxu0 %v5884
        %7495 = vmatprep.subr.mxu0 %v5881
        %7496 = vmatpush1.msra.mxu0 %v5880
        %7497 = vmatprep.subr.mxu0 0.0
        %7498 = vmatpush2.msra.mxu0 0.0
        %7499 = vmatprep.subr.mxu0 0.0
        %7500 = vmatpush2.msra.mxu0 0.0
        %7501 = vmatprep.subr.mxu0 0.0
        %7502 = vmatpush2.msra.mxu0 0.0
        %7503 = vmatprep.subr.mxu0 0.0
        %7504 = vmatpush2.msra.mxu0 0.0
        %7505 = vmatprep.subr.mxu0 0.0
        %7506 = vmatpush2.msra.mxu0 0.0
        %7507 = vmatprep.subr.mxu0 0.0
        %7508 = vmatpush2.msra.mxu0 0.0
        %7509 = vmatprep.subr.mxu0 0.0
        %7510 = vmatpush2.msra.mxu0 0.0
        %7511 = vmatprep.subr.mxu0 0.0
        %7512 = vmatpush2.msra.mxu0 0.0
        %7513 = vmatprep.subr.mxu0 0.0
        %7514 = vmatpush2.msra.mxu0 0.0
        %7515 = vmatprep.subr.mxu0 0.0
        %7516 = vmatpush2.msra.mxu0 0.0
        %7517 = vmatprep.subr.mxu0 0.0
        %7518 = vmatpush2.msra.mxu0 0.0
        %7519 = vmatprep.subr.mxu0 0.0
        %7520 = vmatpush2.msra.mxu0 0.0
        %7521 = vmatprep.subr.mxu0 0.0
        %7522 = vmatpush2.msra.mxu0 0.0
        %7523 = vmatprep.subr.mxu0 0.0
        %7524 = vmatpush2.msra.mxu0 0.0
        %7525 = vmatprep.subr.mxu0 0.0
        %7526 = vmatpush2.msra.mxu0 0.0
        %7527 = vmatprep.subr.mxu0 0.0
        %7528 = vmatpush2.msra.mxu0 0.0
        %7529 = vmatprep.mubr.f32.mxu0 0.0
        %7530 = vmatmul.mubr.f32.gmra.mxu0 %v7388
        %v7531 = vpop.f32.mrf.mxu0
        %v7532 = vadd.f32 %v7392, %v7531
        %v7533 = vpop.f32.mrf.mxu0
        %v7534 = vadd.f32 %v7393, %v7533
        %7535 = vdwg.mxu0
        %v7536 = vmul.f32 %v7461, 0.5
        %v7537 = vmul.f32 %v7463, 0.5
        %v7538 = vmul.f32 %v7532, 0.5
        %v7539 = vtanh.pop %v7536
        %v7540 = vtanh.pop %v7537
        %v7541 = vtanh.pop %v7538
        %v7542 = vmul.f32 %v7539, 0.5
        %v7543 = vmul.f32 %v7540, 0.5
        %v7544 = vmul.f32 %v7541, 0.5
        %v7545 = vadd.f32 %v7542, 0.5
        %v7546 = vadd.f32 %v7543, 0.5
        %v7547 = vadd.f32 %v7544, 0.5
        %v7548 = vtanh.pop %v7534
        %v7549 = vmul.f32 %v7546, %v7386
        %v7550 = vmul.f32 %v7545, %v7548
        %v7551 = vadd.f32 %v7549, %v7550
        %v7552 = vtanh.pop %v7551
        %v7553 = vmul.f32 %v7547, %v7552
        %7554 = vst [vmem:[%s2318] sm:$0xff] %v7553
        %7555 = vst [vmem:[%s6231] sm:$0xff] %v7553
        %7556 = vst [vmem:[%s6233] sm:$0xff] %v7551
        %v7557 = vld [vmem:[#allocation4] sm:$0xff]
        %v7558 = vld [vmem:[#allocation4 + $0x8] sm:$0xff]
        %v7559 = vld [vmem:[#allocation4 + $0x10] sm:$0xff]
        %v7560 = vld [vmem:[#allocation4 + $0x18] sm:$0xff]
        %v7561 = vld [vmem:[#allocation4 + $0x20] sm:$0xff]
        %v7562 = vld [vmem:[#allocation4 + $0x28] sm:$0xff]
        %v7563 = vld [vmem:[#allocation4 + $0x30] sm:$0xff]
        %v7564 = vld [vmem:[#allocation4 + $0x38] sm:$0xff]
        %v7565 = vld [vmem:[#allocation17] sm:$0xff]
        %v7566 = vld [vmem:[#allocation17 + $0x8] sm:$0xff]
        %v7567 = vld [vmem:[#allocation17 + $0x10] sm:$0xff]
        %v7568 = vld [vmem:[#allocation17 + $0x18] sm:$0xff]
        %v7569 = vld [vmem:[#allocation17 + $0x20] sm:$0xff]
        %v7570 = vld [vmem:[#allocation17 + $0x28] sm:$0xff]
        %v7571 = vld [vmem:[#allocation17 + $0x30] sm:$0xff]
        %v7572 = vld [vmem:[#allocation17 + $0x38] sm:$0xff]
        %v7573 = vld [vmem:[#allocation17 + $0x40] sm:$0xff]
        %v7574 = vld [vmem:[#allocation17 + $0x48] sm:$0xff]
        %v7575 = vld [vmem:[#allocation17 + $0x50] sm:$0xff]
        %v7576 = vld [vmem:[#allocation17 + $0x58] sm:$0xff]
        %v7577 = vld [vmem:[#allocation17 + $0x60] sm:$0xff]
        %v7578 = vld [vmem:[#allocation17 + $0x68] sm:$0xff]
        %v7579 = vld [vmem:[#allocation17 + $0x70] sm:$0xff]
        %v7580 = vld [vmem:[#allocation17 + $0x78] sm:$0xff]
        %v7581 = vld [vmem:[#allocation17 + $0x80] sm:$0xff]
        %v7582 = vld [vmem:[#allocation17 + $0x88] sm:$0xff]
        %v7583 = vld [vmem:[#allocation17 + $0x90] sm:$0xff]
        %v7584 = vld [vmem:[#allocation17 + $0x98] sm:$0xff]
        %v7585 = vld [vmem:[#allocation17 + $0xa0] sm:$0xff]
        %v7586 = vld [vmem:[#allocation17 + $0xa8] sm:$0xff]
        %v7587 = vld [vmem:[#allocation17 + $0xb0] sm:$0xff]
        %v7588 = vld [vmem:[#allocation17 + $0xb8] sm:$0xff]
        %v7589 = vld [vmem:[#allocation17 + $0xc0] sm:$0xff]
        %v7590 = vld [vmem:[#allocation17 + $0xc8] sm:$0xff]
        %v7591 = vld [vmem:[#allocation17 + $0xd0] sm:$0xff]
        %v7592 = vld [vmem:[#allocation17 + $0xd8] sm:$0xff]
        %v7593 = vld [vmem:[#allocation17 + $0xe0] sm:$0xff]
        %v7594 = vld [vmem:[#allocation17 + $0xe8] sm:$0xff]
        %v7595 = vld [vmem:[#allocation17 + $0xf0] sm:$0xff]
        %v7596 = vld [vmem:[#allocation17 + $0xf8] sm:$0xff]
        %v7597 = vld [vmem:[%s7] sm:$0x3]
        %v7599 = vlaneseq
        %v7600 = vshrl.u32 %v7599, 7
        %v7601 = vsub.s32 0, %v7600
        %v7602 = vrot.slane %v7597, %v7601
        %v7603 = vlaneseq
        %v7604 = vshrl.u32 %v7603, 7
        %v7605 = vsub.s32 1, %v7604
        %v7606 = vrot.slane %v7597, %v7605
        %7609 = vmatprep.subr.mxu0 %v7596
        %7610 = vmatpush1.msra.mxu0 %v7595
        %7611 = vmatprep.subr.mxu0 %v7594
        %7612 = vmatpush1.msra.mxu0 %v7593
        %7613 = vmatprep.subr.mxu0 %v7592
        %7614 = vmatpush1.msra.mxu0 %v7591
        %7615 = vmatprep.subr.mxu0 %v7590
        %7616 = vmatpush1.msra.mxu0 %v7589
        %7617 = vmatprep.subr.mxu0 %v7588
        %7618 = vmatpush1.msra.mxu0 %v7587
        %7619 = vmatprep.subr.mxu0 %v7586
        %7620 = vmatpush1.msra.mxu0 %v7585
        %7621 = vmatprep.subr.mxu0 %v7584
        %7622 = vmatpush1.msra.mxu0 %v7583
        %7623 = vmatprep.subr.mxu0 %v7582
        %7624 = vmatpush1.msra.mxu0 %v7581
        %7625 = vmatprep.subr.mxu0 %v7580
        %7626 = vmatpush1.msra.mxu0 %v7579
        %7627 = vmatprep.subr.mxu0 %v7578
        %7628 = vmatpush1.msra.mxu0 %v7577
        %7629 = vmatprep.subr.mxu0 %v7576
        %7630 = vmatpush1.msra.mxu0 %v7575
        %7631 = vmatprep.subr.mxu0 %v7574
        %7632 = vmatpush1.msra.mxu0 %v7573
        %7633 = vmatprep.subr.mxu0 %v7572
        %7634 = vmatpush1.msra.mxu0 %v7571
        %7635 = vmatprep.subr.mxu0 %v7570
        %7636 = vmatpush1.msra.mxu0 %v7569
        %7637 = vmatprep.subr.mxu0 %v7568
        %7638 = vmatpush1.msra.mxu0 %v7567
        %7639 = vmatprep.subr.mxu0 %v7566
        %7640 = vmatpush1.msra.mxu0 %v7565
        %7641 = vmatprep.subr.mxu0 0.0
        %7642 = vmatpush2.msra.mxu0 0.0
        %7643 = vmatprep.subr.mxu0 0.0
        %7644 = vmatpush2.msra.mxu0 0.0
        %7645 = vmatprep.subr.mxu0 0.0
        %7646 = vmatpush2.msra.mxu0 0.0
        %7647 = vmatprep.subr.mxu0 0.0
        %7648 = vmatpush2.msra.mxu0 0.0
        %7649 = vmatprep.subr.mxu0 0.0
        %7650 = vmatpush2.msra.mxu0 0.0
        %7651 = vmatprep.subr.mxu0 0.0
        %7652 = vmatpush2.msra.mxu0 0.0
        %7653 = vmatprep.subr.mxu0 0.0
        %7654 = vmatpush2.msra.mxu0 0.0
        %7655 = vmatprep.subr.mxu0 0.0
        %7656 = vmatpush2.msra.mxu0 0.0
        %7657 = vmatprep.subr.mxu0 0.0
        %7658 = vmatpush2.msra.mxu0 0.0
        %7659 = vmatprep.subr.mxu0 0.0
        %7660 = vmatpush2.msra.mxu0 0.0
        %7661 = vmatprep.subr.mxu0 0.0
        %7662 = vmatpush2.msra.mxu0 0.0
        %7663 = vmatprep.subr.mxu0 0.0
        %7664 = vmatpush2.msra.mxu0 0.0
        %7665 = vmatprep.subr.mxu0 0.0
        %7666 = vmatpush2.msra.mxu0 0.0
        %7667 = vmatprep.subr.mxu0 0.0
        %7668 = vmatpush2.msra.mxu0 0.0
        %7669 = vmatprep.subr.mxu0 0.0
        %7670 = vmatpush2.msra.mxu0 0.0
        %7671 = vmatprep.subr.mxu0 0.0
        %7672 = vmatpush2.msra.mxu0 0.0
        %7673 = vmatprep.mubr.f32.mxu0 0.0
        %7674 = vmatmul.mubr.f32.gmra.mxu0 %v7557
        %v7675 = vpop.f32.mrf.mxu0
        %v7676 = vadd.f32 %v7602, %v7675
        %v7677 = vpop.f32.mrf.mxu0
        %v7678 = vadd.f32 %v7606, %v7677
        %7679 = vmatprep.mubr.f32.mxu0 0.0
        %7680 = vmatmul.mubr.f32.gmra.mxu0 %v7558
        %v7681 = vpop.f32.mrf.mxu0
        %v7682 = vadd.f32 %v7602, %v7681
        %v7683 = vpop.f32.mrf.mxu0
        %v7684 = vadd.f32 %v7606, %v7683
        %7685 = vmatprep.mubr.f32.mxu0 0.0
        %7686 = vmatmul.mubr.f32.gmra.mxu0 %v7559
        %v7687 = vpop.f32.mrf.mxu0
        %v7688 = vadd.f32 %v7602, %v7687
        %v7689 = vpop.f32.mrf.mxu0
        %v7690 = vadd.f32 %v7606, %v7689
        %7691 = vmatprep.mubr.f32.mxu0 0.0
        %7692 = vmatmul.mubr.f32.gmra.mxu0 %v7560
        %v7693 = vpop.f32.mrf.mxu0
        %v7694 = vadd.f32 %v7602, %v7693
        %v7695 = vpop.f32.mrf.mxu0
        %v7696 = vadd.f32 %v7606, %v7695
        %7697 = vmatprep.mubr.f32.mxu0 0.0
        %7698 = vmatmul.mubr.f32.gmra.mxu0 %v7561
        %v7699 = vpop.f32.mrf.mxu0
        %v7700 = vadd.f32 %v7602, %v7699
        %v7701 = vpop.f32.mrf.mxu0
        %v7702 = vadd.f32 %v7606, %v7701
        %7703 = vmatprep.mubr.f32.mxu0 0.0
        %7704 = vmatmul.mubr.f32.gmra.mxu0 %v7562
        %v7705 = vpop.f32.mrf.mxu0
        %v7706 = vadd.f32 %v7602, %v7705
        %v7707 = vpop.f32.mrf.mxu0
        %v7708 = vadd.f32 %v7606, %v7707
        %7709 = vmatprep.mubr.f32.mxu0 0.0
        %7710 = vmatmul.mubr.f32.gmra.mxu0 %v7563
        %v7711 = vpop.f32.mrf.mxu0
        %v7712 = vadd.f32 %v7602, %v7711
        %v7713 = vpop.f32.mrf.mxu0
        %v7714 = vadd.f32 %v7606, %v7713
        %7715 = vmatprep.mubr.f32.mxu0 0.0
        %7716 = vmatmul.mubr.f32.gmra.mxu0 %v7564
        %v7717 = vpop.f32.mrf.mxu0
        %v7718 = vadd.f32 %v7602, %v7717
        %v7719 = vpop.f32.mrf.mxu0
        %v7720 = vadd.f32 %v7606, %v7719
        %7721 = vdwg.mxu0
        %v7722 = vld [vmem:[#allocation18] sm:$0xff]
        %v7723 = vld [vmem:[#allocation18 + $0x8] sm:$0xff]
        %v7724 = vld [vmem:[#allocation18 + $0x10] sm:$0xff]
        %v7725 = vld [vmem:[#allocation18 + $0x18] sm:$0xff]
        %v7726 = vld [vmem:[#allocation18 + $0x20] sm:$0xff]
        %v7727 = vld [vmem:[#allocation18 + $0x28] sm:$0xff]
        %v7728 = vld [vmem:[#allocation18 + $0x30] sm:$0xff]
        %v7729 = vld [vmem:[#allocation18 + $0x38] sm:$0xff]
        %v7730 = vld [vmem:[#allocation18 + $0x40] sm:$0xff]
        %v7731 = vld [vmem:[#allocation18 + $0x48] sm:$0xff]
        %v7732 = vld [vmem:[#allocation18 + $0x50] sm:$0xff]
        %v7733 = vld [vmem:[#allocation18 + $0x58] sm:$0xff]
        %v7734 = vld [vmem:[#allocation18 + $0x60] sm:$0xff]
        %v7735 = vld [vmem:[#allocation18 + $0x68] sm:$0xff]
        %v7736 = vld [vmem:[#allocation18 + $0x70] sm:$0xff]
        %v7737 = vld [vmem:[#allocation18 + $0x78] sm:$0xff]
        %v7738 = vld [vmem:[#allocation18 + $0x80] sm:$0xff]
        %v7739 = vld [vmem:[#allocation18 + $0x88] sm:$0xff]
        %v7740 = vld [vmem:[#allocation18 + $0x90] sm:$0xff]
        %v7741 = vld [vmem:[#allocation18 + $0x98] sm:$0xff]
        %v7742 = vld [vmem:[#allocation18 + $0xa0] sm:$0xff]
        %v7743 = vld [vmem:[#allocation18 + $0xa8] sm:$0xff]
        %v7744 = vld [vmem:[#allocation18 + $0xb0] sm:$0xff]
        %v7745 = vld [vmem:[#allocation18 + $0xb8] sm:$0xff]
        %v7746 = vld [vmem:[#allocation18 + $0xc0] sm:$0xff]
        %v7747 = vld [vmem:[#allocation18 + $0xc8] sm:$0xff]
        %v7748 = vld [vmem:[#allocation18 + $0xd0] sm:$0xff]
        %v7749 = vld [vmem:[#allocation18 + $0xd8] sm:$0xff]
        %v7750 = vld [vmem:[#allocation18 + $0xe0] sm:$0xff]
        %v7751 = vld [vmem:[#allocation18 + $0xe8] sm:$0xff]
        %v7752 = vld [vmem:[#allocation18 + $0xf0] sm:$0xff]
        %v7753 = vld [vmem:[#allocation18 + $0xf8] sm:$0xff]
        %v7754 = vld [vmem:[#allocation18 + $0x100] sm:$0xff]
        %v7755 = vld [vmem:[#allocation18 + $0x108] sm:$0xff]
        %v7756 = vld [vmem:[#allocation18 + $0x110] sm:$0xff]
        %v7757 = vld [vmem:[#allocation18 + $0x118] sm:$0xff]
        %v7758 = vld [vmem:[#allocation18 + $0x120] sm:$0xff]
        %v7759 = vld [vmem:[#allocation18 + $0x128] sm:$0xff]
        %v7760 = vld [vmem:[#allocation18 + $0x130] sm:$0xff]
        %v7761 = vld [vmem:[#allocation18 + $0x138] sm:$0xff]
        %v7762 = vld [vmem:[#allocation18 + $0x140] sm:$0xff]
        %v7763 = vld [vmem:[#allocation18 + $0x148] sm:$0xff]
        %v7764 = vld [vmem:[#allocation18 + $0x150] sm:$0xff]
        %v7765 = vld [vmem:[#allocation18 + $0x158] sm:$0xff]
        %v7766 = vld [vmem:[#allocation18 + $0x160] sm:$0xff]
        %v7767 = vld [vmem:[#allocation18 + $0x168] sm:$0xff]
        %v7768 = vld [vmem:[#allocation18 + $0x170] sm:$0xff]
        %v7769 = vld [vmem:[#allocation18 + $0x178] sm:$0xff]
        %v7770 = vld [vmem:[#allocation18 + $0x180] sm:$0xff]
        %v7771 = vld [vmem:[#allocation18 + $0x188] sm:$0xff]
        %v7772 = vld [vmem:[#allocation18 + $0x190] sm:$0xff]
        %v7773 = vld [vmem:[#allocation18 + $0x198] sm:$0xff]
        %v7774 = vld [vmem:[#allocation18 + $0x1a0] sm:$0xff]
        %v7775 = vld [vmem:[#allocation18 + $0x1a8] sm:$0xff]
        %v7776 = vld [vmem:[#allocation18 + $0x1b0] sm:$0xff]
        %v7777 = vld [vmem:[#allocation18 + $0x1b8] sm:$0xff]
        %v7778 = vld [vmem:[#allocation18 + $0x1c0] sm:$0xff]
        %v7779 = vld [vmem:[#allocation18 + $0x1c8] sm:$0xff]
        %v7780 = vld [vmem:[#allocation18 + $0x1d0] sm:$0xff]
        %v7781 = vld [vmem:[#allocation18 + $0x1d8] sm:$0xff]
        %v7782 = vld [vmem:[#allocation18 + $0x1e0] sm:$0xff]
        %v7783 = vld [vmem:[#allocation18 + $0x1e8] sm:$0xff]
        %v7784 = vld [vmem:[#allocation18 + $0x1f0] sm:$0xff]
        %v7785 = vld [vmem:[#allocation18 + $0x1f8] sm:$0xff]
        %v7786 = vld [vmem:[%s9] sm:$0x3]
        %v7788 = vlaneseq
        %v7789 = vshrl.u32 %v7788, 7
        %v7790 = vsub.s32 0, %v7789
        %v7791 = vrot.slane %v7786, %v7790
        %v7792 = vlaneseq
        %v7793 = vshrl.u32 %v7792, 7
        %v7794 = vsub.s32 1, %v7793
        %v7795 = vrot.slane %v7786, %v7794
        %7798 = vmatprep.subr.mxu0 %v7753
        %7799 = vmatpush1.msra.mxu0 %v7752
        %7800 = vmatprep.subr.mxu0 %v7751
        %7801 = vmatpush1.msra.mxu0 %v7750
        %7802 = vmatprep.subr.mxu0 %v7749
        %7803 = vmatpush1.msra.mxu0 %v7748
        %7804 = vmatprep.subr.mxu0 %v7747
        %7805 = vmatpush1.msra.mxu0 %v7746
        %7806 = vmatprep.subr.mxu0 %v7745
        %7807 = vmatpush1.msra.mxu0 %v7744
        %7808 = vmatprep.subr.mxu0 %v7743
        %7809 = vmatpush1.msra.mxu0 %v7742
        %7810 = vmatprep.subr.mxu0 %v7741
        %7811 = vmatpush1.msra.mxu0 %v7740
        %7812 = vmatprep.subr.mxu0 %v7739
        %7813 = vmatpush1.msra.mxu0 %v7738
        %7814 = vmatprep.subr.mxu0 %v7737
        %7815 = vmatpush1.msra.mxu0 %v7736
        %7816 = vmatprep.subr.mxu0 %v7735
        %7817 = vmatpush1.msra.mxu0 %v7734
        %7818 = vmatprep.subr.mxu0 %v7733
        %7819 = vmatpush1.msra.mxu0 %v7732
        %7820 = vmatprep.subr.mxu0 %v7731
        %7821 = vmatpush1.msra.mxu0 %v7730
        %7822 = vmatprep.subr.mxu0 %v7729
        %7823 = vmatpush1.msra.mxu0 %v7728
        %7824 = vmatprep.subr.mxu0 %v7727
        %7825 = vmatpush1.msra.mxu0 %v7726
        %7826 = vmatprep.subr.mxu0 %v7725
        %7827 = vmatpush1.msra.mxu0 %v7724
        %7828 = vmatprep.subr.mxu0 %v7723
        %7829 = vmatpush1.msra.mxu0 %v7722
        %7830 = vmatprep.subr.mxu0 %v7785
        %7831 = vmatpush2.msra.mxu0 %v7784
        %7832 = vmatprep.subr.mxu0 %v7783
        %7833 = vmatpush2.msra.mxu0 %v7782
        %7834 = vmatprep.subr.mxu0 %v7781
        %7835 = vmatpush2.msra.mxu0 %v7780
        %7836 = vmatprep.subr.mxu0 %v7779
        %7837 = vmatpush2.msra.mxu0 %v7778
        %7838 = vmatprep.subr.mxu0 %v7777
        %7839 = vmatpush2.msra.mxu0 %v7776
        %7840 = vmatprep.subr.mxu0 %v7775
        %7841 = vmatpush2.msra.mxu0 %v7774
        %7842 = vmatprep.subr.mxu0 %v7773
        %7843 = vmatpush2.msra.mxu0 %v7772
        %7844 = vmatprep.subr.mxu0 %v7771
        %7845 = vmatpush2.msra.mxu0 %v7770
        %7846 = vmatprep.subr.mxu0 %v7769
        %7847 = vmatpush2.msra.mxu0 %v7768
        %7848 = vmatprep.subr.mxu0 %v7767
        %7849 = vmatpush2.msra.mxu0 %v7766
        %7850 = vmatprep.subr.mxu0 %v7765
        %7851 = vmatpush2.msra.mxu0 %v7764
        %7852 = vmatprep.subr.mxu0 %v7763
        %7853 = vmatpush2.msra.mxu0 %v7762
        %7854 = vmatprep.subr.mxu0 %v7761
        %7855 = vmatpush2.msra.mxu0 %v7760
        %7856 = vmatprep.subr.mxu0 %v7759
        %7857 = vmatpush2.msra.mxu0 %v7758
        %7858 = vmatprep.subr.mxu0 %v7757
        %7859 = vmatpush2.msra.mxu0 %v7756
        %7860 = vmatprep.subr.mxu0 %v7755
        %7861 = vmatpush2.msra.mxu0 %v7754
        %7862 = vmatprep.mubr.f32.mxu0 %v7678
        %7863 = vmatmul.mubr.f32.gmra.mxu0 %v7676
        %v7864 = vpop.f32.mrf.mxu0
        %v7865 = vadd.f32 %v7791, %v7864
        %v7866 = vpop.f32.mrf.mxu0
        %v7867 = vadd.f32 %v7795, %v7866
        %7868 = vmatprep.mubr.f32.mxu0 %v7684
        %7869 = vmatmul.mubr.f32.gmra.mxu0 %v7682
        %v7870 = vpop.f32.mrf.mxu0
        %v7871 = vadd.f32 %v7791, %v7870
        %v7872 = vpop.f32.mrf.mxu0
        %v7873 = vadd.f32 %v7795, %v7872
        %7874 = vmatprep.mubr.f32.mxu0 %v7690
        %7875 = vmatmul.mubr.f32.gmra.mxu0 %v7688
        %v7876 = vpop.f32.mrf.mxu0
        %v7877 = vadd.f32 %v7791, %v7876
        %v7878 = vpop.f32.mrf.mxu0
        %v7879 = vadd.f32 %v7795, %v7878
        %7880 = vmatprep.mubr.f32.mxu0 %v7696
        %7881 = vmatmul.mubr.f32.gmra.mxu0 %v7694
        %v7882 = vpop.f32.mrf.mxu0
        %v7883 = vadd.f32 %v7791, %v7882
        %v7884 = vpop.f32.mrf.mxu0
        %v7885 = vadd.f32 %v7795, %v7884
        %7886 = vmatprep.mubr.f32.mxu0 %v7702
        %7887 = vmatmul.mubr.f32.gmra.mxu0 %v7700
        %v7888 = vpop.f32.mrf.mxu0
        %v7889 = vadd.f32 %v7791, %v7888
        %v7890 = vpop.f32.mrf.mxu0
        %v7891 = vadd.f32 %v7795, %v7890
        %7892 = vmatprep.mubr.f32.mxu0 %v7708
        %7893 = vmatmul.mubr.f32.gmra.mxu0 %v7706
        %v7894 = vpop.f32.mrf.mxu0
        %v7895 = vadd.f32 %v7791, %v7894
        %v7896 = vpop.f32.mrf.mxu0
        %v7897 = vadd.f32 %v7795, %v7896
        %7898 = vmatprep.mubr.f32.mxu0 %v7714
        %7899 = vmatmul.mubr.f32.gmra.mxu0 %v7712
        %v7900 = vpop.f32.mrf.mxu0
        %v7901 = vadd.f32 %v7791, %v7900
        %v7902 = vpop.f32.mrf.mxu0
        %v7903 = vadd.f32 %v7795, %v7902
        %7904 = vmatprep.mubr.f32.mxu0 %v7720
        %7905 = vmatmul.mubr.f32.gmra.mxu0 %v7718
        %v7906 = vpop.f32.mrf.mxu0
        %v7907 = vadd.f32 %v7791, %v7906
        %v7908 = vpop.f32.mrf.mxu0
        %v7909 = vadd.f32 %v7795, %v7908
        %7910 = vdwg.mxu0
        %7911 = vst [vmem:[%s525] sm:$0xff] %v7865
        %7912 = vst [vmem:[%s525 + $0x8] sm:$0xff] %v7867
        %7913 = vst [vmem:[%s525 + $0x10] sm:$0xff] %v7871
        %7914 = vst [vmem:[%s525 + $0x18] sm:$0xff] %v7873
        %7915 = vst [vmem:[%s525 + $0x20] sm:$0xff] %v7877
        %7916 = vst [vmem:[%s525 + $0x28] sm:$0xff] %v7879
        %7917 = vst [vmem:[%s525 + $0x30] sm:$0xff] %v7883
        %7918 = vst [vmem:[%s525 + $0x38] sm:$0xff] %v7885
        %7919 = vst [vmem:[%s525 + $0x40] sm:$0xff] %v7889
        %7920 = vst [vmem:[%s525 + $0x48] sm:$0xff] %v7891
        %7921 = vst [vmem:[%s525 + $0x50] sm:$0xff] %v7895
        %7922 = vst [vmem:[%s525 + $0x58] sm:$0xff] %v7897
        %7923 = vst [vmem:[%s525 + $0x60] sm:$0xff] %v7901
        %7924 = vst [vmem:[%s525 + $0x68] sm:$0xff] %v7903
        %7925 = vst [vmem:[%s525 + $0x70] sm:$0xff] %v7907
        %7926 = vst [vmem:[%s525 + $0x78] sm:$0xff] %v7909
        %p7927 = scmp.eq.s32.totalorder %s35, 1
        // Predicated region
        $region97: #{tpu_custom_call.1} parent=59 // pred_check
          %p7928 = pneg %p7927
        $region98: #{tpu_custom_call.1} parent=59 // pred_check_branch
          %7930 = sbr.rel (%p7928) target = $region100
        $region99: #{tpu_custom_call.1} parent=59 // pred_region
          %v7931 = vld [vmem:[#allocation2] sm:$0xff]
          %v7932 = vld [vmem:[#allocation2 + $0x8] sm:$0xff]
          %v7933 = vld [vmem:[#allocation2 + $0x10] sm:$0xff]
          %v7934 = vld [vmem:[#allocation2 + $0x18] sm:$0xff]
          %7935 = vst [vmem:[#allocation21] sm:$0xff] %v7931
          %7936 = vst [vmem:[#allocation21 + $0x8] sm:$0xff] %v7932
          %7937 = vst [vmem:[#allocation21 + $0x10] sm:$0xff] %v7933
          %7938 = vst [vmem:[#allocation21 + $0x18] sm:$0xff] %v7934
          %v7939 = vld [vmem:[#allocation3] sm:$0xff]
          %v7940 = vld [vmem:[#allocation3 + $0x8] sm:$0xff]
          %v7941 = vld [vmem:[#allocation3 + $0x10] sm:$0xff]
          %v7942 = vld [vmem:[#allocation3 + $0x18] sm:$0xff]
          %7943 = vst [vmem:[#allocation23] sm:$0xff] %v7939
          %7944 = vst [vmem:[#allocation23 + $0x8] sm:$0xff] %v7940
          %7945 = vst [vmem:[#allocation23 + $0x10] sm:$0xff] %v7941
          %7946 = vst [vmem:[#allocation23 + $0x18] sm:$0xff] %v7942
        $region100: #{tpu_custom_call.1} parent=59 // pred_fallthru
          _
        %s7947 = sand.u32 %s258, 1
        %s7948 = scalar_lea.sflag [#allocation8], %s7947
        %s7949 = sand.u32 %s258, 1
        %s7950 = smul.addr %s7949, 128
        %s7951 = scalar_lea.vmem [#allocation20], %s7950
        // Predicated region
        $region101: #{tpu_custom_call.1} parent=59 // pred_check
          %p7952 = pneg %p268
        $region102: #{tpu_custom_call.1} parent=59 // pred_check_branch
          %7954 = sbr.rel (%p7952) target = $region104
        $region103: #{tpu_custom_call.1} parent=59 // pred_region
          %s7955 = smul.u32 8, %s35
          %s7957 = ssub.s32 2048, 2048
          %7958 = vsyncadd %s7948, %s7957
          %s7959 = smul.addr %s7955, 2
          %s7960 = smul.addr %s7959, 128
          %s7961 = scalar_lea.hbm %s10, %s7960
          %s7962 = sshll.u32 %s7951, 4
          %s7963 = int_to_ptr.vmem [resolvable:$true] %s7962
          %7968 = dma.vmem_to_hbm [thread:$0]  %s7963, 2048, %s7961, %s7948, 256, 256, 16
        $region104: #{tpu_custom_call.1} parent=59 // pred_fallthru
          _
        // Predicated region
        $region105: #{tpu_custom_call.1} parent=59 // pred_check
          %p7969 = pneg %p289
        $region106: #{tpu_custom_call.1} parent=59 // pred_check_branch
          %7971 = sbr.rel (%p7969) target = $region108
        $region107: #{tpu_custom_call.1} parent=59 // pred_region
          %s7973 = ssub.s32 512, 512
          %7974 = vsyncadd [#allocation22], %s7973
          %s7975 = sshll.u32 [#allocation21], 4
          %s7976 = int_to_ptr.vmem [resolvable:$true] %s7975
          %7981 = dma.vmem_to_hbm [thread:$0]  %s7976, 512, %s11, [#allocation22], 128, 128, 8
        $region108: #{tpu_custom_call.1} parent=59 // pred_fallthru
          _
        // Predicated region
        $region109: #{tpu_custom_call.1} parent=59 // pred_check
          %p7982 = pneg %p310
        $region110: #{tpu_custom_call.1} parent=59 // pred_check_branch
          %7984 = sbr.rel (%p7982) target = $region112
        $region111: #{tpu_custom_call.1} parent=59 // pred_region
          %s7986 = ssub.s32 512, 512
          %7987 = vsyncadd [#allocation22], %s7986
          %s7988 = sshll.u32 [#allocation23], 4
          %s7989 = int_to_ptr.vmem [resolvable:$true] %s7988
          %7994 = dma.vmem_to_hbm [thread:$0]  %s7989, 512, %s12, [#allocation22], 128, 128, 8
        $region112: #{tpu_custom_call.1} parent=59 // pred_fallthru
          _
        // Predicated region
        $region113: #{tpu_custom_call.1} parent=59 // pred_check
          %p7995 = pneg %p289
        $region114: #{tpu_custom_call.1} parent=59 // pred_check_branch
          %7997 = sbr.rel (%p7995) target = $region116
        $region115: #{tpu_custom_call.1} parent=59 // pred_region
          %7998 = dma.done [#allocation22], 512
        $region116: #{tpu_custom_call.1} parent=59 // pred_fallthru
          _
        // Predicated region
        $region117: #{tpu_custom_call.1} parent=59 // pred_check
          %p7999 = pneg %p310
        $region118: #{tpu_custom_call.1} parent=59 // pred_check_branch
          %8001 = sbr.rel (%p7999) target = $region120
        $region119: #{tpu_custom_call.1} parent=59 // pred_region
          %8002 = dma.done [#allocation22], 512
        $region120: #{tpu_custom_call.1} parent=59 // pred_fallthru
          _
      $region60: #{tpu_custom_call.1} parent=5 // pred_fallthru
        _
      %p8003 = scmp.le.s32.totalorder 2, %s30
      // Predicated region
      $region121: #{tpu_custom_call.1} parent=5 // pred_check
        %p8004 = pneg %p8003
      $region122: #{tpu_custom_call.1} parent=5 // pred_check_branch
        %8006 = sbr.rel (%p8004) target = $region124
      $region123: #{tpu_custom_call.1} parent=5 // pred_region
        %s8007 = ssub.s32 %s30, 2
        // Predicated region
        $region125: #{tpu_custom_call.1} parent=123 // pred_check
          %p8008 = pneg %p274
        $region126: #{tpu_custom_call.1} parent=123 // pred_check_branch
          %8010 = sbr.rel (%p8008) target = $region128
        $region127: #{tpu_custom_call.1} parent=123 // pred_region
          %s8011 = sand.u32 %s259, 1
          %s8012 = scalar_lea.sflag [#allocation8], %s8011
          %s8013 = sand.u32 %s259, 1
          %s8014 = smul.addr %s8013, 128
          %s8015 = scalar_lea.vmem [#allocation20], %s8014
          %8016 = dma.done %s8012, 2048
        $region128: #{tpu_custom_call.1} parent=123 // pred_fallthru
          _
      $region124: #{tpu_custom_call.1} parent=5 // pred_fallthru
        _
    $region6: #{tpu_custom_call.1} parent=1 // loop_footer
      %s34 = sadd.s32 1, %s30
    $region7: #{tpu_custom_call.1} parent=1 // loop_footer_branch
      %29 = sbr.rel target = $region3
    $region8: #{tpu_custom_call.1} parent=1 // loop_exit
      _
    %8017 = vsyncpa [#allocation7], 1
    %s8018 = scalar_lea.sflag [#allocation7], 1
    %8019 = vsyncpa %s8018, 1
    %8020 = vsyncpa [#allocation10], 1
    %8021 = vsyncpa [#allocation13], 1
    %8022 = vsyncpa [#allocation16], 1
    %8023 = vsyncpa [#allocation19], 1
    %8024 = vsyncpa [#allocation8], 1
    %s8025 = scalar_lea.sflag [#allocation8], 1
    %8026 = vsyncpa %s8025, 1
    %8027 = vsyncpa [#allocation22], 1

</llo_original>
